<compile_context>
chip_gen: v7x
topology: tpu7x:2x2x1
jax: 0.10.0
libtpu: 0.0.40
codegen_flags: <defaults>
</compile_context>

<pallas_src>
import jax
import jax.numpy as jnp
from jax import lax
from jax.experimental import pallas as pl
from jax.experimental.pallas import tpu as pltpu

_EPS = 1e-5


def _full_spec(shape):
    zeros = (0,) * len(shape)
    return pl.BlockSpec(shape, lambda *_: zeros)


def _stage1_patches(x_nhwc, kh, pk, m_pad):
    """Pool-tap-major im2col for stage 1 (Cin=3, K=27), padded so per-tap row
    blocks are sublane-tile aligned and pre-flattened so the kernel runs one
    tall GEMM with no in-kernel reshape."""
    nb, h, w, c = x_nhwc.shape
    hc = ((h - kh + 1) // pk) * pk
    wc = ((w - kh + 1) // pk) * pk
    hp, wp = hc // pk, wc // pk
    taps = [lax.slice(x_nhwc, (0, a, b, 0), (nb, a + hc, b + wc, c))
            for a in range(kh) for b in range(kh)]
    k = kh * kh * c
    pat = jnp.concatenate(taps, axis=-1)                 # (N, hc, wc, K)
    pat = pat.reshape(nb, hp, pk, wp, pk, k)
    pat = jnp.transpose(pat, (2, 4, 0, 1, 3, 5))         # (pk, pk, N, hp, wp, K)
    pat = pat.reshape(pk * pk, nb * hp * wp, k)
    pat = jnp.pad(pat, ((0, 0), (0, m_pad - nb * hp * wp), (0, 0)))
    return pat.reshape(pk * pk * m_pad, k)               # (9*m_pad, K) bf16


def onet_forward(pp, x_nchw):
    n, in_ch, img, img_w = x_nchw.shape
    assert img == img_w

    # --- static geometry (mirrors the torch module: valid conv, floor pool) ---
    kh1, pk1 = 3, 3
    kh2, pk2 = 3, 2
    kh3, pk3 = 2, 3
    c1, c2, c3 = 32, 64, 128
    h1 = (img - kh1 + 1) // pk1          # 15 : stage-1 pooled grid
    h2 = (h1 - kh2 + 1) // pk2           # 6  : stage-2 pooled grid
    h3 = (h2 - kh3 + 1) // pk3           # 1  : stage-3 pooled grid
    assert h3 == 1, "fused FC path assumes a 1x1 final spatial extent"

    m1 = n * h1 * h1                     # 450 pooled rows, stage 1
    m1p = -(-m1 // 16) * 16              # 464: per-tap blocks stay tile aligned
    m2 = n * h2 * h2                     # 72
    n_pool1 = pk1 * pk1                  # 9

    def _lens(hs, pk, hp):
        # flat-row extents for one shift-GEMM conv + fused max-pool stage
        anchor_max = (n - 1) * hs * hs + pk * (hp - 1) * hs + pk * (hp - 1)
        pw_len = anchor_max + 1                         # window-max rows
        cf_len = anchor_max + (pk - 1) * (hs + 1) + 1   # conv rows needed
        return cf_len, pw_len

    cf2_len, pw2_len = _lens(h1, pk2, h2)                # 402, 386
    cf3_len, pw3_len = _lens(h2, pk3, h3)                # 51, 37

    # bf16 first, then NCHW->NHWC (halves the bytes moved by the transpose).
    x = jnp.transpose(x_nchw.astype(jnp.bfloat16), (0, 2, 3, 1))
    p1 = _stage1_patches(x, kh1, pk1, m1p)               # (9*m1p, 27) bf16

    def kernel(p1_ref, w1_ref, b1_ref, g1_ref, be1_ref,
               w2_ref, b2_ref, g2_ref, be2_ref,
               w3_ref, b3_ref, g3_ref, be3_ref,
               fw1_ref, fb1_ref, fw2_ref, fb2_ref,
               out_ref,
               a1_ref, cf2_ref, pw2_ref, pl2_ref, a2_ref,
               cf3_ref, pw3_ref, pl3_ref):

        def bn_relu(pooled, b_ref, g_ref, be_ref):
            # Conv bias (commutes with max-pool) + train-mode BatchNorm over
            # the N*Hp*Wp pooled rows (biased variance) + ReLU, all in f32.
            z = pooled + b_ref[...]
            mean = jnp.mean(z, axis=0, keepdims=True)
            var = jnp.mean((z - mean) ** 2, axis=0, keepdims=True)
            z = (z - mean) * lax.rsqrt(var + _EPS)
            return jnp.maximum(z * g_ref[...] + be_ref[...], 0.0)

        # ---------- stage 1: one tall GEMM + aligned pool-tap max -----------
        conv1 = jnp.dot(p1_ref[...], w1_ref[...],
                        preferred_element_type=jnp.float32)      # (9*m1p, 32)
        pooled1 = conv1[0:m1p, :]
        for t in range(1, n_pool1):
            pooled1 = jnp.maximum(pooled1, conv1[t * m1p:(t + 1) * m1p, :])
        pooled1 = pooled1[0:m1, :]                               # drop pad rows
        a1_ref[...] = bn_relu(pooled1, b1_ref, g1_ref, be1_ref
                              ).astype(a1_ref.dtype)

        # ------ stages 2-3: VMEM shift-GEMM conv + fused max-pool -----------
        def conv_pool(src_ref, w_ref, cf_ref, pw_ref, pld_ref, kh, pk, hs, hp):
            cf_len = cf_ref.shape[0]
            pw_len = pw_ref.shape[0]
            # conv as kh*kh shifted GEMMs over the flat (N*H*W, Cin) rows
            acc = None
            for a in range(kh):
                for b in range(kh):
                    d = a * hs + b
                    part = jnp.dot(src_ref[d:d + cf_len, :], w_ref[a * kh + b],
                                   preferred_element_type=jnp.float32)
                    acc = part if acc is None else acc + part
            cf_ref[...] = acc
            # max over the pk*pk pooling footprint (shifted row slices)
            pwin = None
            for u in range(pk):
                for v in range(pk):
                    d = u * hs + v
                    s = cf_ref[d:d + pw_len, :]
                    pwin = s if pwin is None else jnp.maximum(pwin, s)
            pw_ref[...] = pwin
            # subsample the window max at the pool anchors (strided rows)
            for ni in range(n):
                for i in range(hp):
                    start = ni * hs * hs + pk * i * hs
                    seg = pw_ref[pl.ds(start, hp, stride=pk), :]
                    r0 = (ni * hp + i) * hp
                    pld_ref[r0:r0 + hp, :] = seg
            return pld_ref[...]

        p2 = conv_pool(a1_ref, w2_ref, cf2_ref, pw2_ref, pl2_ref,
                       kh2, pk2, h1, h2)
        a2_ref[...] = bn_relu(p2, b2_ref, g2_ref, be2_ref).astype(a2_ref.dtype)

        p3 = conv_pool(a2_ref, w3_ref, cf3_ref, pw3_ref, pl3_ref,
                       kh3, pk3, h2, h3)
        feat = bn_relu(p3, b3_ref, g3_ref, be3_ref)              # (N, 128) f32

        # ---------- fused fc1 -> ReLU -> fc2 (hidden stays in VMEM) ---------
        hid = jnp.dot(feat.astype(fw1_ref.dtype), fw1_ref[...],
                      preferred_element_type=jnp.float32) + fb1_ref[...]
        hid = jnp.maximum(hid, 0.0)
        out_ref[...] = jnp.dot(hid.astype(fw2_ref.dtype), fw2_ref[...],
                               preferred_element_type=jnp.float32) + fb2_ref[...]

    args = (p1,
            pp["conv1_w"], pp["conv1_b"], pp["bn1_g"], pp["bn1_b"],
            pp["conv2_w"], pp["conv2_b"], pp["bn2_g"], pp["bn2_b"],
            pp["conv3_w"], pp["conv3_b"], pp["bn3_g"], pp["bn3_b"],
            pp["fc1_w"], pp["fc1_b"], pp["fc2_w"], pp["fc2_b"])
    n_out = pp["fc2_w"].shape[1]

    return pl.pallas_call(
        kernel,
        out_shape=jax.ShapeDtypeStruct((n, n_out), jnp.float32),
        grid=(1,),
        in_specs=[_full_spec(a.shape) for a in args],
        out_specs=_full_spec((n, n_out)),
        scratch_shapes=[
            pltpu.VMEM((m1, c1), jnp.bfloat16),        # stage-1 activation
            pltpu.VMEM((cf2_len, c2), jnp.float32),    # stage-2 conv rows
            pltpu.VMEM((pw2_len, c2), jnp.float32),    # stage-2 window max
            pltpu.VMEM((m2, c2), jnp.float32),         # stage-2 pooled rows
            pltpu.VMEM((m2, c2), jnp.bfloat16),        # stage-2 activation
            pltpu.VMEM((cf3_len, c3), jnp.float32),    # stage-3 conv rows
            pltpu.VMEM((pw3_len, c3), jnp.float32),    # stage-3 window max
            pltpu.VMEM((n, c3), jnp.float32),          # stage-3 pooled rows
        ],
    )(*args)


# ------------------------------ param packing ------------------------------ #

def pack_params(p):
    """One-time repack of torch-layout params into GEMM-ready kernel layouts.

    NOTE: fc1_w / fc2_w are taken as (in_features, out_features) as produced by
    init_params; a real torch nn.Linear checkpoint is (out, in) -> transpose.
    """
    def conv_flat(w):                 # stage 1: (Co,Ci,kh,kw) -> (kh*kw*Ci, Co)
        co, ci, kh, kw = w.shape
        return (jnp.transpose(w, (2, 3, 1, 0))
                .reshape(kh * kw * ci, co).astype(jnp.bfloat16))

    def conv_taps(w):                 # stages 2-3: -> (kh*kw, Ci, Co) slabs
        co, ci, kh, kw = w.shape
        return (jnp.transpose(w, (2, 3, 1, 0))
                .reshape(kh * kw, ci, co).astype(jnp.bfloat16))

    def vec(v):
        return v.reshape(1, -1).astype(jnp.float32)

    return {
        "conv1_w": conv_flat(p["conv1_w"]), "conv1_b": vec(p["conv1_b"]),
        "bn1_g": vec(p["bn1_g"]), "bn1_b": vec(p["bn1_b"]),
        "conv2_w": conv_taps(p["conv2_w"]), "conv2_b": vec(p["conv2_b"]),
        "bn2_g": vec(p["bn2_g"]), "bn2_b": vec(p["bn2_b"]),
        "conv3_w": conv_taps(p["conv3_w"]), "conv3_b": vec(p["conv3_b"]),
        "bn3_g": vec(p["bn3_g"]), "bn3_b": vec(p["bn3_b"]),
        "fc1_w": p["fc1_w"].astype(jnp.bfloat16), "fc1_b": vec(p["fc1_b"]),
        "fc2_w": p["fc2_w"].astype(jnp.bfloat16), "fc2_b": vec(p["fc2_b"]),
    }


# ------------------------------ parameter init ------------------------------ #

def init_params(key, in_ch=3, img_size=48):
    # Derive fc input size exactly as the torch module's dummy forward does.
    h = img_size - 2   # conv 3x3
    h = h // 3         # maxpool 3
    h = h - 2          # conv 3x3
    h = h // 2         # maxpool 2
    h = h - 1          # conv 2x2
    h = h // 3         # maxpool 3
    fc_size = 128 * h * h

    keys = jax.random.split(key, 16)
    it = iter(keys)

    def nrm(shape, scale=0.1):
        return scale * jax.random.normal(next(it), shape, jnp.float32)

    return {
        "conv1_w": nrm((32, in_ch, 3, 3)), "conv1_b": nrm((32,)),
        "bn1_g": 1.0 + nrm((32,)), "bn1_b": nrm((32,)),
        "conv2_w": nrm((64, 32, 3, 3)), "conv2_b": nrm((64,)),
        "bn2_g": 1.0 + nrm((64,)), "bn2_b": nrm((64,)),
        "conv3_w": nrm((128, 64, 2, 2)), "conv3_b": nrm((128,)),
        "bn3_g": 1.0 + nrm((128,)), "bn3_b": nrm((128,)),
        "fc1_w": nrm((fc_size, 256)), "fc1_b": nrm((256,)),
        "fc2_w": nrm((256, 136)), "fc2_b": nrm((136,)),
    }


# ----------------------------------- main ----------------------------------- #

if __name__ == "__main__":
    key = jax.random.PRNGKey(0)
    pkey, xkey = jax.random.split(key)

    in_ch, img_size, batch = 3, 48, 2
    params = pack_params(init_params(pkey, in_ch=in_ch, img_size=img_size))
    x = jax.random.normal(xkey, (batch, in_ch, img_size, img_size), jnp.float32)

    fwd = jax.jit(onet_forward)
    out = jax.block_until_ready(fwd(params, x))
    assert out.shape == (batch, 136), out.shape
    assert bool(jnp.all(jnp.isfinite(out)))
    print("KERNEL_OK")
</pallas_src>

<mosaic_0001>
module attributes {stable_mosaic.version = 11 : i64} {
  func.func @kernel(%arg0: i32, %arg1: memref<4176x27xbf16, #tpu.memory_space<vmem>>, %arg2: memref<27x32xbf16, #tpu.memory_space<vmem>>, %arg3: memref<1x32xf32, #tpu.memory_space<vmem>>, %arg4: memref<1x32xf32, #tpu.memory_space<vmem>>, %arg5: memref<1x32xf32, #tpu.memory_space<vmem>>, %arg6: memref<9x32x64xbf16, #tpu.memory_space<vmem>>, %arg7: memref<1x64xf32, #tpu.memory_space<vmem>>, %arg8: memref<1x64xf32, #tpu.memory_space<vmem>>, %arg9: memref<1x64xf32, #tpu.memory_space<vmem>>, %arg10: memref<4x64x128xbf16, #tpu.memory_space<vmem>>, %arg11: memref<1x128xf32, #tpu.memory_space<vmem>>, %arg12: memref<1x128xf32, #tpu.memory_space<vmem>>, %arg13: memref<1x128xf32, #tpu.memory_space<vmem>>, %arg14: memref<128x256xbf16, #tpu.memory_space<vmem>>, %arg15: memref<1x256xf32, #tpu.memory_space<vmem>>, %arg16: memref<256x136xbf16, #tpu.memory_space<vmem>>, %arg17: memref<1x136xf32, #tpu.memory_space<vmem>>, %arg18: memref<2x136xf32, #tpu.memory_space<vmem>>, %arg19: memref<450x32xbf16, #tpu.memory_space<vmem>>, %arg20: memref<402x64xf32, #tpu.memory_space<vmem>>, %arg21: memref<386x64xf32, #tpu.memory_space<vmem>>, %arg22: memref<72x64xf32, #tpu.memory_space<vmem>>, %arg23: memref<72x64xbf16, #tpu.memory_space<vmem>>, %arg24: memref<51x128xf32, #tpu.memory_space<vmem>>, %arg25: memref<37x128xf32, #tpu.memory_space<vmem>>, %arg26: memref<2x128xf32, #tpu.memory_space<vmem>>) attributes {dimension_semantics = [#tpu.dimension_semantics<arbitrary>], iteration_bounds = array<i64: 1>, scalar_prefetch = 0 : i64, scratch_operands = 8 : i64, tpu.core_type = #tpu.core_type<tc>, window_params = [{pipeline_mode = #tpu.pipeline_mode<synchronous>, transform_indices = @transform_0, window_bounds = array<i64: 4176, 27>}, {pipeline_mode = #tpu.pipeline_mode<synchronous>, transform_indices = @transform_1, window_bounds = array<i64: 27, 32>}, {pipeline_mode = #tpu.pipeline_mode<synchronous>, transform_indices = @transform_2, window_bounds = array<i64: 1, 32>}, {pipeline_mode = #tpu.pipeline_mode<synchronous>, transform_indices = @transform_3, window_bounds = array<i64: 1, 32>}, {pipeline_mode = #tpu.pipeline_mode<synchronous>, transform_indices = @transform_4, window_bounds = array<i64: 1, 32>}, {pipeline_mode = #tpu.pipeline_mode<synchronous>, transform_indices = @transform_5, window_bounds = array<i64: 9, 32, 64>}, {pipeline_mode = #tpu.pipeline_mode<synchronous>, transform_indices = @transform_6, window_bounds = array<i64: 1, 64>}, {pipeline_mode = #tpu.pipeline_mode<synchronous>, transform_indices = @transform_7, window_bounds = array<i64: 1, 64>}, {pipeline_mode = #tpu.pipeline_mode<synchronous>, transform_indices = @transform_8, window_bounds = array<i64: 1, 64>}, {pipeline_mode = #tpu.pipeline_mode<synchronous>, transform_indices = @transform_9, window_bounds = array<i64: 4, 64, 128>}, {pipeline_mode = #tpu.pipeline_mode<synchronous>, transform_indices = @transform_10, window_bounds = array<i64: 1, 128>}, {pipeline_mode = #tpu.pipeline_mode<synchronous>, transform_indices = @transform_11, window_bounds = array<i64: 1, 128>}, {pipeline_mode = #tpu.pipeline_mode<synchronous>, transform_indices = @transform_12, window_bounds = array<i64: 1, 128>}, {pipeline_mode = #tpu.pipeline_mode<synchronous>, transform_indices = @transform_13, window_bounds = array<i64: 128, 256>}, {pipeline_mode = #tpu.pipeline_mode<synchronous>, transform_indices = @transform_14, window_bounds = array<i64: 1, 256>}, {pipeline_mode = #tpu.pipeline_mode<synchronous>, transform_indices = @transform_15, window_bounds = array<i64: 256, 136>}, {pipeline_mode = #tpu.pipeline_mode<synchronous>, transform_indices = @transform_16, window_bounds = array<i64: 1, 136>}, {pipeline_mode = #tpu.pipeline_mode<synchronous>, transform_indices = @transform_17, window_bounds = array<i64: 2, 136>}]} {
    %c0 = arith.constant 0 : index
    %c0_0 = arith.constant 0 : index
    %0 = vector.load %arg1[%c0, %c0_0] : memref<4176x27xbf16, #tpu.memory_space<vmem>>, vector<4176x27xbf16>
    %c0_1 = arith.constant 0 : index
    %c0_2 = arith.constant 0 : index
    %1 = vector.load %arg2[%c0_1, %c0_2] : memref<27x32xbf16, #tpu.memory_space<vmem>>, vector<27x32xbf16>
    %cst = arith.constant dense<0.000000e+00> : vector<4176x32xf32>
    %2 = tpu.matmul %0, %1, %cst {dimension_numbers = #tpu.dot_dimension_numbers<[1], [0], [0], [1], [0, 0, 1, 1], [], []>} : vector<4176x27xbf16>, vector<27x32xbf16>, vector<4176x32xf32> -> vector<4176x32xf32>
    %3 = vector.extract_strided_slice %2 {offsets = [0, 0], sizes = [464, 32], strides = [1, 1]} : vector<4176x32xf32> to vector<464x32xf32>
    %4 = vector.extract_strided_slice %2 {offsets = [464, 0], sizes = [464, 32], strides = [1, 1]} : vector<4176x32xf32> to vector<464x32xf32>
    %5 = arith.maximumf %3, %4 : vector<464x32xf32>
    %6 = vector.extract_strided_slice %2 {offsets = [928, 0], sizes = [464, 32], strides = [1, 1]} : vector<4176x32xf32> to vector<464x32xf32>
    %7 = arith.maximumf %5, %6 : vector<464x32xf32>
    %8 = vector.extract_strided_slice %2 {offsets = [1392, 0], sizes = [464, 32], strides = [1, 1]} : vector<4176x32xf32> to vector<464x32xf32>
    %9 = arith.maximumf %7, %8 : vector<464x32xf32>
    %10 = vector.extract_strided_slice %2 {offsets = [1856, 0], sizes = [464, 32], strides = [1, 1]} : vector<4176x32xf32> to vector<464x32xf32>
    %11 = arith.maximumf %9, %10 : vector<464x32xf32>
    %12 = vector.extract_strided_slice %2 {offsets = [2320, 0], sizes = [464, 32], strides = [1, 1]} : vector<4176x32xf32> to vector<464x32xf32>
    %13 = arith.maximumf %11, %12 : vector<464x32xf32>
    %14 = vector.extract_strided_slice %2 {offsets = [2784, 0], sizes = [464, 32], strides = [1, 1]} : vector<4176x32xf32> to vector<464x32xf32>
    %15 = arith.maximumf %13, %14 : vector<464x32xf32>
    %16 = vector.extract_strided_slice %2 {offsets = [3248, 0], sizes = [464, 32], strides = [1, 1]} : vector<4176x32xf32> to vector<464x32xf32>
    %17 = arith.maximumf %15, %16 : vector<464x32xf32>
    %18 = vector.extract_strided_slice %2 {offsets = [3712, 0], sizes = [464, 32], strides = [1, 1]} : vector<4176x32xf32> to vector<464x32xf32>
    %19 = arith.maximumf %17, %18 : vector<464x32xf32>
    %20 = vector.extract_strided_slice %19 {offsets = [0, 0], sizes = [450, 32], strides = [1, 1]} : vector<464x32xf32> to vector<450x32xf32>
    %c0_3 = arith.constant 0 : index
    %c0_4 = arith.constant 0 : index
    %21 = vector.load %arg3[%c0_3, %c0_4] : memref<1x32xf32, #tpu.memory_space<vmem>>, vector<1x32xf32>
    %22 = vector.broadcast %21 : vector<1x32xf32> to vector<450x32xf32>
    %23 = arith.addf %20, %22 : vector<450x32xf32>
    %cst_5 = arith.constant dense<0.000000e+00> : vector<32xf32>
    %24 = vector.multi_reduction <add>, %23, %cst_5 [0] : vector<450x32xf32> to vector<32xf32>
    %25 = vector.shape_cast %24 : vector<32xf32> to vector<1x32xf32>
    %cst_6 = arith.constant 4.500000e+02 : f32
    %26 = vector.broadcast %cst_6 : f32 to vector<1x32xf32>
    %27 = arith.divf %25, %26 : vector<1x32xf32>
    %28 = vector.broadcast %27 : vector<1x32xf32> to vector<450x32xf32>
    %29 = arith.subf %23, %28 : vector<450x32xf32>
    %30 = arith.mulf %29, %29 : vector<450x32xf32>
    %cst_7 = arith.constant dense<0.000000e+00> : vector<32xf32>
    %31 = vector.multi_reduction <add>, %30, %cst_7 [0] : vector<450x32xf32> to vector<32xf32>
    %32 = vector.shape_cast %31 : vector<32xf32> to vector<1x32xf32>
    %cst_8 = arith.constant 4.500000e+02 : f32
    %33 = vector.broadcast %cst_8 : f32 to vector<1x32xf32>
    %34 = arith.divf %32, %33 : vector<1x32xf32>
    %35 = vector.broadcast %27 : vector<1x32xf32> to vector<450x32xf32>
    %36 = arith.subf %23, %35 : vector<450x32xf32>
    %cst_9 = arith.constant 9.99999974E-6 : f32
    %37 = vector.broadcast %cst_9 : f32 to vector<1x32xf32>
    %38 = arith.addf %34, %37 : vector<1x32xf32>
    %39 = math.rsqrt %38 : vector<1x32xf32>
    %40 = vector.broadcast %39 : vector<1x32xf32> to vector<450x32xf32>
    %41 = arith.mulf %36, %40 : vector<450x32xf32>
    %c0_10 = arith.constant 0 : index
    %c0_11 = arith.constant 0 : index
    %42 = vector.load %arg4[%c0_10, %c0_11] : memref<1x32xf32, #tpu.memory_space<vmem>>, vector<1x32xf32>
    %43 = vector.broadcast %42 : vector<1x32xf32> to vector<450x32xf32>
    %44 = arith.mulf %41, %43 : vector<450x32xf32>
    %c0_12 = arith.constant 0 : index
    %c0_13 = arith.constant 0 : index
    %45 = vector.load %arg5[%c0_12, %c0_13] : memref<1x32xf32, #tpu.memory_space<vmem>>, vector<1x32xf32>
    %46 = vector.broadcast %45 : vector<1x32xf32> to vector<450x32xf32>
    %47 = arith.addf %44, %46 : vector<450x32xf32>
    %cst_14 = arith.constant 0.000000e+00 : f32
    %48 = vector.broadcast %cst_14 : f32 to vector<450x32xf32>
    %49 = arith.maximumf %47, %48 : vector<450x32xf32>
    %50 = arith.truncf %49 : vector<450x32xf32> to vector<450x32xbf16>
    %c0_15 = arith.constant 0 : index
    %c0_16 = arith.constant 0 : index
    %51 = vector.load %arg19[%c0_15, %c0_16] : memref<450x32xbf16, #tpu.memory_space<vmem>>, vector<450x32xbf16>
    tpu.vector_store %arg19[%c0_15, %c0_16], %50 {strides = array<i32>} : memref<450x32xbf16, #tpu.memory_space<vmem>>, vector<450x32xbf16>,
    %c0_17 = arith.constant 0 : index
    %c0_18 = arith.constant 0 : index
    %52 = vector.load %arg19[%c0_17, %c0_18] : memref<450x32xbf16, #tpu.memory_space<vmem>>, vector<402x32xbf16>
    %c0_19 = arith.constant 0 : index
    %c0_20 = arith.constant 0 : index
    %c0_21 = arith.constant 0 : index
    %53 = vector.load %arg6[%c0_19, %c0_20, %c0_21] : memref<9x32x64xbf16, #tpu.memory_space<vmem>>, vector<1x32x64xbf16>
    %54 = vector.shape_cast %53 : vector<1x32x64xbf16> to vector<32x64xbf16>
    %cst_22 = arith.constant dense<0.000000e+00> : vector<402x64xf32>
    %55 = tpu.matmul %52, %54, %cst_22 {dimension_numbers = #tpu.dot_dimension_numbers<[1], [0], [0], [1], [0, 0, 1, 1], [], []>} : vector<402x32xbf16>, vector<32x64xbf16>, vector<402x64xf32> -> vector<402x64xf32>
    %c1 = arith.constant 1 : index
    %c0_23 = arith.constant 0 : index
    %56 = vector.load %arg19[%c1, %c0_23] : memref<450x32xbf16, #tpu.memory_space<vmem>>, vector<402x32xbf16>
    %c1_24 = arith.constant 1 : index
    %c0_25 = arith.constant 0 : index
    %c0_26 = arith.constant 0 : index
    %57 = vector.load %arg6[%c1_24, %c0_25, %c0_26] : memref<9x32x64xbf16, #tpu.memory_space<vmem>>, vector<1x32x64xbf16>
    %58 = vector.shape_cast %57 : vector<1x32x64xbf16> to vector<32x64xbf16>
    %cst_27 = arith.constant dense<0.000000e+00> : vector<402x64xf32>
    %59 = tpu.matmul %56, %58, %cst_27 {dimension_numbers = #tpu.dot_dimension_numbers<[1], [0], [0], [1], [0, 0, 1, 1], [], []>} : vector<402x32xbf16>, vector<32x64xbf16>, vector<402x64xf32> -> vector<402x64xf32>
    %60 = arith.addf %55, %59 : vector<402x64xf32>
    %c2 = arith.constant 2 : index
    %c0_28 = arith.constant 0 : index
    %61 = vector.load %arg19[%c2, %c0_28] : memref<450x32xbf16, #tpu.memory_space<vmem>>, vector<402x32xbf16>
    %c2_29 = arith.constant 2 : index
    %c0_30 = arith.constant 0 : index
    %c0_31 = arith.constant 0 : index
    %62 = vector.load %arg6[%c2_29, %c0_30, %c0_31] : memref<9x32x64xbf16, #tpu.memory_space<vmem>>, vector<1x32x64xbf16>
    %63 = vector.shape_cast %62 : vector<1x32x64xbf16> to vector<32x64xbf16>
    %cst_32 = arith.constant dense<0.000000e+00> : vector<402x64xf32>
    %64 = tpu.matmul %61, %63, %cst_32 {dimension_numbers = #tpu.dot_dimension_numbers<[1], [0], [0], [1], [0, 0, 1, 1], [], []>} : vector<402x32xbf16>, vector<32x64xbf16>, vector<402x64xf32> -> vector<402x64xf32>
    %65 = arith.addf %60, %64 : vector<402x64xf32>
    %c15 = arith.constant 15 : index
    %c0_33 = arith.constant 0 : index
    %66 = vector.load %arg19[%c15, %c0_33] : memref<450x32xbf16, #tpu.memory_space<vmem>>, vector<402x32xbf16>
    %c3 = arith.constant 3 : index
    %c0_34 = arith.constant 0 : index
    %c0_35 = arith.constant 0 : index
    %67 = vector.load %arg6[%c3, %c0_34, %c0_35] : memref<9x32x64xbf16, #tpu.memory_space<vmem>>, vector<1x32x64xbf16>
    %68 = vector.shape_cast %67 : vector<1x32x64xbf16> to vector<32x64xbf16>
    %cst_36 = arith.constant dense<0.000000e+00> : vector<402x64xf32>
    %69 = tpu.matmul %66, %68, %cst_36 {dimension_numbers = #tpu.dot_dimension_numbers<[1], [0], [0], [1], [0, 0, 1, 1], [], []>} : vector<402x32xbf16>, vector<32x64xbf16>, vector<402x64xf32> -> vector<402x64xf32>
    %70 = arith.addf %65, %69 : vector<402x64xf32>
    %c16 = arith.constant 16 : index
    %c0_37 = arith.constant 0 : index
    %71 = vector.load %arg19[%c16, %c0_37] : memref<450x32xbf16, #tpu.memory_space<vmem>>, vector<402x32xbf16>
    %c4 = arith.constant 4 : index
    %c0_38 = arith.constant 0 : index
    %c0_39 = arith.constant 0 : index
    %72 = vector.load %arg6[%c4, %c0_38, %c0_39] : memref<9x32x64xbf16, #tpu.memory_space<vmem>>, vector<1x32x64xbf16>
    %73 = vector.shape_cast %72 : vector<1x32x64xbf16> to vector<32x64xbf16>
    %cst_40 = arith.constant dense<0.000000e+00> : vector<402x64xf32>
    %74 = tpu.matmul %71, %73, %cst_40 {dimension_numbers = #tpu.dot_dimension_numbers<[1], [0], [0], [1], [0, 0, 1, 1], [], []>} : vector<402x32xbf16>, vector<32x64xbf16>, vector<402x64xf32> -> vector<402x64xf32>
    %75 = arith.addf %70, %74 : vector<402x64xf32>
    %c17 = arith.constant 17 : index
    %c0_41 = arith.constant 0 : index
    %76 = vector.load %arg19[%c17, %c0_41] : memref<450x32xbf16, #tpu.memory_space<vmem>>, vector<402x32xbf16>
    %c5 = arith.constant 5 : index
    %c0_42 = arith.constant 0 : index
    %c0_43 = arith.constant 0 : index
    %77 = vector.load %arg6[%c5, %c0_42, %c0_43] : memref<9x32x64xbf16, #tpu.memory_space<vmem>>, vector<1x32x64xbf16>
    %78 = vector.shape_cast %77 : vector<1x32x64xbf16> to vector<32x64xbf16>
    %cst_44 = arith.constant dense<0.000000e+00> : vector<402x64xf32>
    %79 = tpu.matmul %76, %78, %cst_44 {dimension_numbers = #tpu.dot_dimension_numbers<[1], [0], [0], [1], [0, 0, 1, 1], [], []>} : vector<402x32xbf16>, vector<32x64xbf16>, vector<402x64xf32> -> vector<402x64xf32>
    %80 = arith.addf %75, %79 : vector<402x64xf32>
    %c30 = arith.constant 30 : index
    %c0_45 = arith.constant 0 : index
    %81 = vector.load %arg19[%c30, %c0_45] : memref<450x32xbf16, #tpu.memory_space<vmem>>, vector<402x32xbf16>
    %c6 = arith.constant 6 : index
    %c0_46 = arith.constant 0 : index
    %c0_47 = arith.constant 0 : index
    %82 = vector.load %arg6[%c6, %c0_46, %c0_47] : memref<9x32x64xbf16, #tpu.memory_space<vmem>>, vector<1x32x64xbf16>
    %83 = vector.shape_cast %82 : vector<1x32x64xbf16> to vector<32x64xbf16>
    %cst_48 = arith.constant dense<0.000000e+00> : vector<402x64xf32>
    %84 = tpu.matmul %81, %83, %cst_48 {dimension_numbers = #tpu.dot_dimension_numbers<[1], [0], [0], [1], [0, 0, 1, 1], [], []>} : vector<402x32xbf16>, vector<32x64xbf16>, vector<402x64xf32> -> vector<402x64xf32>
    %85 = arith.addf %80, %84 : vector<402x64xf32>
    %c31 = arith.constant 31 : index
    %c0_49 = arith.constant 0 : index
    %86 = vector.load %arg19[%c31, %c0_49] : memref<450x32xbf16, #tpu.memory_space<vmem>>, vector<402x32xbf16>
    %c7 = arith.constant 7 : index
    %c0_50 = arith.constant 0 : index
    %c0_51 = arith.constant 0 : index
    %87 = vector.load %arg6[%c7, %c0_50, %c0_51] : memref<9x32x64xbf16, #tpu.memory_space<vmem>>, vector<1x32x64xbf16>
    %88 = vector.shape_cast %87 : vector<1x32x64xbf16> to vector<32x64xbf16>
    %cst_52 = arith.constant dense<0.000000e+00> : vector<402x64xf32>
    %89 = tpu.matmul %86, %88, %cst_52 {dimension_numbers = #tpu.dot_dimension_numbers<[1], [0], [0], [1], [0, 0, 1, 1], [], []>} : vector<402x32xbf16>, vector<32x64xbf16>, vector<402x64xf32> -> vector<402x64xf32>
    %90 = arith.addf %85, %89 : vector<402x64xf32>
    %c32 = arith.constant 32 : index
    %c0_53 = arith.constant 0 : index
    %91 = vector.load %arg19[%c32, %c0_53] : memref<450x32xbf16, #tpu.memory_space<vmem>>, vector<402x32xbf16>
    %c8 = arith.constant 8 : index
    %c0_54 = arith.constant 0 : index
    %c0_55 = arith.constant 0 : index
    %92 = vector.load %arg6[%c8, %c0_54, %c0_55] : memref<9x32x64xbf16, #tpu.memory_space<vmem>>, vector<1x32x64xbf16>
    %93 = vector.shape_cast %92 : vector<1x32x64xbf16> to vector<32x64xbf16>
    %cst_56 = arith.constant dense<0.000000e+00> : vector<402x64xf32>
    %94 = tpu.matmul %91, %93, %cst_56 {dimension_numbers = #tpu.dot_dimension_numbers<[1], [0], [0], [1], [0, 0, 1, 1], [], []>} : vector<402x32xbf16>, vector<32x64xbf16>, vector<402x64xf32> -> vector<402x64xf32>
    %95 = arith.addf %90, %94 : vector<402x64xf32>
    %c0_57 = arith.constant 0 : index
    %c0_58 = arith.constant 0 : index
    %96 = vector.load %arg20[%c0_57, %c0_58] : memref<402x64xf32, #tpu.memory_space<vmem>>, vector<402x64xf32>
    tpu.vector_store %arg20[%c0_57, %c0_58], %95 {strides = array<i32>} : memref<402x64xf32, #tpu.memory_space<vmem>>, vector<402x64xf32>,
    %c0_59 = arith.constant 0 : index
    %c0_60 = arith.constant 0 : index
    %97 = vector.load %arg20[%c0_59, %c0_60] : memref<402x64xf32, #tpu.memory_space<vmem>>, vector<386x64xf32>
    %c1_61 = arith.constant 1 : index
    %c0_62 = arith.constant 0 : index
    %98 = vector.load %arg20[%c1_61, %c0_62] : memref<402x64xf32, #tpu.memory_space<vmem>>, vector<386x64xf32>
    %99 = arith.maximumf %97, %98 : vector<386x64xf32>
    %c15_63 = arith.constant 15 : index
    %c0_64 = arith.constant 0 : index
    %100 = vector.load %arg20[%c15_63, %c0_64] : memref<402x64xf32, #tpu.memory_space<vmem>>, vector<386x64xf32>
    %101 = arith.maximumf %99, %100 : vector<386x64xf32>
    %c16_65 = arith.constant 16 : index
    %c0_66 = arith.constant 0 : index
    %102 = vector.load %arg20[%c16_65, %c0_66] : memref<402x64xf32, #tpu.memory_space<vmem>>, vector<386x64xf32>
    %103 = arith.maximumf %101, %102 : vector<386x64xf32>
    %c0_67 = arith.constant 0 : index
    %c0_68 = arith.constant 0 : index
    %104 = vector.load %arg21[%c0_67, %c0_68] : memref<386x64xf32, #tpu.memory_space<vmem>>, vector<386x64xf32>
    tpu.vector_store %arg21[%c0_67, %c0_68], %103 {strides = array<i32>} : memref<386x64xf32, #tpu.memory_space<vmem>>, vector<386x64xf32>,
    %c0_69 = arith.constant 0 : index
    %c0_70 = arith.constant 0 : index
    %105 = tpu.strided_load %arg21[%c0_69, %c0_70] {strides = array<i32: 2, 1>} : memref<386x64xf32, #tpu.memory_space<vmem>>, vector<6x64xf32>
    %c0_71 = arith.constant 0 : index
    %c0_72 = arith.constant 0 : index
    %106 = vector.load %arg22[%c0_71, %c0_72] : memref<72x64xf32, #tpu.memory_space<vmem>>, vector<6x64xf32>
    tpu.vector_store %arg22[%c0_71, %c0_72], %105 {strides = array<i32>} : memref<72x64xf32, #tpu.memory_space<vmem>>, vector<6x64xf32>,
    %c30_73 = arith.constant 30 : index
    %c0_74 = arith.constant 0 : index
    %107 = tpu.strided_load %arg21[%c30_73, %c0_74] {strides = array<i32: 2, 1>} : memref<386x64xf32, #tpu.memory_space<vmem>>, vector<6x64xf32>
    %c6_75 = arith.constant 6 : index
    %c0_76 = arith.constant 0 : index
    %108 = vector.load %arg22[%c6_75, %c0_76] : memref<72x64xf32, #tpu.memory_space<vmem>>, vector<6x64xf32>
    tpu.vector_store %arg22[%c6_75, %c0_76], %107 {strides = array<i32>} : memref<72x64xf32, #tpu.memory_space<vmem>>, vector<6x64xf32>,
    %c60 = arith.constant 60 : index
    %c0_77 = arith.constant 0 : index
    %109 = tpu.strided_load %arg21[%c60, %c0_77] {strides = array<i32: 2, 1>} : memref<386x64xf32, #tpu.memory_space<vmem>>, vector<6x64xf32>
    %c12 = arith.constant 12 : index
    %c0_78 = arith.constant 0 : index
    %110 = vector.load %arg22[%c12, %c0_78] : memref<72x64xf32, #tpu.memory_space<vmem>>, vector<6x64xf32>
    tpu.vector_store %arg22[%c12, %c0_78], %109 {strides = array<i32>} : memref<72x64xf32, #tpu.memory_space<vmem>>, vector<6x64xf32>,
    %c90 = arith.constant 90 : index
    %c0_79 = arith.constant 0 : index
    %111 = tpu.strided_load %arg21[%c90, %c0_79] {strides = array<i32: 2, 1>} : memref<386x64xf32, #tpu.memory_space<vmem>>, vector<6x64xf32>
    %c18 = arith.constant 18 : index
    %c0_80 = arith.constant 0 : index
    %112 = vector.load %arg22[%c18, %c0_80] : memref<72x64xf32, #tpu.memory_space<vmem>>, vector<6x64xf32>
    tpu.vector_store %arg22[%c18, %c0_80], %111 {strides = array<i32>} : memref<72x64xf32, #tpu.memory_space<vmem>>, vector<6x64xf32>,
    %c120 = arith.constant 120 : index
    %c0_81 = arith.constant 0 : index
    %113 = tpu.strided_load %arg21[%c120, %c0_81] {strides = array<i32: 2, 1>} : memref<386x64xf32, #tpu.memory_space<vmem>>, vector<6x64xf32>
    %c24 = arith.constant 24 : index
    %c0_82 = arith.constant 0 : index
    %114 = vector.load %arg22[%c24, %c0_82] : memref<72x64xf32, #tpu.memory_space<vmem>>, vector<6x64xf32>
    tpu.vector_store %arg22[%c24, %c0_82], %113 {strides = array<i32>} : memref<72x64xf32, #tpu.memory_space<vmem>>, vector<6x64xf32>,
    %c150 = arith.constant 150 : index
    %c0_83 = arith.constant 0 : index
    %115 = tpu.strided_load %arg21[%c150, %c0_83] {strides = array<i32: 2, 1>} : memref<386x64xf32, #tpu.memory_space<vmem>>, vector<6x64xf32>
    %c30_84 = arith.constant 30 : index
    %c0_85 = arith.constant 0 : index
    %116 = vector.load %arg22[%c30_84, %c0_85] : memref<72x64xf32, #tpu.memory_space<vmem>>, vector<6x64xf32>
    tpu.vector_store %arg22[%c30_84, %c0_85], %115 {strides = array<i32>} : memref<72x64xf32, #tpu.memory_space<vmem>>, vector<6x64xf32>,
    %c225 = arith.constant 225 : index
    %c0_86 = arith.constant 0 : index
    %117 = tpu.strided_load %arg21[%c225, %c0_86] {strides = array<i32: 2, 1>} : memref<386x64xf32, #tpu.memory_space<vmem>>, vector<6x64xf32>
    %c36 = arith.constant 36 : index
    %c0_87 = arith.constant 0 : index
    %118 = vector.load %arg22[%c36, %c0_87] : memref<72x64xf32, #tpu.memory_space<vmem>>, vector<6x64xf32>
    tpu.vector_store %arg22[%c36, %c0_87], %117 {strides = array<i32>} : memref<72x64xf32, #tpu.memory_space<vmem>>, vector<6x64xf32>,
    %c255 = arith.constant 255 : index
    %c0_88 = arith.constant 0 : index
    %119 = tpu.strided_load %arg21[%c255, %c0_88] {strides = array<i32: 2, 1>} : memref<386x64xf32, #tpu.memory_space<vmem>>, vector<6x64xf32>
    %c42 = arith.constant 42 : index
    %c0_89 = arith.constant 0 : index
    %120 = vector.load %arg22[%c42, %c0_89] : memref<72x64xf32, #tpu.memory_space<vmem>>, vector<6x64xf32>
    tpu.vector_store %arg22[%c42, %c0_89], %119 {strides = array<i32>} : memref<72x64xf32, #tpu.memory_space<vmem>>, vector<6x64xf32>,
    %c285 = arith.constant 285 : index
    %c0_90 = arith.constant 0 : index
    %121 = tpu.strided_load %arg21[%c285, %c0_90] {strides = array<i32: 2, 1>} : memref<386x64xf32, #tpu.memory_space<vmem>>, vector<6x64xf32>
    %c48 = arith.constant 48 : index
    %c0_91 = arith.constant 0 : index
    %122 = vector.load %arg22[%c48, %c0_91] : memref<72x64xf32, #tpu.memory_space<vmem>>, vector<6x64xf32>
    tpu.vector_store %arg22[%c48, %c0_91], %121 {strides = array<i32>} : memref<72x64xf32, #tpu.memory_space<vmem>>, vector<6x64xf32>,
    %c315 = arith.constant 315 : index
    %c0_92 = arith.constant 0 : index
    %123 = tpu.strided_load %arg21[%c315, %c0_92] {strides = array<i32: 2, 1>} : memref<386x64xf32, #tpu.memory_space<vmem>>, vector<6x64xf32>
    %c54 = arith.constant 54 : index
    %c0_93 = arith.constant 0 : index
    %124 = vector.load %arg22[%c54, %c0_93] : memref<72x64xf32, #tpu.memory_space<vmem>>, vector<6x64xf32>
    tpu.vector_store %arg22[%c54, %c0_93], %123 {strides = array<i32>} : memref<72x64xf32, #tpu.memory_space<vmem>>, vector<6x64xf32>,
    %c345 = arith.constant 345 : index
    %c0_94 = arith.constant 0 : index
    %125 = tpu.strided_load %arg21[%c345, %c0_94] {strides = array<i32: 2, 1>} : memref<386x64xf32, #tpu.memory_space<vmem>>, vector<6x64xf32>
    %c60_95 = arith.constant 60 : index
    %c0_96 = arith.constant 0 : index
    %126 = vector.load %arg22[%c60_95, %c0_96] : memref<72x64xf32, #tpu.memory_space<vmem>>, vector<6x64xf32>
    tpu.vector_store %arg22[%c60_95, %c0_96], %125 {strides = array<i32>} : memref<72x64xf32, #tpu.memory_space<vmem>>, vector<6x64xf32>,
    %c375 = arith.constant 375 : index
    %c0_97 = arith.constant 0 : index
    %127 = tpu.strided_load %arg21[%c375, %c0_97] {strides = array<i32: 2, 1>} : memref<386x64xf32, #tpu.memory_space<vmem>>, vector<6x64xf32>
    %c66 = arith.constant 66 : index
    %c0_98 = arith.constant 0 : index
    %128 = vector.load %arg22[%c66, %c0_98] : memref<72x64xf32, #tpu.memory_space<vmem>>, vector<6x64xf32>
    tpu.vector_store %arg22[%c66, %c0_98], %127 {strides = array<i32>} : memref<72x64xf32, #tpu.memory_space<vmem>>, vector<6x64xf32>,
    %c0_99 = arith.constant 0 : index
    %c0_100 = arith.constant 0 : index
    %129 = vector.load %arg22[%c0_99, %c0_100] : memref<72x64xf32, #tpu.memory_space<vmem>>, vector<72x64xf32>
    %c0_101 = arith.constant 0 : index
    %c0_102 = arith.constant 0 : index
    %130 = vector.load %arg7[%c0_101, %c0_102] : memref<1x64xf32, #tpu.memory_space<vmem>>, vector<1x64xf32>
    %131 = vector.broadcast %130 : vector<1x64xf32> to vector<72x64xf32>
    %132 = arith.addf %129, %131 : vector<72x64xf32>
    %cst_103 = arith.constant dense<0.000000e+00> : vector<64xf32>
    %133 = vector.multi_reduction <add>, %132, %cst_103 [0] : vector<72x64xf32> to vector<64xf32>
    %134 = vector.shape_cast %133 : vector<64xf32> to vector<1x64xf32>
    %cst_104 = arith.constant 7.200000e+01 : f32
    %135 = vector.broadcast %cst_104 : f32 to vector<1x64xf32>
    %136 = arith.divf %134, %135 : vector<1x64xf32>
    %137 = vector.broadcast %136 : vector<1x64xf32> to vector<72x64xf32>
    %138 = arith.subf %132, %137 : vector<72x64xf32>
    %139 = arith.mulf %138, %138 : vector<72x64xf32>
    %cst_105 = arith.constant dense<0.000000e+00> : vector<64xf32>
    %140 = vector.multi_reduction <add>, %139, %cst_105 [0] : vector<72x64xf32> to vector<64xf32>
    %141 = vector.shape_cast %140 : vector<64xf32> to vector<1x64xf32>
    %cst_106 = arith.constant 7.200000e+01 : f32
    %142 = vector.broadcast %cst_106 : f32 to vector<1x64xf32>
    %143 = arith.divf %141, %142 : vector<1x64xf32>
    %144 = vector.broadcast %136 : vector<1x64xf32> to vector<72x64xf32>
    %145 = arith.subf %132, %144 : vector<72x64xf32>
    %cst_107 = arith.constant 9.99999974E-6 : f32
    %146 = vector.broadcast %cst_107 : f32 to vector<1x64xf32>
    %147 = arith.addf %143, %146 : vector<1x64xf32>
    %148 = math.rsqrt %147 : vector<1x64xf32>
    %149 = vector.broadcast %148 : vector<1x64xf32> to vector<72x64xf32>
    %150 = arith.mulf %145, %149 : vector<72x64xf32>
    %c0_108 = arith.constant 0 : index
    %c0_109 = arith.constant 0 : index
    %151 = vector.load %arg8[%c0_108, %c0_109] : memref<1x64xf32, #tpu.memory_space<vmem>>, vector<1x64xf32>
    %152 = vector.broadcast %151 : vector<1x64xf32> to vector<72x64xf32>
    %153 = arith.mulf %150, %152 : vector<72x64xf32>
    %c0_110 = arith.constant 0 : index
    %c0_111 = arith.constant 0 : index
    %154 = vector.load %arg9[%c0_110, %c0_111] : memref<1x64xf32, #tpu.memory_space<vmem>>, vector<1x64xf32>
    %155 = vector.broadcast %154 : vector<1x64xf32> to vector<72x64xf32>
    %156 = arith.addf %153, %155 : vector<72x64xf32>
    %cst_112 = arith.constant 0.000000e+00 : f32
    %157 = vector.broadcast %cst_112 : f32 to vector<72x64xf32>
    %158 = arith.maximumf %156, %157 : vector<72x64xf32>
    %159 = arith.truncf %158 : vector<72x64xf32> to vector<72x64xbf16>
    %c0_113 = arith.constant 0 : index
    %c0_114 = arith.constant 0 : index
    %160 = vector.load %arg23[%c0_113, %c0_114] : memref<72x64xbf16, #tpu.memory_space<vmem>>, vector<72x64xbf16>
    tpu.vector_store %arg23[%c0_113, %c0_114], %159 {strides = array<i32>} : memref<72x64xbf16, #tpu.memory_space<vmem>>, vector<72x64xbf16>,
    %c0_115 = arith.constant 0 : index
    %c0_116 = arith.constant 0 : index
    %161 = vector.load %arg23[%c0_115, %c0_116] : memref<72x64xbf16, #tpu.memory_space<vmem>>, vector<51x64xbf16>
    %c0_117 = arith.constant 0 : index
    %c0_118 = arith.constant 0 : index
    %c0_119 = arith.constant 0 : index
    %162 = vector.load %arg10[%c0_117, %c0_118, %c0_119] : memref<4x64x128xbf16, #tpu.memory_space<vmem>>, vector<1x64x128xbf16>
    %163 = vector.shape_cast %162 : vector<1x64x128xbf16> to vector<64x128xbf16>
    %cst_120 = arith.constant dense<0.000000e+00> : vector<51x128xf32>
    %164 = tpu.matmul %161, %163, %cst_120 {dimension_numbers = #tpu.dot_dimension_numbers<[1], [0], [0], [1], [0, 0, 1, 1], [], []>} : vector<51x64xbf16>, vector<64x128xbf16>, vector<51x128xf32> -> vector<51x128xf32>
    %c1_121 = arith.constant 1 : index
    %c0_122 = arith.constant 0 : index
    %165 = vector.load %arg23[%c1_121, %c0_122] : memref<72x64xbf16, #tpu.memory_space<vmem>>, vector<51x64xbf16>
    %c1_123 = arith.constant 1 : index
    %c0_124 = arith.constant 0 : index
    %c0_125 = arith.constant 0 : index
    %166 = vector.load %arg10[%c1_123, %c0_124, %c0_125] : memref<4x64x128xbf16, #tpu.memory_space<vmem>>, vector<1x64x128xbf16>
    %167 = vector.shape_cast %166 : vector<1x64x128xbf16> to vector<64x128xbf16>
    %cst_126 = arith.constant dense<0.000000e+00> : vector<51x128xf32>
    %168 = tpu.matmul %165, %167, %cst_126 {dimension_numbers = #tpu.dot_dimension_numbers<[1], [0], [0], [1], [0, 0, 1, 1], [], []>} : vector<51x64xbf16>, vector<64x128xbf16>, vector<51x128xf32> -> vector<51x128xf32>
    %169 = arith.addf %164, %168 : vector<51x128xf32>
    %c6_127 = arith.constant 6 : index
    %c0_128 = arith.constant 0 : index
    %170 = vector.load %arg23[%c6_127, %c0_128] : memref<72x64xbf16, #tpu.memory_space<vmem>>, vector<51x64xbf16>
    %c2_129 = arith.constant 2 : index
    %c0_130 = arith.constant 0 : index
    %c0_131 = arith.constant 0 : index
    %171 = vector.load %arg10[%c2_129, %c0_130, %c0_131] : memref<4x64x128xbf16, #tpu.memory_space<vmem>>, vector<1x64x128xbf16>
    %172 = vector.shape_cast %171 : vector<1x64x128xbf16> to vector<64x128xbf16>
    %cst_132 = arith.constant dense<0.000000e+00> : vector<51x128xf32>
    %173 = tpu.matmul %170, %172, %cst_132 {dimension_numbers = #tpu.dot_dimension_numbers<[1], [0], [0], [1], [0, 0, 1, 1], [], []>} : vector<51x64xbf16>, vector<64x128xbf16>, vector<51x128xf32> -> vector<51x128xf32>
    %174 = arith.addf %169, %173 : vector<51x128xf32>
    %c7_133 = arith.constant 7 : index
    %c0_134 = arith.constant 0 : index
    %175 = vector.load %arg23[%c7_133, %c0_134] : memref<72x64xbf16, #tpu.memory_space<vmem>>, vector<51x64xbf16>
    %c3_135 = arith.constant 3 : index
    %c0_136 = arith.constant 0 : index
    %c0_137 = arith.constant 0 : index
    %176 = vector.load %arg10[%c3_135, %c0_136, %c0_137] : memref<4x64x128xbf16, #tpu.memory_space<vmem>>, vector<1x64x128xbf16>
    %177 = vector.shape_cast %176 : vector<1x64x128xbf16> to vector<64x128xbf16>
    %cst_138 = arith.constant dense<0.000000e+00> : vector<51x128xf32>
    %178 = tpu.matmul %175, %177, %cst_138 {dimension_numbers = #tpu.dot_dimension_numbers<[1], [0], [0], [1], [0, 0, 1, 1], [], []>} : vector<51x64xbf16>, vector<64x128xbf16>, vector<51x128xf32> -> vector<51x128xf32>
    %179 = arith.addf %174, %178 : vector<51x128xf32>
    %c0_139 = arith.constant 0 : index
    %c0_140 = arith.constant 0 : index
    %180 = vector.load %arg24[%c0_139, %c0_140] : memref<51x128xf32, #tpu.memory_space<vmem>>, vector<51x128xf32>
    tpu.vector_store %arg24[%c0_139, %c0_140], %179 {strides = array<i32>} : memref<51x128xf32, #tpu.memory_space<vmem>>, vector<51x128xf32>,
    %c0_141 = arith.constant 0 : index
    %c0_142 = arith.constant 0 : index
    %181 = vector.load %arg24[%c0_141, %c0_142] : memref<51x128xf32, #tpu.memory_space<vmem>>, vector<37x128xf32>
    %c1_143 = arith.constant 1 : index
    %c0_144 = arith.constant 0 : index
    %182 = vector.load %arg24[%c1_143, %c0_144] : memref<51x128xf32, #tpu.memory_space<vmem>>, vector<37x128xf32>
    %183 = arith.maximumf %181, %182 : vector<37x128xf32>
    %c2_145 = arith.constant 2 : index
    %c0_146 = arith.constant 0 : index
    %184 = vector.load %arg24[%c2_145, %c0_146] : memref<51x128xf32, #tpu.memory_space<vmem>>, vector<37x128xf32>
    %185 = arith.maximumf %183, %184 : vector<37x128xf32>
    %c6_147 = arith.constant 6 : index
    %c0_148 = arith.constant 0 : index
    %186 = vector.load %arg24[%c6_147, %c0_148] : memref<51x128xf32, #tpu.memory_space<vmem>>, vector<37x128xf32>
    %187 = arith.maximumf %185, %186 : vector<37x128xf32>
    %c7_149 = arith.constant 7 : index
    %c0_150 = arith.constant 0 : index
    %188 = vector.load %arg24[%c7_149, %c0_150] : memref<51x128xf32, #tpu.memory_space<vmem>>, vector<37x128xf32>
    %189 = arith.maximumf %187, %188 : vector<37x128xf32>
    %c8_151 = arith.constant 8 : index
    %c0_152 = arith.constant 0 : index
    %190 = vector.load %arg24[%c8_151, %c0_152] : memref<51x128xf32, #tpu.memory_space<vmem>>, vector<37x128xf32>
    %191 = arith.maximumf %189, %190 : vector<37x128xf32>
    %c12_153 = arith.constant 12 : index
    %c0_154 = arith.constant 0 : index
    %192 = vector.load %arg24[%c12_153, %c0_154] : memref<51x128xf32, #tpu.memory_space<vmem>>, vector<37x128xf32>
    %193 = arith.maximumf %191, %192 : vector<37x128xf32>
    %c13 = arith.constant 13 : index
    %c0_155 = arith.constant 0 : index
    %194 = vector.load %arg24[%c13, %c0_155] : memref<51x128xf32, #tpu.memory_space<vmem>>, vector<37x128xf32>
    %195 = arith.maximumf %193, %194 : vector<37x128xf32>
    %c14 = arith.constant 14 : index
    %c0_156 = arith.constant 0 : index
    %196 = vector.load %arg24[%c14, %c0_156] : memref<51x128xf32, #tpu.memory_space<vmem>>, vector<37x128xf32>
    %197 = arith.maximumf %195, %196 : vector<37x128xf32>
    %c0_157 = arith.constant 0 : index
    %c0_158 = arith.constant 0 : index
    %198 = vector.load %arg25[%c0_157, %c0_158] : memref<37x128xf32, #tpu.memory_space<vmem>>, vector<37x128xf32>
    tpu.vector_store %arg25[%c0_157, %c0_158], %197 {strides = array<i32>} : memref<37x128xf32, #tpu.memory_space<vmem>>, vector<37x128xf32>,
    %c0_159 = arith.constant 0 : index
    %c0_160 = arith.constant 0 : index
    %199 = tpu.strided_load %arg25[%c0_159, %c0_160] {strides = array<i32: 3, 1>} : memref<37x128xf32, #tpu.memory_space<vmem>>, vector<1x128xf32>
    %c0_161 = arith.constant 0 : index
    %c0_162 = arith.constant 0 : index
    %200 = vector.load %arg26[%c0_161, %c0_162] : memref<2x128xf32, #tpu.memory_space<vmem>>, vector<1x128xf32>
    tpu.vector_store %arg26[%c0_161, %c0_162], %199 {strides = array<i32>} : memref<2x128xf32, #tpu.memory_space<vmem>>, vector<1x128xf32>,
    %c36_163 = arith.constant 36 : index
    %c0_164 = arith.constant 0 : index
    %201 = tpu.strided_load %arg25[%c36_163, %c0_164] {strides = array<i32: 3, 1>} : memref<37x128xf32, #tpu.memory_space<vmem>>, vector<1x128xf32>
    %c1_165 = arith.constant 1 : index
    %c0_166 = arith.constant 0 : index
    %202 = vector.load %arg26[%c1_165, %c0_166] : memref<2x128xf32, #tpu.memory_space<vmem>>, vector<1x128xf32>
    tpu.vector_store %arg26[%c1_165, %c0_166], %201 {strides = array<i32>} : memref<2x128xf32, #tpu.memory_space<vmem>>, vector<1x128xf32>,
    %c0_167 = arith.constant 0 : index
    %c0_168 = arith.constant 0 : index
    %203 = vector.load %arg26[%c0_167, %c0_168] : memref<2x128xf32, #tpu.memory_space<vmem>>, vector<2x128xf32>
    %c0_169 = arith.constant 0 : index
    %c0_170 = arith.constant 0 : index
    %204 = vector.load %arg11[%c0_169, %c0_170] : memref<1x128xf32, #tpu.memory_space<vmem>>, vector<1x128xf32>
    %205 = vector.broadcast %204 : vector<1x128xf32> to vector<2x128xf32>
    %206 = arith.addf %203, %205 : vector<2x128xf32>
    %cst_171 = arith.constant dense<0.000000e+00> : vector<128xf32>
    %207 = vector.multi_reduction <add>, %206, %cst_171 [0] : vector<2x128xf32> to vector<128xf32>
    %208 = vector.shape_cast %207 : vector<128xf32> to vector<1x128xf32>
    %cst_172 = arith.constant 2.000000e+00 : f32
    %209 = vector.broadcast %cst_172 : f32 to vector<1x128xf32>
    %210 = arith.divf %208, %209 : vector<1x128xf32>
    %211 = vector.broadcast %210 : vector<1x128xf32> to vector<2x128xf32>
    %212 = arith.subf %206, %211 : vector<2x128xf32>
    %213 = arith.mulf %212, %212 : vector<2x128xf32>
    %cst_173 = arith.constant dense<0.000000e+00> : vector<128xf32>
    %214 = vector.multi_reduction <add>, %213, %cst_173 [0] : vector<2x128xf32> to vector<128xf32>
    %215 = vector.shape_cast %214 : vector<128xf32> to vector<1x128xf32>
    %cst_174 = arith.constant 2.000000e+00 : f32
    %216 = vector.broadcast %cst_174 : f32 to vector<1x128xf32>
    %217 = arith.divf %215, %216 : vector<1x128xf32>
    %218 = vector.broadcast %210 : vector<1x128xf32> to vector<2x128xf32>
    %219 = arith.subf %206, %218 : vector<2x128xf32>
    %cst_175 = arith.constant 9.99999974E-6 : f32
    %220 = vector.broadcast %cst_175 : f32 to vector<1x128xf32>
    %221 = arith.addf %217, %220 : vector<1x128xf32>
    %222 = math.rsqrt %221 : vector<1x128xf32>
    %223 = vector.broadcast %222 : vector<1x128xf32> to vector<2x128xf32>
    %224 = arith.mulf %219, %223 : vector<2x128xf32>
    %c0_176 = arith.constant 0 : index
    %c0_177 = arith.constant 0 : index
    %225 = vector.load %arg12[%c0_176, %c0_177] : memref<1x128xf32, #tpu.memory_space<vmem>>, vector<1x128xf32>
    %226 = vector.broadcast %225 : vector<1x128xf32> to vector<2x128xf32>
    %227 = arith.mulf %224, %226 : vector<2x128xf32>
    %c0_178 = arith.constant 0 : index
    %c0_179 = arith.constant 0 : index
    %228 = vector.load %arg13[%c0_178, %c0_179] : memref<1x128xf32, #tpu.memory_space<vmem>>, vector<1x128xf32>
    %229 = vector.broadcast %228 : vector<1x128xf32> to vector<2x128xf32>
    %230 = arith.addf %227, %229 : vector<2x128xf32>
    %cst_180 = arith.constant 0.000000e+00 : f32
    %231 = vector.broadcast %cst_180 : f32 to vector<2x128xf32>
    %232 = arith.maximumf %230, %231 : vector<2x128xf32>
    %233 = arith.truncf %232 : vector<2x128xf32> to vector<2x128xbf16>
    %c0_181 = arith.constant 0 : index
    %c0_182 = arith.constant 0 : index
    %234 = vector.load %arg14[%c0_181, %c0_182] : memref<128x256xbf16, #tpu.memory_space<vmem>>, vector<128x256xbf16>
    %cst_183 = arith.constant dense<0.000000e+00> : vector<2x256xf32>
    %235 = tpu.matmul %233, %234, %cst_183 {dimension_numbers = #tpu.dot_dimension_numbers<[1], [0], [0], [1], [0, 0, 1, 1], [], []>} : vector<2x128xbf16>, vector<128x256xbf16>, vector<2x256xf32> -> vector<2x256xf32>
    %c0_184 = arith.constant 0 : index
    %c0_185 = arith.constant 0 : index
    %236 = vector.load %arg15[%c0_184, %c0_185] : memref<1x256xf32, #tpu.memory_space<vmem>>, vector<1x256xf32>
    %237 = vector.broadcast %236 : vector<1x256xf32> to vector<2x256xf32>
    %238 = arith.addf %235, %237 : vector<2x256xf32>
    %cst_186 = arith.constant 0.000000e+00 : f32
    %239 = vector.broadcast %cst_186 : f32 to vector<2x256xf32>
    %240 = arith.maximumf %238, %239 : vector<2x256xf32>
    %241 = arith.truncf %240 : vector<2x256xf32> to vector<2x256xbf16>
    %c0_187 = arith.constant 0 : index
    %c0_188 = arith.constant 0 : index
    %242 = vector.load %arg16[%c0_187, %c0_188] : memref<256x136xbf16, #tpu.memory_space<vmem>>, vector<256x136xbf16>
    %cst_189 = arith.constant dense<0.000000e+00> : vector<2x136xf32>
    %243 = tpu.matmul %241, %242, %cst_189 {dimension_numbers = #tpu.dot_dimension_numbers<[1], [0], [0], [1], [0, 0, 1, 1], [], []>} : vector<2x256xbf16>, vector<256x136xbf16>, vector<2x136xf32> -> vector<2x136xf32>
    %c0_190 = arith.constant 0 : index
    %c0_191 = arith.constant 0 : index
    %244 = vector.load %arg17[%c0_190, %c0_191] : memref<1x136xf32, #tpu.memory_space<vmem>>, vector<1x136xf32>
    %245 = vector.broadcast %244 : vector<1x136xf32> to vector<2x136xf32>
    %246 = arith.addf %243, %245 : vector<2x136xf32>
    %c0_192 = arith.constant 0 : index
    %c0_193 = arith.constant 0 : index
    %247 = vector.load %arg18[%c0_192, %c0_193] : memref<2x136xf32, #tpu.memory_space<vmem>>, vector<2x136xf32>
    tpu.vector_store %arg18[%c0_192, %c0_193], %246 {strides = array<i32>} : memref<2x136xf32, #tpu.memory_space<vmem>>, vector<2x136xf32>,
    return
  }
  func.func @transform_0(%arg0: i32) -> (i32, i32) {
    %c0_i32 = arith.constant 0 : i32
    %c0_i32_0 = arith.constant 0 : i32
    %c0_i32_1 = arith.constant 0 : i32
    return %c0_i32, %c0_i32_0 : i32, i32
  }
  func.func @transform_1(%arg0: i32) -> (i32, i32) {
    %c0_i32 = arith.constant 0 : i32
    %c0_i32_0 = arith.constant 0 : i32
    %c0_i32_1 = arith.constant 0 : i32
    return %c0_i32, %c0_i32_0 : i32, i32
  }
  func.func @transform_2(%arg0: i32) -> (i32, i32) {
    %c0_i32 = arith.constant 0 : i32
    %c0_i32_0 = arith.constant 0 : i32
    %c0_i32_1 = arith.constant 0 : i32
    return %c0_i32, %c0_i32_0 : i32, i32
  }
  func.func @transform_3(%arg0: i32) -> (i32, i32) {
    %c0_i32 = arith.constant 0 : i32
    %c0_i32_0 = arith.constant 0 : i32
    %c0_i32_1 = arith.constant 0 : i32
    return %c0_i32, %c0_i32_0 : i32, i32
  }
  func.func @transform_4(%arg0: i32) -> (i32, i32) {
    %c0_i32 = arith.constant 0 : i32
    %c0_i32_0 = arith.constant 0 : i32
    %c0_i32_1 = arith.constant 0 : i32
    return %c0_i32, %c0_i32_0 : i32, i32
  }
  func.func @transform_5(%arg0: i32) -> (i32, i32, i32) {
    %c0_i32 = arith.constant 0 : i32
    %c0_i32_0 = arith.constant 0 : i32
    %c0_i32_1 = arith.constant 0 : i32
    %c0_i32_2 = arith.constant 0 : i32
    return %c0_i32, %c0_i32_0, %c0_i32_1 : i32, i32, i32
  }
  func.func @transform_6(%arg0: i32) -> (i32, i32) {
    %c0_i32 = arith.constant 0 : i32
    %c0_i32_0 = arith.constant 0 : i32
    %c0_i32_1 = arith.constant 0 : i32
    return %c0_i32, %c0_i32_0 : i32, i32
  }
  func.func @transform_7(%arg0: i32) -> (i32, i32) {
    %c0_i32 = arith.constant 0 : i32
    %c0_i32_0 = arith.constant 0 : i32
    %c0_i32_1 = arith.constant 0 : i32
    return %c0_i32, %c0_i32_0 : i32, i32
  }
  func.func @transform_8(%arg0: i32) -> (i32, i32) {
    %c0_i32 = arith.constant 0 : i32
    %c0_i32_0 = arith.constant 0 : i32
    %c0_i32_1 = arith.constant 0 : i32
    return %c0_i32, %c0_i32_0 : i32, i32
  }
  func.func @transform_9(%arg0: i32) -> (i32, i32, i32) {
    %c0_i32 = arith.constant 0 : i32
    %c0_i32_0 = arith.constant 0 : i32
    %c0_i32_1 = arith.constant 0 : i32
    %c0_i32_2 = arith.constant 0 : i32
    return %c0_i32, %c0_i32_0, %c0_i32_1 : i32, i32, i32
  }
  func.func @transform_10(%arg0: i32) -> (i32, i32) {
    %c0_i32 = arith.constant 0 : i32
    %c0_i32_0 = arith.constant 0 : i32
    %c0_i32_1 = arith.constant 0 : i32
    return %c0_i32, %c0_i32_0 : i32, i32
  }
  func.func @transform_11(%arg0: i32) -> (i32, i32) {
    %c0_i32 = arith.constant 0 : i32
    %c0_i32_0 = arith.constant 0 : i32
    %c0_i32_1 = arith.constant 0 : i32
    return %c0_i32, %c0_i32_0 : i32, i32
  }
  func.func @transform_12(%arg0: i32) -> (i32, i32) {
    %c0_i32 = arith.constant 0 : i32
    %c0_i32_0 = arith.constant 0 : i32
    %c0_i32_1 = arith.constant 0 : i32
    return %c0_i32, %c0_i32_0 : i32, i32
  }
  func.func @transform_13(%arg0: i32) -> (i32, i32) {
    %c0_i32 = arith.constant 0 : i32
    %c0_i32_0 = arith.constant 0 : i32
    %c0_i32_1 = arith.constant 0 : i32
    return %c0_i32, %c0_i32_0 : i32, i32
  }
  func.func @transform_14(%arg0: i32) -> (i32, i32) {
    %c0_i32 = arith.constant 0 : i32
    %c0_i32_0 = arith.constant 0 : i32
    %c0_i32_1 = arith.constant 0 : i32
    return %c0_i32, %c0_i32_0 : i32, i32
  }
  func.func @transform_15(%arg0: i32) -> (i32, i32) {
    %c0_i32 = arith.constant 0 : i32
    %c0_i32_0 = arith.constant 0 : i32
    %c0_i32_1 = arith.constant 0 : i32
    return %c0_i32, %c0_i32_0 : i32, i32
  }
  func.func @transform_16(%arg0: i32) -> (i32, i32) {
    %c0_i32 = arith.constant 0 : i32
    %c0_i32_0 = arith.constant 0 : i32
    %c0_i32_1 = arith.constant 0 : i32
    return %c0_i32, %c0_i32_0 : i32, i32
  }
  func.func @transform_17(%arg0: i32) -> (i32, i32) {
    %c0_i32 = arith.constant 0 : i32
    %c0_i32_0 = arith.constant 0 : i32
    %c0_i32_1 = arith.constant 0 : i32
    return %c0_i32, %c0_i32_0 : i32, i32
  }
}

</mosaic_0001>

<llo_original>
// kernel: onet_forward.1
$region0: #{onet_forward.1}
  #allocation0 [shape = 'u32[]', space=smem, size = 0x4, offset = 0x4, fixed_abs, tag = 'smem constant byte address 0x4 - core index']
  #allocation1 [shape = 'u32[144,128]{1,0:T(1,128)}', space=vmem, size = 0x12000, scoped, tag = 'internal scratch']
  #allocation2 [shape = 'bf16[450,32]{1,0:T(8,128)(2,1)}', space=vmem, size = 0x1c800, scoped, tag = 'scratch operand']
  #allocation3 [shape = 'f32[402,64]{1,0:T(8,128)}', space=vmem, size = 0x33000, scoped, tag = 'scratch operand']
  #allocation4 [shape = 'f32[386,64]{1,0:T(8,128)}', space=vmem, size = 0x31000, scoped, tag = 'scratch operand']
  #allocation5 [shape = 'f32[72,64]{1,0:T(8,128)}', space=vmem, size = 0x9000, scoped, tag = 'scratch operand']
  #allocation6 [shape = 'bf16[72,64]{1,0:T(8,128)(2,1)}', space=vmem, size = 0x4800, scoped, tag = 'scratch operand']
  #allocation7 [shape = 'f32[51,128]{1,0:T(8,128)}', space=vmem, size = 0x7000, scoped, tag = 'scratch operand']
  #allocation8 [shape = 'f32[37,128]{1,0:T(8,128)}', space=vmem, size = 0x5000, scoped, tag = 'scratch operand']
  #allocation9 [shape = 'f32[2,128]{1,0:T(2,128)}', space=vmem, size = 0x400, scoped, tag = 'scratch operand']
  %s0 = inlined_call_operand.vmem [shape: bf16[4176,27], index: 0, kind: input, shape index: {}]
  %s1 = inlined_call_operand.vmem [shape: bf16[27,32], index: 1, kind: input, shape index: {}]
  %s2 = inlined_call_operand.vmem [shape: f32[1,32], index: 2, kind: input, shape index: {}]
  %s3 = inlined_call_operand.vmem [shape: f32[1,32], index: 3, kind: input, shape index: {}]
  %s4 = inlined_call_operand.vmem [shape: f32[1,32], index: 4, kind: input, shape index: {}]
  %s5 = inlined_call_operand.vmem [shape: bf16[9,32,64], index: 5, kind: input, shape index: {}]
  %s6 = inlined_call_operand.vmem [shape: f32[1,64], index: 6, kind: input, shape index: {}]
  %s7 = inlined_call_operand.vmem [shape: f32[1,64], index: 7, kind: input, shape index: {}]
  %s8 = inlined_call_operand.vmem [shape: f32[1,64], index: 8, kind: input, shape index: {}]
  %s9 = inlined_call_operand.vmem [shape: bf16[4,64,128], index: 9, kind: input, shape index: {}]
  %s10 = inlined_call_operand.vmem [shape: f32[1,128], index: 10, kind: input, shape index: {}]
  %s11 = inlined_call_operand.vmem [shape: f32[1,128], index: 11, kind: input, shape index: {}]
  %s12 = inlined_call_operand.vmem [shape: f32[1,128], index: 12, kind: input, shape index: {}]
  %s13 = inlined_call_operand.vmem [shape: bf16[128,256], index: 13, kind: input, shape index: {}]
  %s14 = inlined_call_operand.vmem [shape: f32[1,256], index: 14, kind: input, shape index: {}]
  %s15 = inlined_call_operand.vmem [shape: bf16[256,136], index: 15, kind: input, shape index: {}]
  %s16 = inlined_call_operand.vmem [shape: f32[1,136], index: 16, kind: input, shape index: {}]
  %s17 = inlined_call_operand.hbm [shape: f32[2,136], index: 17, kind: output, shape index: {}]
  %s18 = sld [smem:[#allocation0]]
  $region78: #{onet_forward.1} parent=0
    _
  %s20 = ssub.s32 1, %s18
  %s21 = scalar_select 0, %s20, %s18
  $region1: #{onet_forward.1} parent=0
    #allocation10 [shape = 'u8[2048]{0}', space=vmem, size = 0x800, scoped, tag = 'output window, operand 0, single buffered']
    #allocation11 [shape = 's32[1]{0}', space=sflag, size = 0x4, scoped, tag = 'scoped memory for onet_forward.1']
    %22 = vsyncpa [#allocation11], 0
    // Predicated region
    $region2: #{onet_forward.1} parent=1 // pred_check
      _
    $region3: #{onet_forward.1} parent=1 // pred_check_branch
      %24 = sbr.rel (0) target = $region5
    $region4: #{onet_forward.1} parent=1 // pred_region
      _
    $region5: #{onet_forward.1} parent=1 // pred_fallthru
      _
    // Predicated region
    $region6: #{onet_forward.1} parent=1 // pred_check
      _
    $region7: #{onet_forward.1} parent=1 // pred_check_branch
      %26 = sbr.rel (0) target = $region9
    $region8: #{onet_forward.1} parent=1 // pred_region
      _
    $region9: #{onet_forward.1} parent=1 // pred_fallthru
      _
    // Predicated region
    $region10: #{onet_forward.1} parent=1 // pred_check
      _
    $region11: #{onet_forward.1} parent=1 // pred_check_branch
      %28 = sbr.rel (0) target = $region13
    $region12: #{onet_forward.1} parent=1 // pred_region
      _
    $region13: #{onet_forward.1} parent=1 // pred_fallthru
      _
    // Predicated region
    $region14: #{onet_forward.1} parent=1 // pred_check
      _
    $region15: #{onet_forward.1} parent=1 // pred_check_branch
      %30 = sbr.rel (0) target = $region17
    $region16: #{onet_forward.1} parent=1 // pred_region
      _
    $region17: #{onet_forward.1} parent=1 // pred_fallthru
      _
    // Predicated region
    $region18: #{onet_forward.1} parent=1 // pred_check
      _
    $region19: #{onet_forward.1} parent=1 // pred_check_branch
      %32 = sbr.rel (0) target = $region21
    $region20: #{onet_forward.1} parent=1 // pred_region
      _
    $region21: #{onet_forward.1} parent=1 // pred_fallthru
      _
    // Predicated region
    $region22: #{onet_forward.1} parent=1 // pred_check
      _
    $region23: #{onet_forward.1} parent=1 // pred_check_branch
      %34 = sbr.rel (0) target = $region25
    $region24: #{onet_forward.1} parent=1 // pred_region
      _
    $region25: #{onet_forward.1} parent=1 // pred_fallthru
      _
    // Predicated region
    $region26: #{onet_forward.1} parent=1 // pred_check
      _
    $region27: #{onet_forward.1} parent=1 // pred_check_branch
      %36 = sbr.rel (0) target = $region29
    $region28: #{onet_forward.1} parent=1 // pred_region
      _
    $region29: #{onet_forward.1} parent=1 // pred_fallthru
      _
    // Predicated region
    $region30: #{onet_forward.1} parent=1 // pred_check
      _
    $region31: #{onet_forward.1} parent=1 // pred_check_branch
      %38 = sbr.rel (0) target = $region33
    $region32: #{onet_forward.1} parent=1 // pred_region
      _
    $region33: #{onet_forward.1} parent=1 // pred_fallthru
      _
    // Predicated region
    $region34: #{onet_forward.1} parent=1 // pred_check
      _
    $region35: #{onet_forward.1} parent=1 // pred_check_branch
      %40 = sbr.rel (0) target = $region37
    $region36: #{onet_forward.1} parent=1 // pred_region
      _
    $region37: #{onet_forward.1} parent=1 // pred_fallthru
      _
    // Predicated region
    $region38: #{onet_forward.1} parent=1 // pred_check
      _
    $region39: #{onet_forward.1} parent=1 // pred_check_branch
      %42 = sbr.rel (0) target = $region41
    $region40: #{onet_forward.1} parent=1 // pred_region
      _
    $region41: #{onet_forward.1} parent=1 // pred_fallthru
      _
    // Predicated region
    $region42: #{onet_forward.1} parent=1 // pred_check
      _
    $region43: #{onet_forward.1} parent=1 // pred_check_branch
      %44 = sbr.rel (0) target = $region45
    $region44: #{onet_forward.1} parent=1 // pred_region
      _
    $region45: #{onet_forward.1} parent=1 // pred_fallthru
      _
    // Predicated region
    $region46: #{onet_forward.1} parent=1 // pred_check
      _
    $region47: #{onet_forward.1} parent=1 // pred_check_branch
      %46 = sbr.rel (0) target = $region49
    $region48: #{onet_forward.1} parent=1 // pred_region
      _
    $region49: #{onet_forward.1} parent=1 // pred_fallthru
      _
    // Predicated region
    $region50: #{onet_forward.1} parent=1 // pred_check
      _
    $region51: #{onet_forward.1} parent=1 // pred_check_branch
      %48 = sbr.rel (0) target = $region53
    $region52: #{onet_forward.1} parent=1 // pred_region
      _
    $region53: #{onet_forward.1} parent=1 // pred_fallthru
      _
    // Predicated region
    $region54: #{onet_forward.1} parent=1 // pred_check
      _
    $region55: #{onet_forward.1} parent=1 // pred_check_branch
      %50 = sbr.rel (0) target = $region57
    $region56: #{onet_forward.1} parent=1 // pred_region
      _
    $region57: #{onet_forward.1} parent=1 // pred_fallthru
      _
    // Predicated region
    $region58: #{onet_forward.1} parent=1 // pred_check
      _
    $region59: #{onet_forward.1} parent=1 // pred_check_branch
      %52 = sbr.rel (0) target = $region61
    $region60: #{onet_forward.1} parent=1 // pred_region
      _
    $region61: #{onet_forward.1} parent=1 // pred_fallthru
      _
    // Predicated region
    $region62: #{onet_forward.1} parent=1 // pred_check
      _
    $region63: #{onet_forward.1} parent=1 // pred_check_branch
      %54 = sbr.rel (0) target = $region65
    $region64: #{onet_forward.1} parent=1 // pred_region
      _
    $region65: #{onet_forward.1} parent=1 // pred_fallthru
      _
    // Predicated region
    $region66: #{onet_forward.1} parent=1 // pred_check
      _
    $region67: #{onet_forward.1} parent=1 // pred_check_branch
      %56 = sbr.rel (0) target = $region69
    $region68: #{onet_forward.1} parent=1 // pred_region
      _
    $region69: #{onet_forward.1} parent=1 // pred_fallthru
      _
    %v58 = vld [vmem:[%s0] sm:$0xf]
    %v59 = vld [vmem:[%s0 + $0x4] sm:$0xf]
    %v60 = vld [vmem:[%s0 + $0x8] sm:$0xf]
    %v61 = vld [vmem:[%s0 + $0xc] sm:$0xf]
    %v62 = vld [vmem:[%s0 + $0x10] sm:$0xf]
    %v63 = vld [vmem:[%s0 + $0x14] sm:$0xf]
    %v64 = vld [vmem:[%s0 + $0x18] sm:$0xf]
    %v65 = vld [vmem:[%s0 + $0x1c] sm:$0xf]
    %v66 = vld [vmem:[%s0 + $0x20] sm:$0xf]
    %v67 = vld [vmem:[%s0 + $0x24] sm:$0xf]
    %v68 = vld [vmem:[%s0 + $0x28] sm:$0xf]
    %v69 = vld [vmem:[%s0 + $0x2c] sm:$0xf]
    %v70 = vld [vmem:[%s0 + $0x30] sm:$0xf]
    %v71 = vld [vmem:[%s0 + $0x34] sm:$0xf]
    %v72 = vld [vmem:[%s0 + $0x38] sm:$0xf]
    %v73 = vld [vmem:[%s0 + $0x3c] sm:$0xf]
    %v74 = vld [vmem:[%s0 + $0x40] sm:$0xf]
    %v75 = vld [vmem:[%s0 + $0x44] sm:$0xf]
    %v76 = vld [vmem:[%s0 + $0x48] sm:$0xf]
    %v77 = vld [vmem:[%s0 + $0x4c] sm:$0xf]
    %v78 = vld [vmem:[%s0 + $0x50] sm:$0xf]
    %v79 = vld [vmem:[%s0 + $0x54] sm:$0xf]
    %v80 = vld [vmem:[%s0 + $0x58] sm:$0xf]
    %v81 = vld [vmem:[%s0 + $0x5c] sm:$0xf]
    %v82 = vld [vmem:[%s0 + $0x60] sm:$0xf]
    %v83 = vld [vmem:[%s0 + $0x64] sm:$0xf]
    %v84 = vld [vmem:[%s0 + $0x68] sm:$0xf]
    %v85 = vld [vmem:[%s0 + $0x6c] sm:$0xf]
    %v86 = vld [vmem:[%s0 + $0x70] sm:$0xf]
    %v87 = vld [vmem:[%s0 + $0x74] sm:$0xf]
    %v88 = vld [vmem:[%s0 + $0x78] sm:$0xf]
    %v89 = vld [vmem:[%s0 + $0x7c] sm:$0xf]
    %v90 = vld [vmem:[%s0 + $0x80] sm:$0xf]
    %v91 = vld [vmem:[%s0 + $0x84] sm:$0xf]
    %v92 = vld [vmem:[%s0 + $0x88] sm:$0xf]
    %v93 = vld [vmem:[%s0 + $0x8c] sm:$0xf]
    %v94 = vld [vmem:[%s0 + $0x90] sm:$0xf]
    %v95 = vld [vmem:[%s0 + $0x94] sm:$0xf]
    %v96 = vld [vmem:[%s0 + $0x98] sm:$0xf]
    %v97 = vld [vmem:[%s0 + $0x9c] sm:$0xf]
    %v98 = vld [vmem:[%s0 + $0xa0] sm:$0xf]
    %v99 = vld [vmem:[%s0 + $0xa4] sm:$0xf]
    %v100 = vld [vmem:[%s0 + $0xa8] sm:$0xf]
    %v101 = vld [vmem:[%s0 + $0xac] sm:$0xf]
    %v102 = vld [vmem:[%s0 + $0xb0] sm:$0xf]
    %v103 = vld [vmem:[%s0 + $0xb4] sm:$0xf]
    %v104 = vld [vmem:[%s0 + $0xb8] sm:$0xf]
    %v105 = vld [vmem:[%s0 + $0xbc] sm:$0xf]
    %v106 = vld [vmem:[%s0 + $0xc0] sm:$0xf]
    %v107 = vld [vmem:[%s0 + $0xc4] sm:$0xf]
    %v108 = vld [vmem:[%s0 + $0xc8] sm:$0xf]
    %v109 = vld [vmem:[%s0 + $0xcc] sm:$0xf]
    %v110 = vld [vmem:[%s0 + $0xd0] sm:$0xf]
    %v111 = vld [vmem:[%s0 + $0xd4] sm:$0xf]
    %v112 = vld [vmem:[%s0 + $0xd8] sm:$0xf]
    %v113 = vld [vmem:[%s0 + $0xdc] sm:$0xf]
    %v114 = vld [vmem:[%s0 + $0xe0] sm:$0xf]
    %v115 = vld [vmem:[%s0 + $0xe4] sm:$0xf]
    %v116 = vld [vmem:[%s0 + $0xe8] sm:$0xf]
    %v117 = vld [vmem:[%s0 + $0xec] sm:$0xf]
    %v118 = vld [vmem:[%s0 + $0xf0] sm:$0xf]
    %v119 = vld [vmem:[%s0 + $0xf4] sm:$0xf]
    %v120 = vld [vmem:[%s0 + $0xf8] sm:$0xf]
    %v121 = vld [vmem:[%s0 + $0xfc] sm:$0xf]
    %v122 = vld [vmem:[%s0 + $0x100] sm:$0xf]
    %v123 = vld [vmem:[%s0 + $0x104] sm:$0xf]
    %v124 = vld [vmem:[%s0 + $0x108] sm:$0xf]
    %v125 = vld [vmem:[%s0 + $0x10c] sm:$0xf]
    %v126 = vld [vmem:[%s0 + $0x110] sm:$0xf]
    %v127 = vld [vmem:[%s0 + $0x114] sm:$0xf]
    %v128 = vld [vmem:[%s0 + $0x118] sm:$0xf]
    %v129 = vld [vmem:[%s0 + $0x11c] sm:$0xf]
    %v130 = vld [vmem:[%s0 + $0x120] sm:$0xf]
    %v131 = vld [vmem:[%s0 + $0x124] sm:$0xf]
    %v132 = vld [vmem:[%s0 + $0x128] sm:$0xf]
    %v133 = vld [vmem:[%s0 + $0x12c] sm:$0xf]
    %v134 = vld [vmem:[%s0 + $0x130] sm:$0xf]
    %v135 = vld [vmem:[%s0 + $0x134] sm:$0xf]
    %v136 = vld [vmem:[%s0 + $0x138] sm:$0xf]
    %v137 = vld [vmem:[%s0 + $0x13c] sm:$0xf]
    %v138 = vld [vmem:[%s0 + $0x140] sm:$0xf]
    %v139 = vld [vmem:[%s0 + $0x144] sm:$0xf]
    %v140 = vld [vmem:[%s0 + $0x148] sm:$0xf]
    %v141 = vld [vmem:[%s0 + $0x14c] sm:$0xf]
    %v142 = vld [vmem:[%s0 + $0x150] sm:$0xf]
    %v143 = vld [vmem:[%s0 + $0x154] sm:$0xf]
    %v144 = vld [vmem:[%s0 + $0x158] sm:$0xf]
    %v145 = vld [vmem:[%s0 + $0x15c] sm:$0xf]
    %v146 = vld [vmem:[%s0 + $0x160] sm:$0xf]
    %v147 = vld [vmem:[%s0 + $0x164] sm:$0xf]
    %v148 = vld [vmem:[%s0 + $0x168] sm:$0xf]
    %v149 = vld [vmem:[%s0 + $0x16c] sm:$0xf]
    %v150 = vld [vmem:[%s0 + $0x170] sm:$0xf]
    %v151 = vld [vmem:[%s0 + $0x174] sm:$0xf]
    %v152 = vld [vmem:[%s0 + $0x178] sm:$0xf]
    %v153 = vld [vmem:[%s0 + $0x17c] sm:$0xf]
    %v154 = vld [vmem:[%s0 + $0x180] sm:$0xf]
    %v155 = vld [vmem:[%s0 + $0x184] sm:$0xf]
    %v156 = vld [vmem:[%s0 + $0x188] sm:$0xf]
    %v157 = vld [vmem:[%s0 + $0x18c] sm:$0xf]
    %v158 = vld [vmem:[%s0 + $0x190] sm:$0xf]
    %v159 = vld [vmem:[%s0 + $0x194] sm:$0xf]
    %v160 = vld [vmem:[%s0 + $0x198] sm:$0xf]
    %v161 = vld [vmem:[%s0 + $0x19c] sm:$0xf]
    %v162 = vld [vmem:[%s0 + $0x1a0] sm:$0xf]
    %v163 = vld [vmem:[%s0 + $0x1a4] sm:$0xf]
    %v164 = vld [vmem:[%s0 + $0x1a8] sm:$0xf]
    %v165 = vld [vmem:[%s0 + $0x1ac] sm:$0xf]
    %v166 = vld [vmem:[%s0 + $0x1b0] sm:$0xf]
    %v167 = vld [vmem:[%s0 + $0x1b4] sm:$0xf]
    %v168 = vld [vmem:[%s0 + $0x1b8] sm:$0xf]
    %v169 = vld [vmem:[%s0 + $0x1bc] sm:$0xf]
    %v170 = vld [vmem:[%s0 + $0x1c0] sm:$0xf]
    %v171 = vld [vmem:[%s0 + $0x1c4] sm:$0xf]
    %v172 = vld [vmem:[%s0 + $0x1c8] sm:$0xf]
    %v173 = vld [vmem:[%s0 + $0x1cc] sm:$0xf]
    %v174 = vld [vmem:[%s0 + $0x1d0] sm:$0xf]
    %v175 = vld [vmem:[%s0 + $0x1d4] sm:$0xf]
    %v176 = vld [vmem:[%s0 + $0x1d8] sm:$0xf]
    %v177 = vld [vmem:[%s0 + $0x1dc] sm:$0xf]
    %v178 = vld [vmem:[%s0 + $0x1e0] sm:$0xf]
    %v179 = vld [vmem:[%s0 + $0x1e4] sm:$0xf]
    %v180 = vld [vmem:[%s0 + $0x1e8] sm:$0xf]
    %v181 = vld [vmem:[%s0 + $0x1ec] sm:$0xf]
    %v182 = vld [vmem:[%s0 + $0x1f0] sm:$0xf]
    %v183 = vld [vmem:[%s0 + $0x1f4] sm:$0xf]
    %v184 = vld [vmem:[%s0 + $0x1f8] sm:$0xf]
    %v185 = vld [vmem:[%s0 + $0x1fc] sm:$0xf]
    %v186 = vld [vmem:[%s0 + $0x200] sm:$0xf]
    %v187 = vld [vmem:[%s0 + $0x204] sm:$0xf]
    %v188 = vld [vmem:[%s0 + $0x208] sm:$0xf]
    %v189 = vld [vmem:[%s0 + $0x20c] sm:$0xf]
    %v190 = vld [vmem:[%s0 + $0x210] sm:$0xf]
    %v191 = vld [vmem:[%s0 + $0x214] sm:$0xf]
    %v192 = vld [vmem:[%s0 + $0x218] sm:$0xf]
    %v193 = vld [vmem:[%s0 + $0x21c] sm:$0xf]
    %v194 = vld [vmem:[%s0 + $0x220] sm:$0xf]
    %v195 = vld [vmem:[%s0 + $0x224] sm:$0xf]
    %v196 = vld [vmem:[%s0 + $0x228] sm:$0xf]
    %v197 = vld [vmem:[%s0 + $0x22c] sm:$0xf]
    %v198 = vld [vmem:[%s0 + $0x230] sm:$0xf]
    %v199 = vld [vmem:[%s0 + $0x234] sm:$0xf]
    %v200 = vld [vmem:[%s0 + $0x238] sm:$0xf]
    %v201 = vld [vmem:[%s0 + $0x23c] sm:$0xf]
    %v202 = vld [vmem:[%s0 + $0x240] sm:$0xf]
    %v203 = vld [vmem:[%s0 + $0x244] sm:$0xf]
    %v204 = vld [vmem:[%s0 + $0x248] sm:$0xf]
    %v205 = vld [vmem:[%s0 + $0x24c] sm:$0xf]
    %v206 = vld [vmem:[%s0 + $0x250] sm:$0xf]
    %v207 = vld [vmem:[%s0 + $0x254] sm:$0xf]
    %v208 = vld [vmem:[%s0 + $0x258] sm:$0xf]
    %v209 = vld [vmem:[%s0 + $0x25c] sm:$0xf]
    %v210 = vld [vmem:[%s0 + $0x260] sm:$0xf]
    %v211 = vld [vmem:[%s0 + $0x264] sm:$0xf]
    %v212 = vld [vmem:[%s0 + $0x268] sm:$0xf]
    %v213 = vld [vmem:[%s0 + $0x26c] sm:$0xf]
    %v214 = vld [vmem:[%s0 + $0x270] sm:$0xf]
    %v215 = vld [vmem:[%s0 + $0x274] sm:$0xf]
    %v216 = vld [vmem:[%s0 + $0x278] sm:$0xf]
    %v217 = vld [vmem:[%s0 + $0x27c] sm:$0xf]
    %v218 = vld [vmem:[%s0 + $0x280] sm:$0xf]
    %v219 = vld [vmem:[%s0 + $0x284] sm:$0xf]
    %v220 = vld [vmem:[%s0 + $0x288] sm:$0xf]
    %v221 = vld [vmem:[%s0 + $0x28c] sm:$0xf]
    %v222 = vld [vmem:[%s0 + $0x290] sm:$0xf]
    %v223 = vld [vmem:[%s0 + $0x294] sm:$0xf]
    %v224 = vld [vmem:[%s0 + $0x298] sm:$0xf]
    %v225 = vld [vmem:[%s0 + $0x29c] sm:$0xf]
    %v226 = vld [vmem:[%s0 + $0x2a0] sm:$0xf]
    %v227 = vld [vmem:[%s0 + $0x2a4] sm:$0xf]
    %v228 = vld [vmem:[%s0 + $0x2a8] sm:$0xf]
    %v229 = vld [vmem:[%s0 + $0x2ac] sm:$0xf]
    %v230 = vld [vmem:[%s0 + $0x2b0] sm:$0xf]
    %v231 = vld [vmem:[%s0 + $0x2b4] sm:$0xf]
    %v232 = vld [vmem:[%s0 + $0x2b8] sm:$0xf]
    %v233 = vld [vmem:[%s0 + $0x2bc] sm:$0xf]
    %v234 = vld [vmem:[%s0 + $0x2c0] sm:$0xf]
    %v235 = vld [vmem:[%s0 + $0x2c4] sm:$0xf]
    %v236 = vld [vmem:[%s0 + $0x2c8] sm:$0xf]
    %v237 = vld [vmem:[%s0 + $0x2cc] sm:$0xf]
    %v238 = vld [vmem:[%s0 + $0x2d0] sm:$0xf]
    %v239 = vld [vmem:[%s0 + $0x2d4] sm:$0xf]
    %v240 = vld [vmem:[%s0 + $0x2d8] sm:$0xf]
    %v241 = vld [vmem:[%s0 + $0x2dc] sm:$0xf]
    %v242 = vld [vmem:[%s0 + $0x2e0] sm:$0xf]
    %v243 = vld [vmem:[%s0 + $0x2e4] sm:$0xf]
    %v244 = vld [vmem:[%s0 + $0x2e8] sm:$0xf]
    %v245 = vld [vmem:[%s0 + $0x2ec] sm:$0xf]
    %v246 = vld [vmem:[%s0 + $0x2f0] sm:$0xf]
    %v247 = vld [vmem:[%s0 + $0x2f4] sm:$0xf]
    %v248 = vld [vmem:[%s0 + $0x2f8] sm:$0xf]
    %v249 = vld [vmem:[%s0 + $0x2fc] sm:$0xf]
    %v250 = vld [vmem:[%s0 + $0x300] sm:$0xf]
    %v251 = vld [vmem:[%s0 + $0x304] sm:$0xf]
    %v252 = vld [vmem:[%s0 + $0x308] sm:$0xf]
    %v253 = vld [vmem:[%s0 + $0x30c] sm:$0xf]
    %v254 = vld [vmem:[%s0 + $0x310] sm:$0xf]
    %v255 = vld [vmem:[%s0 + $0x314] sm:$0xf]
    %v256 = vld [vmem:[%s0 + $0x318] sm:$0xf]
    %v257 = vld [vmem:[%s0 + $0x31c] sm:$0xf]
    %v258 = vld [vmem:[%s0 + $0x320] sm:$0xf]
    %v259 = vld [vmem:[%s0 + $0x324] sm:$0xf]
    %v260 = vld [vmem:[%s0 + $0x328] sm:$0xf]
    %v261 = vld [vmem:[%s0 + $0x32c] sm:$0xf]
    %v262 = vld [vmem:[%s0 + $0x330] sm:$0xf]
    %v263 = vld [vmem:[%s0 + $0x334] sm:$0xf]
    %v264 = vld [vmem:[%s0 + $0x338] sm:$0xf]
    %v265 = vld [vmem:[%s0 + $0x33c] sm:$0xf]
    %v266 = vld [vmem:[%s0 + $0x340] sm:$0xf]
    %v267 = vld [vmem:[%s0 + $0x344] sm:$0xf]
    %v268 = vld [vmem:[%s0 + $0x348] sm:$0xf]
    %v269 = vld [vmem:[%s0 + $0x34c] sm:$0xf]
    %v270 = vld [vmem:[%s0 + $0x350] sm:$0xf]
    %v271 = vld [vmem:[%s0 + $0x354] sm:$0xf]
    %v272 = vld [vmem:[%s0 + $0x358] sm:$0xf]
    %v273 = vld [vmem:[%s0 + $0x35c] sm:$0xf]
    %v274 = vld [vmem:[%s0 + $0x360] sm:$0xf]
    %v275 = vld [vmem:[%s0 + $0x364] sm:$0xf]
    %v276 = vld [vmem:[%s0 + $0x368] sm:$0xf]
    %v277 = vld [vmem:[%s0 + $0x36c] sm:$0xf]
    %v278 = vld [vmem:[%s0 + $0x370] sm:$0xf]
    %v279 = vld [vmem:[%s0 + $0x374] sm:$0xf]
    %v280 = vld [vmem:[%s0 + $0x378] sm:$0xf]
    %v281 = vld [vmem:[%s0 + $0x37c] sm:$0xf]
    %v282 = vld [vmem:[%s0 + $0x380] sm:$0xf]
    %v283 = vld [vmem:[%s0 + $0x384] sm:$0xf]
    %v284 = vld [vmem:[%s0 + $0x388] sm:$0xf]
    %v285 = vld [vmem:[%s0 + $0x38c] sm:$0xf]
    %v286 = vld [vmem:[%s0 + $0x390] sm:$0xf]
    %v287 = vld [vmem:[%s0 + $0x394] sm:$0xf]
    %v288 = vld [vmem:[%s0 + $0x398] sm:$0xf]
    %v289 = vld [vmem:[%s0 + $0x39c] sm:$0xf]
    %v290 = vld [vmem:[%s0 + $0x3a0] sm:$0xf]
    %v291 = vld [vmem:[%s0 + $0x3a4] sm:$0xf]
    %v292 = vld [vmem:[%s0 + $0x3a8] sm:$0xf]
    %v293 = vld [vmem:[%s0 + $0x3ac] sm:$0xf]
    %v294 = vld [vmem:[%s0 + $0x3b0] sm:$0xf]
    %v295 = vld [vmem:[%s0 + $0x3b4] sm:$0xf]
    %v296 = vld [vmem:[%s0 + $0x3b8] sm:$0xf]
    %v297 = vld [vmem:[%s0 + $0x3bc] sm:$0xf]
    %v298 = vld [vmem:[%s0 + $0x3c0] sm:$0xf]
    %v299 = vld [vmem:[%s0 + $0x3c4] sm:$0xf]
    %v300 = vld [vmem:[%s0 + $0x3c8] sm:$0xf]
    %v301 = vld [vmem:[%s0 + $0x3cc] sm:$0xf]
    %v302 = vld [vmem:[%s0 + $0x3d0] sm:$0xf]
    %v303 = vld [vmem:[%s0 + $0x3d4] sm:$0xf]
    %v304 = vld [vmem:[%s0 + $0x3d8] sm:$0xf]
    %v305 = vld [vmem:[%s0 + $0x3dc] sm:$0xf]
    %v306 = vld [vmem:[%s0 + $0x3e0] sm:$0xf]
    %v307 = vld [vmem:[%s0 + $0x3e4] sm:$0xf]
    %v308 = vld [vmem:[%s0 + $0x3e8] sm:$0xf]
    %v309 = vld [vmem:[%s0 + $0x3ec] sm:$0xf]
    %v310 = vld [vmem:[%s0 + $0x3f0] sm:$0xf]
    %v311 = vld [vmem:[%s0 + $0x3f4] sm:$0xf]
    %v312 = vld [vmem:[%s0 + $0x3f8] sm:$0xf]
    %v313 = vld [vmem:[%s0 + $0x3fc] sm:$0xf]
    %v314 = vld [vmem:[%s0 + $0x400] sm:$0xf]
    %v315 = vld [vmem:[%s0 + $0x404] sm:$0xf]
    %v316 = vld [vmem:[%s0 + $0x408] sm:$0xf]
    %v317 = vld [vmem:[%s0 + $0x40c] sm:$0xf]
    %v318 = vld [vmem:[%s0 + $0x410] sm:$0xf]
    %v319 = vld [vmem:[%s0 + $0x414] sm:$0xf]
    %v320 = vld [vmem:[%s0 + $0x418] sm:$0xf]
    %v321 = vld [vmem:[%s0 + $0x41c] sm:$0xf]
    %v322 = vld [vmem:[%s0 + $0x420] sm:$0xf]
    %v323 = vld [vmem:[%s0 + $0x424] sm:$0xf]
    %v324 = vld [vmem:[%s0 + $0x428] sm:$0xf]
    %v325 = vld [vmem:[%s0 + $0x42c] sm:$0xf]
    %v326 = vld [vmem:[%s0 + $0x430] sm:$0xf]
    %v327 = vld [vmem:[%s0 + $0x434] sm:$0xf]
    %v328 = vld [vmem:[%s0 + $0x438] sm:$0xf]
    %v329 = vld [vmem:[%s0 + $0x43c] sm:$0xf]
    %v330 = vld [vmem:[%s0 + $0x440] sm:$0xf]
    %v331 = vld [vmem:[%s0 + $0x444] sm:$0xf]
    %v332 = vld [vmem:[%s0 + $0x448] sm:$0xf]
    %v333 = vld [vmem:[%s0 + $0x44c] sm:$0xf]
    %v334 = vld [vmem:[%s0 + $0x450] sm:$0xf]
    %v335 = vld [vmem:[%s0 + $0x454] sm:$0xf]
    %v336 = vld [vmem:[%s0 + $0x458] sm:$0xf]
    %v337 = vld [vmem:[%s0 + $0x45c] sm:$0xf]
    %v338 = vld [vmem:[%s0 + $0x460] sm:$0xf]
    %v339 = vld [vmem:[%s0 + $0x464] sm:$0xf]
    %v340 = vld [vmem:[%s0 + $0x468] sm:$0xf]
    %v341 = vld [vmem:[%s0 + $0x46c] sm:$0xf]
    %v342 = vld [vmem:[%s0 + $0x470] sm:$0xf]
    %v343 = vld [vmem:[%s0 + $0x474] sm:$0xf]
    %v344 = vld [vmem:[%s0 + $0x478] sm:$0xf]
    %v345 = vld [vmem:[%s0 + $0x47c] sm:$0xf]
    %v346 = vld [vmem:[%s0 + $0x480] sm:$0xf]
    %v347 = vld [vmem:[%s0 + $0x484] sm:$0xf]
    %v348 = vld [vmem:[%s0 + $0x488] sm:$0xf]
    %v349 = vld [vmem:[%s0 + $0x48c] sm:$0xf]
    %v350 = vld [vmem:[%s0 + $0x490] sm:$0xf]
    %v351 = vld [vmem:[%s0 + $0x494] sm:$0xf]
    %v352 = vld [vmem:[%s0 + $0x498] sm:$0xf]
    %v353 = vld [vmem:[%s0 + $0x49c] sm:$0xf]
    %v354 = vld [vmem:[%s0 + $0x4a0] sm:$0xf]
    %v355 = vld [vmem:[%s0 + $0x4a4] sm:$0xf]
    %v356 = vld [vmem:[%s0 + $0x4a8] sm:$0xf]
    %v357 = vld [vmem:[%s0 + $0x4ac] sm:$0xf]
    %v358 = vld [vmem:[%s0 + $0x4b0] sm:$0xf]
    %v359 = vld [vmem:[%s0 + $0x4b4] sm:$0xf]
    %v360 = vld [vmem:[%s0 + $0x4b8] sm:$0xf]
    %v361 = vld [vmem:[%s0 + $0x4bc] sm:$0xf]
    %v362 = vld [vmem:[%s0 + $0x4c0] sm:$0xf]
    %v363 = vld [vmem:[%s0 + $0x4c4] sm:$0xf]
    %v364 = vld [vmem:[%s0 + $0x4c8] sm:$0xf]
    %v365 = vld [vmem:[%s0 + $0x4cc] sm:$0xf]
    %v366 = vld [vmem:[%s0 + $0x4d0] sm:$0xf]
    %v367 = vld [vmem:[%s0 + $0x4d4] sm:$0xf]
    %v368 = vld [vmem:[%s0 + $0x4d8] sm:$0xf]
    %v369 = vld [vmem:[%s0 + $0x4dc] sm:$0xf]
    %v370 = vld [vmem:[%s0 + $0x4e0] sm:$0xf]
    %v371 = vld [vmem:[%s0 + $0x4e4] sm:$0xf]
    %v372 = vld [vmem:[%s0 + $0x4e8] sm:$0xf]
    %v373 = vld [vmem:[%s0 + $0x4ec] sm:$0xf]
    %v374 = vld [vmem:[%s0 + $0x4f0] sm:$0xf]
    %v375 = vld [vmem:[%s0 + $0x4f4] sm:$0xf]
    %v376 = vld [vmem:[%s0 + $0x4f8] sm:$0xf]
    %v377 = vld [vmem:[%s0 + $0x4fc] sm:$0xf]
    %v378 = vld [vmem:[%s0 + $0x500] sm:$0xf]
    %v379 = vld [vmem:[%s0 + $0x504] sm:$0xf]
    %v380 = vld [vmem:[%s0 + $0x508] sm:$0xf]
    %v381 = vld [vmem:[%s0 + $0x50c] sm:$0xf]
    %v382 = vld [vmem:[%s0 + $0x510] sm:$0xf]
    %v383 = vld [vmem:[%s0 + $0x514] sm:$0xf]
    %v384 = vld [vmem:[%s0 + $0x518] sm:$0xf]
    %v385 = vld [vmem:[%s0 + $0x51c] sm:$0xf]
    %v386 = vld [vmem:[%s0 + $0x520] sm:$0xf]
    %v387 = vld [vmem:[%s0 + $0x524] sm:$0xf]
    %v388 = vld [vmem:[%s0 + $0x528] sm:$0xf]
    %v389 = vld [vmem:[%s0 + $0x52c] sm:$0xf]
    %v390 = vld [vmem:[%s0 + $0x530] sm:$0xf]
    %v391 = vld [vmem:[%s0 + $0x534] sm:$0xf]
    %v392 = vld [vmem:[%s0 + $0x538] sm:$0xf]
    %v393 = vld [vmem:[%s0 + $0x53c] sm:$0xf]
    %v394 = vld [vmem:[%s0 + $0x540] sm:$0xf]
    %v395 = vld [vmem:[%s0 + $0x544] sm:$0xf]
    %v396 = vld [vmem:[%s0 + $0x548] sm:$0xf]
    %v397 = vld [vmem:[%s0 + $0x54c] sm:$0xf]
    %v398 = vld [vmem:[%s0 + $0x550] sm:$0xf]
    %v399 = vld [vmem:[%s0 + $0x554] sm:$0xf]
    %v400 = vld [vmem:[%s0 + $0x558] sm:$0xf]
    %v401 = vld [vmem:[%s0 + $0x55c] sm:$0xf]
    %v402 = vld [vmem:[%s0 + $0x560] sm:$0xf]
    %v403 = vld [vmem:[%s0 + $0x564] sm:$0xf]
    %v404 = vld [vmem:[%s0 + $0x568] sm:$0xf]
    %v405 = vld [vmem:[%s0 + $0x56c] sm:$0xf]
    %v406 = vld [vmem:[%s0 + $0x570] sm:$0xf]
    %v407 = vld [vmem:[%s0 + $0x574] sm:$0xf]
    %v408 = vld [vmem:[%s0 + $0x578] sm:$0xf]
    %v409 = vld [vmem:[%s0 + $0x57c] sm:$0xf]
    %v410 = vld [vmem:[%s0 + $0x580] sm:$0xf]
    %v411 = vld [vmem:[%s0 + $0x584] sm:$0xf]
    %v412 = vld [vmem:[%s0 + $0x588] sm:$0xf]
    %v413 = vld [vmem:[%s0 + $0x58c] sm:$0xf]
    %v414 = vld [vmem:[%s0 + $0x590] sm:$0xf]
    %v415 = vld [vmem:[%s0 + $0x594] sm:$0xf]
    %v416 = vld [vmem:[%s0 + $0x598] sm:$0xf]
    %v417 = vld [vmem:[%s0 + $0x59c] sm:$0xf]
    %v418 = vld [vmem:[%s0 + $0x5a0] sm:$0xf]
    %v419 = vld [vmem:[%s0 + $0x5a4] sm:$0xf]
    %v420 = vld [vmem:[%s0 + $0x5a8] sm:$0xf]
    %v421 = vld [vmem:[%s0 + $0x5ac] sm:$0xf]
    %v422 = vld [vmem:[%s0 + $0x5b0] sm:$0xf]
    %v423 = vld [vmem:[%s0 + $0x5b4] sm:$0xf]
    %v424 = vld [vmem:[%s0 + $0x5b8] sm:$0xf]
    %v425 = vld [vmem:[%s0 + $0x5bc] sm:$0xf]
    %v426 = vld [vmem:[%s0 + $0x5c0] sm:$0xf]
    %v427 = vld [vmem:[%s0 + $0x5c4] sm:$0xf]
    %v428 = vld [vmem:[%s0 + $0x5c8] sm:$0xf]
    %v429 = vld [vmem:[%s0 + $0x5cc] sm:$0xf]
    %v430 = vld [vmem:[%s0 + $0x5d0] sm:$0xf]
    %v431 = vld [vmem:[%s0 + $0x5d4] sm:$0xf]
    %v432 = vld [vmem:[%s0 + $0x5d8] sm:$0xf]
    %v433 = vld [vmem:[%s0 + $0x5dc] sm:$0xf]
    %v434 = vld [vmem:[%s0 + $0x5e0] sm:$0xf]
    %v435 = vld [vmem:[%s0 + $0x5e4] sm:$0xf]
    %v436 = vld [vmem:[%s0 + $0x5e8] sm:$0xf]
    %v437 = vld [vmem:[%s0 + $0x5ec] sm:$0xf]
    %v438 = vld [vmem:[%s0 + $0x5f0] sm:$0xf]
    %v439 = vld [vmem:[%s0 + $0x5f4] sm:$0xf]
    %v440 = vld [vmem:[%s0 + $0x5f8] sm:$0xf]
    %v441 = vld [vmem:[%s0 + $0x5fc] sm:$0xf]
    %v442 = vld [vmem:[%s0 + $0x600] sm:$0xf]
    %v443 = vld [vmem:[%s0 + $0x604] sm:$0xf]
    %v444 = vld [vmem:[%s0 + $0x608] sm:$0xf]
    %v445 = vld [vmem:[%s0 + $0x60c] sm:$0xf]
    %v446 = vld [vmem:[%s0 + $0x610] sm:$0xf]
    %v447 = vld [vmem:[%s0 + $0x614] sm:$0xf]
    %v448 = vld [vmem:[%s0 + $0x618] sm:$0xf]
    %v449 = vld [vmem:[%s0 + $0x61c] sm:$0xf]
    %v450 = vld [vmem:[%s0 + $0x620] sm:$0xf]
    %v451 = vld [vmem:[%s0 + $0x624] sm:$0xf]
    %v452 = vld [vmem:[%s0 + $0x628] sm:$0xf]
    %v453 = vld [vmem:[%s0 + $0x62c] sm:$0xf]
    %v454 = vld [vmem:[%s0 + $0x630] sm:$0xf]
    %v455 = vld [vmem:[%s0 + $0x634] sm:$0xf]
    %v456 = vld [vmem:[%s0 + $0x638] sm:$0xf]
    %v457 = vld [vmem:[%s0 + $0x63c] sm:$0xf]
    %v458 = vld [vmem:[%s0 + $0x640] sm:$0xf]
    %v459 = vld [vmem:[%s0 + $0x644] sm:$0xf]
    %v460 = vld [vmem:[%s0 + $0x648] sm:$0xf]
    %v461 = vld [vmem:[%s0 + $0x64c] sm:$0xf]
    %v462 = vld [vmem:[%s0 + $0x650] sm:$0xf]
    %v463 = vld [vmem:[%s0 + $0x654] sm:$0xf]
    %v464 = vld [vmem:[%s0 + $0x658] sm:$0xf]
    %v465 = vld [vmem:[%s0 + $0x65c] sm:$0xf]
    %v466 = vld [vmem:[%s0 + $0x660] sm:$0xf]
    %v467 = vld [vmem:[%s0 + $0x664] sm:$0xf]
    %v468 = vld [vmem:[%s0 + $0x668] sm:$0xf]
    %v469 = vld [vmem:[%s0 + $0x66c] sm:$0xf]
    %v470 = vld [vmem:[%s0 + $0x670] sm:$0xf]
    %v471 = vld [vmem:[%s0 + $0x674] sm:$0xf]
    %v472 = vld [vmem:[%s0 + $0x678] sm:$0xf]
    %v473 = vld [vmem:[%s0 + $0x67c] sm:$0xf]
    %v474 = vld [vmem:[%s0 + $0x680] sm:$0xf]
    %v475 = vld [vmem:[%s0 + $0x684] sm:$0xf]
    %v476 = vld [vmem:[%s0 + $0x688] sm:$0xf]
    %v477 = vld [vmem:[%s0 + $0x68c] sm:$0xf]
    %v478 = vld [vmem:[%s0 + $0x690] sm:$0xf]
    %v479 = vld [vmem:[%s0 + $0x694] sm:$0xf]
    %v480 = vld [vmem:[%s0 + $0x698] sm:$0xf]
    %v481 = vld [vmem:[%s0 + $0x69c] sm:$0xf]
    %v482 = vld [vmem:[%s0 + $0x6a0] sm:$0xf]
    %v483 = vld [vmem:[%s0 + $0x6a4] sm:$0xf]
    %v484 = vld [vmem:[%s0 + $0x6a8] sm:$0xf]
    %v485 = vld [vmem:[%s0 + $0x6ac] sm:$0xf]
    %v486 = vld [vmem:[%s0 + $0x6b0] sm:$0xf]
    %v487 = vld [vmem:[%s0 + $0x6b4] sm:$0xf]
    %v488 = vld [vmem:[%s0 + $0x6b8] sm:$0xf]
    %v489 = vld [vmem:[%s0 + $0x6bc] sm:$0xf]
    %v490 = vld [vmem:[%s0 + $0x6c0] sm:$0xf]
    %v491 = vld [vmem:[%s0 + $0x6c4] sm:$0xf]
    %v492 = vld [vmem:[%s0 + $0x6c8] sm:$0xf]
    %v493 = vld [vmem:[%s0 + $0x6cc] sm:$0xf]
    %v494 = vld [vmem:[%s0 + $0x6d0] sm:$0xf]
    %v495 = vld [vmem:[%s0 + $0x6d4] sm:$0xf]
    %v496 = vld [vmem:[%s0 + $0x6d8] sm:$0xf]
    %v497 = vld [vmem:[%s0 + $0x6dc] sm:$0xf]
    %v498 = vld [vmem:[%s0 + $0x6e0] sm:$0xf]
    %v499 = vld [vmem:[%s0 + $0x6e4] sm:$0xf]
    %v500 = vld [vmem:[%s0 + $0x6e8] sm:$0xf]
    %v501 = vld [vmem:[%s0 + $0x6ec] sm:$0xf]
    %v502 = vld [vmem:[%s0 + $0x6f0] sm:$0xf]
    %v503 = vld [vmem:[%s0 + $0x6f4] sm:$0xf]
    %v504 = vld [vmem:[%s0 + $0x6f8] sm:$0xf]
    %v505 = vld [vmem:[%s0 + $0x6fc] sm:$0xf]
    %v506 = vld [vmem:[%s0 + $0x700] sm:$0xf]
    %v507 = vld [vmem:[%s0 + $0x704] sm:$0xf]
    %v508 = vld [vmem:[%s0 + $0x708] sm:$0xf]
    %v509 = vld [vmem:[%s0 + $0x70c] sm:$0xf]
    %v510 = vld [vmem:[%s0 + $0x710] sm:$0xf]
    %v511 = vld [vmem:[%s0 + $0x714] sm:$0xf]
    %v512 = vld [vmem:[%s0 + $0x718] sm:$0xf]
    %v513 = vld [vmem:[%s0 + $0x71c] sm:$0xf]
    %v514 = vld [vmem:[%s0 + $0x720] sm:$0xf]
    %v515 = vld [vmem:[%s0 + $0x724] sm:$0xf]
    %v516 = vld [vmem:[%s0 + $0x728] sm:$0xf]
    %v517 = vld [vmem:[%s0 + $0x72c] sm:$0xf]
    %v518 = vld [vmem:[%s0 + $0x730] sm:$0xf]
    %v519 = vld [vmem:[%s0 + $0x734] sm:$0xf]
    %v520 = vld [vmem:[%s0 + $0x738] sm:$0xf]
    %v521 = vld [vmem:[%s0 + $0x73c] sm:$0xf]
    %v522 = vld [vmem:[%s0 + $0x740] sm:$0xf]
    %v523 = vld [vmem:[%s0 + $0x744] sm:$0xf]
    %v524 = vld [vmem:[%s0 + $0x748] sm:$0xf]
    %v525 = vld [vmem:[%s0 + $0x74c] sm:$0xf]
    %v526 = vld [vmem:[%s0 + $0x750] sm:$0xf]
    %v527 = vld [vmem:[%s0 + $0x754] sm:$0xf]
    %v528 = vld [vmem:[%s0 + $0x758] sm:$0xf]
    %v529 = vld [vmem:[%s0 + $0x75c] sm:$0xf]
    %v530 = vld [vmem:[%s0 + $0x760] sm:$0xf]
    %v531 = vld [vmem:[%s0 + $0x764] sm:$0xf]
    %v532 = vld [vmem:[%s0 + $0x768] sm:$0xf]
    %v533 = vld [vmem:[%s0 + $0x76c] sm:$0xf]
    %v534 = vld [vmem:[%s0 + $0x770] sm:$0xf]
    %v535 = vld [vmem:[%s0 + $0x774] sm:$0xf]
    %v536 = vld [vmem:[%s0 + $0x778] sm:$0xf]
    %v537 = vld [vmem:[%s0 + $0x77c] sm:$0xf]
    %v538 = vld [vmem:[%s0 + $0x780] sm:$0xf]
    %v539 = vld [vmem:[%s0 + $0x784] sm:$0xf]
    %v540 = vld [vmem:[%s0 + $0x788] sm:$0xf]
    %v541 = vld [vmem:[%s0 + $0x78c] sm:$0xf]
    %v542 = vld [vmem:[%s0 + $0x790] sm:$0xf]
    %v543 = vld [vmem:[%s0 + $0x794] sm:$0xf]
    %v544 = vld [vmem:[%s0 + $0x798] sm:$0xf]
    %v545 = vld [vmem:[%s0 + $0x79c] sm:$0xf]
    %v546 = vld [vmem:[%s0 + $0x7a0] sm:$0xf]
    %v547 = vld [vmem:[%s0 + $0x7a4] sm:$0xf]
    %v548 = vld [vmem:[%s0 + $0x7a8] sm:$0xf]
    %v549 = vld [vmem:[%s0 + $0x7ac] sm:$0xf]
    %v550 = vld [vmem:[%s0 + $0x7b0] sm:$0xf]
    %v551 = vld [vmem:[%s0 + $0x7b4] sm:$0xf]
    %v552 = vld [vmem:[%s0 + $0x7b8] sm:$0xf]
    %v553 = vld [vmem:[%s0 + $0x7bc] sm:$0xf]
    %v554 = vld [vmem:[%s0 + $0x7c0] sm:$0xf]
    %v555 = vld [vmem:[%s0 + $0x7c4] sm:$0xf]
    %v556 = vld [vmem:[%s0 + $0x7c8] sm:$0xf]
    %v557 = vld [vmem:[%s0 + $0x7cc] sm:$0xf]
    %v558 = vld [vmem:[%s0 + $0x7d0] sm:$0xf]
    %v559 = vld [vmem:[%s0 + $0x7d4] sm:$0xf]
    %v560 = vld [vmem:[%s0 + $0x7d8] sm:$0xf]
    %v561 = vld [vmem:[%s0 + $0x7dc] sm:$0xf]
    %v562 = vld [vmem:[%s0 + $0x7e0] sm:$0xf]
    %v563 = vld [vmem:[%s0 + $0x7e4] sm:$0xf]
    %v564 = vld [vmem:[%s0 + $0x7e8] sm:$0xf]
    %v565 = vld [vmem:[%s0 + $0x7ec] sm:$0xf]
    %v566 = vld [vmem:[%s0 + $0x7f0] sm:$0xf]
    %v567 = vld [vmem:[%s0 + $0x7f4] sm:$0xf]
    %v568 = vld [vmem:[%s0 + $0x7f8] sm:$0xf]
    %v569 = vld [vmem:[%s0 + $0x7fc] sm:$0xf]
    %v570 = vld [vmem:[%s0 + $0x800] sm:$0xf]
    %v571 = vld [vmem:[%s0 + $0x804] sm:$0xf]
    %v572 = vld [vmem:[%s0 + $0x808] sm:$0xf]
    %v573 = vld [vmem:[%s0 + $0x80c] sm:$0xf]
    %v574 = vld [vmem:[%s0 + $0x810] sm:$0xf]
    %v575 = vld [vmem:[%s0 + $0x814] sm:$0xf]
    %v576 = vld [vmem:[%s0 + $0x818] sm:$0xf]
    %v577 = vld [vmem:[%s0 + $0x81c] sm:$0xf]
    %v578 = vld [vmem:[%s0 + $0x820] sm:$0xf]
    %v579 = vld [vmem:[%s0 + $0x824] sm:$0xf]
    %v580 = vld [vmem:[%s1] sm:$0xf]
    %v581 = vld [vmem:[%s1 + $0x4] sm:$0xf]
    %v582 = vld [vmem:[%s1 + $0x8] sm:$0xf]
    %v583 = vld [vmem:[%s1 + $0xc] sm:$0x3]
    %v1106 = vunpack.c.l.b16 %v58
    %v1107 = vunpack.c.l.b16 %v59
    %v1108 = vunpack.c.l.b16 %v60
    %v1109 = vunpack.c.l.b16 %v61
    %v1110 = vunpack.c.l.b16 %v62
    %v1111 = vunpack.c.l.b16 %v63
    %v1112 = vunpack.c.l.b16 %v64
    %v1113 = vunpack.c.l.b16 %v65
    %v1114 = vunpack.c.l.b16 %v66
    %v1115 = vunpack.c.l.b16 %v67
    %v1116 = vunpack.c.l.b16 %v68
    %v1117 = vunpack.c.l.b16 %v69
    %v1118 = vunpack.c.l.b16 %v70
    %v1119 = vunpack.c.l.b16 %v71
    %v1120 = vunpack.c.l.b16 %v72
    %v1121 = vunpack.c.l.b16 %v73
    %v1122 = vunpack.c.l.b16 %v74
    %v1123 = vunpack.c.l.b16 %v75
    %v1124 = vunpack.c.l.b16 %v76
    %v1125 = vunpack.c.l.b16 %v77
    %v1126 = vunpack.c.l.b16 %v78
    %v1127 = vunpack.c.l.b16 %v79
    %v1128 = vunpack.c.l.b16 %v80
    %v1129 = vunpack.c.l.b16 %v81
    %v1130 = vunpack.c.l.b16 %v82
    %v1131 = vunpack.c.l.b16 %v83
    %v1132 = vunpack.c.l.b16 %v84
    %v1133 = vunpack.c.l.b16 %v85
    %v1134 = vunpack.c.l.b16 %v86
    %v1135 = vunpack.c.l.b16 %v87
    %v1136 = vunpack.c.l.b16 %v88
    %v1137 = vunpack.c.l.b16 %v89
    %v1138 = vunpack.c.l.b16 %v90
    %v1139 = vunpack.c.l.b16 %v91
    %v1140 = vunpack.c.l.b16 %v92
    %v1141 = vunpack.c.l.b16 %v93
    %v1142 = vunpack.c.l.b16 %v94
    %v1143 = vunpack.c.l.b16 %v95
    %v1144 = vunpack.c.l.b16 %v96
    %v1145 = vunpack.c.l.b16 %v97
    %v1146 = vunpack.c.l.b16 %v98
    %v1147 = vunpack.c.l.b16 %v99
    %v1148 = vunpack.c.l.b16 %v100
    %v1149 = vunpack.c.l.b16 %v101
    %v1150 = vunpack.c.l.b16 %v102
    %v1151 = vunpack.c.l.b16 %v103
    %v1152 = vunpack.c.l.b16 %v104
    %v1153 = vunpack.c.l.b16 %v105
    %v1154 = vunpack.c.l.b16 %v106
    %v1155 = vunpack.c.l.b16 %v107
    %v1156 = vunpack.c.l.b16 %v108
    %v1157 = vunpack.c.l.b16 %v109
    %v1158 = vunpack.c.l.b16 %v110
    %v1159 = vunpack.c.l.b16 %v111
    %v1160 = vunpack.c.l.b16 %v112
    %v1161 = vunpack.c.l.b16 %v113
    %v1162 = vunpack.c.l.b16 %v114
    %v1163 = vunpack.c.l.b16 %v115
    %v1164 = vunpack.c.l.b16 %v116
    %v1165 = vunpack.c.l.b16 %v117
    %v1166 = vunpack.c.l.b16 %v118
    %v1167 = vunpack.c.l.b16 %v119
    %v1168 = vunpack.c.l.b16 %v120
    %v1169 = vunpack.c.l.b16 %v121
    %v1170 = vunpack.c.l.b16 %v122
    %v1171 = vunpack.c.l.b16 %v123
    %v1172 = vunpack.c.l.b16 %v124
    %v1173 = vunpack.c.l.b16 %v125
    %v1174 = vunpack.c.l.b16 %v126
    %v1175 = vunpack.c.l.b16 %v127
    %v1176 = vunpack.c.l.b16 %v128
    %v1177 = vunpack.c.l.b16 %v129
    %v1178 = vunpack.c.l.b16 %v130
    %v1179 = vunpack.c.l.b16 %v131
    %v1180 = vunpack.c.l.b16 %v132
    %v1181 = vunpack.c.l.b16 %v133
    %v1182 = vunpack.c.l.b16 %v134
    %v1183 = vunpack.c.l.b16 %v135
    %v1184 = vunpack.c.l.b16 %v136
    %v1185 = vunpack.c.l.b16 %v137
    %v1186 = vunpack.c.l.b16 %v138
    %v1187 = vunpack.c.l.b16 %v139
    %v1188 = vunpack.c.l.b16 %v140
    %v1189 = vunpack.c.l.b16 %v141
    %v1190 = vunpack.c.l.b16 %v142
    %v1191 = vunpack.c.l.b16 %v143
    %v1192 = vunpack.c.l.b16 %v144
    %v1193 = vunpack.c.l.b16 %v145
    %v1194 = vunpack.c.l.b16 %v146
    %v1195 = vunpack.c.l.b16 %v147
    %v1196 = vunpack.c.l.b16 %v148
    %v1197 = vunpack.c.l.b16 %v149
    %v1198 = vunpack.c.l.b16 %v150
    %v1199 = vunpack.c.l.b16 %v151
    %v1200 = vunpack.c.l.b16 %v152
    %v1201 = vunpack.c.l.b16 %v153
    %v1202 = vunpack.c.l.b16 %v154
    %v1203 = vunpack.c.l.b16 %v155
    %v1204 = vunpack.c.l.b16 %v156
    %v1205 = vunpack.c.l.b16 %v157
    %v1206 = vunpack.c.l.b16 %v158
    %v1207 = vunpack.c.l.b16 %v159
    %v1208 = vunpack.c.l.b16 %v160
    %v1209 = vunpack.c.l.b16 %v161
    %v1210 = vunpack.c.l.b16 %v162
    %v1211 = vunpack.c.l.b16 %v163
    %v1212 = vunpack.c.l.b16 %v164
    %v1213 = vunpack.c.l.b16 %v165
    %v1214 = vunpack.c.l.b16 %v166
    %v1215 = vunpack.c.l.b16 %v167
    %v1216 = vunpack.c.l.b16 %v168
    %v1217 = vunpack.c.l.b16 %v169
    %v1218 = vunpack.c.l.b16 %v170
    %v1219 = vunpack.c.l.b16 %v171
    %v1220 = vunpack.c.l.b16 %v172
    %v1221 = vunpack.c.l.b16 %v173
    %v1222 = vunpack.c.l.b16 %v174
    %v1223 = vunpack.c.l.b16 %v175
    %v1224 = vunpack.c.l.b16 %v176
    %v1225 = vunpack.c.l.b16 %v177
    %v1226 = vunpack.c.l.b16 %v178
    %v1227 = vunpack.c.l.b16 %v179
    %v1228 = vunpack.c.l.b16 %v180
    %v1229 = vunpack.c.l.b16 %v181
    %v1230 = vunpack.c.l.b16 %v182
    %v1231 = vunpack.c.l.b16 %v183
    %v1232 = vunpack.c.l.b16 %v184
    %v1233 = vunpack.c.l.b16 %v185
    %v1234 = vunpack.c.l.b16 %v186
    %v1235 = vunpack.c.l.b16 %v187
    %v1236 = vunpack.c.l.b16 %v188
    %v1237 = vunpack.c.l.b16 %v189
    %v1238 = vunpack.c.l.b16 %v190
    %v1239 = vunpack.c.l.b16 %v191
    %v1240 = vunpack.c.l.b16 %v192
    %v1241 = vunpack.c.l.b16 %v193
    %v1242 = vunpack.c.l.b16 %v194
    %v1243 = vunpack.c.l.b16 %v195
    %v1244 = vunpack.c.l.b16 %v196
    %v1245 = vunpack.c.l.b16 %v197
    %v1246 = vunpack.c.l.b16 %v198
    %v1247 = vunpack.c.l.b16 %v199
    %v1248 = vunpack.c.l.b16 %v200
    %v1249 = vunpack.c.l.b16 %v201
    %v1250 = vunpack.c.l.b16 %v202
    %v1251 = vunpack.c.l.b16 %v203
    %v1252 = vunpack.c.l.b16 %v204
    %v1253 = vunpack.c.l.b16 %v205
    %v1254 = vunpack.c.l.b16 %v206
    %v1255 = vunpack.c.l.b16 %v207
    %v1256 = vunpack.c.l.b16 %v208
    %v1257 = vunpack.c.l.b16 %v209
    %v1258 = vunpack.c.l.b16 %v210
    %v1259 = vunpack.c.l.b16 %v211
    %v1260 = vunpack.c.l.b16 %v212
    %v1261 = vunpack.c.l.b16 %v213
    %v1262 = vunpack.c.l.b16 %v214
    %v1263 = vunpack.c.l.b16 %v215
    %v1264 = vunpack.c.l.b16 %v216
    %v1265 = vunpack.c.l.b16 %v217
    %v1266 = vunpack.c.l.b16 %v218
    %v1267 = vunpack.c.l.b16 %v219
    %v1268 = vunpack.c.l.b16 %v220
    %v1269 = vunpack.c.l.b16 %v221
    %v1270 = vunpack.c.l.b16 %v222
    %v1271 = vunpack.c.l.b16 %v223
    %v1272 = vunpack.c.l.b16 %v224
    %v1273 = vunpack.c.l.b16 %v225
    %v1274 = vunpack.c.l.b16 %v226
    %v1275 = vunpack.c.l.b16 %v227
    %v1276 = vunpack.c.l.b16 %v228
    %v1277 = vunpack.c.l.b16 %v229
    %v1278 = vunpack.c.l.b16 %v230
    %v1279 = vunpack.c.l.b16 %v231
    %v1280 = vunpack.c.l.b16 %v232
    %v1281 = vunpack.c.l.b16 %v233
    %v1282 = vunpack.c.l.b16 %v234
    %v1283 = vunpack.c.l.b16 %v235
    %v1284 = vunpack.c.l.b16 %v236
    %v1285 = vunpack.c.l.b16 %v237
    %v1286 = vunpack.c.l.b16 %v238
    %v1287 = vunpack.c.l.b16 %v239
    %v1288 = vunpack.c.l.b16 %v240
    %v1289 = vunpack.c.l.b16 %v241
    %v1290 = vunpack.c.l.b16 %v242
    %v1291 = vunpack.c.l.b16 %v243
    %v1292 = vunpack.c.l.b16 %v244
    %v1293 = vunpack.c.l.b16 %v245
    %v1294 = vunpack.c.l.b16 %v246
    %v1295 = vunpack.c.l.b16 %v247
    %v1296 = vunpack.c.l.b16 %v248
    %v1297 = vunpack.c.l.b16 %v249
    %v1298 = vunpack.c.l.b16 %v250
    %v1299 = vunpack.c.l.b16 %v251
    %v1300 = vunpack.c.l.b16 %v252
    %v1301 = vunpack.c.l.b16 %v253
    %v1302 = vunpack.c.l.b16 %v254
    %v1303 = vunpack.c.l.b16 %v255
    %v1304 = vunpack.c.l.b16 %v256
    %v1305 = vunpack.c.l.b16 %v257
    %v1306 = vunpack.c.l.b16 %v258
    %v1307 = vunpack.c.l.b16 %v259
    %v1308 = vunpack.c.l.b16 %v260
    %v1309 = vunpack.c.l.b16 %v261
    %v1310 = vunpack.c.l.b16 %v262
    %v1311 = vunpack.c.l.b16 %v263
    %v1312 = vunpack.c.l.b16 %v264
    %v1313 = vunpack.c.l.b16 %v265
    %v1314 = vunpack.c.l.b16 %v266
    %v1315 = vunpack.c.l.b16 %v267
    %v1316 = vunpack.c.l.b16 %v268
    %v1317 = vunpack.c.l.b16 %v269
    %v1318 = vunpack.c.l.b16 %v270
    %v1319 = vunpack.c.l.b16 %v271
    %v1320 = vunpack.c.l.b16 %v272
    %v1321 = vunpack.c.l.b16 %v273
    %v1322 = vunpack.c.l.b16 %v274
    %v1323 = vunpack.c.l.b16 %v275
    %v1324 = vunpack.c.l.b16 %v276
    %v1325 = vunpack.c.l.b16 %v277
    %v1326 = vunpack.c.l.b16 %v278
    %v1327 = vunpack.c.l.b16 %v279
    %v1328 = vunpack.c.l.b16 %v280
    %v1329 = vunpack.c.l.b16 %v281
    %v1330 = vunpack.c.l.b16 %v282
    %v1331 = vunpack.c.l.b16 %v283
    %v1332 = vunpack.c.l.b16 %v284
    %v1333 = vunpack.c.l.b16 %v285
    %v1334 = vunpack.c.l.b16 %v286
    %v1335 = vunpack.c.l.b16 %v287
    %v1336 = vunpack.c.l.b16 %v288
    %v1337 = vunpack.c.l.b16 %v289
    %v1338 = vunpack.c.l.b16 %v290
    %v1339 = vunpack.c.l.b16 %v291
    %v1340 = vunpack.c.l.b16 %v292
    %v1341 = vunpack.c.l.b16 %v293
    %v1342 = vunpack.c.l.b16 %v294
    %v1343 = vunpack.c.l.b16 %v295
    %v1344 = vunpack.c.l.b16 %v296
    %v1345 = vunpack.c.l.b16 %v297
    %v1346 = vunpack.c.l.b16 %v298
    %v1347 = vunpack.c.l.b16 %v299
    %v1348 = vunpack.c.l.b16 %v300
    %v1349 = vunpack.c.l.b16 %v301
    %v1350 = vunpack.c.l.b16 %v302
    %v1351 = vunpack.c.l.b16 %v303
    %v1352 = vunpack.c.l.b16 %v304
    %v1353 = vunpack.c.l.b16 %v305
    %v1354 = vunpack.c.l.b16 %v306
    %v1355 = vunpack.c.l.b16 %v307
    %v1356 = vunpack.c.l.b16 %v308
    %v1357 = vunpack.c.l.b16 %v309
    %v1358 = vunpack.c.l.b16 %v310
    %v1359 = vunpack.c.l.b16 %v311
    %v1360 = vunpack.c.l.b16 %v312
    %v1361 = vunpack.c.l.b16 %v313
    %v1362 = vunpack.c.l.b16 %v314
    %v1363 = vunpack.c.l.b16 %v315
    %v1364 = vunpack.c.l.b16 %v316
    %v1365 = vunpack.c.l.b16 %v317
    %v1366 = vunpack.c.l.b16 %v318
    %v1367 = vunpack.c.l.b16 %v319
    %v1368 = vunpack.c.l.b16 %v320
    %v1369 = vunpack.c.l.b16 %v321
    %v1370 = vunpack.c.l.b16 %v322
    %v1371 = vunpack.c.l.b16 %v323
    %v1372 = vunpack.c.l.b16 %v324
    %v1373 = vunpack.c.l.b16 %v325
    %v1374 = vunpack.c.l.b16 %v326
    %v1375 = vunpack.c.l.b16 %v327
    %v1376 = vunpack.c.l.b16 %v328
    %v1377 = vunpack.c.l.b16 %v329
    %v1378 = vunpack.c.l.b16 %v330
    %v1379 = vunpack.c.l.b16 %v331
    %v1380 = vunpack.c.l.b16 %v332
    %v1381 = vunpack.c.l.b16 %v333
    %v1382 = vunpack.c.l.b16 %v334
    %v1383 = vunpack.c.l.b16 %v335
    %v1384 = vunpack.c.l.b16 %v336
    %v1385 = vunpack.c.l.b16 %v337
    %v1386 = vunpack.c.l.b16 %v338
    %v1387 = vunpack.c.l.b16 %v339
    %v1388 = vunpack.c.l.b16 %v340
    %v1389 = vunpack.c.l.b16 %v341
    %v1390 = vunpack.c.l.b16 %v342
    %v1391 = vunpack.c.l.b16 %v343
    %v1392 = vunpack.c.l.b16 %v344
    %v1393 = vunpack.c.l.b16 %v345
    %v1394 = vunpack.c.l.b16 %v346
    %v1395 = vunpack.c.l.b16 %v347
    %v1396 = vunpack.c.l.b16 %v348
    %v1397 = vunpack.c.l.b16 %v349
    %v1398 = vunpack.c.l.b16 %v350
    %v1399 = vunpack.c.l.b16 %v351
    %v1400 = vunpack.c.l.b16 %v352
    %v1401 = vunpack.c.l.b16 %v353
    %v1402 = vunpack.c.l.b16 %v354
    %v1403 = vunpack.c.l.b16 %v355
    %v1404 = vunpack.c.l.b16 %v356
    %v1405 = vunpack.c.l.b16 %v357
    %v1406 = vunpack.c.l.b16 %v358
    %v1407 = vunpack.c.l.b16 %v359
    %v1408 = vunpack.c.l.b16 %v360
    %v1409 = vunpack.c.l.b16 %v361
    %v1410 = vunpack.c.l.b16 %v362
    %v1411 = vunpack.c.l.b16 %v363
    %v1412 = vunpack.c.l.b16 %v364
    %v1413 = vunpack.c.l.b16 %v365
    %v1414 = vunpack.c.l.b16 %v366
    %v1415 = vunpack.c.l.b16 %v367
    %v1416 = vunpack.c.l.b16 %v368
    %v1417 = vunpack.c.l.b16 %v369
    %v1418 = vunpack.c.l.b16 %v370
    %v1419 = vunpack.c.l.b16 %v371
    %v1420 = vunpack.c.l.b16 %v372
    %v1421 = vunpack.c.l.b16 %v373
    %v1422 = vunpack.c.l.b16 %v374
    %v1423 = vunpack.c.l.b16 %v375
    %v1424 = vunpack.c.l.b16 %v376
    %v1425 = vunpack.c.l.b16 %v377
    %v1426 = vunpack.c.l.b16 %v378
    %v1427 = vunpack.c.l.b16 %v379
    %v1428 = vunpack.c.l.b16 %v380
    %v1429 = vunpack.c.l.b16 %v381
    %v1430 = vunpack.c.l.b16 %v382
    %v1431 = vunpack.c.l.b16 %v383
    %v1432 = vunpack.c.l.b16 %v384
    %v1433 = vunpack.c.l.b16 %v385
    %v1434 = vunpack.c.l.b16 %v386
    %v1435 = vunpack.c.l.b16 %v387
    %v1436 = vunpack.c.l.b16 %v388
    %v1437 = vunpack.c.l.b16 %v389
    %v1438 = vunpack.c.l.b16 %v390
    %v1439 = vunpack.c.l.b16 %v391
    %v1440 = vunpack.c.l.b16 %v392
    %v1441 = vunpack.c.l.b16 %v393
    %v1442 = vunpack.c.l.b16 %v394
    %v1443 = vunpack.c.l.b16 %v395
    %v1444 = vunpack.c.l.b16 %v396
    %v1445 = vunpack.c.l.b16 %v397
    %v1446 = vunpack.c.l.b16 %v398
    %v1447 = vunpack.c.l.b16 %v399
    %v1448 = vunpack.c.l.b16 %v400
    %v1449 = vunpack.c.l.b16 %v401
    %v1450 = vunpack.c.l.b16 %v402
    %v1451 = vunpack.c.l.b16 %v403
    %v1452 = vunpack.c.l.b16 %v404
    %v1453 = vunpack.c.l.b16 %v405
    %v1454 = vunpack.c.l.b16 %v406
    %v1455 = vunpack.c.l.b16 %v407
    %v1456 = vunpack.c.l.b16 %v408
    %v1457 = vunpack.c.l.b16 %v409
    %v1458 = vunpack.c.l.b16 %v410
    %v1459 = vunpack.c.l.b16 %v411
    %v1460 = vunpack.c.l.b16 %v412
    %v1461 = vunpack.c.l.b16 %v413
    %v1462 = vunpack.c.l.b16 %v414
    %v1463 = vunpack.c.l.b16 %v415
    %v1464 = vunpack.c.l.b16 %v416
    %v1465 = vunpack.c.l.b16 %v417
    %v1466 = vunpack.c.l.b16 %v418
    %v1467 = vunpack.c.l.b16 %v419
    %v1468 = vunpack.c.l.b16 %v420
    %v1469 = vunpack.c.l.b16 %v421
    %v1470 = vunpack.c.l.b16 %v422
    %v1471 = vunpack.c.l.b16 %v423
    %v1472 = vunpack.c.l.b16 %v424
    %v1473 = vunpack.c.l.b16 %v425
    %v1474 = vunpack.c.l.b16 %v426
    %v1475 = vunpack.c.l.b16 %v427
    %v1476 = vunpack.c.l.b16 %v428
    %v1477 = vunpack.c.l.b16 %v429
    %v1478 = vunpack.c.l.b16 %v430
    %v1479 = vunpack.c.l.b16 %v431
    %v1480 = vunpack.c.l.b16 %v432
    %v1481 = vunpack.c.l.b16 %v433
    %v1482 = vunpack.c.l.b16 %v434
    %v1483 = vunpack.c.l.b16 %v435
    %v1484 = vunpack.c.l.b16 %v436
    %v1485 = vunpack.c.l.b16 %v437
    %v1486 = vunpack.c.l.b16 %v438
    %v1487 = vunpack.c.l.b16 %v439
    %v1488 = vunpack.c.l.b16 %v440
    %v1489 = vunpack.c.l.b16 %v441
    %v1490 = vunpack.c.l.b16 %v442
    %v1491 = vunpack.c.l.b16 %v443
    %v1492 = vunpack.c.l.b16 %v444
    %v1493 = vunpack.c.l.b16 %v445
    %v1494 = vunpack.c.l.b16 %v446
    %v1495 = vunpack.c.l.b16 %v447
    %v1496 = vunpack.c.l.b16 %v448
    %v1497 = vunpack.c.l.b16 %v449
    %v1498 = vunpack.c.l.b16 %v450
    %v1499 = vunpack.c.l.b16 %v451
    %v1500 = vunpack.c.l.b16 %v452
    %v1501 = vunpack.c.l.b16 %v453
    %v1502 = vunpack.c.l.b16 %v454
    %v1503 = vunpack.c.l.b16 %v455
    %v1504 = vunpack.c.l.b16 %v456
    %v1505 = vunpack.c.l.b16 %v457
    %v1506 = vunpack.c.l.b16 %v458
    %v1507 = vunpack.c.l.b16 %v459
    %v1508 = vunpack.c.l.b16 %v460
    %v1509 = vunpack.c.l.b16 %v461
    %v1510 = vunpack.c.l.b16 %v462
    %v1511 = vunpack.c.l.b16 %v463
    %v1512 = vunpack.c.l.b16 %v464
    %v1513 = vunpack.c.l.b16 %v465
    %v1514 = vunpack.c.l.b16 %v466
    %v1515 = vunpack.c.l.b16 %v467
    %v1516 = vunpack.c.l.b16 %v468
    %v1517 = vunpack.c.l.b16 %v469
    %v1518 = vunpack.c.l.b16 %v470
    %v1519 = vunpack.c.l.b16 %v471
    %v1520 = vunpack.c.l.b16 %v472
    %v1521 = vunpack.c.l.b16 %v473
    %v1522 = vunpack.c.l.b16 %v474
    %v1523 = vunpack.c.l.b16 %v475
    %v1524 = vunpack.c.l.b16 %v476
    %v1525 = vunpack.c.l.b16 %v477
    %v1526 = vunpack.c.l.b16 %v478
    %v1527 = vunpack.c.l.b16 %v479
    %v1528 = vunpack.c.l.b16 %v480
    %v1529 = vunpack.c.l.b16 %v481
    %v1530 = vunpack.c.l.b16 %v482
    %v1531 = vunpack.c.l.b16 %v483
    %v1532 = vunpack.c.l.b16 %v484
    %v1533 = vunpack.c.l.b16 %v485
    %v1534 = vunpack.c.l.b16 %v486
    %v1535 = vunpack.c.l.b16 %v487
    %v1536 = vunpack.c.l.b16 %v488
    %v1537 = vunpack.c.l.b16 %v489
    %v1538 = vunpack.c.l.b16 %v490
    %v1539 = vunpack.c.l.b16 %v491
    %v1540 = vunpack.c.l.b16 %v492
    %v1541 = vunpack.c.l.b16 %v493
    %v1542 = vunpack.c.l.b16 %v494
    %v1543 = vunpack.c.l.b16 %v495
    %v1544 = vunpack.c.l.b16 %v496
    %v1545 = vunpack.c.l.b16 %v497
    %v1546 = vunpack.c.l.b16 %v498
    %v1547 = vunpack.c.l.b16 %v499
    %v1548 = vunpack.c.l.b16 %v500
    %v1549 = vunpack.c.l.b16 %v501
    %v1550 = vunpack.c.l.b16 %v502
    %v1551 = vunpack.c.l.b16 %v503
    %v1552 = vunpack.c.l.b16 %v504
    %v1553 = vunpack.c.l.b16 %v505
    %v1554 = vunpack.c.l.b16 %v506
    %v1555 = vunpack.c.l.b16 %v507
    %v1556 = vunpack.c.l.b16 %v508
    %v1557 = vunpack.c.l.b16 %v509
    %v1558 = vunpack.c.l.b16 %v510
    %v1559 = vunpack.c.l.b16 %v511
    %v1560 = vunpack.c.l.b16 %v512
    %v1561 = vunpack.c.l.b16 %v513
    %v1562 = vunpack.c.l.b16 %v514
    %v1563 = vunpack.c.l.b16 %v515
    %v1564 = vunpack.c.l.b16 %v516
    %v1565 = vunpack.c.l.b16 %v517
    %v1566 = vunpack.c.l.b16 %v518
    %v1567 = vunpack.c.l.b16 %v519
    %v1568 = vunpack.c.l.b16 %v520
    %v1569 = vunpack.c.l.b16 %v521
    %v1570 = vunpack.c.l.b16 %v522
    %v1571 = vunpack.c.l.b16 %v523
    %v1572 = vunpack.c.l.b16 %v524
    %v1573 = vunpack.c.l.b16 %v525
    %v1574 = vunpack.c.l.b16 %v526
    %v1575 = vunpack.c.l.b16 %v527
    %v1576 = vunpack.c.l.b16 %v528
    %v1577 = vunpack.c.l.b16 %v529
    %v1578 = vunpack.c.l.b16 %v530
    %v1579 = vunpack.c.l.b16 %v531
    %v1580 = vunpack.c.l.b16 %v532
    %v1581 = vunpack.c.l.b16 %v533
    %v1582 = vunpack.c.l.b16 %v534
    %v1583 = vunpack.c.l.b16 %v535
    %v1584 = vunpack.c.l.b16 %v536
    %v1585 = vunpack.c.l.b16 %v537
    %v1586 = vunpack.c.l.b16 %v538
    %v1587 = vunpack.c.l.b16 %v539
    %v1588 = vunpack.c.l.b16 %v540
    %v1589 = vunpack.c.l.b16 %v541
    %v1590 = vunpack.c.l.b16 %v542
    %v1591 = vunpack.c.l.b16 %v543
    %v1592 = vunpack.c.l.b16 %v544
    %v1593 = vunpack.c.l.b16 %v545
    %v1594 = vunpack.c.l.b16 %v546
    %v1595 = vunpack.c.l.b16 %v547
    %v1596 = vunpack.c.l.b16 %v548
    %v1597 = vunpack.c.l.b16 %v549
    %v1598 = vunpack.c.l.b16 %v550
    %v1599 = vunpack.c.l.b16 %v551
    %v1600 = vunpack.c.l.b16 %v552
    %v1601 = vunpack.c.l.b16 %v553
    %v1602 = vunpack.c.l.b16 %v554
    %v1603 = vunpack.c.l.b16 %v555
    %v1604 = vunpack.c.l.b16 %v556
    %v1605 = vunpack.c.l.b16 %v557
    %v1606 = vunpack.c.l.b16 %v558
    %v1607 = vunpack.c.l.b16 %v559
    %v1608 = vunpack.c.l.b16 %v560
    %v1609 = vunpack.c.l.b16 %v561
    %v1610 = vunpack.c.l.b16 %v562
    %v1611 = vunpack.c.l.b16 %v563
    %v1612 = vunpack.c.l.b16 %v564
    %v1613 = vunpack.c.l.b16 %v565
    %v1614 = vunpack.c.l.b16 %v566
    %v1615 = vunpack.c.l.b16 %v567
    %v1616 = vunpack.c.l.b16 %v568
    %v1617 = vunpack.c.l.b16 %v569
    %v1618 = vunpack.c.l.b16 %v570
    %v1619 = vunpack.c.l.b16 %v571
    %v1620 = vunpack.c.l.b16 %v572
    %v1621 = vunpack.c.l.b16 %v573
    %v1622 = vunpack.c.l.b16 %v574
    %v1623 = vunpack.c.l.b16 %v575
    %v1624 = vunpack.c.l.b16 %v576
    %v1625 = vunpack.c.l.b16 %v577
    %v1626 = vunpack.c.l.b16 %v578
    %v1627 = vunpack.c.l.b16 %v579
    %v1628 = vpack.c.b16 %v1107, %v1106
    %v1629 = vpack.c.b16 %v1109, %v1108
    %v1630 = vpack.c.b16 %v1111, %v1110
    %v1631 = vpack.c.b16 %v1113, %v1112
    %v1632 = vpack.c.b16 %v1115, %v1114
    %v1633 = vpack.c.b16 %v1117, %v1116
    %v1634 = vpack.c.b16 %v1119, %v1118
    %v1635 = vpack.c.b16 %v1121, %v1120
    %v1636 = vpack.c.b16 %v1123, %v1122
    %v1637 = vpack.c.b16 %v1125, %v1124
    %v1638 = vpack.c.b16 %v1127, %v1126
    %v1639 = vpack.c.b16 %v1129, %v1128
    %v1640 = vpack.c.b16 %v1131, %v1130
    %v1641 = vpack.c.b16 %v1133, %v1132
    %v1642 = vpack.c.b16 %v1135, %v1134
    %v1643 = vpack.c.b16 %v1137, %v1136
    %v1644 = vpack.c.b16 %v1139, %v1138
    %v1645 = vpack.c.b16 %v1141, %v1140
    %v1646 = vpack.c.b16 %v1143, %v1142
    %v1647 = vpack.c.b16 %v1145, %v1144
    %v1648 = vpack.c.b16 %v1147, %v1146
    %v1649 = vpack.c.b16 %v1149, %v1148
    %v1650 = vpack.c.b16 %v1151, %v1150
    %v1651 = vpack.c.b16 %v1153, %v1152
    %v1652 = vpack.c.b16 %v1155, %v1154
    %v1653 = vpack.c.b16 %v1157, %v1156
    %v1654 = vpack.c.b16 %v1159, %v1158
    %v1655 = vpack.c.b16 %v1161, %v1160
    %v1656 = vpack.c.b16 %v1163, %v1162
    %v1657 = vpack.c.b16 %v1165, %v1164
    %v1658 = vpack.c.b16 %v1167, %v1166
    %v1659 = vpack.c.b16 %v1169, %v1168
    %v1660 = vpack.c.b16 %v1171, %v1170
    %v1661 = vpack.c.b16 %v1173, %v1172
    %v1662 = vpack.c.b16 %v1175, %v1174
    %v1663 = vpack.c.b16 %v1177, %v1176
    %v1664 = vpack.c.b16 %v1179, %v1178
    %v1665 = vpack.c.b16 %v1181, %v1180
    %v1666 = vpack.c.b16 %v1183, %v1182
    %v1667 = vpack.c.b16 %v1185, %v1184
    %v1668 = vpack.c.b16 %v1187, %v1186
    %v1669 = vpack.c.b16 %v1189, %v1188
    %v1670 = vpack.c.b16 %v1191, %v1190
    %v1671 = vpack.c.b16 %v1193, %v1192
    %v1672 = vpack.c.b16 %v1195, %v1194
    %v1673 = vpack.c.b16 %v1197, %v1196
    %v1674 = vpack.c.b16 %v1199, %v1198
    %v1675 = vpack.c.b16 %v1201, %v1200
    %v1676 = vpack.c.b16 %v1203, %v1202
    %v1677 = vpack.c.b16 %v1205, %v1204
    %v1678 = vpack.c.b16 %v1207, %v1206
    %v1679 = vpack.c.b16 %v1209, %v1208
    %v1680 = vpack.c.b16 %v1211, %v1210
    %v1681 = vpack.c.b16 %v1213, %v1212
    %v1682 = vpack.c.b16 %v1215, %v1214
    %v1683 = vpack.c.b16 %v1217, %v1216
    %v1684 = vpack.c.b16 %v1219, %v1218
    %v1685 = vpack.c.b16 %v1221, %v1220
    %v1686 = vpack.c.b16 %v1223, %v1222
    %v1687 = vpack.c.b16 %v1225, %v1224
    %v1688 = vpack.c.b16 %v1227, %v1226
    %v1689 = vpack.c.b16 %v1229, %v1228
    %v1690 = vpack.c.b16 %v1231, %v1230
    %v1691 = vpack.c.b16 %v1233, %v1232
    %v1692 = vpack.c.b16 %v1235, %v1234
    %v1693 = vpack.c.b16 %v1237, %v1236
    %v1694 = vpack.c.b16 %v1239, %v1238
    %v1695 = vpack.c.b16 %v1241, %v1240
    %v1696 = vpack.c.b16 %v1243, %v1242
    %v1697 = vpack.c.b16 %v1245, %v1244
    %v1698 = vpack.c.b16 %v1247, %v1246
    %v1699 = vpack.c.b16 %v1249, %v1248
    %v1700 = vpack.c.b16 %v1251, %v1250
    %v1701 = vpack.c.b16 %v1253, %v1252
    %v1702 = vpack.c.b16 %v1255, %v1254
    %v1703 = vpack.c.b16 %v1257, %v1256
    %v1704 = vpack.c.b16 %v1259, %v1258
    %v1705 = vpack.c.b16 %v1261, %v1260
    %v1706 = vpack.c.b16 %v1263, %v1262
    %v1707 = vpack.c.b16 %v1265, %v1264
    %v1708 = vpack.c.b16 %v1267, %v1266
    %v1709 = vpack.c.b16 %v1269, %v1268
    %v1710 = vpack.c.b16 %v1271, %v1270
    %v1711 = vpack.c.b16 %v1273, %v1272
    %v1712 = vpack.c.b16 %v1275, %v1274
    %v1713 = vpack.c.b16 %v1277, %v1276
    %v1714 = vpack.c.b16 %v1279, %v1278
    %v1715 = vpack.c.b16 %v1281, %v1280
    %v1716 = vpack.c.b16 %v1283, %v1282
    %v1717 = vpack.c.b16 %v1285, %v1284
    %v1718 = vpack.c.b16 %v1287, %v1286
    %v1719 = vpack.c.b16 %v1289, %v1288
    %v1720 = vpack.c.b16 %v1291, %v1290
    %v1721 = vpack.c.b16 %v1293, %v1292
    %v1722 = vpack.c.b16 %v1295, %v1294
    %v1723 = vpack.c.b16 %v1297, %v1296
    %v1724 = vpack.c.b16 %v1299, %v1298
    %v1725 = vpack.c.b16 %v1301, %v1300
    %v1726 = vpack.c.b16 %v1303, %v1302
    %v1727 = vpack.c.b16 %v1305, %v1304
    %v1728 = vpack.c.b16 %v1307, %v1306
    %v1729 = vpack.c.b16 %v1309, %v1308
    %v1730 = vpack.c.b16 %v1311, %v1310
    %v1731 = vpack.c.b16 %v1313, %v1312
    %v1732 = vpack.c.b16 %v1315, %v1314
    %v1733 = vpack.c.b16 %v1317, %v1316
    %v1734 = vpack.c.b16 %v1319, %v1318
    %v1735 = vpack.c.b16 %v1321, %v1320
    %v1736 = vpack.c.b16 %v1323, %v1322
    %v1737 = vpack.c.b16 %v1325, %v1324
    %v1738 = vpack.c.b16 %v1327, %v1326
    %v1739 = vpack.c.b16 %v1329, %v1328
    %v1740 = vpack.c.b16 %v1331, %v1330
    %v1741 = vpack.c.b16 %v1333, %v1332
    %v1742 = vpack.c.b16 %v1335, %v1334
    %v1743 = vpack.c.b16 %v1337, %v1336
    %v1744 = vpack.c.b16 %v1339, %v1338
    %v1745 = vpack.c.b16 %v1341, %v1340
    %v1746 = vpack.c.b16 %v1343, %v1342
    %v1747 = vpack.c.b16 %v1345, %v1344
    %v1748 = vpack.c.b16 %v1347, %v1346
    %v1749 = vpack.c.b16 %v1349, %v1348
    %v1750 = vpack.c.b16 %v1351, %v1350
    %v1751 = vpack.c.b16 %v1353, %v1352
    %v1752 = vpack.c.b16 %v1355, %v1354
    %v1753 = vpack.c.b16 %v1357, %v1356
    %v1754 = vpack.c.b16 %v1359, %v1358
    %v1755 = vpack.c.b16 %v1361, %v1360
    %v1756 = vpack.c.b16 %v1363, %v1362
    %v1757 = vpack.c.b16 %v1365, %v1364
    %v1758 = vpack.c.b16 %v1367, %v1366
    %v1759 = vpack.c.b16 %v1369, %v1368
    %v1760 = vpack.c.b16 %v1371, %v1370
    %v1761 = vpack.c.b16 %v1373, %v1372
    %v1762 = vpack.c.b16 %v1375, %v1374
    %v1763 = vpack.c.b16 %v1377, %v1376
    %v1764 = vpack.c.b16 %v1379, %v1378
    %v1765 = vpack.c.b16 %v1381, %v1380
    %v1766 = vpack.c.b16 %v1383, %v1382
    %v1767 = vpack.c.b16 %v1385, %v1384
    %v1768 = vpack.c.b16 %v1387, %v1386
    %v1769 = vpack.c.b16 %v1389, %v1388
    %v1770 = vpack.c.b16 %v1391, %v1390
    %v1771 = vpack.c.b16 %v1393, %v1392
    %v1772 = vpack.c.b16 %v1395, %v1394
    %v1773 = vpack.c.b16 %v1397, %v1396
    %v1774 = vpack.c.b16 %v1399, %v1398
    %v1775 = vpack.c.b16 %v1401, %v1400
    %v1776 = vpack.c.b16 %v1403, %v1402
    %v1777 = vpack.c.b16 %v1405, %v1404
    %v1778 = vpack.c.b16 %v1407, %v1406
    %v1779 = vpack.c.b16 %v1409, %v1408
    %v1780 = vpack.c.b16 %v1411, %v1410
    %v1781 = vpack.c.b16 %v1413, %v1412
    %v1782 = vpack.c.b16 %v1415, %v1414
    %v1783 = vpack.c.b16 %v1417, %v1416
    %v1784 = vpack.c.b16 %v1419, %v1418
    %v1785 = vpack.c.b16 %v1421, %v1420
    %v1786 = vpack.c.b16 %v1423, %v1422
    %v1787 = vpack.c.b16 %v1425, %v1424
    %v1788 = vpack.c.b16 %v1427, %v1426
    %v1789 = vpack.c.b16 %v1429, %v1428
    %v1790 = vpack.c.b16 %v1431, %v1430
    %v1791 = vpack.c.b16 %v1433, %v1432
    %v1792 = vpack.c.b16 %v1435, %v1434
    %v1793 = vpack.c.b16 %v1437, %v1436
    %v1794 = vpack.c.b16 %v1439, %v1438
    %v1795 = vpack.c.b16 %v1441, %v1440
    %v1796 = vpack.c.b16 %v1443, %v1442
    %v1797 = vpack.c.b16 %v1445, %v1444
    %v1798 = vpack.c.b16 %v1447, %v1446
    %v1799 = vpack.c.b16 %v1449, %v1448
    %v1800 = vpack.c.b16 %v1451, %v1450
    %v1801 = vpack.c.b16 %v1453, %v1452
    %v1802 = vpack.c.b16 %v1455, %v1454
    %v1803 = vpack.c.b16 %v1457, %v1456
    %v1804 = vpack.c.b16 %v1459, %v1458
    %v1805 = vpack.c.b16 %v1461, %v1460
    %v1806 = vpack.c.b16 %v1463, %v1462
    %v1807 = vpack.c.b16 %v1465, %v1464
    %v1808 = vpack.c.b16 %v1467, %v1466
    %v1809 = vpack.c.b16 %v1469, %v1468
    %v1810 = vpack.c.b16 %v1471, %v1470
    %v1811 = vpack.c.b16 %v1473, %v1472
    %v1812 = vpack.c.b16 %v1475, %v1474
    %v1813 = vpack.c.b16 %v1477, %v1476
    %v1814 = vpack.c.b16 %v1479, %v1478
    %v1815 = vpack.c.b16 %v1481, %v1480
    %v1816 = vpack.c.b16 %v1483, %v1482
    %v1817 = vpack.c.b16 %v1485, %v1484
    %v1818 = vpack.c.b16 %v1487, %v1486
    %v1819 = vpack.c.b16 %v1489, %v1488
    %v1820 = vpack.c.b16 %v1491, %v1490
    %v1821 = vpack.c.b16 %v1493, %v1492
    %v1822 = vpack.c.b16 %v1495, %v1494
    %v1823 = vpack.c.b16 %v1497, %v1496
    %v1824 = vpack.c.b16 %v1499, %v1498
    %v1825 = vpack.c.b16 %v1501, %v1500
    %v1826 = vpack.c.b16 %v1503, %v1502
    %v1827 = vpack.c.b16 %v1505, %v1504
    %v1828 = vpack.c.b16 %v1507, %v1506
    %v1829 = vpack.c.b16 %v1509, %v1508
    %v1830 = vpack.c.b16 %v1511, %v1510
    %v1831 = vpack.c.b16 %v1513, %v1512
    %v1832 = vpack.c.b16 %v1515, %v1514
    %v1833 = vpack.c.b16 %v1517, %v1516
    %v1834 = vpack.c.b16 %v1519, %v1518
    %v1835 = vpack.c.b16 %v1521, %v1520
    %v1836 = vpack.c.b16 %v1523, %v1522
    %v1837 = vpack.c.b16 %v1525, %v1524
    %v1838 = vpack.c.b16 %v1527, %v1526
    %v1839 = vpack.c.b16 %v1529, %v1528
    %v1840 = vpack.c.b16 %v1531, %v1530
    %v1841 = vpack.c.b16 %v1533, %v1532
    %v1842 = vpack.c.b16 %v1535, %v1534
    %v1843 = vpack.c.b16 %v1537, %v1536
    %v1844 = vpack.c.b16 %v1539, %v1538
    %v1845 = vpack.c.b16 %v1541, %v1540
    %v1846 = vpack.c.b16 %v1543, %v1542
    %v1847 = vpack.c.b16 %v1545, %v1544
    %v1848 = vpack.c.b16 %v1547, %v1546
    %v1849 = vpack.c.b16 %v1549, %v1548
    %v1850 = vpack.c.b16 %v1551, %v1550
    %v1851 = vpack.c.b16 %v1553, %v1552
    %v1852 = vpack.c.b16 %v1555, %v1554
    %v1853 = vpack.c.b16 %v1557, %v1556
    %v1854 = vpack.c.b16 %v1559, %v1558
    %v1855 = vpack.c.b16 %v1561, %v1560
    %v1856 = vpack.c.b16 %v1563, %v1562
    %v1857 = vpack.c.b16 %v1565, %v1564
    %v1858 = vpack.c.b16 %v1567, %v1566
    %v1859 = vpack.c.b16 %v1569, %v1568
    %v1860 = vpack.c.b16 %v1571, %v1570
    %v1861 = vpack.c.b16 %v1573, %v1572
    %v1862 = vpack.c.b16 %v1575, %v1574
    %v1863 = vpack.c.b16 %v1577, %v1576
    %v1864 = vpack.c.b16 %v1579, %v1578
    %v1865 = vpack.c.b16 %v1581, %v1580
    %v1866 = vpack.c.b16 %v1583, %v1582
    %v1867 = vpack.c.b16 %v1585, %v1584
    %v1868 = vpack.c.b16 %v1587, %v1586
    %v1869 = vpack.c.b16 %v1589, %v1588
    %v1870 = vpack.c.b16 %v1591, %v1590
    %v1871 = vpack.c.b16 %v1593, %v1592
    %v1872 = vpack.c.b16 %v1595, %v1594
    %v1873 = vpack.c.b16 %v1597, %v1596
    %v1874 = vpack.c.b16 %v1599, %v1598
    %v1875 = vpack.c.b16 %v1601, %v1600
    %v1876 = vpack.c.b16 %v1603, %v1602
    %v1877 = vpack.c.b16 %v1605, %v1604
    %v1878 = vpack.c.b16 %v1607, %v1606
    %v1879 = vpack.c.b16 %v1609, %v1608
    %v1880 = vpack.c.b16 %v1611, %v1610
    %v1881 = vpack.c.b16 %v1613, %v1612
    %v1882 = vpack.c.b16 %v1615, %v1614
    %v1883 = vpack.c.b16 %v1617, %v1616
    %v1884 = vpack.c.b16 %v1619, %v1618
    %v1885 = vpack.c.b16 %v1621, %v1620
    %v1886 = vpack.c.b16 %v1623, %v1622
    %v1887 = vpack.c.b16 %v1625, %v1624
    %v1888 = vpack.c.b16 %v1627, %v1626
    %v1893 = vunpack.c.l.b16 %v580
    %v1894 = vunpack.c.l.b16 %v581
    %v1895 = vunpack.c.l.b16 %v582
    %v1896 = vunpack.c.l.b16 %v583
    %v1897 = vpack.c.b16 %v1894, %v1893
    %v1898 = vpack.c.b16 %v1896, %v1895
    %vm1900 = vcmask 220160
    %v1902 = vsel %vm1900, %v1628, 0
    %v1905 = vsel %vm1900, %v1629, 0
    %v1908 = vsel %vm1900, %v1630, 0
    %v1911 = vsel %vm1900, %v1631, 0
    %v1914 = vsel %vm1900, %v1632, 0
    %v1917 = vsel %vm1900, %v1633, 0
    %v1920 = vsel %vm1900, %v1634, 0
    %v1923 = vsel %vm1900, %v1635, 0
    %v1926 = vsel %vm1900, %v1636, 0
    %v1929 = vsel %vm1900, %v1637, 0
    %v1932 = vsel %vm1900, %v1638, 0
    %v1935 = vsel %vm1900, %v1639, 0
    %v1938 = vsel %vm1900, %v1640, 0
    %v1941 = vsel %vm1900, %v1641, 0
    %v1944 = vsel %vm1900, %v1642, 0
    %v1947 = vsel %vm1900, %v1643, 0
    %v1950 = vsel %vm1900, %v1644, 0
    %v1953 = vsel %vm1900, %v1645, 0
    %v1956 = vsel %vm1900, %v1646, 0
    %v1959 = vsel %vm1900, %v1647, 0
    %v1962 = vsel %vm1900, %v1648, 0
    %v1965 = vsel %vm1900, %v1649, 0
    %v1968 = vsel %vm1900, %v1650, 0
    %v1971 = vsel %vm1900, %v1651, 0
    %v1974 = vsel %vm1900, %v1652, 0
    %v1977 = vsel %vm1900, %v1653, 0
    %v1980 = vsel %vm1900, %v1654, 0
    %v1983 = vsel %vm1900, %v1655, 0
    %v1986 = vsel %vm1900, %v1656, 0
    %v1989 = vsel %vm1900, %v1657, 0
    %v1992 = vsel %vm1900, %v1658, 0
    %v1995 = vsel %vm1900, %v1659, 0
    %v1998 = vsel %vm1900, %v1660, 0
    %v2001 = vsel %vm1900, %v1661, 0
    %v2004 = vsel %vm1900, %v1662, 0
    %v2007 = vsel %vm1900, %v1663, 0
    %v2010 = vsel %vm1900, %v1664, 0
    %v2013 = vsel %vm1900, %v1665, 0
    %v2016 = vsel %vm1900, %v1666, 0
    %v2019 = vsel %vm1900, %v1667, 0
    %v2022 = vsel %vm1900, %v1668, 0
    %v2025 = vsel %vm1900, %v1669, 0
    %v2028 = vsel %vm1900, %v1670, 0
    %v2031 = vsel %vm1900, %v1671, 0
    %v2034 = vsel %vm1900, %v1672, 0
    %v2037 = vsel %vm1900, %v1673, 0
    %v2040 = vsel %vm1900, %v1674, 0
    %v2043 = vsel %vm1900, %v1675, 0
    %v2046 = vsel %vm1900, %v1676, 0
    %v2049 = vsel %vm1900, %v1677, 0
    %v2052 = vsel %vm1900, %v1678, 0
    %v2055 = vsel %vm1900, %v1679, 0
    %v2058 = vsel %vm1900, %v1680, 0
    %v2061 = vsel %vm1900, %v1681, 0
    %v2064 = vsel %vm1900, %v1682, 0
    %v2067 = vsel %vm1900, %v1683, 0
    %v2070 = vsel %vm1900, %v1684, 0
    %v2073 = vsel %vm1900, %v1685, 0
    %v2076 = vsel %vm1900, %v1686, 0
    %v2079 = vsel %vm1900, %v1687, 0
    %v2082 = vsel %vm1900, %v1688, 0
    %v2085 = vsel %vm1900, %v1689, 0
    %v2088 = vsel %vm1900, %v1690, 0
    %v2091 = vsel %vm1900, %v1691, 0
    %v2094 = vsel %vm1900, %v1692, 0
    %v2097 = vsel %vm1900, %v1693, 0
    %v2100 = vsel %vm1900, %v1694, 0
    %v2103 = vsel %vm1900, %v1695, 0
    %v2106 = vsel %vm1900, %v1696, 0
    %v2109 = vsel %vm1900, %v1697, 0
    %v2112 = vsel %vm1900, %v1698, 0
    %v2115 = vsel %vm1900, %v1699, 0
    %v2118 = vsel %vm1900, %v1700, 0
    %v2121 = vsel %vm1900, %v1701, 0
    %v2124 = vsel %vm1900, %v1702, 0
    %v2127 = vsel %vm1900, %v1703, 0
    %v2130 = vsel %vm1900, %v1704, 0
    %v2133 = vsel %vm1900, %v1705, 0
    %v2136 = vsel %vm1900, %v1706, 0
    %v2139 = vsel %vm1900, %v1707, 0
    %v2142 = vsel %vm1900, %v1708, 0
    %v2145 = vsel %vm1900, %v1709, 0
    %v2148 = vsel %vm1900, %v1710, 0
    %v2151 = vsel %vm1900, %v1711, 0
    %v2154 = vsel %vm1900, %v1712, 0
    %v2157 = vsel %vm1900, %v1713, 0
    %v2160 = vsel %vm1900, %v1714, 0
    %v2163 = vsel %vm1900, %v1715, 0
    %v2166 = vsel %vm1900, %v1716, 0
    %v2169 = vsel %vm1900, %v1717, 0
    %v2172 = vsel %vm1900, %v1718, 0
    %v2175 = vsel %vm1900, %v1719, 0
    %v2178 = vsel %vm1900, %v1720, 0
    %v2181 = vsel %vm1900, %v1721, 0
    %v2184 = vsel %vm1900, %v1722, 0
    %v2187 = vsel %vm1900, %v1723, 0
    %v2190 = vsel %vm1900, %v1724, 0
    %v2193 = vsel %vm1900, %v1725, 0
    %v2196 = vsel %vm1900, %v1726, 0
    %v2199 = vsel %vm1900, %v1727, 0
    %v2202 = vsel %vm1900, %v1728, 0
    %v2205 = vsel %vm1900, %v1729, 0
    %v2208 = vsel %vm1900, %v1730, 0
    %v2211 = vsel %vm1900, %v1731, 0
    %v2214 = vsel %vm1900, %v1732, 0
    %v2217 = vsel %vm1900, %v1733, 0
    %v2220 = vsel %vm1900, %v1734, 0
    %v2223 = vsel %vm1900, %v1735, 0
    %v2226 = vsel %vm1900, %v1736, 0
    %v2229 = vsel %vm1900, %v1737, 0
    %v2232 = vsel %vm1900, %v1738, 0
    %v2235 = vsel %vm1900, %v1739, 0
    %v2238 = vsel %vm1900, %v1740, 0
    %v2241 = vsel %vm1900, %v1741, 0
    %v2244 = vsel %vm1900, %v1742, 0
    %v2247 = vsel %vm1900, %v1743, 0
    %v2250 = vsel %vm1900, %v1744, 0
    %v2253 = vsel %vm1900, %v1745, 0
    %v2256 = vsel %vm1900, %v1746, 0
    %v2259 = vsel %vm1900, %v1747, 0
    %v2262 = vsel %vm1900, %v1748, 0
    %v2265 = vsel %vm1900, %v1749, 0
    %v2268 = vsel %vm1900, %v1750, 0
    %v2271 = vsel %vm1900, %v1751, 0
    %v2274 = vsel %vm1900, %v1752, 0
    %v2277 = vsel %vm1900, %v1753, 0
    %v2280 = vsel %vm1900, %v1754, 0
    %v2283 = vsel %vm1900, %v1755, 0
    %v2286 = vsel %vm1900, %v1756, 0
    %v2289 = vsel %vm1900, %v1757, 0
    %v2292 = vsel %vm1900, %v1758, 0
    %v2295 = vsel %vm1900, %v1759, 0
    %v2298 = vsel %vm1900, %v1760, 0
    %v2301 = vsel %vm1900, %v1761, 0
    %v2304 = vsel %vm1900, %v1762, 0
    %v2307 = vsel %vm1900, %v1763, 0
    %v2310 = vsel %vm1900, %v1764, 0
    %v2313 = vsel %vm1900, %v1765, 0
    %v2316 = vsel %vm1900, %v1766, 0
    %v2319 = vsel %vm1900, %v1767, 0
    %v2322 = vsel %vm1900, %v1768, 0
    %v2325 = vsel %vm1900, %v1769, 0
    %v2328 = vsel %vm1900, %v1770, 0
    %v2331 = vsel %vm1900, %v1771, 0
    %v2334 = vsel %vm1900, %v1772, 0
    %v2337 = vsel %vm1900, %v1773, 0
    %v2340 = vsel %vm1900, %v1774, 0
    %v2343 = vsel %vm1900, %v1775, 0
    %v2346 = vsel %vm1900, %v1776, 0
    %v2349 = vsel %vm1900, %v1777, 0
    %v2352 = vsel %vm1900, %v1778, 0
    %v2355 = vsel %vm1900, %v1779, 0
    %v2358 = vsel %vm1900, %v1780, 0
    %v2361 = vsel %vm1900, %v1781, 0
    %v2364 = vsel %vm1900, %v1782, 0
    %v2367 = vsel %vm1900, %v1783, 0
    %v2370 = vsel %vm1900, %v1784, 0
    %v2373 = vsel %vm1900, %v1785, 0
    %v2376 = vsel %vm1900, %v1786, 0
    %v2379 = vsel %vm1900, %v1787, 0
    %v2382 = vsel %vm1900, %v1788, 0
    %v2385 = vsel %vm1900, %v1789, 0
    %v2388 = vsel %vm1900, %v1790, 0
    %v2391 = vsel %vm1900, %v1791, 0
    %v2394 = vsel %vm1900, %v1792, 0
    %v2397 = vsel %vm1900, %v1793, 0
    %v2400 = vsel %vm1900, %v1794, 0
    %v2403 = vsel %vm1900, %v1795, 0
    %v2406 = vsel %vm1900, %v1796, 0
    %v2409 = vsel %vm1900, %v1797, 0
    %v2412 = vsel %vm1900, %v1798, 0
    %v2415 = vsel %vm1900, %v1799, 0
    %v2418 = vsel %vm1900, %v1800, 0
    %v2421 = vsel %vm1900, %v1801, 0
    %v2424 = vsel %vm1900, %v1802, 0
    %v2427 = vsel %vm1900, %v1803, 0
    %v2430 = vsel %vm1900, %v1804, 0
    %v2433 = vsel %vm1900, %v1805, 0
    %v2436 = vsel %vm1900, %v1806, 0
    %v2439 = vsel %vm1900, %v1807, 0
    %v2442 = vsel %vm1900, %v1808, 0
    %v2445 = vsel %vm1900, %v1809, 0
    %v2448 = vsel %vm1900, %v1810, 0
    %v2451 = vsel %vm1900, %v1811, 0
    %v2454 = vsel %vm1900, %v1812, 0
    %v2457 = vsel %vm1900, %v1813, 0
    %v2460 = vsel %vm1900, %v1814, 0
    %v2463 = vsel %vm1900, %v1815, 0
    %v2466 = vsel %vm1900, %v1816, 0
    %v2469 = vsel %vm1900, %v1817, 0
    %v2472 = vsel %vm1900, %v1818, 0
    %v2475 = vsel %vm1900, %v1819, 0
    %v2478 = vsel %vm1900, %v1820, 0
    %v2481 = vsel %vm1900, %v1821, 0
    %v2484 = vsel %vm1900, %v1822, 0
    %v2487 = vsel %vm1900, %v1823, 0
    %v2490 = vsel %vm1900, %v1824, 0
    %v2493 = vsel %vm1900, %v1825, 0
    %v2496 = vsel %vm1900, %v1826, 0
    %v2499 = vsel %vm1900, %v1827, 0
    %v2502 = vsel %vm1900, %v1828, 0
    %v2505 = vsel %vm1900, %v1829, 0
    %v2508 = vsel %vm1900, %v1830, 0
    %v2511 = vsel %vm1900, %v1831, 0
    %v2514 = vsel %vm1900, %v1832, 0
    %v2517 = vsel %vm1900, %v1833, 0
    %v2520 = vsel %vm1900, %v1834, 0
    %v2523 = vsel %vm1900, %v1835, 0
    %v2526 = vsel %vm1900, %v1836, 0
    %v2529 = vsel %vm1900, %v1837, 0
    %v2532 = vsel %vm1900, %v1838, 0
    %v2535 = vsel %vm1900, %v1839, 0
    %v2538 = vsel %vm1900, %v1840, 0
    %v2541 = vsel %vm1900, %v1841, 0
    %v2544 = vsel %vm1900, %v1842, 0
    %v2547 = vsel %vm1900, %v1843, 0
    %v2550 = vsel %vm1900, %v1844, 0
    %v2553 = vsel %vm1900, %v1845, 0
    %v2556 = vsel %vm1900, %v1846, 0
    %v2559 = vsel %vm1900, %v1847, 0
    %v2562 = vsel %vm1900, %v1848, 0
    %v2565 = vsel %vm1900, %v1849, 0
    %v2568 = vsel %vm1900, %v1850, 0
    %v2571 = vsel %vm1900, %v1851, 0
    %v2574 = vsel %vm1900, %v1852, 0
    %v2577 = vsel %vm1900, %v1853, 0
    %v2580 = vsel %vm1900, %v1854, 0
    %v2583 = vsel %vm1900, %v1855, 0
    %v2586 = vsel %vm1900, %v1856, 0
    %v2589 = vsel %vm1900, %v1857, 0
    %v2592 = vsel %vm1900, %v1858, 0
    %v2595 = vsel %vm1900, %v1859, 0
    %v2598 = vsel %vm1900, %v1860, 0
    %v2601 = vsel %vm1900, %v1861, 0
    %v2604 = vsel %vm1900, %v1862, 0
    %v2607 = vsel %vm1900, %v1863, 0
    %v2610 = vsel %vm1900, %v1864, 0
    %v2613 = vsel %vm1900, %v1865, 0
    %v2616 = vsel %vm1900, %v1866, 0
    %v2619 = vsel %vm1900, %v1867, 0
    %v2622 = vsel %vm1900, %v1868, 0
    %v2625 = vsel %vm1900, %v1869, 0
    %v2628 = vsel %vm1900, %v1870, 0
    %v2631 = vsel %vm1900, %v1871, 0
    %v2634 = vsel %vm1900, %v1872, 0
    %v2637 = vsel %vm1900, %v1873, 0
    %v2640 = vsel %vm1900, %v1874, 0
    %v2643 = vsel %vm1900, %v1875, 0
    %v2646 = vsel %vm1900, %v1876, 0
    %v2649 = vsel %vm1900, %v1877, 0
    %v2652 = vsel %vm1900, %v1878, 0
    %v2655 = vsel %vm1900, %v1879, 0
    %v2658 = vsel %vm1900, %v1880, 0
    %v2661 = vsel %vm1900, %v1881, 0
    %v2664 = vsel %vm1900, %v1882, 0
    %v2667 = vsel %vm1900, %v1883, 0
    %v2670 = vsel %vm1900, %v1884, 0
    %v2673 = vsel %vm1900, %v1885, 0
    %v2676 = vsel %vm1900, %v1886, 0
    %v2679 = vsel %vm1900, %v1887, 0
    %v2682 = vsel %vm1900, %v1888, 0
    %vm2684 = vcmask 1044480
    %vm2685 = vcmask 1045504
    %v2686 = vsel %vm2684, 4294967295, 65535
    %v2687 = vsel %vm2685, %v2686, 0
    %v2689 = vand.u32 %v1898, %v2687
    %2691 = vmatprep.subr.bf16.mxu0 0
    %2692 = vmatpush1.bf16.msra.mxu0 %v1897
    %2693 = vmatprep.subr.bf16.mxu0 0
    %2694 = vmatpush1.bf16.msra.mxu0 %v2689
    %2695 = vmatprep.subr.bf16.mxu0 0
    %2696 = vmatpush1.bf16.msra.mxu0 0
    %2697 = vmatprep.subr.bf16.mxu0 0
    %2698 = vmatpush1.bf16.msra.mxu0 0
    %2699 = vmatprep.subr.bf16.mxu0 0
    %2700 = vmatpush1.bf16.msra.mxu0 0
    %2701 = vmatprep.subr.bf16.mxu0 0
    %2702 = vmatpush1.bf16.msra.mxu0 0
    %2703 = vmatprep.subr.bf16.mxu0 0
    %2704 = vmatpush1.bf16.msra.mxu0 0
    %2705 = vmatprep.subr.bf16.mxu0 0
    %2706 = vmatpush1.bf16.msra.mxu0 0
    %2707 = vmatprep.subr.bf16.mxu0 0
    %2708 = vmatpush1.bf16.msra.mxu0 0
    %2709 = vmatprep.subr.bf16.mxu0 0
    %2710 = vmatpush1.bf16.msra.mxu0 0
    %2711 = vmatprep.subr.bf16.mxu0 0
    %2712 = vmatpush1.bf16.msra.mxu0 0
    %2713 = vmatprep.subr.bf16.mxu0 0
    %2714 = vmatpush1.bf16.msra.mxu0 0
    %2715 = vmatprep.subr.bf16.mxu0 0
    %2716 = vmatpush1.bf16.msra.mxu0 0
    %2717 = vmatprep.subr.bf16.mxu0 0
    %2718 = vmatpush1.bf16.msra.mxu0 0
    %2719 = vmatprep.subr.bf16.mxu0 0
    %2720 = vmatpush1.bf16.msra.mxu0 0
    %2721 = vmatprep.subr.bf16.mxu0 0
    %2722 = vmatpush1.bf16.msra.mxu0 0
    %2723 = vmatprep.mubr.bf16.mxu0 0
    %2724 = vmatmul.mubr.bf16.gmra.mrb[0].mxu0 %v1902
    %v2725 = vpop.f32.mrb[0].mxu0
    %v2726 = vadd.f32 0.0, %v2725
    %v2727 = vpop.f32.mrb[0].mxu0
    %v2728 = vpop.f32.mrb[0].mxu0
    %v2729 = vadd.f32 0.0, %v2728
    %v2730 = vpop.f32.mrb[0].mxu0
    %2731 = vmatprep.mubr.bf16.mxu0 0
    %2732 = vmatmul.mubr.bf16.gmra.mrb[0].mxu0 %v1905
    %v2733 = vpop.f32.mrb[0].mxu0
    %v2734 = vadd.f32 0.0, %v2733
    %v2735 = vpop.f32.mrb[0].mxu0
    %v2736 = vpop.f32.mrb[0].mxu0
    %v2737 = vadd.f32 0.0, %v2736
    %v2738 = vpop.f32.mrb[0].mxu0
    %2739 = vmatprep.mubr.bf16.mxu0 0
    %2740 = vmatmul.mubr.bf16.gmra.mrb[0].mxu0 %v1908
    %v2741 = vpop.f32.mrb[0].mxu0
    %v2742 = vadd.f32 0.0, %v2741
    %v2743 = vpop.f32.mrb[0].mxu0
    %v2744 = vpop.f32.mrb[0].mxu0
    %v2745 = vadd.f32 0.0, %v2744
    %v2746 = vpop.f32.mrb[0].mxu0
    %2747 = vmatprep.mubr.bf16.mxu0 0
    %2748 = vmatmul.mubr.bf16.gmra.mrb[0].mxu0 %v1911
    %v2749 = vpop.f32.mrb[0].mxu0
    %v2750 = vadd.f32 0.0, %v2749
    %v2751 = vpop.f32.mrb[0].mxu0
    %v2752 = vpop.f32.mrb[0].mxu0
    %v2753 = vadd.f32 0.0, %v2752
    %v2754 = vpop.f32.mrb[0].mxu0
    %2755 = vmatprep.mubr.bf16.mxu0 0
    %2756 = vmatmul.mubr.bf16.gmra.mrb[0].mxu0 %v1914
    %v2757 = vpop.f32.mrb[0].mxu0
    %v2758 = vadd.f32 0.0, %v2757
    %v2759 = vpop.f32.mrb[0].mxu0
    %v2760 = vpop.f32.mrb[0].mxu0
    %v2761 = vadd.f32 0.0, %v2760
    %v2762 = vpop.f32.mrb[0].mxu0
    %2763 = vmatprep.mubr.bf16.mxu0 0
    %2764 = vmatmul.mubr.bf16.gmra.mrb[0].mxu0 %v1917
    %v2765 = vpop.f32.mrb[0].mxu0
    %v2766 = vadd.f32 0.0, %v2765
    %v2767 = vpop.f32.mrb[0].mxu0
    %v2768 = vpop.f32.mrb[0].mxu0
    %v2769 = vadd.f32 0.0, %v2768
    %v2770 = vpop.f32.mrb[0].mxu0
    %2771 = vmatprep.mubr.bf16.mxu0 0
    %2772 = vmatmul.mubr.bf16.gmra.mrb[0].mxu0 %v1920
    %v2773 = vpop.f32.mrb[0].mxu0
    %v2774 = vadd.f32 0.0, %v2773
    %v2775 = vpop.f32.mrb[0].mxu0
    %v2776 = vpop.f32.mrb[0].mxu0
    %v2777 = vadd.f32 0.0, %v2776
    %v2778 = vpop.f32.mrb[0].mxu0
    %2779 = vmatprep.mubr.bf16.mxu0 0
    %2780 = vmatmul.mubr.bf16.gmra.mrb[0].mxu0 %v1923
    %v2781 = vpop.f32.mrb[0].mxu0
    %v2782 = vadd.f32 0.0, %v2781
    %v2783 = vpop.f32.mrb[0].mxu0
    %v2784 = vpop.f32.mrb[0].mxu0
    %v2785 = vadd.f32 0.0, %v2784
    %v2786 = vpop.f32.mrb[0].mxu0
    %2787 = vmatprep.mubr.bf16.mxu0 0
    %2788 = vmatmul.mubr.bf16.gmra.mrb[0].mxu0 %v1926
    %v2789 = vpop.f32.mrb[0].mxu0
    %v2790 = vadd.f32 0.0, %v2789
    %v2791 = vpop.f32.mrb[0].mxu0
    %v2792 = vpop.f32.mrb[0].mxu0
    %v2793 = vadd.f32 0.0, %v2792
    %v2794 = vpop.f32.mrb[0].mxu0
    %2795 = vmatprep.mubr.bf16.mxu0 0
    %2796 = vmatmul.mubr.bf16.gmra.mrb[0].mxu0 %v1929
    %v2797 = vpop.f32.mrb[0].mxu0
    %v2798 = vadd.f32 0.0, %v2797
    %v2799 = vpop.f32.mrb[0].mxu0
    %v2800 = vpop.f32.mrb[0].mxu0
    %v2801 = vadd.f32 0.0, %v2800
    %v2802 = vpop.f32.mrb[0].mxu0
    %2803 = vmatprep.mubr.bf16.mxu0 0
    %2804 = vmatmul.mubr.bf16.gmra.mrb[0].mxu0 %v1932
    %v2805 = vpop.f32.mrb[0].mxu0
    %v2806 = vadd.f32 0.0, %v2805
    %v2807 = vpop.f32.mrb[0].mxu0
    %v2808 = vpop.f32.mrb[0].mxu0
    %v2809 = vadd.f32 0.0, %v2808
    %v2810 = vpop.f32.mrb[0].mxu0
    %2811 = vmatprep.mubr.bf16.mxu0 0
    %2812 = vmatmul.mubr.bf16.gmra.mrb[0].mxu0 %v1935
    %v2813 = vpop.f32.mrb[0].mxu0
    %v2814 = vadd.f32 0.0, %v2813
    %v2815 = vpop.f32.mrb[0].mxu0
    %v2816 = vpop.f32.mrb[0].mxu0
    %v2817 = vadd.f32 0.0, %v2816
    %v2818 = vpop.f32.mrb[0].mxu0
    %2819 = vmatprep.mubr.bf16.mxu0 0
    %2820 = vmatmul.mubr.bf16.gmra.mrb[0].mxu0 %v1938
    %v2821 = vpop.f32.mrb[0].mxu0
    %v2822 = vadd.f32 0.0, %v2821
    %v2823 = vpop.f32.mrb[0].mxu0
    %v2824 = vpop.f32.mrb[0].mxu0
    %v2825 = vadd.f32 0.0, %v2824
    %v2826 = vpop.f32.mrb[0].mxu0
    %2827 = vmatprep.mubr.bf16.mxu0 0
    %2828 = vmatmul.mubr.bf16.gmra.mrb[0].mxu0 %v1941
    %v2829 = vpop.f32.mrb[0].mxu0
    %v2830 = vadd.f32 0.0, %v2829
    %v2831 = vpop.f32.mrb[0].mxu0
    %v2832 = vpop.f32.mrb[0].mxu0
    %v2833 = vadd.f32 0.0, %v2832
    %v2834 = vpop.f32.mrb[0].mxu0
    %2835 = vmatprep.mubr.bf16.mxu0 0
    %2836 = vmatmul.mubr.bf16.gmra.mrb[0].mxu0 %v1944
    %v2837 = vpop.f32.mrb[0].mxu0
    %v2838 = vadd.f32 0.0, %v2837
    %v2839 = vpop.f32.mrb[0].mxu0
    %v2840 = vpop.f32.mrb[0].mxu0
    %v2841 = vadd.f32 0.0, %v2840
    %v2842 = vpop.f32.mrb[0].mxu0
    %2843 = vmatprep.mubr.bf16.mxu0 0
    %2844 = vmatmul.mubr.bf16.gmra.mrb[0].mxu0 %v1947
    %v2845 = vpop.f32.mrb[0].mxu0
    %v2846 = vadd.f32 0.0, %v2845
    %v2847 = vpop.f32.mrb[0].mxu0
    %v2848 = vpop.f32.mrb[0].mxu0
    %v2849 = vadd.f32 0.0, %v2848
    %v2850 = vpop.f32.mrb[0].mxu0
    %2851 = vmatprep.mubr.bf16.mxu0 0
    %2852 = vmatmul.mubr.bf16.gmra.mrb[0].mxu0 %v1950
    %v2853 = vpop.f32.mrb[0].mxu0
    %v2854 = vadd.f32 0.0, %v2853
    %v2855 = vpop.f32.mrb[0].mxu0
    %v2856 = vpop.f32.mrb[0].mxu0
    %v2857 = vadd.f32 0.0, %v2856
    %v2858 = vpop.f32.mrb[0].mxu0
    %2859 = vmatprep.mubr.bf16.mxu0 0
    %2860 = vmatmul.mubr.bf16.gmra.mrb[0].mxu0 %v1953
    %v2861 = vpop.f32.mrb[0].mxu0
    %v2862 = vadd.f32 0.0, %v2861
    %v2863 = vpop.f32.mrb[0].mxu0
    %v2864 = vpop.f32.mrb[0].mxu0
    %v2865 = vadd.f32 0.0, %v2864
    %v2866 = vpop.f32.mrb[0].mxu0
    %2867 = vmatprep.mubr.bf16.mxu0 0
    %2868 = vmatmul.mubr.bf16.gmra.mrb[0].mxu0 %v1956
    %v2869 = vpop.f32.mrb[0].mxu0
    %v2870 = vadd.f32 0.0, %v2869
    %v2871 = vpop.f32.mrb[0].mxu0
    %v2872 = vpop.f32.mrb[0].mxu0
    %v2873 = vadd.f32 0.0, %v2872
    %v2874 = vpop.f32.mrb[0].mxu0
    %2875 = vmatprep.mubr.bf16.mxu0 0
    %2876 = vmatmul.mubr.bf16.gmra.mrb[0].mxu0 %v1959
    %v2877 = vpop.f32.mrb[0].mxu0
    %v2878 = vadd.f32 0.0, %v2877
    %v2879 = vpop.f32.mrb[0].mxu0
    %v2880 = vpop.f32.mrb[0].mxu0
    %v2881 = vadd.f32 0.0, %v2880
    %v2882 = vpop.f32.mrb[0].mxu0
    %2883 = vmatprep.mubr.bf16.mxu0 0
    %2884 = vmatmul.mubr.bf16.gmra.mrb[0].mxu0 %v1962
    %v2885 = vpop.f32.mrb[0].mxu0
    %v2886 = vadd.f32 0.0, %v2885
    %v2887 = vpop.f32.mrb[0].mxu0
    %v2888 = vpop.f32.mrb[0].mxu0
    %v2889 = vadd.f32 0.0, %v2888
    %v2890 = vpop.f32.mrb[0].mxu0
    %2891 = vmatprep.mubr.bf16.mxu0 0
    %2892 = vmatmul.mubr.bf16.gmra.mrb[0].mxu0 %v1965
    %v2893 = vpop.f32.mrb[0].mxu0
    %v2894 = vadd.f32 0.0, %v2893
    %v2895 = vpop.f32.mrb[0].mxu0
    %v2896 = vpop.f32.mrb[0].mxu0
    %v2897 = vadd.f32 0.0, %v2896
    %v2898 = vpop.f32.mrb[0].mxu0
    %2899 = vmatprep.mubr.bf16.mxu0 0
    %2900 = vmatmul.mubr.bf16.gmra.mrb[0].mxu0 %v1968
    %v2901 = vpop.f32.mrb[0].mxu0
    %v2902 = vadd.f32 0.0, %v2901
    %v2903 = vpop.f32.mrb[0].mxu0
    %v2904 = vpop.f32.mrb[0].mxu0
    %v2905 = vadd.f32 0.0, %v2904
    %v2906 = vpop.f32.mrb[0].mxu0
    %2907 = vmatprep.mubr.bf16.mxu0 0
    %2908 = vmatmul.mubr.bf16.gmra.mrb[0].mxu0 %v1971
    %v2909 = vpop.f32.mrb[0].mxu0
    %v2910 = vadd.f32 0.0, %v2909
    %v2911 = vpop.f32.mrb[0].mxu0
    %v2912 = vpop.f32.mrb[0].mxu0
    %v2913 = vadd.f32 0.0, %v2912
    %v2914 = vpop.f32.mrb[0].mxu0
    %2915 = vmatprep.mubr.bf16.mxu0 0
    %2916 = vmatmul.mubr.bf16.gmra.mrb[0].mxu0 %v1974
    %v2917 = vpop.f32.mrb[0].mxu0
    %v2918 = vadd.f32 0.0, %v2917
    %v2919 = vpop.f32.mrb[0].mxu0
    %v2920 = vpop.f32.mrb[0].mxu0
    %v2921 = vadd.f32 0.0, %v2920
    %v2922 = vpop.f32.mrb[0].mxu0
    %2923 = vmatprep.mubr.bf16.mxu0 0
    %2924 = vmatmul.mubr.bf16.gmra.mrb[0].mxu0 %v1977
    %v2925 = vpop.f32.mrb[0].mxu0
    %v2926 = vadd.f32 0.0, %v2925
    %v2927 = vpop.f32.mrb[0].mxu0
    %v2928 = vpop.f32.mrb[0].mxu0
    %v2929 = vadd.f32 0.0, %v2928
    %v2930 = vpop.f32.mrb[0].mxu0
    %2931 = vmatprep.mubr.bf16.mxu0 0
    %2932 = vmatmul.mubr.bf16.gmra.mrb[0].mxu0 %v1980
    %v2933 = vpop.f32.mrb[0].mxu0
    %v2934 = vadd.f32 0.0, %v2933
    %v2935 = vpop.f32.mrb[0].mxu0
    %v2936 = vpop.f32.mrb[0].mxu0
    %v2937 = vadd.f32 0.0, %v2936
    %v2938 = vpop.f32.mrb[0].mxu0
    %2939 = vmatprep.mubr.bf16.mxu0 0
    %2940 = vmatmul.mubr.bf16.gmra.mrb[0].mxu0 %v1983
    %v2941 = vpop.f32.mrb[0].mxu0
    %v2942 = vadd.f32 0.0, %v2941
    %v2943 = vpop.f32.mrb[0].mxu0
    %v2944 = vpop.f32.mrb[0].mxu0
    %v2945 = vadd.f32 0.0, %v2944
    %v2946 = vpop.f32.mrb[0].mxu0
    %2947 = vmatprep.mubr.bf16.mxu0 0
    %2948 = vmatmul.mubr.bf16.gmra.mrb[0].mxu0 %v1986
    %v2949 = vpop.f32.mrb[0].mxu0
    %v2950 = vadd.f32 0.0, %v2949
    %v2951 = vpop.f32.mrb[0].mxu0
    %v2952 = vpop.f32.mrb[0].mxu0
    %v2953 = vpop.f32.mrb[0].mxu0
    %2954 = vmatprep.mubr.bf16.mxu0 0
    %2955 = vmatmul.mubr.bf16.gmra.mrb[0].mxu0 %v1989
    %v2956 = vpop.f32.mrb[0].mxu0
    %v2957 = vadd.f32 0.0, %v2956
    %v2958 = vpop.f32.mrb[0].mxu0
    %v2959 = vpop.f32.mrb[0].mxu0
    %v2960 = vadd.f32 0.0, %v2959
    %v2961 = vpop.f32.mrb[0].mxu0
    %2962 = vmatprep.mubr.bf16.mxu0 0
    %2963 = vmatmul.mubr.bf16.gmra.mrb[0].mxu0 %v1992
    %v2964 = vpop.f32.mrb[0].mxu0
    %v2965 = vadd.f32 0.0, %v2964
    %v2966 = vpop.f32.mrb[0].mxu0
    %v2967 = vpop.f32.mrb[0].mxu0
    %v2968 = vadd.f32 0.0, %v2967
    %v2969 = vpop.f32.mrb[0].mxu0
    %2970 = vmatprep.mubr.bf16.mxu0 0
    %2971 = vmatmul.mubr.bf16.gmra.mrb[0].mxu0 %v1995
    %v2972 = vpop.f32.mrb[0].mxu0
    %v2973 = vadd.f32 0.0, %v2972
    %v2974 = vpop.f32.mrb[0].mxu0
    %v2975 = vpop.f32.mrb[0].mxu0
    %v2976 = vadd.f32 0.0, %v2975
    %v2977 = vpop.f32.mrb[0].mxu0
    %2978 = vmatprep.mubr.bf16.mxu0 0
    %2979 = vmatmul.mubr.bf16.gmra.mrb[0].mxu0 %v1998
    %v2980 = vpop.f32.mrb[0].mxu0
    %v2981 = vadd.f32 0.0, %v2980
    %v2982 = vpop.f32.mrb[0].mxu0
    %v2983 = vpop.f32.mrb[0].mxu0
    %v2984 = vadd.f32 0.0, %v2983
    %v2985 = vpop.f32.mrb[0].mxu0
    %2986 = vmatprep.mubr.bf16.mxu0 0
    %2987 = vmatmul.mubr.bf16.gmra.mrb[0].mxu0 %v2001
    %v2988 = vpop.f32.mrb[0].mxu0
    %v2989 = vadd.f32 0.0, %v2988
    %v2990 = vpop.f32.mrb[0].mxu0
    %v2991 = vpop.f32.mrb[0].mxu0
    %v2992 = vadd.f32 0.0, %v2991
    %v2993 = vpop.f32.mrb[0].mxu0
    %2994 = vmatprep.mubr.bf16.mxu0 0
    %2995 = vmatmul.mubr.bf16.gmra.mrb[0].mxu0 %v2004
    %v2996 = vpop.f32.mrb[0].mxu0
    %v2997 = vadd.f32 0.0, %v2996
    %v2998 = vpop.f32.mrb[0].mxu0
    %v2999 = vpop.f32.mrb[0].mxu0
    %v3000 = vadd.f32 0.0, %v2999
    %v3001 = vpop.f32.mrb[0].mxu0
    %3002 = vmatprep.mubr.bf16.mxu0 0
    %3003 = vmatmul.mubr.bf16.gmra.mrb[0].mxu0 %v2007
    %v3004 = vpop.f32.mrb[0].mxu0
    %v3005 = vadd.f32 0.0, %v3004
    %v3006 = vpop.f32.mrb[0].mxu0
    %v3007 = vpop.f32.mrb[0].mxu0
    %v3008 = vadd.f32 0.0, %v3007
    %v3009 = vpop.f32.mrb[0].mxu0
    %3010 = vmatprep.mubr.bf16.mxu0 0
    %3011 = vmatmul.mubr.bf16.gmra.mrb[0].mxu0 %v2010
    %v3012 = vpop.f32.mrb[0].mxu0
    %v3013 = vadd.f32 0.0, %v3012
    %v3014 = vpop.f32.mrb[0].mxu0
    %v3015 = vpop.f32.mrb[0].mxu0
    %v3016 = vadd.f32 0.0, %v3015
    %v3017 = vpop.f32.mrb[0].mxu0
    %3018 = vmatprep.mubr.bf16.mxu0 0
    %3019 = vmatmul.mubr.bf16.gmra.mrb[0].mxu0 %v2013
    %v3020 = vpop.f32.mrb[0].mxu0
    %v3021 = vadd.f32 0.0, %v3020
    %v3022 = vpop.f32.mrb[0].mxu0
    %v3023 = vpop.f32.mrb[0].mxu0
    %v3024 = vadd.f32 0.0, %v3023
    %v3025 = vpop.f32.mrb[0].mxu0
    %3026 = vmatprep.mubr.bf16.mxu0 0
    %3027 = vmatmul.mubr.bf16.gmra.mrb[0].mxu0 %v2016
    %v3028 = vpop.f32.mrb[0].mxu0
    %v3029 = vadd.f32 0.0, %v3028
    %v3030 = vpop.f32.mrb[0].mxu0
    %v3031 = vpop.f32.mrb[0].mxu0
    %v3032 = vadd.f32 0.0, %v3031
    %v3033 = vpop.f32.mrb[0].mxu0
    %3034 = vmatprep.mubr.bf16.mxu0 0
    %3035 = vmatmul.mubr.bf16.gmra.mrb[0].mxu0 %v2019
    %v3036 = vpop.f32.mrb[0].mxu0
    %v3037 = vadd.f32 0.0, %v3036
    %v3038 = vpop.f32.mrb[0].mxu0
    %v3039 = vpop.f32.mrb[0].mxu0
    %v3040 = vadd.f32 0.0, %v3039
    %v3041 = vpop.f32.mrb[0].mxu0
    %3042 = vmatprep.mubr.bf16.mxu0 0
    %3043 = vmatmul.mubr.bf16.gmra.mrb[0].mxu0 %v2022
    %v3044 = vpop.f32.mrb[0].mxu0
    %v3045 = vadd.f32 0.0, %v3044
    %v3046 = vpop.f32.mrb[0].mxu0
    %v3047 = vpop.f32.mrb[0].mxu0
    %v3048 = vadd.f32 0.0, %v3047
    %v3049 = vpop.f32.mrb[0].mxu0
    %3050 = vmatprep.mubr.bf16.mxu0 0
    %3051 = vmatmul.mubr.bf16.gmra.mrb[0].mxu0 %v2025
    %v3052 = vpop.f32.mrb[0].mxu0
    %v3053 = vadd.f32 0.0, %v3052
    %v3054 = vpop.f32.mrb[0].mxu0
    %v3055 = vpop.f32.mrb[0].mxu0
    %v3056 = vadd.f32 0.0, %v3055
    %v3057 = vpop.f32.mrb[0].mxu0
    %3058 = vmatprep.mubr.bf16.mxu0 0
    %3059 = vmatmul.mubr.bf16.gmra.mrb[0].mxu0 %v2028
    %v3060 = vpop.f32.mrb[0].mxu0
    %v3061 = vadd.f32 0.0, %v3060
    %v3062 = vpop.f32.mrb[0].mxu0
    %v3063 = vpop.f32.mrb[0].mxu0
    %v3064 = vadd.f32 0.0, %v3063
    %v3065 = vpop.f32.mrb[0].mxu0
    %3066 = vmatprep.mubr.bf16.mxu0 0
    %3067 = vmatmul.mubr.bf16.gmra.mrb[0].mxu0 %v2031
    %v3068 = vpop.f32.mrb[0].mxu0
    %v3069 = vadd.f32 0.0, %v3068
    %v3070 = vpop.f32.mrb[0].mxu0
    %v3071 = vpop.f32.mrb[0].mxu0
    %v3072 = vadd.f32 0.0, %v3071
    %v3073 = vpop.f32.mrb[0].mxu0
    %3074 = vmatprep.mubr.bf16.mxu0 0
    %3075 = vmatmul.mubr.bf16.gmra.mrb[0].mxu0 %v2034
    %v3076 = vpop.f32.mrb[0].mxu0
    %v3077 = vadd.f32 0.0, %v3076
    %v3078 = vpop.f32.mrb[0].mxu0
    %v3079 = vpop.f32.mrb[0].mxu0
    %v3080 = vadd.f32 0.0, %v3079
    %v3081 = vpop.f32.mrb[0].mxu0
    %3082 = vmatprep.mubr.bf16.mxu0 0
    %3083 = vmatmul.mubr.bf16.gmra.mrb[0].mxu0 %v2037
    %v3084 = vpop.f32.mrb[0].mxu0
    %v3085 = vadd.f32 0.0, %v3084
    %v3086 = vpop.f32.mrb[0].mxu0
    %v3087 = vpop.f32.mrb[0].mxu0
    %v3088 = vadd.f32 0.0, %v3087
    %v3089 = vpop.f32.mrb[0].mxu0
    %3090 = vmatprep.mubr.bf16.mxu0 0
    %3091 = vmatmul.mubr.bf16.gmra.mrb[0].mxu0 %v2040
    %v3092 = vpop.f32.mrb[0].mxu0
    %v3093 = vadd.f32 0.0, %v3092
    %v3094 = vpop.f32.mrb[0].mxu0
    %v3095 = vpop.f32.mrb[0].mxu0
    %v3096 = vadd.f32 0.0, %v3095
    %v3097 = vpop.f32.mrb[0].mxu0
    %3098 = vmatprep.mubr.bf16.mxu0 0
    %3099 = vmatmul.mubr.bf16.gmra.mrb[0].mxu0 %v2043
    %v3100 = vpop.f32.mrb[0].mxu0
    %v3101 = vadd.f32 0.0, %v3100
    %v3102 = vpop.f32.mrb[0].mxu0
    %v3103 = vpop.f32.mrb[0].mxu0
    %v3104 = vadd.f32 0.0, %v3103
    %v3105 = vpop.f32.mrb[0].mxu0
    %3106 = vmatprep.mubr.bf16.mxu0 0
    %3107 = vmatmul.mubr.bf16.gmra.mrb[0].mxu0 %v2046
    %v3108 = vpop.f32.mrb[0].mxu0
    %v3109 = vadd.f32 0.0, %v3108
    %v3110 = vpop.f32.mrb[0].mxu0
    %v3111 = vpop.f32.mrb[0].mxu0
    %v3112 = vadd.f32 0.0, %v3111
    %v3113 = vpop.f32.mrb[0].mxu0
    %3114 = vmatprep.mubr.bf16.mxu0 0
    %3115 = vmatmul.mubr.bf16.gmra.mrb[0].mxu0 %v2049
    %v3116 = vpop.f32.mrb[0].mxu0
    %v3117 = vadd.f32 0.0, %v3116
    %v3118 = vpop.f32.mrb[0].mxu0
    %v3119 = vpop.f32.mrb[0].mxu0
    %v3120 = vadd.f32 0.0, %v3119
    %v3121 = vpop.f32.mrb[0].mxu0
    %3122 = vmatprep.mubr.bf16.mxu0 0
    %3123 = vmatmul.mubr.bf16.gmra.mrb[0].mxu0 %v2052
    %v3124 = vpop.f32.mrb[0].mxu0
    %v3125 = vadd.f32 0.0, %v3124
    %v3126 = vpop.f32.mrb[0].mxu0
    %v3127 = vpop.f32.mrb[0].mxu0
    %v3128 = vadd.f32 0.0, %v3127
    %v3129 = vpop.f32.mrb[0].mxu0
    %3130 = vmatprep.mubr.bf16.mxu0 0
    %3131 = vmatmul.mubr.bf16.gmra.mrb[0].mxu0 %v2055
    %v3132 = vpop.f32.mrb[0].mxu0
    %v3133 = vadd.f32 0.0, %v3132
    %v3134 = vpop.f32.mrb[0].mxu0
    %v3135 = vpop.f32.mrb[0].mxu0
    %v3136 = vadd.f32 0.0, %v3135
    %v3137 = vpop.f32.mrb[0].mxu0
    %3138 = vmatprep.mubr.bf16.mxu0 0
    %3139 = vmatmul.mubr.bf16.gmra.mrb[0].mxu0 %v2058
    %v3140 = vpop.f32.mrb[0].mxu0
    %v3141 = vadd.f32 0.0, %v3140
    %v3142 = vpop.f32.mrb[0].mxu0
    %v3143 = vpop.f32.mrb[0].mxu0
    %v3144 = vadd.f32 0.0, %v3143
    %v3145 = vpop.f32.mrb[0].mxu0
    %3146 = vmatprep.mubr.bf16.mxu0 0
    %3147 = vmatmul.mubr.bf16.gmra.mrb[0].mxu0 %v2061
    %v3148 = vpop.f32.mrb[0].mxu0
    %v3149 = vadd.f32 0.0, %v3148
    %v3150 = vpop.f32.mrb[0].mxu0
    %v3151 = vpop.f32.mrb[0].mxu0
    %v3152 = vadd.f32 0.0, %v3151
    %v3153 = vpop.f32.mrb[0].mxu0
    %3154 = vmatprep.mubr.bf16.mxu0 0
    %3155 = vmatmul.mubr.bf16.gmra.mrb[0].mxu0 %v2064
    %v3156 = vpop.f32.mrb[0].mxu0
    %v3157 = vadd.f32 0.0, %v3156
    %v3158 = vpop.f32.mrb[0].mxu0
    %v3159 = vpop.f32.mrb[0].mxu0
    %v3160 = vadd.f32 0.0, %v3159
    %v3161 = vpop.f32.mrb[0].mxu0
    %3162 = vmatprep.mubr.bf16.mxu0 0
    %3163 = vmatmul.mubr.bf16.gmra.mrb[0].mxu0 %v2067
    %v3164 = vpop.f32.mrb[0].mxu0
    %v3165 = vadd.f32 0.0, %v3164
    %v3166 = vpop.f32.mrb[0].mxu0
    %v3167 = vpop.f32.mrb[0].mxu0
    %v3168 = vadd.f32 0.0, %v3167
    %v3169 = vpop.f32.mrb[0].mxu0
    %3170 = vmatprep.mubr.bf16.mxu0 0
    %3171 = vmatmul.mubr.bf16.gmra.mrb[0].mxu0 %v2070
    %v3172 = vpop.f32.mrb[0].mxu0
    %v3173 = vadd.f32 0.0, %v3172
    %v3174 = vpop.f32.mrb[0].mxu0
    %v3175 = vpop.f32.mrb[0].mxu0
    %v3176 = vadd.f32 0.0, %v3175
    %v3177 = vpop.f32.mrb[0].mxu0
    %3178 = vmatprep.mubr.bf16.mxu0 0
    %3179 = vmatmul.mubr.bf16.gmra.mrb[0].mxu0 %v2073
    %v3180 = vpop.f32.mrb[0].mxu0
    %v3181 = vadd.f32 0.0, %v3180
    %v3182 = vpop.f32.mrb[0].mxu0
    %v3183 = vpop.f32.mrb[0].mxu0
    %v3184 = vpop.f32.mrb[0].mxu0
    %3185 = vmatprep.mubr.bf16.mxu0 0
    %3186 = vmatmul.mubr.bf16.gmra.mrb[0].mxu0 %v2076
    %v3187 = vpop.f32.mrb[0].mxu0
    %v3188 = vadd.f32 0.0, %v3187
    %v3189 = vpop.f32.mrb[0].mxu0
    %v3190 = vpop.f32.mrb[0].mxu0
    %v3191 = vadd.f32 0.0, %v3190
    %v3192 = vpop.f32.mrb[0].mxu0
    %3193 = vmatprep.mubr.bf16.mxu0 0
    %3194 = vmatmul.mubr.bf16.gmra.mrb[0].mxu0 %v2079
    %v3195 = vpop.f32.mrb[0].mxu0
    %v3196 = vadd.f32 0.0, %v3195
    %v3197 = vpop.f32.mrb[0].mxu0
    %v3198 = vpop.f32.mrb[0].mxu0
    %v3199 = vadd.f32 0.0, %v3198
    %v3200 = vpop.f32.mrb[0].mxu0
    %3201 = vmatprep.mubr.bf16.mxu0 0
    %3202 = vmatmul.mubr.bf16.gmra.mrb[0].mxu0 %v2082
    %v3203 = vpop.f32.mrb[0].mxu0
    %v3204 = vadd.f32 0.0, %v3203
    %v3205 = vpop.f32.mrb[0].mxu0
    %v3206 = vpop.f32.mrb[0].mxu0
    %v3207 = vadd.f32 0.0, %v3206
    %v3208 = vpop.f32.mrb[0].mxu0
    %3209 = vmatprep.mubr.bf16.mxu0 0
    %3210 = vmatmul.mubr.bf16.gmra.mrb[0].mxu0 %v2085
    %v3211 = vpop.f32.mrb[0].mxu0
    %v3212 = vadd.f32 0.0, %v3211
    %v3213 = vpop.f32.mrb[0].mxu0
    %v3214 = vpop.f32.mrb[0].mxu0
    %v3215 = vadd.f32 0.0, %v3214
    %v3216 = vpop.f32.mrb[0].mxu0
    %3217 = vmatprep.mubr.bf16.mxu0 0
    %3218 = vmatmul.mubr.bf16.gmra.mrb[0].mxu0 %v2088
    %v3219 = vpop.f32.mrb[0].mxu0
    %v3220 = vadd.f32 0.0, %v3219
    %v3221 = vpop.f32.mrb[0].mxu0
    %v3222 = vpop.f32.mrb[0].mxu0
    %v3223 = vadd.f32 0.0, %v3222
    %v3224 = vpop.f32.mrb[0].mxu0
    %3225 = vmatprep.mubr.bf16.mxu0 0
    %3226 = vmatmul.mubr.bf16.gmra.mrb[0].mxu0 %v2091
    %v3227 = vpop.f32.mrb[0].mxu0
    %v3228 = vadd.f32 0.0, %v3227
    %v3229 = vpop.f32.mrb[0].mxu0
    %v3230 = vpop.f32.mrb[0].mxu0
    %v3231 = vadd.f32 0.0, %v3230
    %v3232 = vpop.f32.mrb[0].mxu0
    %3233 = vmatprep.mubr.bf16.mxu0 0
    %3234 = vmatmul.mubr.bf16.gmra.mrb[0].mxu0 %v2094
    %v3235 = vpop.f32.mrb[0].mxu0
    %v3236 = vadd.f32 0.0, %v3235
    %v3237 = vpop.f32.mrb[0].mxu0
    %v3238 = vpop.f32.mrb[0].mxu0
    %v3239 = vadd.f32 0.0, %v3238
    %v3240 = vpop.f32.mrb[0].mxu0
    %3241 = vmatprep.mubr.bf16.mxu0 0
    %3242 = vmatmul.mubr.bf16.gmra.mrb[0].mxu0 %v2097
    %v3243 = vpop.f32.mrb[0].mxu0
    %v3244 = vadd.f32 0.0, %v3243
    %v3245 = vpop.f32.mrb[0].mxu0
    %v3246 = vpop.f32.mrb[0].mxu0
    %v3247 = vadd.f32 0.0, %v3246
    %v3248 = vpop.f32.mrb[0].mxu0
    %3249 = vmatprep.mubr.bf16.mxu0 0
    %3250 = vmatmul.mubr.bf16.gmra.mrb[0].mxu0 %v2100
    %v3251 = vpop.f32.mrb[0].mxu0
    %v3252 = vadd.f32 0.0, %v3251
    %v3253 = vpop.f32.mrb[0].mxu0
    %v3254 = vpop.f32.mrb[0].mxu0
    %v3255 = vadd.f32 0.0, %v3254
    %v3256 = vpop.f32.mrb[0].mxu0
    %3257 = vmatprep.mubr.bf16.mxu0 0
    %3258 = vmatmul.mubr.bf16.gmra.mrb[0].mxu0 %v2103
    %v3259 = vpop.f32.mrb[0].mxu0
    %v3260 = vadd.f32 0.0, %v3259
    %v3261 = vpop.f32.mrb[0].mxu0
    %v3262 = vpop.f32.mrb[0].mxu0
    %v3263 = vadd.f32 0.0, %v3262
    %v3264 = vpop.f32.mrb[0].mxu0
    %3265 = vmatprep.mubr.bf16.mxu0 0
    %3266 = vmatmul.mubr.bf16.gmra.mrb[0].mxu0 %v2106
    %v3267 = vpop.f32.mrb[0].mxu0
    %v3268 = vadd.f32 0.0, %v3267
    %v3269 = vpop.f32.mrb[0].mxu0
    %v3270 = vpop.f32.mrb[0].mxu0
    %v3271 = vadd.f32 0.0, %v3270
    %v3272 = vpop.f32.mrb[0].mxu0
    %3273 = vmatprep.mubr.bf16.mxu0 0
    %3274 = vmatmul.mubr.bf16.gmra.mrb[0].mxu0 %v2109
    %v3275 = vpop.f32.mrb[0].mxu0
    %v3276 = vadd.f32 0.0, %v3275
    %v3277 = vpop.f32.mrb[0].mxu0
    %v3278 = vpop.f32.mrb[0].mxu0
    %v3279 = vadd.f32 0.0, %v3278
    %v3280 = vpop.f32.mrb[0].mxu0
    %3281 = vmatprep.mubr.bf16.mxu0 0
    %3282 = vmatmul.mubr.bf16.gmra.mrb[0].mxu0 %v2112
    %v3283 = vpop.f32.mrb[0].mxu0
    %v3284 = vadd.f32 0.0, %v3283
    %v3285 = vpop.f32.mrb[0].mxu0
    %v3286 = vpop.f32.mrb[0].mxu0
    %v3287 = vadd.f32 0.0, %v3286
    %v3288 = vpop.f32.mrb[0].mxu0
    %3289 = vmatprep.mubr.bf16.mxu0 0
    %3290 = vmatmul.mubr.bf16.gmra.mrb[0].mxu0 %v2115
    %v3291 = vpop.f32.mrb[0].mxu0
    %v3292 = vadd.f32 0.0, %v3291
    %v3293 = vpop.f32.mrb[0].mxu0
    %v3294 = vpop.f32.mrb[0].mxu0
    %v3295 = vadd.f32 0.0, %v3294
    %v3296 = vpop.f32.mrb[0].mxu0
    %3297 = vmatprep.mubr.bf16.mxu0 0
    %3298 = vmatmul.mubr.bf16.gmra.mrb[0].mxu0 %v2118
    %v3299 = vpop.f32.mrb[0].mxu0
    %v3300 = vadd.f32 0.0, %v3299
    %v3301 = vpop.f32.mrb[0].mxu0
    %v3302 = vpop.f32.mrb[0].mxu0
    %v3303 = vadd.f32 0.0, %v3302
    %v3304 = vpop.f32.mrb[0].mxu0
    %3305 = vmatprep.mubr.bf16.mxu0 0
    %3306 = vmatmul.mubr.bf16.gmra.mrb[0].mxu0 %v2121
    %v3307 = vpop.f32.mrb[0].mxu0
    %v3308 = vadd.f32 0.0, %v3307
    %v3309 = vpop.f32.mrb[0].mxu0
    %v3310 = vpop.f32.mrb[0].mxu0
    %v3311 = vadd.f32 0.0, %v3310
    %v3312 = vpop.f32.mrb[0].mxu0
    %3313 = vmatprep.mubr.bf16.mxu0 0
    %3314 = vmatmul.mubr.bf16.gmra.mrb[0].mxu0 %v2124
    %v3315 = vpop.f32.mrb[0].mxu0
    %v3316 = vadd.f32 0.0, %v3315
    %v3317 = vpop.f32.mrb[0].mxu0
    %v3318 = vpop.f32.mrb[0].mxu0
    %v3319 = vadd.f32 0.0, %v3318
    %v3320 = vpop.f32.mrb[0].mxu0
    %3321 = vmatprep.mubr.bf16.mxu0 0
    %3322 = vmatmul.mubr.bf16.gmra.mrb[0].mxu0 %v2127
    %v3323 = vpop.f32.mrb[0].mxu0
    %v3324 = vadd.f32 0.0, %v3323
    %v3325 = vpop.f32.mrb[0].mxu0
    %v3326 = vpop.f32.mrb[0].mxu0
    %v3327 = vadd.f32 0.0, %v3326
    %v3328 = vpop.f32.mrb[0].mxu0
    %3329 = vmatprep.mubr.bf16.mxu0 0
    %3330 = vmatmul.mubr.bf16.gmra.mrb[0].mxu0 %v2130
    %v3331 = vpop.f32.mrb[0].mxu0
    %v3332 = vadd.f32 0.0, %v3331
    %v3333 = vpop.f32.mrb[0].mxu0
    %v3334 = vpop.f32.mrb[0].mxu0
    %v3335 = vadd.f32 0.0, %v3334
    %v3336 = vpop.f32.mrb[0].mxu0
    %3337 = vmatprep.mubr.bf16.mxu0 0
    %3338 = vmatmul.mubr.bf16.gmra.mrb[0].mxu0 %v2133
    %v3339 = vpop.f32.mrb[0].mxu0
    %v3340 = vadd.f32 0.0, %v3339
    %v3341 = vpop.f32.mrb[0].mxu0
    %v3342 = vpop.f32.mrb[0].mxu0
    %v3343 = vadd.f32 0.0, %v3342
    %v3344 = vpop.f32.mrb[0].mxu0
    %3345 = vmatprep.mubr.bf16.mxu0 0
    %3346 = vmatmul.mubr.bf16.gmra.mrb[0].mxu0 %v2136
    %v3347 = vpop.f32.mrb[0].mxu0
    %v3348 = vadd.f32 0.0, %v3347
    %v3349 = vpop.f32.mrb[0].mxu0
    %v3350 = vpop.f32.mrb[0].mxu0
    %v3351 = vadd.f32 0.0, %v3350
    %v3352 = vpop.f32.mrb[0].mxu0
    %3353 = vmatprep.mubr.bf16.mxu0 0
    %3354 = vmatmul.mubr.bf16.gmra.mrb[0].mxu0 %v2139
    %v3355 = vpop.f32.mrb[0].mxu0
    %v3356 = vadd.f32 0.0, %v3355
    %v3357 = vpop.f32.mrb[0].mxu0
    %v3358 = vpop.f32.mrb[0].mxu0
    %v3359 = vadd.f32 0.0, %v3358
    %v3360 = vpop.f32.mrb[0].mxu0
    %3361 = vmatprep.mubr.bf16.mxu0 0
    %3362 = vmatmul.mubr.bf16.gmra.mrb[0].mxu0 %v2142
    %v3363 = vpop.f32.mrb[0].mxu0
    %v3364 = vadd.f32 0.0, %v3363
    %v3365 = vpop.f32.mrb[0].mxu0
    %v3366 = vpop.f32.mrb[0].mxu0
    %v3367 = vadd.f32 0.0, %v3366
    %v3368 = vpop.f32.mrb[0].mxu0
    %3369 = vmatprep.mubr.bf16.mxu0 0
    %3370 = vmatmul.mubr.bf16.gmra.mrb[0].mxu0 %v2145
    %v3371 = vpop.f32.mrb[0].mxu0
    %v3372 = vadd.f32 0.0, %v3371
    %v3373 = vpop.f32.mrb[0].mxu0
    %v3374 = vpop.f32.mrb[0].mxu0
    %v3375 = vadd.f32 0.0, %v3374
    %v3376 = vpop.f32.mrb[0].mxu0
    %3377 = vmatprep.mubr.bf16.mxu0 0
    %3378 = vmatmul.mubr.bf16.gmra.mrb[0].mxu0 %v2148
    %v3379 = vpop.f32.mrb[0].mxu0
    %v3380 = vadd.f32 0.0, %v3379
    %v3381 = vpop.f32.mrb[0].mxu0
    %v3382 = vpop.f32.mrb[0].mxu0
    %v3383 = vadd.f32 0.0, %v3382
    %v3384 = vpop.f32.mrb[0].mxu0
    %3385 = vmatprep.mubr.bf16.mxu0 0
    %3386 = vmatmul.mubr.bf16.gmra.mrb[0].mxu0 %v2151
    %v3387 = vpop.f32.mrb[0].mxu0
    %v3388 = vadd.f32 0.0, %v3387
    %v3389 = vpop.f32.mrb[0].mxu0
    %v3390 = vpop.f32.mrb[0].mxu0
    %v3391 = vadd.f32 0.0, %v3390
    %v3392 = vpop.f32.mrb[0].mxu0
    %3393 = vmatprep.mubr.bf16.mxu0 0
    %3394 = vmatmul.mubr.bf16.gmra.mrb[0].mxu0 %v2154
    %v3395 = vpop.f32.mrb[0].mxu0
    %v3396 = vadd.f32 0.0, %v3395
    %v3397 = vpop.f32.mrb[0].mxu0
    %v3398 = vpop.f32.mrb[0].mxu0
    %v3399 = vadd.f32 0.0, %v3398
    %v3400 = vpop.f32.mrb[0].mxu0
    %3401 = vmatprep.mubr.bf16.mxu0 0
    %3402 = vmatmul.mubr.bf16.gmra.mrb[0].mxu0 %v2157
    %v3403 = vpop.f32.mrb[0].mxu0
    %v3404 = vadd.f32 0.0, %v3403
    %v3405 = vpop.f32.mrb[0].mxu0
    %v3406 = vpop.f32.mrb[0].mxu0
    %v3407 = vadd.f32 0.0, %v3406
    %v3408 = vpop.f32.mrb[0].mxu0
    %3409 = vmatprep.mubr.bf16.mxu0 0
    %3410 = vmatmul.mubr.bf16.gmra.mrb[0].mxu0 %v2160
    %v3411 = vpop.f32.mrb[0].mxu0
    %v3412 = vadd.f32 0.0, %v3411
    %v3413 = vpop.f32.mrb[0].mxu0
    %v3414 = vpop.f32.mrb[0].mxu0
    %v3415 = vpop.f32.mrb[0].mxu0
    %3416 = vmatprep.mubr.bf16.mxu0 0
    %3417 = vmatmul.mubr.bf16.gmra.mrb[0].mxu0 %v2163
    %v3418 = vpop.f32.mrb[0].mxu0
    %v3419 = vadd.f32 0.0, %v3418
    %v3420 = vpop.f32.mrb[0].mxu0
    %v3421 = vpop.f32.mrb[0].mxu0
    %v3422 = vadd.f32 0.0, %v3421
    %v3423 = vpop.f32.mrb[0].mxu0
    %3424 = vmatprep.mubr.bf16.mxu0 0
    %3425 = vmatmul.mubr.bf16.gmra.mrb[0].mxu0 %v2166
    %v3426 = vpop.f32.mrb[0].mxu0
    %v3427 = vadd.f32 0.0, %v3426
    %v3428 = vpop.f32.mrb[0].mxu0
    %v3429 = vpop.f32.mrb[0].mxu0
    %v3430 = vadd.f32 0.0, %v3429
    %v3431 = vpop.f32.mrb[0].mxu0
    %3432 = vmatprep.mubr.bf16.mxu0 0
    %3433 = vmatmul.mubr.bf16.gmra.mrb[0].mxu0 %v2169
    %v3434 = vpop.f32.mrb[0].mxu0
    %v3435 = vadd.f32 0.0, %v3434
    %v3436 = vpop.f32.mrb[0].mxu0
    %v3437 = vpop.f32.mrb[0].mxu0
    %v3438 = vadd.f32 0.0, %v3437
    %v3439 = vpop.f32.mrb[0].mxu0
    %3440 = vmatprep.mubr.bf16.mxu0 0
    %3441 = vmatmul.mubr.bf16.gmra.mrb[0].mxu0 %v2172
    %v3442 = vpop.f32.mrb[0].mxu0
    %v3443 = vadd.f32 0.0, %v3442
    %v3444 = vpop.f32.mrb[0].mxu0
    %v3445 = vpop.f32.mrb[0].mxu0
    %v3446 = vadd.f32 0.0, %v3445
    %v3447 = vpop.f32.mrb[0].mxu0
    %3448 = vmatprep.mubr.bf16.mxu0 0
    %3449 = vmatmul.mubr.bf16.gmra.mrb[0].mxu0 %v2175
    %v3450 = vpop.f32.mrb[0].mxu0
    %v3451 = vadd.f32 0.0, %v3450
    %v3452 = vpop.f32.mrb[0].mxu0
    %v3453 = vpop.f32.mrb[0].mxu0
    %v3454 = vadd.f32 0.0, %v3453
    %v3455 = vpop.f32.mrb[0].mxu0
    %3456 = vmatprep.mubr.bf16.mxu0 0
    %3457 = vmatmul.mubr.bf16.gmra.mrb[0].mxu0 %v2178
    %v3458 = vpop.f32.mrb[0].mxu0
    %v3459 = vadd.f32 0.0, %v3458
    %v3460 = vpop.f32.mrb[0].mxu0
    %v3461 = vpop.f32.mrb[0].mxu0
    %v3462 = vadd.f32 0.0, %v3461
    %v3463 = vpop.f32.mrb[0].mxu0
    %3464 = vmatprep.mubr.bf16.mxu0 0
    %3465 = vmatmul.mubr.bf16.gmra.mrb[0].mxu0 %v2181
    %v3466 = vpop.f32.mrb[0].mxu0
    %v3467 = vadd.f32 0.0, %v3466
    %v3468 = vpop.f32.mrb[0].mxu0
    %v3469 = vpop.f32.mrb[0].mxu0
    %v3470 = vadd.f32 0.0, %v3469
    %v3471 = vpop.f32.mrb[0].mxu0
    %3472 = vmatprep.mubr.bf16.mxu0 0
    %3473 = vmatmul.mubr.bf16.gmra.mrb[0].mxu0 %v2184
    %v3474 = vpop.f32.mrb[0].mxu0
    %v3475 = vadd.f32 0.0, %v3474
    %v3476 = vpop.f32.mrb[0].mxu0
    %v3477 = vpop.f32.mrb[0].mxu0
    %v3478 = vadd.f32 0.0, %v3477
    %v3479 = vpop.f32.mrb[0].mxu0
    %3480 = vmatprep.mubr.bf16.mxu0 0
    %3481 = vmatmul.mubr.bf16.gmra.mrb[0].mxu0 %v2187
    %v3482 = vpop.f32.mrb[0].mxu0
    %v3483 = vadd.f32 0.0, %v3482
    %v3484 = vpop.f32.mrb[0].mxu0
    %v3485 = vpop.f32.mrb[0].mxu0
    %v3486 = vadd.f32 0.0, %v3485
    %v3487 = vpop.f32.mrb[0].mxu0
    %3488 = vmatprep.mubr.bf16.mxu0 0
    %3489 = vmatmul.mubr.bf16.gmra.mrb[0].mxu0 %v2190
    %v3490 = vpop.f32.mrb[0].mxu0
    %v3491 = vadd.f32 0.0, %v3490
    %v3492 = vpop.f32.mrb[0].mxu0
    %v3493 = vpop.f32.mrb[0].mxu0
    %v3494 = vadd.f32 0.0, %v3493
    %v3495 = vpop.f32.mrb[0].mxu0
    %3496 = vmatprep.mubr.bf16.mxu0 0
    %3497 = vmatmul.mubr.bf16.gmra.mrb[0].mxu0 %v2193
    %v3498 = vpop.f32.mrb[0].mxu0
    %v3499 = vadd.f32 0.0, %v3498
    %v3500 = vpop.f32.mrb[0].mxu0
    %v3501 = vpop.f32.mrb[0].mxu0
    %v3502 = vadd.f32 0.0, %v3501
    %v3503 = vpop.f32.mrb[0].mxu0
    %3504 = vmatprep.mubr.bf16.mxu0 0
    %3505 = vmatmul.mubr.bf16.gmra.mrb[0].mxu0 %v2196
    %v3506 = vpop.f32.mrb[0].mxu0
    %v3507 = vadd.f32 0.0, %v3506
    %v3508 = vpop.f32.mrb[0].mxu0
    %v3509 = vpop.f32.mrb[0].mxu0
    %v3510 = vadd.f32 0.0, %v3509
    %v3511 = vpop.f32.mrb[0].mxu0
    %3512 = vmatprep.mubr.bf16.mxu0 0
    %3513 = vmatmul.mubr.bf16.gmra.mrb[0].mxu0 %v2199
    %v3514 = vpop.f32.mrb[0].mxu0
    %v3515 = vadd.f32 0.0, %v3514
    %v3516 = vpop.f32.mrb[0].mxu0
    %v3517 = vpop.f32.mrb[0].mxu0
    %v3518 = vadd.f32 0.0, %v3517
    %v3519 = vpop.f32.mrb[0].mxu0
    %3520 = vmatprep.mubr.bf16.mxu0 0
    %3521 = vmatmul.mubr.bf16.gmra.mrb[0].mxu0 %v2202
    %v3522 = vpop.f32.mrb[0].mxu0
    %v3523 = vadd.f32 0.0, %v3522
    %v3524 = vpop.f32.mrb[0].mxu0
    %v3525 = vpop.f32.mrb[0].mxu0
    %v3526 = vadd.f32 0.0, %v3525
    %v3527 = vpop.f32.mrb[0].mxu0
    %3528 = vmatprep.mubr.bf16.mxu0 0
    %3529 = vmatmul.mubr.bf16.gmra.mrb[0].mxu0 %v2205
    %v3530 = vpop.f32.mrb[0].mxu0
    %v3531 = vadd.f32 0.0, %v3530
    %v3532 = vpop.f32.mrb[0].mxu0
    %v3533 = vpop.f32.mrb[0].mxu0
    %v3534 = vadd.f32 0.0, %v3533
    %v3535 = vpop.f32.mrb[0].mxu0
    %3536 = vmatprep.mubr.bf16.mxu0 0
    %3537 = vmatmul.mubr.bf16.gmra.mrb[0].mxu0 %v2208
    %v3538 = vpop.f32.mrb[0].mxu0
    %v3539 = vadd.f32 0.0, %v3538
    %v3540 = vpop.f32.mrb[0].mxu0
    %v3541 = vpop.f32.mrb[0].mxu0
    %v3542 = vadd.f32 0.0, %v3541
    %v3543 = vpop.f32.mrb[0].mxu0
    %3544 = vmatprep.mubr.bf16.mxu0 0
    %3545 = vmatmul.mubr.bf16.gmra.mrb[0].mxu0 %v2211
    %v3546 = vpop.f32.mrb[0].mxu0
    %v3547 = vadd.f32 0.0, %v3546
    %v3548 = vpop.f32.mrb[0].mxu0
    %v3549 = vpop.f32.mrb[0].mxu0
    %v3550 = vadd.f32 0.0, %v3549
    %v3551 = vpop.f32.mrb[0].mxu0
    %3552 = vmatprep.mubr.bf16.mxu0 0
    %3553 = vmatmul.mubr.bf16.gmra.mrb[0].mxu0 %v2214
    %v3554 = vpop.f32.mrb[0].mxu0
    %v3555 = vadd.f32 0.0, %v3554
    %v3556 = vpop.f32.mrb[0].mxu0
    %v3557 = vpop.f32.mrb[0].mxu0
    %v3558 = vadd.f32 0.0, %v3557
    %v3559 = vpop.f32.mrb[0].mxu0
    %3560 = vmatprep.mubr.bf16.mxu0 0
    %3561 = vmatmul.mubr.bf16.gmra.mrb[0].mxu0 %v2217
    %v3562 = vpop.f32.mrb[0].mxu0
    %v3563 = vadd.f32 0.0, %v3562
    %v3564 = vpop.f32.mrb[0].mxu0
    %v3565 = vpop.f32.mrb[0].mxu0
    %v3566 = vadd.f32 0.0, %v3565
    %v3567 = vpop.f32.mrb[0].mxu0
    %3568 = vmatprep.mubr.bf16.mxu0 0
    %3569 = vmatmul.mubr.bf16.gmra.mrb[0].mxu0 %v2220
    %v3570 = vpop.f32.mrb[0].mxu0
    %v3571 = vadd.f32 0.0, %v3570
    %v3572 = vpop.f32.mrb[0].mxu0
    %v3573 = vpop.f32.mrb[0].mxu0
    %v3574 = vadd.f32 0.0, %v3573
    %v3575 = vpop.f32.mrb[0].mxu0
    %3576 = vmatprep.mubr.bf16.mxu0 0
    %3577 = vmatmul.mubr.bf16.gmra.mrb[0].mxu0 %v2223
    %v3578 = vpop.f32.mrb[0].mxu0
    %v3579 = vadd.f32 0.0, %v3578
    %v3580 = vpop.f32.mrb[0].mxu0
    %v3581 = vpop.f32.mrb[0].mxu0
    %v3582 = vadd.f32 0.0, %v3581
    %v3583 = vpop.f32.mrb[0].mxu0
    %3584 = vmatprep.mubr.bf16.mxu0 0
    %3585 = vmatmul.mubr.bf16.gmra.mrb[0].mxu0 %v2226
    %v3586 = vpop.f32.mrb[0].mxu0
    %v3587 = vadd.f32 0.0, %v3586
    %v3588 = vpop.f32.mrb[0].mxu0
    %v3589 = vpop.f32.mrb[0].mxu0
    %v3590 = vadd.f32 0.0, %v3589
    %v3591 = vpop.f32.mrb[0].mxu0
    %3592 = vmatprep.mubr.bf16.mxu0 0
    %3593 = vmatmul.mubr.bf16.gmra.mrb[0].mxu0 %v2229
    %v3594 = vpop.f32.mrb[0].mxu0
    %v3595 = vadd.f32 0.0, %v3594
    %v3596 = vpop.f32.mrb[0].mxu0
    %v3597 = vpop.f32.mrb[0].mxu0
    %v3598 = vadd.f32 0.0, %v3597
    %v3599 = vpop.f32.mrb[0].mxu0
    %3600 = vmatprep.mubr.bf16.mxu0 0
    %3601 = vmatmul.mubr.bf16.gmra.mrb[0].mxu0 %v2232
    %v3602 = vpop.f32.mrb[0].mxu0
    %v3603 = vadd.f32 0.0, %v3602
    %v3604 = vpop.f32.mrb[0].mxu0
    %v3605 = vpop.f32.mrb[0].mxu0
    %v3606 = vadd.f32 0.0, %v3605
    %v3607 = vpop.f32.mrb[0].mxu0
    %3608 = vmatprep.mubr.bf16.mxu0 0
    %3609 = vmatmul.mubr.bf16.gmra.mrb[0].mxu0 %v2235
    %v3610 = vpop.f32.mrb[0].mxu0
    %v3611 = vadd.f32 0.0, %v3610
    %v3612 = vpop.f32.mrb[0].mxu0
    %v3613 = vpop.f32.mrb[0].mxu0
    %v3614 = vadd.f32 0.0, %v3613
    %v3615 = vpop.f32.mrb[0].mxu0
    %3616 = vmatprep.mubr.bf16.mxu0 0
    %3617 = vmatmul.mubr.bf16.gmra.mrb[0].mxu0 %v2238
    %v3618 = vpop.f32.mrb[0].mxu0
    %v3619 = vadd.f32 0.0, %v3618
    %v3620 = vpop.f32.mrb[0].mxu0
    %v3621 = vpop.f32.mrb[0].mxu0
    %v3622 = vadd.f32 0.0, %v3621
    %v3623 = vpop.f32.mrb[0].mxu0
    %3624 = vmatprep.mubr.bf16.mxu0 0
    %3625 = vmatmul.mubr.bf16.gmra.mrb[0].mxu0 %v2241
    %v3626 = vpop.f32.mrb[0].mxu0
    %v3627 = vadd.f32 0.0, %v3626
    %v3628 = vpop.f32.mrb[0].mxu0
    %v3629 = vpop.f32.mrb[0].mxu0
    %v3630 = vadd.f32 0.0, %v3629
    %v3631 = vpop.f32.mrb[0].mxu0
    %3632 = vmatprep.mubr.bf16.mxu0 0
    %3633 = vmatmul.mubr.bf16.gmra.mrb[0].mxu0 %v2244
    %v3634 = vpop.f32.mrb[0].mxu0
    %v3635 = vadd.f32 0.0, %v3634
    %v3636 = vpop.f32.mrb[0].mxu0
    %v3637 = vpop.f32.mrb[0].mxu0
    %v3638 = vadd.f32 0.0, %v3637
    %v3639 = vpop.f32.mrb[0].mxu0
    %3640 = vmatprep.mubr.bf16.mxu0 0
    %3641 = vmatmul.mubr.bf16.gmra.mrb[0].mxu0 %v2247
    %v3642 = vpop.f32.mrb[0].mxu0
    %v3643 = vadd.f32 0.0, %v3642
    %v3644 = vpop.f32.mrb[0].mxu0
    %v3645 = vpop.f32.mrb[0].mxu0
    %v3646 = vpop.f32.mrb[0].mxu0
    %3647 = vmatprep.mubr.bf16.mxu0 0
    %3648 = vmatmul.mubr.bf16.gmra.mrb[0].mxu0 %v2250
    %v3649 = vpop.f32.mrb[0].mxu0
    %v3650 = vadd.f32 0.0, %v3649
    %v3651 = vpop.f32.mrb[0].mxu0
    %v3652 = vpop.f32.mrb[0].mxu0
    %v3653 = vadd.f32 0.0, %v3652
    %v3654 = vpop.f32.mrb[0].mxu0
    %3655 = vmatprep.mubr.bf16.mxu0 0
    %3656 = vmatmul.mubr.bf16.gmra.mrb[0].mxu0 %v2253
    %v3657 = vpop.f32.mrb[0].mxu0
    %v3658 = vadd.f32 0.0, %v3657
    %v3659 = vpop.f32.mrb[0].mxu0
    %v3660 = vpop.f32.mrb[0].mxu0
    %v3661 = vadd.f32 0.0, %v3660
    %v3662 = vpop.f32.mrb[0].mxu0
    %3663 = vmatprep.mubr.bf16.mxu0 0
    %3664 = vmatmul.mubr.bf16.gmra.mrb[0].mxu0 %v2256
    %v3665 = vpop.f32.mrb[0].mxu0
    %v3666 = vadd.f32 0.0, %v3665
    %v3667 = vpop.f32.mrb[0].mxu0
    %v3668 = vpop.f32.mrb[0].mxu0
    %v3669 = vadd.f32 0.0, %v3668
    %v3670 = vpop.f32.mrb[0].mxu0
    %3671 = vmatprep.mubr.bf16.mxu0 0
    %3672 = vmatmul.mubr.bf16.gmra.mrb[0].mxu0 %v2259
    %v3673 = vpop.f32.mrb[0].mxu0
    %v3674 = vadd.f32 0.0, %v3673
    %v3675 = vpop.f32.mrb[0].mxu0
    %v3676 = vpop.f32.mrb[0].mxu0
    %v3677 = vadd.f32 0.0, %v3676
    %v3678 = vpop.f32.mrb[0].mxu0
    %3679 = vmatprep.mubr.bf16.mxu0 0
    %3680 = vmatmul.mubr.bf16.gmra.mrb[0].mxu0 %v2262
    %v3681 = vpop.f32.mrb[0].mxu0
    %v3682 = vadd.f32 0.0, %v3681
    %v3683 = vpop.f32.mrb[0].mxu0
    %v3684 = vpop.f32.mrb[0].mxu0
    %v3685 = vadd.f32 0.0, %v3684
    %v3686 = vpop.f32.mrb[0].mxu0
    %3687 = vmatprep.mubr.bf16.mxu0 0
    %3688 = vmatmul.mubr.bf16.gmra.mrb[0].mxu0 %v2265
    %v3689 = vpop.f32.mrb[0].mxu0
    %v3690 = vadd.f32 0.0, %v3689
    %v3691 = vpop.f32.mrb[0].mxu0
    %v3692 = vpop.f32.mrb[0].mxu0
    %v3693 = vadd.f32 0.0, %v3692
    %v3694 = vpop.f32.mrb[0].mxu0
    %3695 = vmatprep.mubr.bf16.mxu0 0
    %3696 = vmatmul.mubr.bf16.gmra.mrb[0].mxu0 %v2268
    %v3697 = vpop.f32.mrb[0].mxu0
    %v3698 = vadd.f32 0.0, %v3697
    %v3699 = vpop.f32.mrb[0].mxu0
    %v3700 = vpop.f32.mrb[0].mxu0
    %v3701 = vadd.f32 0.0, %v3700
    %v3702 = vpop.f32.mrb[0].mxu0
    %3703 = vmatprep.mubr.bf16.mxu0 0
    %3704 = vmatmul.mubr.bf16.gmra.mrb[0].mxu0 %v2271
    %v3705 = vpop.f32.mrb[0].mxu0
    %v3706 = vadd.f32 0.0, %v3705
    %v3707 = vpop.f32.mrb[0].mxu0
    %v3708 = vpop.f32.mrb[0].mxu0
    %v3709 = vadd.f32 0.0, %v3708
    %v3710 = vpop.f32.mrb[0].mxu0
    %3711 = vmatprep.mubr.bf16.mxu0 0
    %3712 = vmatmul.mubr.bf16.gmra.mrb[0].mxu0 %v2274
    %v3713 = vpop.f32.mrb[0].mxu0
    %v3714 = vadd.f32 0.0, %v3713
    %v3715 = vpop.f32.mrb[0].mxu0
    %v3716 = vpop.f32.mrb[0].mxu0
    %v3717 = vadd.f32 0.0, %v3716
    %v3718 = vpop.f32.mrb[0].mxu0
    %3719 = vmatprep.mubr.bf16.mxu0 0
    %3720 = vmatmul.mubr.bf16.gmra.mrb[0].mxu0 %v2277
    %v3721 = vpop.f32.mrb[0].mxu0
    %v3722 = vadd.f32 0.0, %v3721
    %v3723 = vpop.f32.mrb[0].mxu0
    %v3724 = vpop.f32.mrb[0].mxu0
    %v3725 = vadd.f32 0.0, %v3724
    %v3726 = vpop.f32.mrb[0].mxu0
    %3727 = vmatprep.mubr.bf16.mxu0 0
    %3728 = vmatmul.mubr.bf16.gmra.mrb[0].mxu0 %v2280
    %v3729 = vpop.f32.mrb[0].mxu0
    %v3730 = vadd.f32 0.0, %v3729
    %v3731 = vpop.f32.mrb[0].mxu0
    %v3732 = vpop.f32.mrb[0].mxu0
    %v3733 = vadd.f32 0.0, %v3732
    %v3734 = vpop.f32.mrb[0].mxu0
    %3735 = vmatprep.mubr.bf16.mxu0 0
    %3736 = vmatmul.mubr.bf16.gmra.mrb[0].mxu0 %v2283
    %v3737 = vpop.f32.mrb[0].mxu0
    %v3738 = vadd.f32 0.0, %v3737
    %v3739 = vpop.f32.mrb[0].mxu0
    %v3740 = vpop.f32.mrb[0].mxu0
    %v3741 = vadd.f32 0.0, %v3740
    %v3742 = vpop.f32.mrb[0].mxu0
    %3743 = vmatprep.mubr.bf16.mxu0 0
    %3744 = vmatmul.mubr.bf16.gmra.mrb[0].mxu0 %v2286
    %v3745 = vpop.f32.mrb[0].mxu0
    %v3746 = vadd.f32 0.0, %v3745
    %v3747 = vpop.f32.mrb[0].mxu0
    %v3748 = vpop.f32.mrb[0].mxu0
    %v3749 = vadd.f32 0.0, %v3748
    %v3750 = vpop.f32.mrb[0].mxu0
    %3751 = vmatprep.mubr.bf16.mxu0 0
    %3752 = vmatmul.mubr.bf16.gmra.mrb[0].mxu0 %v2289
    %v3753 = vpop.f32.mrb[0].mxu0
    %v3754 = vadd.f32 0.0, %v3753
    %v3755 = vpop.f32.mrb[0].mxu0
    %v3756 = vpop.f32.mrb[0].mxu0
    %v3757 = vadd.f32 0.0, %v3756
    %v3758 = vpop.f32.mrb[0].mxu0
    %3759 = vmatprep.mubr.bf16.mxu0 0
    %3760 = vmatmul.mubr.bf16.gmra.mrb[0].mxu0 %v2292
    %v3761 = vpop.f32.mrb[0].mxu0
    %v3762 = vadd.f32 0.0, %v3761
    %v3763 = vpop.f32.mrb[0].mxu0
    %v3764 = vpop.f32.mrb[0].mxu0
    %v3765 = vadd.f32 0.0, %v3764
    %v3766 = vpop.f32.mrb[0].mxu0
    %3767 = vmatprep.mubr.bf16.mxu0 0
    %3768 = vmatmul.mubr.bf16.gmra.mrb[0].mxu0 %v2295
    %v3769 = vpop.f32.mrb[0].mxu0
    %v3770 = vadd.f32 0.0, %v3769
    %v3771 = vpop.f32.mrb[0].mxu0
    %v3772 = vpop.f32.mrb[0].mxu0
    %v3773 = vadd.f32 0.0, %v3772
    %v3774 = vpop.f32.mrb[0].mxu0
    %3775 = vmatprep.mubr.bf16.mxu0 0
    %3776 = vmatmul.mubr.bf16.gmra.mrb[0].mxu0 %v2298
    %v3777 = vpop.f32.mrb[0].mxu0
    %v3778 = vadd.f32 0.0, %v3777
    %v3779 = vpop.f32.mrb[0].mxu0
    %v3780 = vpop.f32.mrb[0].mxu0
    %v3781 = vadd.f32 0.0, %v3780
    %v3782 = vpop.f32.mrb[0].mxu0
    %3783 = vmatprep.mubr.bf16.mxu0 0
    %3784 = vmatmul.mubr.bf16.gmra.mrb[0].mxu0 %v2301
    %v3785 = vpop.f32.mrb[0].mxu0
    %v3786 = vadd.f32 0.0, %v3785
    %v3787 = vpop.f32.mrb[0].mxu0
    %v3788 = vpop.f32.mrb[0].mxu0
    %v3789 = vadd.f32 0.0, %v3788
    %v3790 = vpop.f32.mrb[0].mxu0
    %3791 = vmatprep.mubr.bf16.mxu0 0
    %3792 = vmatmul.mubr.bf16.gmra.mrb[0].mxu0 %v2304
    %v3793 = vpop.f32.mrb[0].mxu0
    %v3794 = vadd.f32 0.0, %v3793
    %v3795 = vpop.f32.mrb[0].mxu0
    %v3796 = vpop.f32.mrb[0].mxu0
    %v3797 = vadd.f32 0.0, %v3796
    %v3798 = vpop.f32.mrb[0].mxu0
    %3799 = vmatprep.mubr.bf16.mxu0 0
    %3800 = vmatmul.mubr.bf16.gmra.mrb[0].mxu0 %v2307
    %v3801 = vpop.f32.mrb[0].mxu0
    %v3802 = vadd.f32 0.0, %v3801
    %v3803 = vpop.f32.mrb[0].mxu0
    %v3804 = vpop.f32.mrb[0].mxu0
    %v3805 = vadd.f32 0.0, %v3804
    %v3806 = vpop.f32.mrb[0].mxu0
    %3807 = vmatprep.mubr.bf16.mxu0 0
    %3808 = vmatmul.mubr.bf16.gmra.mrb[0].mxu0 %v2310
    %v3809 = vpop.f32.mrb[0].mxu0
    %v3810 = vadd.f32 0.0, %v3809
    %v3811 = vpop.f32.mrb[0].mxu0
    %v3812 = vpop.f32.mrb[0].mxu0
    %v3813 = vadd.f32 0.0, %v3812
    %v3814 = vpop.f32.mrb[0].mxu0
    %3815 = vmatprep.mubr.bf16.mxu0 0
    %3816 = vmatmul.mubr.bf16.gmra.mrb[0].mxu0 %v2313
    %v3817 = vpop.f32.mrb[0].mxu0
    %v3818 = vadd.f32 0.0, %v3817
    %v3819 = vpop.f32.mrb[0].mxu0
    %v3820 = vpop.f32.mrb[0].mxu0
    %v3821 = vadd.f32 0.0, %v3820
    %v3822 = vpop.f32.mrb[0].mxu0
    %3823 = vmatprep.mubr.bf16.mxu0 0
    %3824 = vmatmul.mubr.bf16.gmra.mrb[0].mxu0 %v2316
    %v3825 = vpop.f32.mrb[0].mxu0
    %v3826 = vadd.f32 0.0, %v3825
    %v3827 = vpop.f32.mrb[0].mxu0
    %v3828 = vpop.f32.mrb[0].mxu0
    %v3829 = vadd.f32 0.0, %v3828
    %v3830 = vpop.f32.mrb[0].mxu0
    %3831 = vmatprep.mubr.bf16.mxu0 0
    %3832 = vmatmul.mubr.bf16.gmra.mrb[0].mxu0 %v2319
    %v3833 = vpop.f32.mrb[0].mxu0
    %v3834 = vadd.f32 0.0, %v3833
    %v3835 = vpop.f32.mrb[0].mxu0
    %v3836 = vpop.f32.mrb[0].mxu0
    %v3837 = vadd.f32 0.0, %v3836
    %v3838 = vpop.f32.mrb[0].mxu0
    %3839 = vmatprep.mubr.bf16.mxu0 0
    %3840 = vmatmul.mubr.bf16.gmra.mrb[0].mxu0 %v2322
    %v3841 = vpop.f32.mrb[0].mxu0
    %v3842 = vadd.f32 0.0, %v3841
    %v3843 = vpop.f32.mrb[0].mxu0
    %v3844 = vpop.f32.mrb[0].mxu0
    %v3845 = vadd.f32 0.0, %v3844
    %v3846 = vpop.f32.mrb[0].mxu0
    %3847 = vmatprep.mubr.bf16.mxu0 0
    %3848 = vmatmul.mubr.bf16.gmra.mrb[0].mxu0 %v2325
    %v3849 = vpop.f32.mrb[0].mxu0
    %v3850 = vadd.f32 0.0, %v3849
    %v3851 = vpop.f32.mrb[0].mxu0
    %v3852 = vpop.f32.mrb[0].mxu0
    %v3853 = vadd.f32 0.0, %v3852
    %v3854 = vpop.f32.mrb[0].mxu0
    %3855 = vmatprep.mubr.bf16.mxu0 0
    %3856 = vmatmul.mubr.bf16.gmra.mrb[0].mxu0 %v2328
    %v3857 = vpop.f32.mrb[0].mxu0
    %v3858 = vadd.f32 0.0, %v3857
    %v3859 = vpop.f32.mrb[0].mxu0
    %v3860 = vpop.f32.mrb[0].mxu0
    %v3861 = vadd.f32 0.0, %v3860
    %v3862 = vpop.f32.mrb[0].mxu0
    %3863 = vmatprep.mubr.bf16.mxu0 0
    %3864 = vmatmul.mubr.bf16.gmra.mrb[0].mxu0 %v2331
    %v3865 = vpop.f32.mrb[0].mxu0
    %v3866 = vadd.f32 0.0, %v3865
    %v3867 = vpop.f32.mrb[0].mxu0
    %v3868 = vpop.f32.mrb[0].mxu0
    %v3869 = vadd.f32 0.0, %v3868
    %v3870 = vpop.f32.mrb[0].mxu0
    %3871 = vmatprep.mubr.bf16.mxu0 0
    %3872 = vmatmul.mubr.bf16.gmra.mrb[0].mxu0 %v2334
    %v3873 = vpop.f32.mrb[0].mxu0
    %v3874 = vadd.f32 0.0, %v3873
    %v3875 = vpop.f32.mrb[0].mxu0
    %v3876 = vpop.f32.mrb[0].mxu0
    %v3877 = vpop.f32.mrb[0].mxu0
    %3878 = vmatprep.mubr.bf16.mxu0 0
    %3879 = vmatmul.mubr.bf16.gmra.mrb[0].mxu0 %v2337
    %v3880 = vpop.f32.mrb[0].mxu0
    %v3881 = vadd.f32 0.0, %v3880
    %v3882 = vpop.f32.mrb[0].mxu0
    %v3883 = vpop.f32.mrb[0].mxu0
    %v3884 = vadd.f32 0.0, %v3883
    %v3885 = vpop.f32.mrb[0].mxu0
    %3886 = vmatprep.mubr.bf16.mxu0 0
    %3887 = vmatmul.mubr.bf16.gmra.mrb[0].mxu0 %v2340
    %v3888 = vpop.f32.mrb[0].mxu0
    %v3889 = vadd.f32 0.0, %v3888
    %v3890 = vpop.f32.mrb[0].mxu0
    %v3891 = vpop.f32.mrb[0].mxu0
    %v3892 = vadd.f32 0.0, %v3891
    %v3893 = vpop.f32.mrb[0].mxu0
    %3894 = vmatprep.mubr.bf16.mxu0 0
    %3895 = vmatmul.mubr.bf16.gmra.mrb[0].mxu0 %v2343
    %v3896 = vpop.f32.mrb[0].mxu0
    %v3897 = vadd.f32 0.0, %v3896
    %v3898 = vpop.f32.mrb[0].mxu0
    %v3899 = vpop.f32.mrb[0].mxu0
    %v3900 = vadd.f32 0.0, %v3899
    %v3901 = vpop.f32.mrb[0].mxu0
    %3902 = vmatprep.mubr.bf16.mxu0 0
    %3903 = vmatmul.mubr.bf16.gmra.mrb[0].mxu0 %v2346
    %v3904 = vpop.f32.mrb[0].mxu0
    %v3905 = vadd.f32 0.0, %v3904
    %v3906 = vpop.f32.mrb[0].mxu0
    %v3907 = vpop.f32.mrb[0].mxu0
    %v3908 = vadd.f32 0.0, %v3907
    %v3909 = vpop.f32.mrb[0].mxu0
    %3910 = vmatprep.mubr.bf16.mxu0 0
    %3911 = vmatmul.mubr.bf16.gmra.mrb[0].mxu0 %v2349
    %v3912 = vpop.f32.mrb[0].mxu0
    %v3913 = vadd.f32 0.0, %v3912
    %v3914 = vpop.f32.mrb[0].mxu0
    %v3915 = vpop.f32.mrb[0].mxu0
    %v3916 = vadd.f32 0.0, %v3915
    %v3917 = vpop.f32.mrb[0].mxu0
    %3918 = vmatprep.mubr.bf16.mxu0 0
    %3919 = vmatmul.mubr.bf16.gmra.mrb[0].mxu0 %v2352
    %v3920 = vpop.f32.mrb[0].mxu0
    %v3921 = vadd.f32 0.0, %v3920
    %v3922 = vpop.f32.mrb[0].mxu0
    %v3923 = vpop.f32.mrb[0].mxu0
    %v3924 = vadd.f32 0.0, %v3923
    %v3925 = vpop.f32.mrb[0].mxu0
    %3926 = vmatprep.mubr.bf16.mxu0 0
    %3927 = vmatmul.mubr.bf16.gmra.mrb[0].mxu0 %v2355
    %v3928 = vpop.f32.mrb[0].mxu0
    %v3929 = vadd.f32 0.0, %v3928
    %v3930 = vpop.f32.mrb[0].mxu0
    %v3931 = vpop.f32.mrb[0].mxu0
    %v3932 = vadd.f32 0.0, %v3931
    %v3933 = vpop.f32.mrb[0].mxu0
    %3934 = vmatprep.mubr.bf16.mxu0 0
    %3935 = vmatmul.mubr.bf16.gmra.mrb[0].mxu0 %v2358
    %v3936 = vpop.f32.mrb[0].mxu0
    %v3937 = vadd.f32 0.0, %v3936
    %v3938 = vpop.f32.mrb[0].mxu0
    %v3939 = vpop.f32.mrb[0].mxu0
    %v3940 = vadd.f32 0.0, %v3939
    %v3941 = vpop.f32.mrb[0].mxu0
    %3942 = vmatprep.mubr.bf16.mxu0 0
    %3943 = vmatmul.mubr.bf16.gmra.mrb[0].mxu0 %v2361
    %v3944 = vpop.f32.mrb[0].mxu0
    %v3945 = vadd.f32 0.0, %v3944
    %v3946 = vpop.f32.mrb[0].mxu0
    %v3947 = vpop.f32.mrb[0].mxu0
    %v3948 = vadd.f32 0.0, %v3947
    %v3949 = vpop.f32.mrb[0].mxu0
    %3950 = vmatprep.mubr.bf16.mxu0 0
    %3951 = vmatmul.mubr.bf16.gmra.mrb[0].mxu0 %v2364
    %v3952 = vpop.f32.mrb[0].mxu0
    %v3953 = vadd.f32 0.0, %v3952
    %v3954 = vpop.f32.mrb[0].mxu0
    %v3955 = vpop.f32.mrb[0].mxu0
    %v3956 = vadd.f32 0.0, %v3955
    %v3957 = vpop.f32.mrb[0].mxu0
    %3958 = vmatprep.mubr.bf16.mxu0 0
    %3959 = vmatmul.mubr.bf16.gmra.mrb[0].mxu0 %v2367
    %v3960 = vpop.f32.mrb[0].mxu0
    %v3961 = vadd.f32 0.0, %v3960
    %v3962 = vpop.f32.mrb[0].mxu0
    %v3963 = vpop.f32.mrb[0].mxu0
    %v3964 = vadd.f32 0.0, %v3963
    %v3965 = vpop.f32.mrb[0].mxu0
    %3966 = vmatprep.mubr.bf16.mxu0 0
    %3967 = vmatmul.mubr.bf16.gmra.mrb[0].mxu0 %v2370
    %v3968 = vpop.f32.mrb[0].mxu0
    %v3969 = vadd.f32 0.0, %v3968
    %v3970 = vpop.f32.mrb[0].mxu0
    %v3971 = vpop.f32.mrb[0].mxu0
    %v3972 = vadd.f32 0.0, %v3971
    %v3973 = vpop.f32.mrb[0].mxu0
    %3974 = vmatprep.mubr.bf16.mxu0 0
    %3975 = vmatmul.mubr.bf16.gmra.mrb[0].mxu0 %v2373
    %v3976 = vpop.f32.mrb[0].mxu0
    %v3977 = vadd.f32 0.0, %v3976
    %v3978 = vpop.f32.mrb[0].mxu0
    %v3979 = vpop.f32.mrb[0].mxu0
    %v3980 = vadd.f32 0.0, %v3979
    %v3981 = vpop.f32.mrb[0].mxu0
    %3982 = vmatprep.mubr.bf16.mxu0 0
    %3983 = vmatmul.mubr.bf16.gmra.mrb[0].mxu0 %v2376
    %v3984 = vpop.f32.mrb[0].mxu0
    %v3985 = vadd.f32 0.0, %v3984
    %v3986 = vpop.f32.mrb[0].mxu0
    %v3987 = vpop.f32.mrb[0].mxu0
    %v3988 = vadd.f32 0.0, %v3987
    %v3989 = vpop.f32.mrb[0].mxu0
    %3990 = vmatprep.mubr.bf16.mxu0 0
    %3991 = vmatmul.mubr.bf16.gmra.mrb[0].mxu0 %v2379
    %v3992 = vpop.f32.mrb[0].mxu0
    %v3993 = vadd.f32 0.0, %v3992
    %v3994 = vpop.f32.mrb[0].mxu0
    %v3995 = vpop.f32.mrb[0].mxu0
    %v3996 = vadd.f32 0.0, %v3995
    %v3997 = vpop.f32.mrb[0].mxu0
    %3998 = vmatprep.mubr.bf16.mxu0 0
    %3999 = vmatmul.mubr.bf16.gmra.mrb[0].mxu0 %v2382
    %v4000 = vpop.f32.mrb[0].mxu0
    %v4001 = vadd.f32 0.0, %v4000
    %v4002 = vpop.f32.mrb[0].mxu0
    %v4003 = vpop.f32.mrb[0].mxu0
    %v4004 = vadd.f32 0.0, %v4003
    %v4005 = vpop.f32.mrb[0].mxu0
    %4006 = vmatprep.mubr.bf16.mxu0 0
    %4007 = vmatmul.mubr.bf16.gmra.mrb[0].mxu0 %v2385
    %v4008 = vpop.f32.mrb[0].mxu0
    %v4009 = vadd.f32 0.0, %v4008
    %v4010 = vpop.f32.mrb[0].mxu0
    %v4011 = vpop.f32.mrb[0].mxu0
    %v4012 = vadd.f32 0.0, %v4011
    %v4013 = vpop.f32.mrb[0].mxu0
    %4014 = vmatprep.mubr.bf16.mxu0 0
    %4015 = vmatmul.mubr.bf16.gmra.mrb[0].mxu0 %v2388
    %v4016 = vpop.f32.mrb[0].mxu0
    %v4017 = vadd.f32 0.0, %v4016
    %v4018 = vpop.f32.mrb[0].mxu0
    %v4019 = vpop.f32.mrb[0].mxu0
    %v4020 = vadd.f32 0.0, %v4019
    %v4021 = vpop.f32.mrb[0].mxu0
    %4022 = vmatprep.mubr.bf16.mxu0 0
    %4023 = vmatmul.mubr.bf16.gmra.mrb[0].mxu0 %v2391
    %v4024 = vpop.f32.mrb[0].mxu0
    %v4025 = vadd.f32 0.0, %v4024
    %v4026 = vpop.f32.mrb[0].mxu0
    %v4027 = vpop.f32.mrb[0].mxu0
    %v4028 = vadd.f32 0.0, %v4027
    %v4029 = vpop.f32.mrb[0].mxu0
    %4030 = vmatprep.mubr.bf16.mxu0 0
    %4031 = vmatmul.mubr.bf16.gmra.mrb[0].mxu0 %v2394
    %v4032 = vpop.f32.mrb[0].mxu0
    %v4033 = vadd.f32 0.0, %v4032
    %v4034 = vpop.f32.mrb[0].mxu0
    %v4035 = vpop.f32.mrb[0].mxu0
    %v4036 = vadd.f32 0.0, %v4035
    %v4037 = vpop.f32.mrb[0].mxu0
    %4038 = vmatprep.mubr.bf16.mxu0 0
    %4039 = vmatmul.mubr.bf16.gmra.mrb[0].mxu0 %v2397
    %v4040 = vpop.f32.mrb[0].mxu0
    %v4041 = vadd.f32 0.0, %v4040
    %v4042 = vpop.f32.mrb[0].mxu0
    %v4043 = vpop.f32.mrb[0].mxu0
    %v4044 = vadd.f32 0.0, %v4043
    %v4045 = vpop.f32.mrb[0].mxu0
    %4046 = vmatprep.mubr.bf16.mxu0 0
    %4047 = vmatmul.mubr.bf16.gmra.mrb[0].mxu0 %v2400
    %v4048 = vpop.f32.mrb[0].mxu0
    %v4049 = vadd.f32 0.0, %v4048
    %v4050 = vpop.f32.mrb[0].mxu0
    %v4051 = vpop.f32.mrb[0].mxu0
    %v4052 = vadd.f32 0.0, %v4051
    %v4053 = vpop.f32.mrb[0].mxu0
    %4054 = vmatprep.mubr.bf16.mxu0 0
    %4055 = vmatmul.mubr.bf16.gmra.mrb[0].mxu0 %v2403
    %v4056 = vpop.f32.mrb[0].mxu0
    %v4057 = vadd.f32 0.0, %v4056
    %v4058 = vpop.f32.mrb[0].mxu0
    %v4059 = vpop.f32.mrb[0].mxu0
    %v4060 = vadd.f32 0.0, %v4059
    %v4061 = vpop.f32.mrb[0].mxu0
    %4062 = vmatprep.mubr.bf16.mxu0 0
    %4063 = vmatmul.mubr.bf16.gmra.mrb[0].mxu0 %v2406
    %v4064 = vpop.f32.mrb[0].mxu0
    %v4065 = vadd.f32 0.0, %v4064
    %v4066 = vpop.f32.mrb[0].mxu0
    %v4067 = vpop.f32.mrb[0].mxu0
    %v4068 = vadd.f32 0.0, %v4067
    %v4069 = vpop.f32.mrb[0].mxu0
    %4070 = vmatprep.mubr.bf16.mxu0 0
    %4071 = vmatmul.mubr.bf16.gmra.mrb[0].mxu0 %v2409
    %v4072 = vpop.f32.mrb[0].mxu0
    %v4073 = vadd.f32 0.0, %v4072
    %v4074 = vpop.f32.mrb[0].mxu0
    %v4075 = vpop.f32.mrb[0].mxu0
    %v4076 = vadd.f32 0.0, %v4075
    %v4077 = vpop.f32.mrb[0].mxu0
    %4078 = vmatprep.mubr.bf16.mxu0 0
    %4079 = vmatmul.mubr.bf16.gmra.mrb[0].mxu0 %v2412
    %v4080 = vpop.f32.mrb[0].mxu0
    %v4081 = vadd.f32 0.0, %v4080
    %v4082 = vpop.f32.mrb[0].mxu0
    %v4083 = vpop.f32.mrb[0].mxu0
    %v4084 = vadd.f32 0.0, %v4083
    %v4085 = vpop.f32.mrb[0].mxu0
    %4086 = vmatprep.mubr.bf16.mxu0 0
    %4087 = vmatmul.mubr.bf16.gmra.mrb[0].mxu0 %v2415
    %v4088 = vpop.f32.mrb[0].mxu0
    %v4089 = vadd.f32 0.0, %v4088
    %v4090 = vpop.f32.mrb[0].mxu0
    %v4091 = vpop.f32.mrb[0].mxu0
    %v4092 = vadd.f32 0.0, %v4091
    %v4093 = vpop.f32.mrb[0].mxu0
    %4094 = vmatprep.mubr.bf16.mxu0 0
    %4095 = vmatmul.mubr.bf16.gmra.mrb[0].mxu0 %v2418
    %v4096 = vpop.f32.mrb[0].mxu0
    %v4097 = vadd.f32 0.0, %v4096
    %v4098 = vpop.f32.mrb[0].mxu0
    %v4099 = vpop.f32.mrb[0].mxu0
    %v4100 = vadd.f32 0.0, %v4099
    %v4101 = vpop.f32.mrb[0].mxu0
    %4102 = vmatprep.mubr.bf16.mxu0 0
    %4103 = vmatmul.mubr.bf16.gmra.mrb[0].mxu0 %v2421
    %v4104 = vpop.f32.mrb[0].mxu0
    %v4105 = vadd.f32 0.0, %v4104
    %v4106 = vpop.f32.mrb[0].mxu0
    %v4107 = vpop.f32.mrb[0].mxu0
    %v4108 = vpop.f32.mrb[0].mxu0
    %4109 = vmatprep.mubr.bf16.mxu0 0
    %4110 = vmatmul.mubr.bf16.gmra.mrb[0].mxu0 %v2424
    %v4111 = vpop.f32.mrb[0].mxu0
    %v4112 = vadd.f32 0.0, %v4111
    %v4113 = vpop.f32.mrb[0].mxu0
    %v4114 = vpop.f32.mrb[0].mxu0
    %v4115 = vadd.f32 0.0, %v4114
    %v4116 = vpop.f32.mrb[0].mxu0
    %4117 = vmatprep.mubr.bf16.mxu0 0
    %4118 = vmatmul.mubr.bf16.gmra.mrb[0].mxu0 %v2427
    %v4119 = vpop.f32.mrb[0].mxu0
    %v4120 = vadd.f32 0.0, %v4119
    %v4121 = vpop.f32.mrb[0].mxu0
    %v4122 = vpop.f32.mrb[0].mxu0
    %v4123 = vadd.f32 0.0, %v4122
    %v4124 = vpop.f32.mrb[0].mxu0
    %4125 = vmatprep.mubr.bf16.mxu0 0
    %4126 = vmatmul.mubr.bf16.gmra.mrb[0].mxu0 %v2430
    %v4127 = vpop.f32.mrb[0].mxu0
    %v4128 = vadd.f32 0.0, %v4127
    %v4129 = vpop.f32.mrb[0].mxu0
    %v4130 = vpop.f32.mrb[0].mxu0
    %v4131 = vadd.f32 0.0, %v4130
    %v4132 = vpop.f32.mrb[0].mxu0
    %4133 = vmatprep.mubr.bf16.mxu0 0
    %4134 = vmatmul.mubr.bf16.gmra.mrb[0].mxu0 %v2433
    %v4135 = vpop.f32.mrb[0].mxu0
    %v4136 = vadd.f32 0.0, %v4135
    %v4137 = vpop.f32.mrb[0].mxu0
    %v4138 = vpop.f32.mrb[0].mxu0
    %v4139 = vadd.f32 0.0, %v4138
    %v4140 = vpop.f32.mrb[0].mxu0
    %4141 = vmatprep.mubr.bf16.mxu0 0
    %4142 = vmatmul.mubr.bf16.gmra.mrb[0].mxu0 %v2436
    %v4143 = vpop.f32.mrb[0].mxu0
    %v4144 = vadd.f32 0.0, %v4143
    %v4145 = vpop.f32.mrb[0].mxu0
    %v4146 = vpop.f32.mrb[0].mxu0
    %v4147 = vadd.f32 0.0, %v4146
    %v4148 = vpop.f32.mrb[0].mxu0
    %4149 = vmatprep.mubr.bf16.mxu0 0
    %4150 = vmatmul.mubr.bf16.gmra.mrb[0].mxu0 %v2439
    %v4151 = vpop.f32.mrb[0].mxu0
    %v4152 = vadd.f32 0.0, %v4151
    %v4153 = vpop.f32.mrb[0].mxu0
    %v4154 = vpop.f32.mrb[0].mxu0
    %v4155 = vadd.f32 0.0, %v4154
    %v4156 = vpop.f32.mrb[0].mxu0
    %4157 = vmatprep.mubr.bf16.mxu0 0
    %4158 = vmatmul.mubr.bf16.gmra.mrb[0].mxu0 %v2442
    %v4159 = vpop.f32.mrb[0].mxu0
    %v4160 = vadd.f32 0.0, %v4159
    %v4161 = vpop.f32.mrb[0].mxu0
    %v4162 = vpop.f32.mrb[0].mxu0
    %v4163 = vadd.f32 0.0, %v4162
    %v4164 = vpop.f32.mrb[0].mxu0
    %4165 = vmatprep.mubr.bf16.mxu0 0
    %4166 = vmatmul.mubr.bf16.gmra.mrb[0].mxu0 %v2445
    %v4167 = vpop.f32.mrb[0].mxu0
    %v4168 = vadd.f32 0.0, %v4167
    %v4169 = vpop.f32.mrb[0].mxu0
    %v4170 = vpop.f32.mrb[0].mxu0
    %v4171 = vadd.f32 0.0, %v4170
    %v4172 = vpop.f32.mrb[0].mxu0
    %4173 = vmatprep.mubr.bf16.mxu0 0
    %4174 = vmatmul.mubr.bf16.gmra.mrb[0].mxu0 %v2448
    %v4175 = vpop.f32.mrb[0].mxu0
    %v4176 = vadd.f32 0.0, %v4175
    %v4177 = vpop.f32.mrb[0].mxu0
    %v4178 = vpop.f32.mrb[0].mxu0
    %v4179 = vadd.f32 0.0, %v4178
    %v4180 = vpop.f32.mrb[0].mxu0
    %4181 = vmatprep.mubr.bf16.mxu0 0
    %4182 = vmatmul.mubr.bf16.gmra.mrb[0].mxu0 %v2451
    %v4183 = vpop.f32.mrb[0].mxu0
    %v4184 = vadd.f32 0.0, %v4183
    %v4185 = vpop.f32.mrb[0].mxu0
    %v4186 = vpop.f32.mrb[0].mxu0
    %v4187 = vadd.f32 0.0, %v4186
    %v4188 = vpop.f32.mrb[0].mxu0
    %4189 = vmatprep.mubr.bf16.mxu0 0
    %4190 = vmatmul.mubr.bf16.gmra.mrb[0].mxu0 %v2454
    %v4191 = vpop.f32.mrb[0].mxu0
    %v4192 = vadd.f32 0.0, %v4191
    %v4193 = vpop.f32.mrb[0].mxu0
    %v4194 = vpop.f32.mrb[0].mxu0
    %v4195 = vadd.f32 0.0, %v4194
    %v4196 = vpop.f32.mrb[0].mxu0
    %4197 = vmatprep.mubr.bf16.mxu0 0
    %4198 = vmatmul.mubr.bf16.gmra.mrb[0].mxu0 %v2457
    %v4199 = vpop.f32.mrb[0].mxu0
    %v4200 = vadd.f32 0.0, %v4199
    %v4201 = vpop.f32.mrb[0].mxu0
    %v4202 = vpop.f32.mrb[0].mxu0
    %v4203 = vadd.f32 0.0, %v4202
    %v4204 = vpop.f32.mrb[0].mxu0
    %4205 = vmatprep.mubr.bf16.mxu0 0
    %4206 = vmatmul.mubr.bf16.gmra.mrb[0].mxu0 %v2460
    %v4207 = vpop.f32.mrb[0].mxu0
    %v4208 = vadd.f32 0.0, %v4207
    %v4209 = vpop.f32.mrb[0].mxu0
    %v4210 = vpop.f32.mrb[0].mxu0
    %v4211 = vadd.f32 0.0, %v4210
    %v4212 = vpop.f32.mrb[0].mxu0
    %4213 = vmatprep.mubr.bf16.mxu0 0
    %4214 = vmatmul.mubr.bf16.gmra.mrb[0].mxu0 %v2463
    %v4215 = vpop.f32.mrb[0].mxu0
    %v4216 = vadd.f32 0.0, %v4215
    %v4217 = vpop.f32.mrb[0].mxu0
    %v4218 = vpop.f32.mrb[0].mxu0
    %v4219 = vadd.f32 0.0, %v4218
    %v4220 = vpop.f32.mrb[0].mxu0
    %4221 = vmatprep.mubr.bf16.mxu0 0
    %4222 = vmatmul.mubr.bf16.gmra.mrb[0].mxu0 %v2466
    %v4223 = vpop.f32.mrb[0].mxu0
    %v4224 = vadd.f32 0.0, %v4223
    %v4225 = vpop.f32.mrb[0].mxu0
    %v4226 = vpop.f32.mrb[0].mxu0
    %v4227 = vadd.f32 0.0, %v4226
    %v4228 = vpop.f32.mrb[0].mxu0
    %4229 = vmatprep.mubr.bf16.mxu0 0
    %4230 = vmatmul.mubr.bf16.gmra.mrb[0].mxu0 %v2469
    %v4231 = vpop.f32.mrb[0].mxu0
    %v4232 = vadd.f32 0.0, %v4231
    %v4233 = vpop.f32.mrb[0].mxu0
    %v4234 = vpop.f32.mrb[0].mxu0
    %v4235 = vadd.f32 0.0, %v4234
    %v4236 = vpop.f32.mrb[0].mxu0
    %4237 = vmatprep.mubr.bf16.mxu0 0
    %4238 = vmatmul.mubr.bf16.gmra.mrb[0].mxu0 %v2472
    %v4239 = vpop.f32.mrb[0].mxu0
    %v4240 = vadd.f32 0.0, %v4239
    %v4241 = vpop.f32.mrb[0].mxu0
    %v4242 = vpop.f32.mrb[0].mxu0
    %v4243 = vadd.f32 0.0, %v4242
    %v4244 = vpop.f32.mrb[0].mxu0
    %4245 = vmatprep.mubr.bf16.mxu0 0
    %4246 = vmatmul.mubr.bf16.gmra.mrb[0].mxu0 %v2475
    %v4247 = vpop.f32.mrb[0].mxu0
    %v4248 = vadd.f32 0.0, %v4247
    %v4249 = vpop.f32.mrb[0].mxu0
    %v4250 = vpop.f32.mrb[0].mxu0
    %v4251 = vadd.f32 0.0, %v4250
    %v4252 = vpop.f32.mrb[0].mxu0
    %4253 = vmatprep.mubr.bf16.mxu0 0
    %4254 = vmatmul.mubr.bf16.gmra.mrb[0].mxu0 %v2478
    %v4255 = vpop.f32.mrb[0].mxu0
    %v4256 = vadd.f32 0.0, %v4255
    %v4257 = vpop.f32.mrb[0].mxu0
    %v4258 = vpop.f32.mrb[0].mxu0
    %v4259 = vadd.f32 0.0, %v4258
    %v4260 = vpop.f32.mrb[0].mxu0
    %4261 = vmatprep.mubr.bf16.mxu0 0
    %4262 = vmatmul.mubr.bf16.gmra.mrb[0].mxu0 %v2481
    %v4263 = vpop.f32.mrb[0].mxu0
    %v4264 = vadd.f32 0.0, %v4263
    %v4265 = vpop.f32.mrb[0].mxu0
    %v4266 = vpop.f32.mrb[0].mxu0
    %v4267 = vadd.f32 0.0, %v4266
    %v4268 = vpop.f32.mrb[0].mxu0
    %4269 = vmatprep.mubr.bf16.mxu0 0
    %4270 = vmatmul.mubr.bf16.gmra.mrb[0].mxu0 %v2484
    %v4271 = vpop.f32.mrb[0].mxu0
    %v4272 = vadd.f32 0.0, %v4271
    %v4273 = vpop.f32.mrb[0].mxu0
    %v4274 = vpop.f32.mrb[0].mxu0
    %v4275 = vadd.f32 0.0, %v4274
    %v4276 = vpop.f32.mrb[0].mxu0
    %4277 = vmatprep.mubr.bf16.mxu0 0
    %4278 = vmatmul.mubr.bf16.gmra.mrb[0].mxu0 %v2487
    %v4279 = vpop.f32.mrb[0].mxu0
    %v4280 = vadd.f32 0.0, %v4279
    %v4281 = vpop.f32.mrb[0].mxu0
    %v4282 = vpop.f32.mrb[0].mxu0
    %v4283 = vadd.f32 0.0, %v4282
    %v4284 = vpop.f32.mrb[0].mxu0
    %4285 = vmatprep.mubr.bf16.mxu0 0
    %4286 = vmatmul.mubr.bf16.gmra.mrb[0].mxu0 %v2490
    %v4287 = vpop.f32.mrb[0].mxu0
    %v4288 = vadd.f32 0.0, %v4287
    %v4289 = vpop.f32.mrb[0].mxu0
    %v4290 = vpop.f32.mrb[0].mxu0
    %v4291 = vadd.f32 0.0, %v4290
    %v4292 = vpop.f32.mrb[0].mxu0
    %4293 = vmatprep.mubr.bf16.mxu0 0
    %4294 = vmatmul.mubr.bf16.gmra.mrb[0].mxu0 %v2493
    %v4295 = vpop.f32.mrb[0].mxu0
    %v4296 = vadd.f32 0.0, %v4295
    %v4297 = vpop.f32.mrb[0].mxu0
    %v4298 = vpop.f32.mrb[0].mxu0
    %v4299 = vadd.f32 0.0, %v4298
    %v4300 = vpop.f32.mrb[0].mxu0
    %4301 = vmatprep.mubr.bf16.mxu0 0
    %4302 = vmatmul.mubr.bf16.gmra.mrb[0].mxu0 %v2496
    %v4303 = vpop.f32.mrb[0].mxu0
    %v4304 = vadd.f32 0.0, %v4303
    %v4305 = vpop.f32.mrb[0].mxu0
    %v4306 = vpop.f32.mrb[0].mxu0
    %v4307 = vadd.f32 0.0, %v4306
    %v4308 = vpop.f32.mrb[0].mxu0
    %4309 = vmatprep.mubr.bf16.mxu0 0
    %4310 = vmatmul.mubr.bf16.gmra.mrb[0].mxu0 %v2499
    %v4311 = vpop.f32.mrb[0].mxu0
    %v4312 = vadd.f32 0.0, %v4311
    %v4313 = vpop.f32.mrb[0].mxu0
    %v4314 = vpop.f32.mrb[0].mxu0
    %v4315 = vadd.f32 0.0, %v4314
    %v4316 = vpop.f32.mrb[0].mxu0
    %4317 = vmatprep.mubr.bf16.mxu0 0
    %4318 = vmatmul.mubr.bf16.gmra.mrb[0].mxu0 %v2502
    %v4319 = vpop.f32.mrb[0].mxu0
    %v4320 = vadd.f32 0.0, %v4319
    %v4321 = vpop.f32.mrb[0].mxu0
    %v4322 = vpop.f32.mrb[0].mxu0
    %v4323 = vadd.f32 0.0, %v4322
    %v4324 = vpop.f32.mrb[0].mxu0
    %4325 = vmatprep.mubr.bf16.mxu0 0
    %4326 = vmatmul.mubr.bf16.gmra.mrb[0].mxu0 %v2505
    %v4327 = vpop.f32.mrb[0].mxu0
    %v4328 = vadd.f32 0.0, %v4327
    %v4329 = vpop.f32.mrb[0].mxu0
    %v4330 = vpop.f32.mrb[0].mxu0
    %v4331 = vadd.f32 0.0, %v4330
    %v4332 = vpop.f32.mrb[0].mxu0
    %4333 = vmatprep.mubr.bf16.mxu0 0
    %4334 = vmatmul.mubr.bf16.gmra.mrb[0].mxu0 %v2508
    %v4335 = vpop.f32.mrb[0].mxu0
    %v4336 = vadd.f32 0.0, %v4335
    %v4337 = vpop.f32.mrb[0].mxu0
    %v4338 = vpop.f32.mrb[0].mxu0
    %v4339 = vpop.f32.mrb[0].mxu0
    %4340 = vmatprep.mubr.bf16.mxu0 0
    %4341 = vmatmul.mubr.bf16.gmra.mrb[0].mxu0 %v2511
    %v4342 = vpop.f32.mrb[0].mxu0
    %v4343 = vadd.f32 0.0, %v4342
    %v4344 = vpop.f32.mrb[0].mxu0
    %v4345 = vpop.f32.mrb[0].mxu0
    %v4346 = vadd.f32 0.0, %v4345
    %v4347 = vpop.f32.mrb[0].mxu0
    %4348 = vmatprep.mubr.bf16.mxu0 0
    %4349 = vmatmul.mubr.bf16.gmra.mrb[0].mxu0 %v2514
    %v4350 = vpop.f32.mrb[0].mxu0
    %v4351 = vadd.f32 0.0, %v4350
    %v4352 = vpop.f32.mrb[0].mxu0
    %v4353 = vpop.f32.mrb[0].mxu0
    %v4354 = vadd.f32 0.0, %v4353
    %v4355 = vpop.f32.mrb[0].mxu0
    %4356 = vmatprep.mubr.bf16.mxu0 0
    %4357 = vmatmul.mubr.bf16.gmra.mrb[0].mxu0 %v2517
    %v4358 = vpop.f32.mrb[0].mxu0
    %v4359 = vadd.f32 0.0, %v4358
    %v4360 = vpop.f32.mrb[0].mxu0
    %v4361 = vpop.f32.mrb[0].mxu0
    %v4362 = vadd.f32 0.0, %v4361
    %v4363 = vpop.f32.mrb[0].mxu0
    %4364 = vmatprep.mubr.bf16.mxu0 0
    %4365 = vmatmul.mubr.bf16.gmra.mrb[0].mxu0 %v2520
    %v4366 = vpop.f32.mrb[0].mxu0
    %v4367 = vadd.f32 0.0, %v4366
    %v4368 = vpop.f32.mrb[0].mxu0
    %v4369 = vpop.f32.mrb[0].mxu0
    %v4370 = vadd.f32 0.0, %v4369
    %v4371 = vpop.f32.mrb[0].mxu0
    %4372 = vmatprep.mubr.bf16.mxu0 0
    %4373 = vmatmul.mubr.bf16.gmra.mrb[0].mxu0 %v2523
    %v4374 = vpop.f32.mrb[0].mxu0
    %v4375 = vadd.f32 0.0, %v4374
    %v4376 = vpop.f32.mrb[0].mxu0
    %v4377 = vpop.f32.mrb[0].mxu0
    %v4378 = vadd.f32 0.0, %v4377
    %v4379 = vpop.f32.mrb[0].mxu0
    %4380 = vmatprep.mubr.bf16.mxu0 0
    %4381 = vmatmul.mubr.bf16.gmra.mrb[0].mxu0 %v2526
    %v4382 = vpop.f32.mrb[0].mxu0
    %v4383 = vadd.f32 0.0, %v4382
    %v4384 = vpop.f32.mrb[0].mxu0
    %v4385 = vpop.f32.mrb[0].mxu0
    %v4386 = vadd.f32 0.0, %v4385
    %v4387 = vpop.f32.mrb[0].mxu0
    %4388 = vmatprep.mubr.bf16.mxu0 0
    %4389 = vmatmul.mubr.bf16.gmra.mrb[0].mxu0 %v2529
    %v4390 = vpop.f32.mrb[0].mxu0
    %v4391 = vadd.f32 0.0, %v4390
    %v4392 = vpop.f32.mrb[0].mxu0
    %v4393 = vpop.f32.mrb[0].mxu0
    %v4394 = vadd.f32 0.0, %v4393
    %v4395 = vpop.f32.mrb[0].mxu0
    %4396 = vmatprep.mubr.bf16.mxu0 0
    %4397 = vmatmul.mubr.bf16.gmra.mrb[0].mxu0 %v2532
    %v4398 = vpop.f32.mrb[0].mxu0
    %v4399 = vadd.f32 0.0, %v4398
    %v4400 = vpop.f32.mrb[0].mxu0
    %v4401 = vpop.f32.mrb[0].mxu0
    %v4402 = vadd.f32 0.0, %v4401
    %v4403 = vpop.f32.mrb[0].mxu0
    %4404 = vmatprep.mubr.bf16.mxu0 0
    %4405 = vmatmul.mubr.bf16.gmra.mrb[0].mxu0 %v2535
    %v4406 = vpop.f32.mrb[0].mxu0
    %v4407 = vadd.f32 0.0, %v4406
    %v4408 = vpop.f32.mrb[0].mxu0
    %v4409 = vpop.f32.mrb[0].mxu0
    %v4410 = vadd.f32 0.0, %v4409
    %v4411 = vpop.f32.mrb[0].mxu0
    %4412 = vmatprep.mubr.bf16.mxu0 0
    %4413 = vmatmul.mubr.bf16.gmra.mrb[0].mxu0 %v2538
    %v4414 = vpop.f32.mrb[0].mxu0
    %v4415 = vadd.f32 0.0, %v4414
    %v4416 = vpop.f32.mrb[0].mxu0
    %v4417 = vpop.f32.mrb[0].mxu0
    %v4418 = vadd.f32 0.0, %v4417
    %v4419 = vpop.f32.mrb[0].mxu0
    %4420 = vmatprep.mubr.bf16.mxu0 0
    %4421 = vmatmul.mubr.bf16.gmra.mrb[0].mxu0 %v2541
    %v4422 = vpop.f32.mrb[0].mxu0
    %v4423 = vadd.f32 0.0, %v4422
    %v4424 = vpop.f32.mrb[0].mxu0
    %v4425 = vpop.f32.mrb[0].mxu0
    %v4426 = vadd.f32 0.0, %v4425
    %v4427 = vpop.f32.mrb[0].mxu0
    %4428 = vmatprep.mubr.bf16.mxu0 0
    %4429 = vmatmul.mubr.bf16.gmra.mrb[0].mxu0 %v2544
    %v4430 = vpop.f32.mrb[0].mxu0
    %v4431 = vadd.f32 0.0, %v4430
    %v4432 = vpop.f32.mrb[0].mxu0
    %v4433 = vpop.f32.mrb[0].mxu0
    %v4434 = vadd.f32 0.0, %v4433
    %v4435 = vpop.f32.mrb[0].mxu0
    %4436 = vmatprep.mubr.bf16.mxu0 0
    %4437 = vmatmul.mubr.bf16.gmra.mrb[0].mxu0 %v2547
    %v4438 = vpop.f32.mrb[0].mxu0
    %v4439 = vadd.f32 0.0, %v4438
    %v4440 = vpop.f32.mrb[0].mxu0
    %v4441 = vpop.f32.mrb[0].mxu0
    %v4442 = vadd.f32 0.0, %v4441
    %v4443 = vpop.f32.mrb[0].mxu0
    %4444 = vmatprep.mubr.bf16.mxu0 0
    %4445 = vmatmul.mubr.bf16.gmra.mrb[0].mxu0 %v2550
    %v4446 = vpop.f32.mrb[0].mxu0
    %v4447 = vadd.f32 0.0, %v4446
    %v4448 = vpop.f32.mrb[0].mxu0
    %v4449 = vpop.f32.mrb[0].mxu0
    %v4450 = vadd.f32 0.0, %v4449
    %v4451 = vpop.f32.mrb[0].mxu0
    %4452 = vmatprep.mubr.bf16.mxu0 0
    %4453 = vmatmul.mubr.bf16.gmra.mrb[0].mxu0 %v2553
    %v4454 = vpop.f32.mrb[0].mxu0
    %v4455 = vadd.f32 0.0, %v4454
    %v4456 = vpop.f32.mrb[0].mxu0
    %v4457 = vpop.f32.mrb[0].mxu0
    %v4458 = vadd.f32 0.0, %v4457
    %v4459 = vpop.f32.mrb[0].mxu0
    %4460 = vmatprep.mubr.bf16.mxu0 0
    %4461 = vmatmul.mubr.bf16.gmra.mrb[0].mxu0 %v2556
    %v4462 = vpop.f32.mrb[0].mxu0
    %v4463 = vadd.f32 0.0, %v4462
    %v4464 = vpop.f32.mrb[0].mxu0
    %v4465 = vpop.f32.mrb[0].mxu0
    %v4466 = vadd.f32 0.0, %v4465
    %v4467 = vpop.f32.mrb[0].mxu0
    %4468 = vmatprep.mubr.bf16.mxu0 0
    %4469 = vmatmul.mubr.bf16.gmra.mrb[0].mxu0 %v2559
    %v4470 = vpop.f32.mrb[0].mxu0
    %v4471 = vadd.f32 0.0, %v4470
    %v4472 = vpop.f32.mrb[0].mxu0
    %v4473 = vpop.f32.mrb[0].mxu0
    %v4474 = vadd.f32 0.0, %v4473
    %v4475 = vpop.f32.mrb[0].mxu0
    %4476 = vmatprep.mubr.bf16.mxu0 0
    %4477 = vmatmul.mubr.bf16.gmra.mrb[0].mxu0 %v2562
    %v4478 = vpop.f32.mrb[0].mxu0
    %v4479 = vadd.f32 0.0, %v4478
    %v4480 = vpop.f32.mrb[0].mxu0
    %v4481 = vpop.f32.mrb[0].mxu0
    %v4482 = vadd.f32 0.0, %v4481
    %v4483 = vpop.f32.mrb[0].mxu0
    %4484 = vmatprep.mubr.bf16.mxu0 0
    %4485 = vmatmul.mubr.bf16.gmra.mrb[0].mxu0 %v2565
    %v4486 = vpop.f32.mrb[0].mxu0
    %v4487 = vadd.f32 0.0, %v4486
    %v4488 = vpop.f32.mrb[0].mxu0
    %v4489 = vpop.f32.mrb[0].mxu0
    %v4490 = vadd.f32 0.0, %v4489
    %v4491 = vpop.f32.mrb[0].mxu0
    %4492 = vmatprep.mubr.bf16.mxu0 0
    %4493 = vmatmul.mubr.bf16.gmra.mrb[0].mxu0 %v2568
    %v4494 = vpop.f32.mrb[0].mxu0
    %v4495 = vadd.f32 0.0, %v4494
    %v4496 = vpop.f32.mrb[0].mxu0
    %v4497 = vpop.f32.mrb[0].mxu0
    %v4498 = vadd.f32 0.0, %v4497
    %v4499 = vpop.f32.mrb[0].mxu0
    %4500 = vmatprep.mubr.bf16.mxu0 0
    %4501 = vmatmul.mubr.bf16.gmra.mrb[0].mxu0 %v2571
    %v4502 = vpop.f32.mrb[0].mxu0
    %v4503 = vadd.f32 0.0, %v4502
    %v4504 = vpop.f32.mrb[0].mxu0
    %v4505 = vpop.f32.mrb[0].mxu0
    %v4506 = vadd.f32 0.0, %v4505
    %v4507 = vpop.f32.mrb[0].mxu0
    %4508 = vmatprep.mubr.bf16.mxu0 0
    %4509 = vmatmul.mubr.bf16.gmra.mrb[0].mxu0 %v2574
    %v4510 = vpop.f32.mrb[0].mxu0
    %v4511 = vadd.f32 0.0, %v4510
    %v4512 = vpop.f32.mrb[0].mxu0
    %v4513 = vpop.f32.mrb[0].mxu0
    %v4514 = vadd.f32 0.0, %v4513
    %v4515 = vpop.f32.mrb[0].mxu0
    %4516 = vmatprep.mubr.bf16.mxu0 0
    %4517 = vmatmul.mubr.bf16.gmra.mrb[0].mxu0 %v2577
    %v4518 = vpop.f32.mrb[0].mxu0
    %v4519 = vadd.f32 0.0, %v4518
    %v4520 = vpop.f32.mrb[0].mxu0
    %v4521 = vpop.f32.mrb[0].mxu0
    %v4522 = vadd.f32 0.0, %v4521
    %v4523 = vpop.f32.mrb[0].mxu0
    %4524 = vmatprep.mubr.bf16.mxu0 0
    %4525 = vmatmul.mubr.bf16.gmra.mrb[0].mxu0 %v2580
    %v4526 = vpop.f32.mrb[0].mxu0
    %v4527 = vadd.f32 0.0, %v4526
    %v4528 = vpop.f32.mrb[0].mxu0
    %v4529 = vpop.f32.mrb[0].mxu0
    %v4530 = vadd.f32 0.0, %v4529
    %v4531 = vpop.f32.mrb[0].mxu0
    %4532 = vmatprep.mubr.bf16.mxu0 0
    %4533 = vmatmul.mubr.bf16.gmra.mrb[0].mxu0 %v2583
    %v4534 = vpop.f32.mrb[0].mxu0
    %v4535 = vadd.f32 0.0, %v4534
    %v4536 = vpop.f32.mrb[0].mxu0
    %v4537 = vpop.f32.mrb[0].mxu0
    %v4538 = vadd.f32 0.0, %v4537
    %v4539 = vpop.f32.mrb[0].mxu0
    %4540 = vmatprep.mubr.bf16.mxu0 0
    %4541 = vmatmul.mubr.bf16.gmra.mrb[0].mxu0 %v2586
    %v4542 = vpop.f32.mrb[0].mxu0
    %v4543 = vadd.f32 0.0, %v4542
    %v4544 = vpop.f32.mrb[0].mxu0
    %v4545 = vpop.f32.mrb[0].mxu0
    %v4546 = vadd.f32 0.0, %v4545
    %v4547 = vpop.f32.mrb[0].mxu0
    %4548 = vmatprep.mubr.bf16.mxu0 0
    %4549 = vmatmul.mubr.bf16.gmra.mrb[0].mxu0 %v2589
    %v4550 = vpop.f32.mrb[0].mxu0
    %v4551 = vadd.f32 0.0, %v4550
    %v4552 = vpop.f32.mrb[0].mxu0
    %v4553 = vpop.f32.mrb[0].mxu0
    %v4554 = vadd.f32 0.0, %v4553
    %v4555 = vpop.f32.mrb[0].mxu0
    %4556 = vmatprep.mubr.bf16.mxu0 0
    %4557 = vmatmul.mubr.bf16.gmra.mrb[0].mxu0 %v2592
    %v4558 = vpop.f32.mrb[0].mxu0
    %v4559 = vadd.f32 0.0, %v4558
    %v4560 = vpop.f32.mrb[0].mxu0
    %v4561 = vpop.f32.mrb[0].mxu0
    %v4562 = vadd.f32 0.0, %v4561
    %v4563 = vpop.f32.mrb[0].mxu0
    %4564 = vmatprep.mubr.bf16.mxu0 0
    %4565 = vmatmul.mubr.bf16.gmra.mrb[0].mxu0 %v2595
    %v4566 = vpop.f32.mrb[0].mxu0
    %v4567 = vadd.f32 0.0, %v4566
    %v4568 = vpop.f32.mrb[0].mxu0
    %v4569 = vpop.f32.mrb[0].mxu0
    %v4570 = vpop.f32.mrb[0].mxu0
    %4571 = vmatprep.mubr.bf16.mxu0 0
    %4572 = vmatmul.mubr.bf16.gmra.mrb[0].mxu0 %v2598
    %v4573 = vpop.f32.mrb[0].mxu0
    %v4574 = vadd.f32 0.0, %v4573
    %v4575 = vpop.f32.mrb[0].mxu0
    %v4576 = vpop.f32.mrb[0].mxu0
    %v4577 = vadd.f32 0.0, %v4576
    %v4578 = vpop.f32.mrb[0].mxu0
    %4579 = vmatprep.mubr.bf16.mxu0 0
    %4580 = vmatmul.mubr.bf16.gmra.mrb[0].mxu0 %v2601
    %v4581 = vpop.f32.mrb[0].mxu0
    %v4582 = vadd.f32 0.0, %v4581
    %v4583 = vpop.f32.mrb[0].mxu0
    %v4584 = vpop.f32.mrb[0].mxu0
    %v4585 = vadd.f32 0.0, %v4584
    %v4586 = vpop.f32.mrb[0].mxu0
    %4587 = vmatprep.mubr.bf16.mxu0 0
    %4588 = vmatmul.mubr.bf16.gmra.mrb[0].mxu0 %v2604
    %v4589 = vpop.f32.mrb[0].mxu0
    %v4590 = vadd.f32 0.0, %v4589
    %v4591 = vpop.f32.mrb[0].mxu0
    %v4592 = vpop.f32.mrb[0].mxu0
    %v4593 = vadd.f32 0.0, %v4592
    %v4594 = vpop.f32.mrb[0].mxu0
    %4595 = vmatprep.mubr.bf16.mxu0 0
    %4596 = vmatmul.mubr.bf16.gmra.mrb[0].mxu0 %v2607
    %v4597 = vpop.f32.mrb[0].mxu0
    %v4598 = vadd.f32 0.0, %v4597
    %v4599 = vpop.f32.mrb[0].mxu0
    %v4600 = vpop.f32.mrb[0].mxu0
    %v4601 = vadd.f32 0.0, %v4600
    %v4602 = vpop.f32.mrb[0].mxu0
    %4603 = vmatprep.mubr.bf16.mxu0 0
    %4604 = vmatmul.mubr.bf16.gmra.mrb[0].mxu0 %v2610
    %v4605 = vpop.f32.mrb[0].mxu0
    %v4606 = vadd.f32 0.0, %v4605
    %v4607 = vpop.f32.mrb[0].mxu0
    %v4608 = vpop.f32.mrb[0].mxu0
    %v4609 = vadd.f32 0.0, %v4608
    %v4610 = vpop.f32.mrb[0].mxu0
    %4611 = vmatprep.mubr.bf16.mxu0 0
    %4612 = vmatmul.mubr.bf16.gmra.mrb[0].mxu0 %v2613
    %v4613 = vpop.f32.mrb[0].mxu0
    %v4614 = vadd.f32 0.0, %v4613
    %v4615 = vpop.f32.mrb[0].mxu0
    %v4616 = vpop.f32.mrb[0].mxu0
    %v4617 = vadd.f32 0.0, %v4616
    %v4618 = vpop.f32.mrb[0].mxu0
    %4619 = vmatprep.mubr.bf16.mxu0 0
    %4620 = vmatmul.mubr.bf16.gmra.mrb[0].mxu0 %v2616
    %v4621 = vpop.f32.mrb[0].mxu0
    %v4622 = vadd.f32 0.0, %v4621
    %v4623 = vpop.f32.mrb[0].mxu0
    %v4624 = vpop.f32.mrb[0].mxu0
    %v4625 = vadd.f32 0.0, %v4624
    %v4626 = vpop.f32.mrb[0].mxu0
    %4627 = vmatprep.mubr.bf16.mxu0 0
    %4628 = vmatmul.mubr.bf16.gmra.mrb[0].mxu0 %v2619
    %v4629 = vpop.f32.mrb[0].mxu0
    %v4630 = vadd.f32 0.0, %v4629
    %v4631 = vpop.f32.mrb[0].mxu0
    %v4632 = vpop.f32.mrb[0].mxu0
    %v4633 = vadd.f32 0.0, %v4632
    %v4634 = vpop.f32.mrb[0].mxu0
    %4635 = vmatprep.mubr.bf16.mxu0 0
    %4636 = vmatmul.mubr.bf16.gmra.mrb[0].mxu0 %v2622
    %v4637 = vpop.f32.mrb[0].mxu0
    %v4638 = vadd.f32 0.0, %v4637
    %v4639 = vpop.f32.mrb[0].mxu0
    %v4640 = vpop.f32.mrb[0].mxu0
    %v4641 = vadd.f32 0.0, %v4640
    %v4642 = vpop.f32.mrb[0].mxu0
    %4643 = vmatprep.mubr.bf16.mxu0 0
    %4644 = vmatmul.mubr.bf16.gmra.mrb[0].mxu0 %v2625
    %v4645 = vpop.f32.mrb[0].mxu0
    %v4646 = vadd.f32 0.0, %v4645
    %v4647 = vpop.f32.mrb[0].mxu0
    %v4648 = vpop.f32.mrb[0].mxu0
    %v4649 = vadd.f32 0.0, %v4648
    %v4650 = vpop.f32.mrb[0].mxu0
    %4651 = vmatprep.mubr.bf16.mxu0 0
    %4652 = vmatmul.mubr.bf16.gmra.mrb[0].mxu0 %v2628
    %v4653 = vpop.f32.mrb[0].mxu0
    %v4654 = vadd.f32 0.0, %v4653
    %v4655 = vpop.f32.mrb[0].mxu0
    %v4656 = vpop.f32.mrb[0].mxu0
    %v4657 = vadd.f32 0.0, %v4656
    %v4658 = vpop.f32.mrb[0].mxu0
    %4659 = vmatprep.mubr.bf16.mxu0 0
    %4660 = vmatmul.mubr.bf16.gmra.mrb[0].mxu0 %v2631
    %v4661 = vpop.f32.mrb[0].mxu0
    %v4662 = vadd.f32 0.0, %v4661
    %v4663 = vpop.f32.mrb[0].mxu0
    %v4664 = vpop.f32.mrb[0].mxu0
    %v4665 = vadd.f32 0.0, %v4664
    %v4666 = vpop.f32.mrb[0].mxu0
    %4667 = vmatprep.mubr.bf16.mxu0 0
    %4668 = vmatmul.mubr.bf16.gmra.mrb[0].mxu0 %v2634
    %v4669 = vpop.f32.mrb[0].mxu0
    %v4670 = vadd.f32 0.0, %v4669
    %v4671 = vpop.f32.mrb[0].mxu0
    %v4672 = vpop.f32.mrb[0].mxu0
    %v4673 = vadd.f32 0.0, %v4672
    %v4674 = vpop.f32.mrb[0].mxu0
    %4675 = vmatprep.mubr.bf16.mxu0 0
    %4676 = vmatmul.mubr.bf16.gmra.mrb[0].mxu0 %v2637
    %v4677 = vpop.f32.mrb[0].mxu0
    %v4678 = vadd.f32 0.0, %v4677
    %v4679 = vpop.f32.mrb[0].mxu0
    %v4680 = vpop.f32.mrb[0].mxu0
    %v4681 = vadd.f32 0.0, %v4680
    %v4682 = vpop.f32.mrb[0].mxu0
    %4683 = vmatprep.mubr.bf16.mxu0 0
    %4684 = vmatmul.mubr.bf16.gmra.mrb[0].mxu0 %v2640
    %v4685 = vpop.f32.mrb[0].mxu0
    %v4686 = vadd.f32 0.0, %v4685
    %v4687 = vpop.f32.mrb[0].mxu0
    %v4688 = vpop.f32.mrb[0].mxu0
    %v4689 = vadd.f32 0.0, %v4688
    %v4690 = vpop.f32.mrb[0].mxu0
    %4691 = vmatprep.mubr.bf16.mxu0 0
    %4692 = vmatmul.mubr.bf16.gmra.mrb[0].mxu0 %v2643
    %v4693 = vpop.f32.mrb[0].mxu0
    %v4694 = vadd.f32 0.0, %v4693
    %v4695 = vpop.f32.mrb[0].mxu0
    %v4696 = vpop.f32.mrb[0].mxu0
    %v4697 = vadd.f32 0.0, %v4696
    %v4698 = vpop.f32.mrb[0].mxu0
    %4699 = vmatprep.mubr.bf16.mxu0 0
    %4700 = vmatmul.mubr.bf16.gmra.mrb[0].mxu0 %v2646
    %v4701 = vpop.f32.mrb[0].mxu0
    %v4702 = vadd.f32 0.0, %v4701
    %v4703 = vpop.f32.mrb[0].mxu0
    %v4704 = vpop.f32.mrb[0].mxu0
    %v4705 = vadd.f32 0.0, %v4704
    %v4706 = vpop.f32.mrb[0].mxu0
    %4707 = vmatprep.mubr.bf16.mxu0 0
    %4708 = vmatmul.mubr.bf16.gmra.mrb[0].mxu0 %v2649
    %v4709 = vpop.f32.mrb[0].mxu0
    %v4710 = vadd.f32 0.0, %v4709
    %v4711 = vpop.f32.mrb[0].mxu0
    %v4712 = vpop.f32.mrb[0].mxu0
    %v4713 = vadd.f32 0.0, %v4712
    %v4714 = vpop.f32.mrb[0].mxu0
    %4715 = vmatprep.mubr.bf16.mxu0 0
    %4716 = vmatmul.mubr.bf16.gmra.mrb[0].mxu0 %v2652
    %v4717 = vpop.f32.mrb[0].mxu0
    %v4718 = vadd.f32 0.0, %v4717
    %v4719 = vpop.f32.mrb[0].mxu0
    %v4720 = vpop.f32.mrb[0].mxu0
    %v4721 = vadd.f32 0.0, %v4720
    %v4722 = vpop.f32.mrb[0].mxu0
    %4723 = vmatprep.mubr.bf16.mxu0 0
    %4724 = vmatmul.mubr.bf16.gmra.mrb[0].mxu0 %v2655
    %v4725 = vpop.f32.mrb[0].mxu0
    %v4726 = vadd.f32 0.0, %v4725
    %v4727 = vpop.f32.mrb[0].mxu0
    %v4728 = vpop.f32.mrb[0].mxu0
    %v4729 = vadd.f32 0.0, %v4728
    %v4730 = vpop.f32.mrb[0].mxu0
    %4731 = vmatprep.mubr.bf16.mxu0 0
    %4732 = vmatmul.mubr.bf16.gmra.mrb[0].mxu0 %v2658
    %v4733 = vpop.f32.mrb[0].mxu0
    %v4734 = vadd.f32 0.0, %v4733
    %v4735 = vpop.f32.mrb[0].mxu0
    %v4736 = vpop.f32.mrb[0].mxu0
    %v4737 = vadd.f32 0.0, %v4736
    %v4738 = vpop.f32.mrb[0].mxu0
    %4739 = vmatprep.mubr.bf16.mxu0 0
    %4740 = vmatmul.mubr.bf16.gmra.mrb[0].mxu0 %v2661
    %v4741 = vpop.f32.mrb[0].mxu0
    %v4742 = vadd.f32 0.0, %v4741
    %v4743 = vpop.f32.mrb[0].mxu0
    %v4744 = vpop.f32.mrb[0].mxu0
    %v4745 = vadd.f32 0.0, %v4744
    %v4746 = vpop.f32.mrb[0].mxu0
    %4747 = vmatprep.mubr.bf16.mxu0 0
    %4748 = vmatmul.mubr.bf16.gmra.mrb[0].mxu0 %v2664
    %v4749 = vpop.f32.mrb[0].mxu0
    %v4750 = vadd.f32 0.0, %v4749
    %v4751 = vpop.f32.mrb[0].mxu0
    %v4752 = vpop.f32.mrb[0].mxu0
    %v4753 = vadd.f32 0.0, %v4752
    %v4754 = vpop.f32.mrb[0].mxu0
    %4755 = vmatprep.mubr.bf16.mxu0 0
    %4756 = vmatmul.mubr.bf16.gmra.mrb[0].mxu0 %v2667
    %v4757 = vpop.f32.mrb[0].mxu0
    %v4758 = vadd.f32 0.0, %v4757
    %v4759 = vpop.f32.mrb[0].mxu0
    %v4760 = vpop.f32.mrb[0].mxu0
    %v4761 = vadd.f32 0.0, %v4760
    %v4762 = vpop.f32.mrb[0].mxu0
    %4763 = vmatprep.mubr.bf16.mxu0 0
    %4764 = vmatmul.mubr.bf16.gmra.mrb[0].mxu0 %v2670
    %v4765 = vpop.f32.mrb[0].mxu0
    %v4766 = vadd.f32 0.0, %v4765
    %v4767 = vpop.f32.mrb[0].mxu0
    %v4768 = vpop.f32.mrb[0].mxu0
    %v4769 = vadd.f32 0.0, %v4768
    %v4770 = vpop.f32.mrb[0].mxu0
    %4771 = vmatprep.mubr.bf16.mxu0 0
    %4772 = vmatmul.mubr.bf16.gmra.mrb[0].mxu0 %v2673
    %v4773 = vpop.f32.mrb[0].mxu0
    %v4774 = vadd.f32 0.0, %v4773
    %v4775 = vpop.f32.mrb[0].mxu0
    %v4776 = vpop.f32.mrb[0].mxu0
    %v4777 = vadd.f32 0.0, %v4776
    %v4778 = vpop.f32.mrb[0].mxu0
    %4779 = vmatprep.mubr.bf16.mxu0 0
    %4780 = vmatmul.mubr.bf16.gmra.mrb[0].mxu0 %v2676
    %v4781 = vpop.f32.mrb[0].mxu0
    %v4782 = vadd.f32 0.0, %v4781
    %v4783 = vpop.f32.mrb[0].mxu0
    %v4784 = vpop.f32.mrb[0].mxu0
    %v4785 = vadd.f32 0.0, %v4784
    %v4786 = vpop.f32.mrb[0].mxu0
    %4787 = vmatprep.mubr.bf16.mxu0 0
    %4788 = vmatmul.mubr.bf16.gmra.mrb[0].mxu0 %v2679
    %v4789 = vpop.f32.mrb[0].mxu0
    %v4790 = vadd.f32 0.0, %v4789
    %v4791 = vpop.f32.mrb[0].mxu0
    %v4792 = vpop.f32.mrb[0].mxu0
    %v4793 = vadd.f32 0.0, %v4792
    %v4794 = vpop.f32.mrb[0].mxu0
    %4795 = vmatprep.mubr.bf16.mxu0 0
    %4796 = vmatmul.mubr.bf16.gmra.mrb[0].mxu0 %v2682
    %v4797 = vpop.f32.mrb[0].mxu0
    %v4798 = vadd.f32 0.0, %v4797
    %v4799 = vpop.f32.mrb[0].mxu0
    %v4800 = vpop.f32.mrb[0].mxu0
    %v4801 = vpop.f32.mrb[0].mxu0
    %4802 = vdwg.mxu0
    %v4803 = vmax.f32 %v2726, %v2957
    %v4804 = vmax.f32 %v2729, %v2960
    %v4805 = vmax.f32 %v2734, %v2965
    %v4806 = vmax.f32 %v2737, %v2968
    %v4807 = vmax.f32 %v2742, %v2973
    %v4808 = vmax.f32 %v2745, %v2976
    %v4809 = vmax.f32 %v2750, %v2981
    %v4810 = vmax.f32 %v2753, %v2984
    %v4811 = vmax.f32 %v2758, %v2989
    %v4812 = vmax.f32 %v2761, %v2992
    %v4813 = vmax.f32 %v2766, %v2997
    %v4814 = vmax.f32 %v2769, %v3000
    %v4815 = vmax.f32 %v2774, %v3005
    %v4816 = vmax.f32 %v2777, %v3008
    %v4817 = vmax.f32 %v2782, %v3013
    %v4818 = vmax.f32 %v2785, %v3016
    %v4819 = vmax.f32 %v2790, %v3021
    %v4820 = vmax.f32 %v2793, %v3024
    %v4821 = vmax.f32 %v2798, %v3029
    %v4822 = vmax.f32 %v2801, %v3032
    %v4823 = vmax.f32 %v2806, %v3037
    %v4824 = vmax.f32 %v2809, %v3040
    %v4825 = vmax.f32 %v2814, %v3045
    %v4826 = vmax.f32 %v2817, %v3048
    %v4827 = vmax.f32 %v2822, %v3053
    %v4828 = vmax.f32 %v2825, %v3056
    %v4829 = vmax.f32 %v2830, %v3061
    %v4830 = vmax.f32 %v2833, %v3064
    %v4831 = vmax.f32 %v2838, %v3069
    %v4832 = vmax.f32 %v2841, %v3072
    %v4833 = vmax.f32 %v2846, %v3077
    %v4834 = vmax.f32 %v2849, %v3080
    %v4835 = vmax.f32 %v2854, %v3085
    %v4836 = vmax.f32 %v2857, %v3088
    %v4837 = vmax.f32 %v2862, %v3093
    %v4838 = vmax.f32 %v2865, %v3096
    %v4839 = vmax.f32 %v2870, %v3101
    %v4840 = vmax.f32 %v2873, %v3104
    %v4841 = vmax.f32 %v2878, %v3109
    %v4842 = vmax.f32 %v2881, %v3112
    %v4843 = vmax.f32 %v2886, %v3117
    %v4844 = vmax.f32 %v2889, %v3120
    %v4845 = vmax.f32 %v2894, %v3125
    %v4846 = vmax.f32 %v2897, %v3128
    %v4847 = vmax.f32 %v2902, %v3133
    %v4848 = vmax.f32 %v2905, %v3136
    %v4849 = vmax.f32 %v2910, %v3141
    %v4850 = vmax.f32 %v2913, %v3144
    %v4851 = vmax.f32 %v2918, %v3149
    %v4852 = vmax.f32 %v2921, %v3152
    %v4853 = vmax.f32 %v2926, %v3157
    %v4854 = vmax.f32 %v2929, %v3160
    %v4855 = vmax.f32 %v2934, %v3165
    %v4856 = vmax.f32 %v2937, %v3168
    %v4857 = vmax.f32 %v2942, %v3173
    %v4858 = vmax.f32 %v2945, %v3176
    %v4859 = vmax.f32 %v2950, %v3181
    %v4860 = vmax.f32 %v4803, %v3188
    %v4861 = vmax.f32 %v4804, %v3191
    %v4862 = vmax.f32 %v4805, %v3196
    %v4863 = vmax.f32 %v4806, %v3199
    %v4864 = vmax.f32 %v4807, %v3204
    %v4865 = vmax.f32 %v4808, %v3207
    %v4866 = vmax.f32 %v4809, %v3212
    %v4867 = vmax.f32 %v4810, %v3215
    %v4868 = vmax.f32 %v4811, %v3220
    %v4869 = vmax.f32 %v4812, %v3223
    %v4870 = vmax.f32 %v4813, %v3228
    %v4871 = vmax.f32 %v4814, %v3231
    %v4872 = vmax.f32 %v4815, %v3236
    %v4873 = vmax.f32 %v4816, %v3239
    %v4874 = vmax.f32 %v4817, %v3244
    %v4875 = vmax.f32 %v4818, %v3247
    %v4876 = vmax.f32 %v4819, %v3252
    %v4877 = vmax.f32 %v4820, %v3255
    %v4878 = vmax.f32 %v4821, %v3260
    %v4879 = vmax.f32 %v4822, %v3263
    %v4880 = vmax.f32 %v4823, %v3268
    %v4881 = vmax.f32 %v4824, %v3271
    %v4882 = vmax.f32 %v4825, %v3276
    %v4883 = vmax.f32 %v4826, %v3279
    %v4884 = vmax.f32 %v4827, %v3284
    %v4885 = vmax.f32 %v4828, %v3287
    %v4886 = vmax.f32 %v4829, %v3292
    %v4887 = vmax.f32 %v4830, %v3295
    %v4888 = vmax.f32 %v4831, %v3300
    %v4889 = vmax.f32 %v4832, %v3303
    %v4890 = vmax.f32 %v4833, %v3308
    %v4891 = vmax.f32 %v4834, %v3311
    %v4892 = vmax.f32 %v4835, %v3316
    %v4893 = vmax.f32 %v4836, %v3319
    %v4894 = vmax.f32 %v4837, %v3324
    %v4895 = vmax.f32 %v4838, %v3327
    %v4896 = vmax.f32 %v4839, %v3332
    %v4897 = vmax.f32 %v4840, %v3335
    %v4898 = vmax.f32 %v4841, %v3340
    %v4899 = vmax.f32 %v4842, %v3343
    %v4900 = vmax.f32 %v4843, %v3348
    %v4901 = vmax.f32 %v4844, %v3351
    %v4902 = vmax.f32 %v4845, %v3356
    %v4903 = vmax.f32 %v4846, %v3359
    %v4904 = vmax.f32 %v4847, %v3364
    %v4905 = vmax.f32 %v4848, %v3367
    %v4906 = vmax.f32 %v4849, %v3372
    %v4907 = vmax.f32 %v4850, %v3375
    %v4908 = vmax.f32 %v4851, %v3380
    %v4909 = vmax.f32 %v4852, %v3383
    %v4910 = vmax.f32 %v4853, %v3388
    %v4911 = vmax.f32 %v4854, %v3391
    %v4912 = vmax.f32 %v4855, %v3396
    %v4913 = vmax.f32 %v4856, %v3399
    %v4914 = vmax.f32 %v4857, %v3404
    %v4915 = vmax.f32 %v4858, %v3407
    %v4916 = vmax.f32 %v4859, %v3412
    %v4917 = vmax.f32 %v4860, %v3419
    %v4918 = vmax.f32 %v4861, %v3422
    %v4919 = vmax.f32 %v4862, %v3427
    %v4920 = vmax.f32 %v4863, %v3430
    %v4921 = vmax.f32 %v4864, %v3435
    %v4922 = vmax.f32 %v4865, %v3438
    %v4923 = vmax.f32 %v4866, %v3443
    %v4924 = vmax.f32 %v4867, %v3446
    %v4925 = vmax.f32 %v4868, %v3451
    %v4926 = vmax.f32 %v4869, %v3454
    %v4927 = vmax.f32 %v4870, %v3459
    %v4928 = vmax.f32 %v4871, %v3462
    %v4929 = vmax.f32 %v4872, %v3467
    %v4930 = vmax.f32 %v4873, %v3470
    %v4931 = vmax.f32 %v4874, %v3475
    %v4932 = vmax.f32 %v4875, %v3478
    %v4933 = vmax.f32 %v4876, %v3483
    %v4934 = vmax.f32 %v4877, %v3486
    %v4935 = vmax.f32 %v4878, %v3491
    %v4936 = vmax.f32 %v4879, %v3494
    %v4937 = vmax.f32 %v4880, %v3499
    %v4938 = vmax.f32 %v4881, %v3502
    %v4939 = vmax.f32 %v4882, %v3507
    %v4940 = vmax.f32 %v4883, %v3510
    %v4941 = vmax.f32 %v4884, %v3515
    %v4942 = vmax.f32 %v4885, %v3518
    %v4943 = vmax.f32 %v4886, %v3523
    %v4944 = vmax.f32 %v4887, %v3526
    %v4945 = vmax.f32 %v4888, %v3531
    %v4946 = vmax.f32 %v4889, %v3534
    %v4947 = vmax.f32 %v4890, %v3539
    %v4948 = vmax.f32 %v4891, %v3542
    %v4949 = vmax.f32 %v4892, %v3547
    %v4950 = vmax.f32 %v4893, %v3550
    %v4951 = vmax.f32 %v4894, %v3555
    %v4952 = vmax.f32 %v4895, %v3558
    %v4953 = vmax.f32 %v4896, %v3563
    %v4954 = vmax.f32 %v4897, %v3566
    %v4955 = vmax.f32 %v4898, %v3571
    %v4956 = vmax.f32 %v4899, %v3574
    %v4957 = vmax.f32 %v4900, %v3579
    %v4958 = vmax.f32 %v4901, %v3582
    %v4959 = vmax.f32 %v4902, %v3587
    %v4960 = vmax.f32 %v4903, %v3590
    %v4961 = vmax.f32 %v4904, %v3595
    %v4962 = vmax.f32 %v4905, %v3598
    %v4963 = vmax.f32 %v4906, %v3603
    %v4964 = vmax.f32 %v4907, %v3606
    %v4965 = vmax.f32 %v4908, %v3611
    %v4966 = vmax.f32 %v4909, %v3614
    %v4967 = vmax.f32 %v4910, %v3619
    %v4968 = vmax.f32 %v4911, %v3622
    %v4969 = vmax.f32 %v4912, %v3627
    %v4970 = vmax.f32 %v4913, %v3630
    %v4971 = vmax.f32 %v4914, %v3635
    %v4972 = vmax.f32 %v4915, %v3638
    %v4973 = vmax.f32 %v4916, %v3643
    %v4974 = vmax.f32 %v4917, %v3650
    %v4975 = vmax.f32 %v4918, %v3653
    %v4976 = vmax.f32 %v4919, %v3658
    %v4977 = vmax.f32 %v4920, %v3661
    %v4978 = vmax.f32 %v4921, %v3666
    %v4979 = vmax.f32 %v4922, %v3669
    %v4980 = vmax.f32 %v4923, %v3674
    %v4981 = vmax.f32 %v4924, %v3677
    %v4982 = vmax.f32 %v4925, %v3682
    %v4983 = vmax.f32 %v4926, %v3685
    %v4984 = vmax.f32 %v4927, %v3690
    %v4985 = vmax.f32 %v4928, %v3693
    %v4986 = vmax.f32 %v4929, %v3698
    %v4987 = vmax.f32 %v4930, %v3701
    %v4988 = vmax.f32 %v4931, %v3706
    %v4989 = vmax.f32 %v4932, %v3709
    %v4990 = vmax.f32 %v4933, %v3714
    %v4991 = vmax.f32 %v4934, %v3717
    %v4992 = vmax.f32 %v4935, %v3722
    %v4993 = vmax.f32 %v4936, %v3725
    %v4994 = vmax.f32 %v4937, %v3730
    %v4995 = vmax.f32 %v4938, %v3733
    %v4996 = vmax.f32 %v4939, %v3738
    %v4997 = vmax.f32 %v4940, %v3741
    %v4998 = vmax.f32 %v4941, %v3746
    %v4999 = vmax.f32 %v4942, %v3749
    %v5000 = vmax.f32 %v4943, %v3754
    %v5001 = vmax.f32 %v4944, %v3757
    %v5002 = vmax.f32 %v4945, %v3762
    %v5003 = vmax.f32 %v4946, %v3765
    %v5004 = vmax.f32 %v4947, %v3770
    %v5005 = vmax.f32 %v4948, %v3773
    %v5006 = vmax.f32 %v4949, %v3778
    %v5007 = vmax.f32 %v4950, %v3781
    %v5008 = vmax.f32 %v4951, %v3786
    %v5009 = vmax.f32 %v4952, %v3789
    %v5010 = vmax.f32 %v4953, %v3794
    %v5011 = vmax.f32 %v4954, %v3797
    %v5012 = vmax.f32 %v4955, %v3802
    %v5013 = vmax.f32 %v4956, %v3805
    %v5014 = vmax.f32 %v4957, %v3810
    %v5015 = vmax.f32 %v4958, %v3813
    %v5016 = vmax.f32 %v4959, %v3818
    %v5017 = vmax.f32 %v4960, %v3821
    %v5018 = vmax.f32 %v4961, %v3826
    %v5019 = vmax.f32 %v4962, %v3829
    %v5020 = vmax.f32 %v4963, %v3834
    %v5021 = vmax.f32 %v4964, %v3837
    %v5022 = vmax.f32 %v4965, %v3842
    %v5023 = vmax.f32 %v4966, %v3845
    %v5024 = vmax.f32 %v4967, %v3850
    %v5025 = vmax.f32 %v4968, %v3853
    %v5026 = vmax.f32 %v4969, %v3858
    %v5027 = vmax.f32 %v4970, %v3861
    %v5028 = vmax.f32 %v4971, %v3866
    %v5029 = vmax.f32 %v4972, %v3869
    %v5030 = vmax.f32 %v4973, %v3874
    %v5031 = vmax.f32 %v4974, %v3881
    %v5032 = vmax.f32 %v4975, %v3884
    %v5033 = vmax.f32 %v4976, %v3889
    %v5034 = vmax.f32 %v4977, %v3892
    %v5035 = vmax.f32 %v4978, %v3897
    %v5036 = vmax.f32 %v4979, %v3900
    %v5037 = vmax.f32 %v4980, %v3905
    %v5038 = vmax.f32 %v4981, %v3908
    %v5039 = vmax.f32 %v4982, %v3913
    %v5040 = vmax.f32 %v4983, %v3916
    %v5041 = vmax.f32 %v4984, %v3921
    %v5042 = vmax.f32 %v4985, %v3924
    %v5043 = vmax.f32 %v4986, %v3929
    %v5044 = vmax.f32 %v4987, %v3932
    %v5045 = vmax.f32 %v4988, %v3937
    %v5046 = vmax.f32 %v4989, %v3940
    %v5047 = vmax.f32 %v4990, %v3945
    %v5048 = vmax.f32 %v4991, %v3948
    %v5049 = vmax.f32 %v4992, %v3953
    %v5050 = vmax.f32 %v4993, %v3956
    %v5051 = vmax.f32 %v4994, %v3961
    %v5052 = vmax.f32 %v4995, %v3964
    %v5053 = vmax.f32 %v4996, %v3969
    %v5054 = vmax.f32 %v4997, %v3972
    %v5055 = vmax.f32 %v4998, %v3977
    %v5056 = vmax.f32 %v4999, %v3980
    %v5057 = vmax.f32 %v5000, %v3985
    %v5058 = vmax.f32 %v5001, %v3988
    %v5059 = vmax.f32 %v5002, %v3993
    %v5060 = vmax.f32 %v5003, %v3996
    %v5061 = vmax.f32 %v5004, %v4001
    %v5062 = vmax.f32 %v5005, %v4004
    %v5063 = vmax.f32 %v5006, %v4009
    %v5064 = vmax.f32 %v5007, %v4012
    %v5065 = vmax.f32 %v5008, %v4017
    %v5066 = vmax.f32 %v5009, %v4020
    %v5067 = vmax.f32 %v5010, %v4025
    %v5068 = vmax.f32 %v5011, %v4028
    %v5069 = vmax.f32 %v5012, %v4033
    %v5070 = vmax.f32 %v5013, %v4036
    %v5071 = vmax.f32 %v5014, %v4041
    %v5072 = vmax.f32 %v5015, %v4044
    %v5073 = vmax.f32 %v5016, %v4049
    %v5074 = vmax.f32 %v5017, %v4052
    %v5075 = vmax.f32 %v5018, %v4057
    %v5076 = vmax.f32 %v5019, %v4060
    %v5077 = vmax.f32 %v5020, %v4065
    %v5078 = vmax.f32 %v5021, %v4068
    %v5079 = vmax.f32 %v5022, %v4073
    %v5080 = vmax.f32 %v5023, %v4076
    %v5081 = vmax.f32 %v5024, %v4081
    %v5082 = vmax.f32 %v5025, %v4084
    %v5083 = vmax.f32 %v5026, %v4089
    %v5084 = vmax.f32 %v5027, %v4092
    %v5085 = vmax.f32 %v5028, %v4097
    %v5086 = vmax.f32 %v5029, %v4100
    %v5087 = vmax.f32 %v5030, %v4105
    %v5088 = vmax.f32 %v5031, %v4112
    %v5089 = vmax.f32 %v5032, %v4115
    %v5090 = vmax.f32 %v5033, %v4120
    %v5091 = vmax.f32 %v5034, %v4123
    %v5092 = vmax.f32 %v5035, %v4128
    %v5093 = vmax.f32 %v5036, %v4131
    %v5094 = vmax.f32 %v5037, %v4136
    %v5095 = vmax.f32 %v5038, %v4139
    %v5096 = vmax.f32 %v5039, %v4144
    %v5097 = vmax.f32 %v5040, %v4147
    %v5098 = vmax.f32 %v5041, %v4152
    %v5099 = vmax.f32 %v5042, %v4155
    %v5100 = vmax.f32 %v5043, %v4160
    %v5101 = vmax.f32 %v5044, %v4163
    %v5102 = vmax.f32 %v5045, %v4168
    %v5103 = vmax.f32 %v5046, %v4171
    %v5104 = vmax.f32 %v5047, %v4176
    %v5105 = vmax.f32 %v5048, %v4179
    %v5106 = vmax.f32 %v5049, %v4184
    %v5107 = vmax.f32 %v5050, %v4187
    %v5108 = vmax.f32 %v5051, %v4192
    %v5109 = vmax.f32 %v5052, %v4195
    %v5110 = vmax.f32 %v5053, %v4200
    %v5111 = vmax.f32 %v5054, %v4203
    %v5112 = vmax.f32 %v5055, %v4208
    %v5113 = vmax.f32 %v5056, %v4211
    %v5114 = vmax.f32 %v5057, %v4216
    %v5115 = vmax.f32 %v5058, %v4219
    %v5116 = vmax.f32 %v5059, %v4224
    %v5117 = vmax.f32 %v5060, %v4227
    %v5118 = vmax.f32 %v5061, %v4232
    %v5119 = vmax.f32 %v5062, %v4235
    %v5120 = vmax.f32 %v5063, %v4240
    %v5121 = vmax.f32 %v5064, %v4243
    %v5122 = vmax.f32 %v5065, %v4248
    %v5123 = vmax.f32 %v5066, %v4251
    %v5124 = vmax.f32 %v5067, %v4256
    %v5125 = vmax.f32 %v5068, %v4259
    %v5126 = vmax.f32 %v5069, %v4264
    %v5127 = vmax.f32 %v5070, %v4267
    %v5128 = vmax.f32 %v5071, %v4272
    %v5129 = vmax.f32 %v5072, %v4275
    %v5130 = vmax.f32 %v5073, %v4280
    %v5131 = vmax.f32 %v5074, %v4283
    %v5132 = vmax.f32 %v5075, %v4288
    %v5133 = vmax.f32 %v5076, %v4291
    %v5134 = vmax.f32 %v5077, %v4296
    %v5135 = vmax.f32 %v5078, %v4299
    %v5136 = vmax.f32 %v5079, %v4304
    %v5137 = vmax.f32 %v5080, %v4307
    %v5138 = vmax.f32 %v5081, %v4312
    %v5139 = vmax.f32 %v5082, %v4315
    %v5140 = vmax.f32 %v5083, %v4320
    %v5141 = vmax.f32 %v5084, %v4323
    %v5142 = vmax.f32 %v5085, %v4328
    %v5143 = vmax.f32 %v5086, %v4331
    %v5144 = vmax.f32 %v5087, %v4336
    %v5145 = vmax.f32 %v5088, %v4343
    %v5146 = vmax.f32 %v5089, %v4346
    %v5147 = vmax.f32 %v5090, %v4351
    %v5148 = vmax.f32 %v5091, %v4354
    %v5149 = vmax.f32 %v5092, %v4359
    %v5150 = vmax.f32 %v5093, %v4362
    %v5151 = vmax.f32 %v5094, %v4367
    %v5152 = vmax.f32 %v5095, %v4370
    %v5153 = vmax.f32 %v5096, %v4375
    %v5154 = vmax.f32 %v5097, %v4378
    %v5155 = vmax.f32 %v5098, %v4383
    %v5156 = vmax.f32 %v5099, %v4386
    %v5157 = vmax.f32 %v5100, %v4391
    %v5158 = vmax.f32 %v5101, %v4394
    %v5159 = vmax.f32 %v5102, %v4399
    %v5160 = vmax.f32 %v5103, %v4402
    %v5161 = vmax.f32 %v5104, %v4407
    %v5162 = vmax.f32 %v5105, %v4410
    %v5163 = vmax.f32 %v5106, %v4415
    %v5164 = vmax.f32 %v5107, %v4418
    %v5165 = vmax.f32 %v5108, %v4423
    %v5166 = vmax.f32 %v5109, %v4426
    %v5167 = vmax.f32 %v5110, %v4431
    %v5168 = vmax.f32 %v5111, %v4434
    %v5169 = vmax.f32 %v5112, %v4439
    %v5170 = vmax.f32 %v5113, %v4442
    %v5171 = vmax.f32 %v5114, %v4447
    %v5172 = vmax.f32 %v5115, %v4450
    %v5173 = vmax.f32 %v5116, %v4455
    %v5174 = vmax.f32 %v5117, %v4458
    %v5175 = vmax.f32 %v5118, %v4463
    %v5176 = vmax.f32 %v5119, %v4466
    %v5177 = vmax.f32 %v5120, %v4471
    %v5178 = vmax.f32 %v5121, %v4474
    %v5179 = vmax.f32 %v5122, %v4479
    %v5180 = vmax.f32 %v5123, %v4482
    %v5181 = vmax.f32 %v5124, %v4487
    %v5182 = vmax.f32 %v5125, %v4490
    %v5183 = vmax.f32 %v5126, %v4495
    %v5184 = vmax.f32 %v5127, %v4498
    %v5185 = vmax.f32 %v5128, %v4503
    %v5186 = vmax.f32 %v5129, %v4506
    %v5187 = vmax.f32 %v5130, %v4511
    %v5188 = vmax.f32 %v5131, %v4514
    %v5189 = vmax.f32 %v5132, %v4519
    %v5190 = vmax.f32 %v5133, %v4522
    %v5191 = vmax.f32 %v5134, %v4527
    %v5192 = vmax.f32 %v5135, %v4530
    %v5193 = vmax.f32 %v5136, %v4535
    %v5194 = vmax.f32 %v5137, %v4538
    %v5195 = vmax.f32 %v5138, %v4543
    %v5196 = vmax.f32 %v5139, %v4546
    %v5197 = vmax.f32 %v5140, %v4551
    %v5198 = vmax.f32 %v5141, %v4554
    %v5199 = vmax.f32 %v5142, %v4559
    %v5200 = vmax.f32 %v5143, %v4562
    %v5201 = vmax.f32 %v5144, %v4567
    %v5202 = vmax.f32 %v5145, %v4574
    %v5203 = vmax.f32 %v5146, %v4577
    %v5204 = vmax.f32 %v5147, %v4582
    %v5205 = vmax.f32 %v5148, %v4585
    %v5206 = vmax.f32 %v5149, %v4590
    %v5207 = vmax.f32 %v5150, %v4593
    %v5208 = vmax.f32 %v5151, %v4598
    %v5209 = vmax.f32 %v5152, %v4601
    %v5210 = vmax.f32 %v5153, %v4606
    %v5211 = vmax.f32 %v5154, %v4609
    %v5212 = vmax.f32 %v5155, %v4614
    %v5213 = vmax.f32 %v5156, %v4617
    %v5214 = vmax.f32 %v5157, %v4622
    %v5215 = vmax.f32 %v5158, %v4625
    %v5216 = vmax.f32 %v5159, %v4630
    %v5217 = vmax.f32 %v5160, %v4633
    %v5218 = vmax.f32 %v5161, %v4638
    %v5219 = vmax.f32 %v5162, %v4641
    %v5220 = vmax.f32 %v5163, %v4646
    %v5221 = vmax.f32 %v5164, %v4649
    %v5222 = vmax.f32 %v5165, %v4654
    %v5223 = vmax.f32 %v5166, %v4657
    %v5224 = vmax.f32 %v5167, %v4662
    %v5225 = vmax.f32 %v5168, %v4665
    %v5226 = vmax.f32 %v5169, %v4670
    %v5227 = vmax.f32 %v5170, %v4673
    %v5228 = vmax.f32 %v5171, %v4678
    %v5229 = vmax.f32 %v5172, %v4681
    %v5230 = vmax.f32 %v5173, %v4686
    %v5231 = vmax.f32 %v5174, %v4689
    %v5232 = vmax.f32 %v5175, %v4694
    %v5233 = vmax.f32 %v5176, %v4697
    %v5234 = vmax.f32 %v5177, %v4702
    %v5235 = vmax.f32 %v5178, %v4705
    %v5236 = vmax.f32 %v5179, %v4710
    %v5237 = vmax.f32 %v5180, %v4713
    %v5238 = vmax.f32 %v5181, %v4718
    %v5239 = vmax.f32 %v5182, %v4721
    %v5240 = vmax.f32 %v5183, %v4726
    %v5241 = vmax.f32 %v5184, %v4729
    %v5242 = vmax.f32 %v5185, %v4734
    %v5243 = vmax.f32 %v5186, %v4737
    %v5244 = vmax.f32 %v5187, %v4742
    %v5245 = vmax.f32 %v5188, %v4745
    %v5246 = vmax.f32 %v5189, %v4750
    %v5247 = vmax.f32 %v5190, %v4753
    %v5248 = vmax.f32 %v5191, %v4758
    %v5249 = vmax.f32 %v5192, %v4761
    %v5250 = vmax.f32 %v5193, %v4766
    %v5251 = vmax.f32 %v5194, %v4769
    %v5252 = vmax.f32 %v5195, %v4774
    %v5253 = vmax.f32 %v5196, %v4777
    %v5254 = vmax.f32 %v5197, %v4782
    %v5255 = vmax.f32 %v5198, %v4785
    %v5256 = vmax.f32 %v5199, %v4790
    %v5257 = vmax.f32 %v5200, %v4793
    %v5258 = vmax.f32 %v5201, %v4798
    %v5259 = vld [vmem:[%s2] sm:$0x1]
    %v5261 = vlaneseq
    %v5262 = vshrl.u32 %v5261, 7
    %v5263 = vsub.s32 0, %v5262
    %v5264 = vrot.slane %v5259, %v5263
    %v5266 = vadd.f32 %v5202, %v5264
    %v5267 = vadd.f32 %v5203, %v5264
    %v5268 = vadd.f32 %v5204, %v5264
    %v5269 = vadd.f32 %v5205, %v5264
    %v5270 = vadd.f32 %v5206, %v5264
    %v5271 = vadd.f32 %v5207, %v5264
    %v5272 = vadd.f32 %v5208, %v5264
    %v5273 = vadd.f32 %v5209, %v5264
    %v5274 = vadd.f32 %v5210, %v5264
    %v5275 = vadd.f32 %v5211, %v5264
    %v5276 = vadd.f32 %v5212, %v5264
    %v5277 = vadd.f32 %v5213, %v5264
    %v5278 = vadd.f32 %v5214, %v5264
    %v5279 = vadd.f32 %v5215, %v5264
    %v5280 = vadd.f32 %v5216, %v5264
    %v5281 = vadd.f32 %v5217, %v5264
    %v5282 = vadd.f32 %v5218, %v5264
    %v5283 = vadd.f32 %v5219, %v5264
    %v5284 = vadd.f32 %v5220, %v5264
    %v5285 = vadd.f32 %v5221, %v5264
    %v5286 = vadd.f32 %v5222, %v5264
    %v5287 = vadd.f32 %v5223, %v5264
    %v5288 = vadd.f32 %v5224, %v5264
    %v5289 = vadd.f32 %v5225, %v5264
    %v5290 = vadd.f32 %v5226, %v5264
    %v5291 = vadd.f32 %v5227, %v5264
    %v5292 = vadd.f32 %v5228, %v5264
    %v5293 = vadd.f32 %v5229, %v5264
    %v5294 = vadd.f32 %v5230, %v5264
    %v5295 = vadd.f32 %v5231, %v5264
    %v5296 = vadd.f32 %v5232, %v5264
    %v5297 = vadd.f32 %v5233, %v5264
    %v5298 = vadd.f32 %v5234, %v5264
    %v5299 = vadd.f32 %v5235, %v5264
    %v5300 = vadd.f32 %v5236, %v5264
    %v5301 = vadd.f32 %v5237, %v5264
    %v5302 = vadd.f32 %v5238, %v5264
    %v5303 = vadd.f32 %v5239, %v5264
    %v5304 = vadd.f32 %v5240, %v5264
    %v5305 = vadd.f32 %v5241, %v5264
    %v5306 = vadd.f32 %v5242, %v5264
    %v5307 = vadd.f32 %v5243, %v5264
    %v5308 = vadd.f32 %v5244, %v5264
    %v5309 = vadd.f32 %v5245, %v5264
    %v5310 = vadd.f32 %v5246, %v5264
    %v5311 = vadd.f32 %v5247, %v5264
    %v5312 = vadd.f32 %v5248, %v5264
    %v5313 = vadd.f32 %v5249, %v5264
    %v5314 = vadd.f32 %v5250, %v5264
    %v5315 = vadd.f32 %v5251, %v5264
    %v5316 = vadd.f32 %v5252, %v5264
    %v5317 = vadd.f32 %v5253, %v5264
    %v5318 = vadd.f32 %v5254, %v5264
    %v5319 = vadd.f32 %v5255, %v5264
    %v5320 = vadd.f32 %v5256, %v5264
    %v5321 = vadd.f32 %v5257, %v5264
    %v5322 = vadd.f32 %v5258, %v5264
    %vm5323 = vcmask 261120
    %v5324 = vsel %vm5323, %v5266, 0.0
    %v5325 = vsel %vm5323, %v5267, 0.0
    %v5326 = vadd.f32 %v5324, %v5325
    %v5327 = vsel %vm5323, %v5268, 0.0
    %v5328 = vadd.f32 %v5326, %v5327
    %v5329 = vsel %vm5323, %v5269, 0.0
    %v5330 = vadd.f32 %v5328, %v5329
    %v5331 = vsel %vm5323, %v5270, 0.0
    %v5332 = vadd.f32 %v5330, %v5331
    %v5333 = vsel %vm5323, %v5271, 0.0
    %v5334 = vadd.f32 %v5332, %v5333
    %v5335 = vsel %vm5323, %v5272, 0.0
    %v5336 = vadd.f32 %v5334, %v5335
    %v5337 = vsel %vm5323, %v5273, 0.0
    %v5338 = vadd.f32 %v5336, %v5337
    %v5339 = vsel %vm5323, %v5274, 0.0
    %v5340 = vadd.f32 %v5338, %v5339
    %v5341 = vsel %vm5323, %v5275, 0.0
    %v5342 = vadd.f32 %v5340, %v5341
    %v5343 = vsel %vm5323, %v5276, 0.0
    %v5344 = vadd.f32 %v5342, %v5343
    %v5345 = vsel %vm5323, %v5277, 0.0
    %v5346 = vadd.f32 %v5344, %v5345
    %v5347 = vsel %vm5323, %v5278, 0.0
    %v5348 = vadd.f32 %v5346, %v5347
    %v5349 = vsel %vm5323, %v5279, 0.0
    %v5350 = vadd.f32 %v5348, %v5349
    %v5351 = vsel %vm5323, %v5280, 0.0
    %v5352 = vadd.f32 %v5350, %v5351
    %v5353 = vsel %vm5323, %v5281, 0.0
    %v5354 = vadd.f32 %v5352, %v5353
    %v5355 = vsel %vm5323, %v5282, 0.0
    %v5356 = vadd.f32 %v5354, %v5355
    %v5357 = vsel %vm5323, %v5283, 0.0
    %v5358 = vadd.f32 %v5356, %v5357
    %v5359 = vsel %vm5323, %v5284, 0.0
    %v5360 = vadd.f32 %v5358, %v5359
    %v5361 = vsel %vm5323, %v5285, 0.0
    %v5362 = vadd.f32 %v5360, %v5361
    %v5363 = vsel %vm5323, %v5286, 0.0
    %v5364 = vadd.f32 %v5362, %v5363
    %v5365 = vsel %vm5323, %v5287, 0.0
    %v5366 = vadd.f32 %v5364, %v5365
    %v5367 = vsel %vm5323, %v5288, 0.0
    %v5368 = vadd.f32 %v5366, %v5367
    %v5369 = vsel %vm5323, %v5289, 0.0
    %v5370 = vadd.f32 %v5368, %v5369
    %v5371 = vsel %vm5323, %v5290, 0.0
    %v5372 = vadd.f32 %v5370, %v5371
    %v5373 = vsel %vm5323, %v5291, 0.0
    %v5374 = vadd.f32 %v5372, %v5373
    %v5375 = vsel %vm5323, %v5292, 0.0
    %v5376 = vadd.f32 %v5374, %v5375
    %v5377 = vsel %vm5323, %v5293, 0.0
    %v5378 = vadd.f32 %v5376, %v5377
    %v5379 = vsel %vm5323, %v5294, 0.0
    %v5380 = vadd.f32 %v5378, %v5379
    %v5381 = vsel %vm5323, %v5295, 0.0
    %v5382 = vadd.f32 %v5380, %v5381
    %v5383 = vsel %vm5323, %v5296, 0.0
    %v5384 = vadd.f32 %v5382, %v5383
    %v5385 = vsel %vm5323, %v5297, 0.0
    %v5386 = vadd.f32 %v5384, %v5385
    %v5387 = vsel %vm5323, %v5298, 0.0
    %v5388 = vadd.f32 %v5386, %v5387
    %v5389 = vsel %vm5323, %v5299, 0.0
    %v5390 = vadd.f32 %v5388, %v5389
    %v5391 = vsel %vm5323, %v5300, 0.0
    %v5392 = vadd.f32 %v5390, %v5391
    %v5393 = vsel %vm5323, %v5301, 0.0
    %v5394 = vadd.f32 %v5392, %v5393
    %v5395 = vsel %vm5323, %v5302, 0.0
    %v5396 = vadd.f32 %v5394, %v5395
    %v5397 = vsel %vm5323, %v5303, 0.0
    %v5398 = vadd.f32 %v5396, %v5397
    %v5399 = vsel %vm5323, %v5304, 0.0
    %v5400 = vadd.f32 %v5398, %v5399
    %v5401 = vsel %vm5323, %v5305, 0.0
    %v5402 = vadd.f32 %v5400, %v5401
    %v5403 = vsel %vm5323, %v5306, 0.0
    %v5404 = vadd.f32 %v5402, %v5403
    %v5405 = vsel %vm5323, %v5307, 0.0
    %v5406 = vadd.f32 %v5404, %v5405
    %v5407 = vsel %vm5323, %v5308, 0.0
    %v5408 = vadd.f32 %v5406, %v5407
    %v5409 = vsel %vm5323, %v5309, 0.0
    %v5410 = vadd.f32 %v5408, %v5409
    %v5411 = vsel %vm5323, %v5310, 0.0
    %v5412 = vadd.f32 %v5410, %v5411
    %v5413 = vsel %vm5323, %v5311, 0.0
    %v5414 = vadd.f32 %v5412, %v5413
    %v5415 = vsel %vm5323, %v5312, 0.0
    %v5416 = vadd.f32 %v5414, %v5415
    %v5417 = vsel %vm5323, %v5313, 0.0
    %v5418 = vadd.f32 %v5416, %v5417
    %v5419 = vsel %vm5323, %v5314, 0.0
    %v5420 = vadd.f32 %v5418, %v5419
    %v5421 = vsel %vm5323, %v5315, 0.0
    %v5422 = vadd.f32 %v5420, %v5421
    %v5423 = vsel %vm5323, %v5316, 0.0
    %v5424 = vadd.f32 %v5422, %v5423
    %v5425 = vsel %vm5323, %v5317, 0.0
    %v5426 = vadd.f32 %v5424, %v5425
    %v5427 = vsel %vm5323, %v5318, 0.0
    %v5428 = vadd.f32 %v5426, %v5427
    %v5429 = vsel %vm5323, %v5319, 0.0
    %v5430 = vadd.f32 %v5428, %v5429
    %v5431 = vsel %vm5323, %v5320, 0.0
    %v5432 = vadd.f32 %v5430, %v5431
    %v5433 = vsel %vm5323, %v5321, 0.0
    %v5434 = vadd.f32 %v5432, %v5433
    %vm5435 = vcmask 254976
    %v5436 = vsel %vm5435, %v5322, 0.0
    %v5437 = vadd.f32 %v5434, %v5436
    %v5438 = vrot.slane %v5437, 4
    %v5439 = vadd.f32 %v5437, %v5438
    %v5440 = vrot.slane %v5439, 2
    %v5441 = vadd.f32 %v5439, %v5440
    %v5442 = vrot.slane %v5441, 1
    %v5443 = vadd.f32 %v5441, %v5442
    %v5444 = vrcp.pop 450.0
    %v5445 = vmul.f32 %v5443, %v5444
    %v5446 = vsub.f32 %v5266, %v5445
    %v5447 = vsub.f32 %v5267, %v5445
    %v5448 = vsub.f32 %v5268, %v5445
    %v5449 = vsub.f32 %v5269, %v5445
    %v5450 = vsub.f32 %v5270, %v5445
    %v5451 = vsub.f32 %v5271, %v5445
    %v5452 = vsub.f32 %v5272, %v5445
    %v5453 = vsub.f32 %v5273, %v5445
    %v5454 = vsub.f32 %v5274, %v5445
    %v5455 = vsub.f32 %v5275, %v5445
    %v5456 = vsub.f32 %v5276, %v5445
    %v5457 = vsub.f32 %v5277, %v5445
    %v5458 = vsub.f32 %v5278, %v5445
    %v5459 = vsub.f32 %v5279, %v5445
    %v5460 = vsub.f32 %v5280, %v5445
    %v5461 = vsub.f32 %v5281, %v5445
    %v5462 = vsub.f32 %v5282, %v5445
    %v5463 = vsub.f32 %v5283, %v5445
    %v5464 = vsub.f32 %v5284, %v5445
    %v5465 = vsub.f32 %v5285, %v5445
    %v5466 = vsub.f32 %v5286, %v5445
    %v5467 = vsub.f32 %v5287, %v5445
    %v5468 = vsub.f32 %v5288, %v5445
    %v5469 = vsub.f32 %v5289, %v5445
    %v5470 = vsub.f32 %v5290, %v5445
    %v5471 = vsub.f32 %v5291, %v5445
    %v5472 = vsub.f32 %v5292, %v5445
    %v5473 = vsub.f32 %v5293, %v5445
    %v5474 = vsub.f32 %v5294, %v5445
    %v5475 = vsub.f32 %v5295, %v5445
    %v5476 = vsub.f32 %v5296, %v5445
    %v5477 = vsub.f32 %v5297, %v5445
    %v5478 = vsub.f32 %v5298, %v5445
    %v5479 = vsub.f32 %v5299, %v5445
    %v5480 = vsub.f32 %v5300, %v5445
    %v5481 = vsub.f32 %v5301, %v5445
    %v5482 = vsub.f32 %v5302, %v5445
    %v5483 = vsub.f32 %v5303, %v5445
    %v5484 = vsub.f32 %v5304, %v5445
    %v5485 = vsub.f32 %v5305, %v5445
    %v5486 = vsub.f32 %v5306, %v5445
    %v5487 = vsub.f32 %v5307, %v5445
    %v5488 = vsub.f32 %v5308, %v5445
    %v5489 = vsub.f32 %v5309, %v5445
    %v5490 = vsub.f32 %v5310, %v5445
    %v5491 = vsub.f32 %v5311, %v5445
    %v5492 = vsub.f32 %v5312, %v5445
    %v5493 = vsub.f32 %v5313, %v5445
    %v5494 = vsub.f32 %v5314, %v5445
    %v5495 = vsub.f32 %v5315, %v5445
    %v5496 = vsub.f32 %v5316, %v5445
    %v5497 = vsub.f32 %v5317, %v5445
    %v5498 = vsub.f32 %v5318, %v5445
    %v5499 = vsub.f32 %v5319, %v5445
    %v5500 = vsub.f32 %v5320, %v5445
    %v5501 = vsub.f32 %v5321, %v5445
    %v5502 = vsub.f32 %v5322, %v5445
    %v5503 = vmul.f32 %v5446, %v5446
    %v5504 = vmul.f32 %v5447, %v5447
    %v5505 = vmul.f32 %v5448, %v5448
    %v5506 = vmul.f32 %v5449, %v5449
    %v5507 = vmul.f32 %v5450, %v5450
    %v5508 = vmul.f32 %v5451, %v5451
    %v5509 = vmul.f32 %v5452, %v5452
    %v5510 = vmul.f32 %v5453, %v5453
    %v5511 = vmul.f32 %v5454, %v5454
    %v5512 = vmul.f32 %v5455, %v5455
    %v5513 = vmul.f32 %v5456, %v5456
    %v5514 = vmul.f32 %v5457, %v5457
    %v5515 = vmul.f32 %v5458, %v5458
    %v5516 = vmul.f32 %v5459, %v5459
    %v5517 = vmul.f32 %v5460, %v5460
    %v5518 = vmul.f32 %v5461, %v5461
    %v5519 = vmul.f32 %v5462, %v5462
    %v5520 = vmul.f32 %v5463, %v5463
    %v5521 = vmul.f32 %v5464, %v5464
    %v5522 = vmul.f32 %v5465, %v5465
    %v5523 = vmul.f32 %v5466, %v5466
    %v5524 = vmul.f32 %v5467, %v5467
    %v5525 = vmul.f32 %v5468, %v5468
    %v5526 = vmul.f32 %v5469, %v5469
    %v5527 = vmul.f32 %v5470, %v5470
    %v5528 = vmul.f32 %v5471, %v5471
    %v5529 = vmul.f32 %v5472, %v5472
    %v5530 = vmul.f32 %v5473, %v5473
    %v5531 = vmul.f32 %v5474, %v5474
    %v5532 = vmul.f32 %v5475, %v5475
    %v5533 = vmul.f32 %v5476, %v5476
    %v5534 = vmul.f32 %v5477, %v5477
    %v5535 = vmul.f32 %v5478, %v5478
    %v5536 = vmul.f32 %v5479, %v5479
    %v5537 = vmul.f32 %v5480, %v5480
    %v5538 = vmul.f32 %v5481, %v5481
    %v5539 = vmul.f32 %v5482, %v5482
    %v5540 = vmul.f32 %v5483, %v5483
    %v5541 = vmul.f32 %v5484, %v5484
    %v5542 = vmul.f32 %v5485, %v5485
    %v5543 = vmul.f32 %v5486, %v5486
    %v5544 = vmul.f32 %v5487, %v5487
    %v5545 = vmul.f32 %v5488, %v5488
    %v5546 = vmul.f32 %v5489, %v5489
    %v5547 = vmul.f32 %v5490, %v5490
    %v5548 = vmul.f32 %v5491, %v5491
    %v5549 = vmul.f32 %v5492, %v5492
    %v5550 = vmul.f32 %v5493, %v5493
    %v5551 = vmul.f32 %v5494, %v5494
    %v5552 = vmul.f32 %v5495, %v5495
    %v5553 = vmul.f32 %v5496, %v5496
    %v5554 = vmul.f32 %v5497, %v5497
    %v5555 = vmul.f32 %v5498, %v5498
    %v5556 = vmul.f32 %v5499, %v5499
    %v5557 = vmul.f32 %v5500, %v5500
    %v5558 = vmul.f32 %v5501, %v5501
    %v5559 = vmul.f32 %v5502, %v5502
    %v5560 = vsel %vm5323, %v5503, 0.0
    %v5561 = vsel %vm5323, %v5504, 0.0
    %v5562 = vadd.f32 %v5560, %v5561
    %v5563 = vsel %vm5323, %v5505, 0.0
    %v5564 = vadd.f32 %v5562, %v5563
    %v5565 = vsel %vm5323, %v5506, 0.0
    %v5566 = vadd.f32 %v5564, %v5565
    %v5567 = vsel %vm5323, %v5507, 0.0
    %v5568 = vadd.f32 %v5566, %v5567
    %v5569 = vsel %vm5323, %v5508, 0.0
    %v5570 = vadd.f32 %v5568, %v5569
    %v5571 = vsel %vm5323, %v5509, 0.0
    %v5572 = vadd.f32 %v5570, %v5571
    %v5573 = vsel %vm5323, %v5510, 0.0
    %v5574 = vadd.f32 %v5572, %v5573
    %v5575 = vsel %vm5323, %v5511, 0.0
    %v5576 = vadd.f32 %v5574, %v5575
    %v5577 = vsel %vm5323, %v5512, 0.0
    %v5578 = vadd.f32 %v5576, %v5577
    %v5579 = vsel %vm5323, %v5513, 0.0
    %v5580 = vadd.f32 %v5578, %v5579
    %v5581 = vsel %vm5323, %v5514, 0.0
    %v5582 = vadd.f32 %v5580, %v5581
    %v5583 = vsel %vm5323, %v5515, 0.0
    %v5584 = vadd.f32 %v5582, %v5583
    %v5585 = vsel %vm5323, %v5516, 0.0
    %v5586 = vadd.f32 %v5584, %v5585
    %v5587 = vsel %vm5323, %v5517, 0.0
    %v5588 = vadd.f32 %v5586, %v5587
    %v5589 = vsel %vm5323, %v5518, 0.0
    %v5590 = vadd.f32 %v5588, %v5589
    %v5591 = vsel %vm5323, %v5519, 0.0
    %v5592 = vadd.f32 %v5590, %v5591
    %v5593 = vsel %vm5323, %v5520, 0.0
    %v5594 = vadd.f32 %v5592, %v5593
    %v5595 = vsel %vm5323, %v5521, 0.0
    %v5596 = vadd.f32 %v5594, %v5595
    %v5597 = vsel %vm5323, %v5522, 0.0
    %v5598 = vadd.f32 %v5596, %v5597
    %v5599 = vsel %vm5323, %v5523, 0.0
    %v5600 = vadd.f32 %v5598, %v5599
    %v5601 = vsel %vm5323, %v5524, 0.0
    %v5602 = vadd.f32 %v5600, %v5601
    %v5603 = vsel %vm5323, %v5525, 0.0
    %v5604 = vadd.f32 %v5602, %v5603
    %v5605 = vsel %vm5323, %v5526, 0.0
    %v5606 = vadd.f32 %v5604, %v5605
    %v5607 = vsel %vm5323, %v5527, 0.0
    %v5608 = vadd.f32 %v5606, %v5607
    %v5609 = vsel %vm5323, %v5528, 0.0
    %v5610 = vadd.f32 %v5608, %v5609
    %v5611 = vsel %vm5323, %v5529, 0.0
    %v5612 = vadd.f32 %v5610, %v5611
    %v5613 = vsel %vm5323, %v5530, 0.0
    %v5614 = vadd.f32 %v5612, %v5613
    %v5615 = vsel %vm5323, %v5531, 0.0
    %v5616 = vadd.f32 %v5614, %v5615
    %v5617 = vsel %vm5323, %v5532, 0.0
    %v5618 = vadd.f32 %v5616, %v5617
    %v5619 = vsel %vm5323, %v5533, 0.0
    %v5620 = vadd.f32 %v5618, %v5619
    %v5621 = vsel %vm5323, %v5534, 0.0
    %v5622 = vadd.f32 %v5620, %v5621
    %v5623 = vsel %vm5323, %v5535, 0.0
    %v5624 = vadd.f32 %v5622, %v5623
    %v5625 = vsel %vm5323, %v5536, 0.0
    %v5626 = vadd.f32 %v5624, %v5625
    %v5627 = vsel %vm5323, %v5537, 0.0
    %v5628 = vadd.f32 %v5626, %v5627
    %v5629 = vsel %vm5323, %v5538, 0.0
    %v5630 = vadd.f32 %v5628, %v5629
    %v5631 = vsel %vm5323, %v5539, 0.0
    %v5632 = vadd.f32 %v5630, %v5631
    %v5633 = vsel %vm5323, %v5540, 0.0
    %v5634 = vadd.f32 %v5632, %v5633
    %v5635 = vsel %vm5323, %v5541, 0.0
    %v5636 = vadd.f32 %v5634, %v5635
    %v5637 = vsel %vm5323, %v5542, 0.0
    %v5638 = vadd.f32 %v5636, %v5637
    %v5639 = vsel %vm5323, %v5543, 0.0
    %v5640 = vadd.f32 %v5638, %v5639
    %v5641 = vsel %vm5323, %v5544, 0.0
    %v5642 = vadd.f32 %v5640, %v5641
    %v5643 = vsel %vm5323, %v5545, 0.0
    %v5644 = vadd.f32 %v5642, %v5643
    %v5645 = vsel %vm5323, %v5546, 0.0
    %v5646 = vadd.f32 %v5644, %v5645
    %v5647 = vsel %vm5323, %v5547, 0.0
    %v5648 = vadd.f32 %v5646, %v5647
    %v5649 = vsel %vm5323, %v5548, 0.0
    %v5650 = vadd.f32 %v5648, %v5649
    %v5651 = vsel %vm5323, %v5549, 0.0
    %v5652 = vadd.f32 %v5650, %v5651
    %v5653 = vsel %vm5323, %v5550, 0.0
    %v5654 = vadd.f32 %v5652, %v5653
    %v5655 = vsel %vm5323, %v5551, 0.0
    %v5656 = vadd.f32 %v5654, %v5655
    %v5657 = vsel %vm5323, %v5552, 0.0
    %v5658 = vadd.f32 %v5656, %v5657
    %v5659 = vsel %vm5323, %v5553, 0.0
    %v5660 = vadd.f32 %v5658, %v5659
    %v5661 = vsel %vm5323, %v5554, 0.0
    %v5662 = vadd.f32 %v5660, %v5661
    %v5663 = vsel %vm5323, %v5555, 0.0
    %v5664 = vadd.f32 %v5662, %v5663
    %v5665 = vsel %vm5323, %v5556, 0.0
    %v5666 = vadd.f32 %v5664, %v5665
    %v5667 = vsel %vm5323, %v5557, 0.0
    %v5668 = vadd.f32 %v5666, %v5667
    %v5669 = vsel %vm5323, %v5558, 0.0
    %v5670 = vadd.f32 %v5668, %v5669
    %v5671 = vsel %vm5435, %v5559, 0.0
    %v5672 = vadd.f32 %v5670, %v5671
    %v5673 = vrot.slane %v5672, 4
    %v5674 = vadd.f32 %v5672, %v5673
    %v5675 = vrot.slane %v5674, 2
    %v5676 = vadd.f32 %v5674, %v5675
    %v5677 = vrot.slane %v5676, 1
    %v5678 = vadd.f32 %v5676, %v5677
    %v5679 = vmul.f32 %v5678, %v5444
    %v5680 = vadd.f32 %v5679, 1e-05
    %v5681 = vrsqrt.pop %v5680
    %v5682 = vmul.f32 %v5446, %v5681
    %v5683 = vmul.f32 %v5447, %v5681
    %v5684 = vmul.f32 %v5448, %v5681
    %v5685 = vmul.f32 %v5449, %v5681
    %v5686 = vmul.f32 %v5450, %v5681
    %v5687 = vmul.f32 %v5451, %v5681
    %v5688 = vmul.f32 %v5452, %v5681
    %v5689 = vmul.f32 %v5453, %v5681
    %v5690 = vmul.f32 %v5454, %v5681
    %v5691 = vmul.f32 %v5455, %v5681
    %v5692 = vmul.f32 %v5456, %v5681
    %v5693 = vmul.f32 %v5457, %v5681
    %v5694 = vmul.f32 %v5458, %v5681
    %v5695 = vmul.f32 %v5459, %v5681
    %v5696 = vmul.f32 %v5460, %v5681
    %v5697 = vmul.f32 %v5461, %v5681
    %v5698 = vmul.f32 %v5462, %v5681
    %v5699 = vmul.f32 %v5463, %v5681
    %v5700 = vmul.f32 %v5464, %v5681
    %v5701 = vmul.f32 %v5465, %v5681
    %v5702 = vmul.f32 %v5466, %v5681
    %v5703 = vmul.f32 %v5467, %v5681
    %v5704 = vmul.f32 %v5468, %v5681
    %v5705 = vmul.f32 %v5469, %v5681
    %v5706 = vmul.f32 %v5470, %v5681
    %v5707 = vmul.f32 %v5471, %v5681
    %v5708 = vmul.f32 %v5472, %v5681
    %v5709 = vmul.f32 %v5473, %v5681
    %v5710 = vmul.f32 %v5474, %v5681
    %v5711 = vmul.f32 %v5475, %v5681
    %v5712 = vmul.f32 %v5476, %v5681
    %v5713 = vmul.f32 %v5477, %v5681
    %v5714 = vmul.f32 %v5478, %v5681
    %v5715 = vmul.f32 %v5479, %v5681
    %v5716 = vmul.f32 %v5480, %v5681
    %v5717 = vmul.f32 %v5481, %v5681
    %v5718 = vmul.f32 %v5482, %v5681
    %v5719 = vmul.f32 %v5483, %v5681
    %v5720 = vmul.f32 %v5484, %v5681
    %v5721 = vmul.f32 %v5485, %v5681
    %v5722 = vmul.f32 %v5486, %v5681
    %v5723 = vmul.f32 %v5487, %v5681
    %v5724 = vmul.f32 %v5488, %v5681
    %v5725 = vmul.f32 %v5489, %v5681
    %v5726 = vmul.f32 %v5490, %v5681
    %v5727 = vmul.f32 %v5491, %v5681
    %v5728 = vmul.f32 %v5492, %v5681
    %v5729 = vmul.f32 %v5493, %v5681
    %v5730 = vmul.f32 %v5494, %v5681
    %v5731 = vmul.f32 %v5495, %v5681
    %v5732 = vmul.f32 %v5496, %v5681
    %v5733 = vmul.f32 %v5497, %v5681
    %v5734 = vmul.f32 %v5498, %v5681
    %v5735 = vmul.f32 %v5499, %v5681
    %v5736 = vmul.f32 %v5500, %v5681
    %v5737 = vmul.f32 %v5501, %v5681
    %v5738 = vmul.f32 %v5502, %v5681
    %v5739 = vld [vmem:[%s3] sm:$0x1]
    %v5741 = vlaneseq
    %v5742 = vshrl.u32 %v5741, 7
    %v5743 = vsub.s32 0, %v5742
    %v5744 = vrot.slane %v5739, %v5743
    %v5746 = vmul.f32 %v5682, %v5744
    %v5747 = vmul.f32 %v5683, %v5744
    %v5748 = vmul.f32 %v5684, %v5744
    %v5749 = vmul.f32 %v5685, %v5744
    %v5750 = vmul.f32 %v5686, %v5744
    %v5751 = vmul.f32 %v5687, %v5744
    %v5752 = vmul.f32 %v5688, %v5744
    %v5753 = vmul.f32 %v5689, %v5744
    %v5754 = vmul.f32 %v5690, %v5744
    %v5755 = vmul.f32 %v5691, %v5744
    %v5756 = vmul.f32 %v5692, %v5744
    %v5757 = vmul.f32 %v5693, %v5744
    %v5758 = vmul.f32 %v5694, %v5744
    %v5759 = vmul.f32 %v5695, %v5744
    %v5760 = vmul.f32 %v5696, %v5744
    %v5761 = vmul.f32 %v5697, %v5744
    %v5762 = vmul.f32 %v5698, %v5744
    %v5763 = vmul.f32 %v5699, %v5744
    %v5764 = vmul.f32 %v5700, %v5744
    %v5765 = vmul.f32 %v5701, %v5744
    %v5766 = vmul.f32 %v5702, %v5744
    %v5767 = vmul.f32 %v5703, %v5744
    %v5768 = vmul.f32 %v5704, %v5744
    %v5769 = vmul.f32 %v5705, %v5744
    %v5770 = vmul.f32 %v5706, %v5744
    %v5771 = vmul.f32 %v5707, %v5744
    %v5772 = vmul.f32 %v5708, %v5744
    %v5773 = vmul.f32 %v5709, %v5744
    %v5774 = vmul.f32 %v5710, %v5744
    %v5775 = vmul.f32 %v5711, %v5744
    %v5776 = vmul.f32 %v5712, %v5744
    %v5777 = vmul.f32 %v5713, %v5744
    %v5778 = vmul.f32 %v5714, %v5744
    %v5779 = vmul.f32 %v5715, %v5744
    %v5780 = vmul.f32 %v5716, %v5744
    %v5781 = vmul.f32 %v5717, %v5744
    %v5782 = vmul.f32 %v5718, %v5744
    %v5783 = vmul.f32 %v5719, %v5744
    %v5784 = vmul.f32 %v5720, %v5744
    %v5785 = vmul.f32 %v5721, %v5744
    %v5786 = vmul.f32 %v5722, %v5744
    %v5787 = vmul.f32 %v5723, %v5744
    %v5788 = vmul.f32 %v5724, %v5744
    %v5789 = vmul.f32 %v5725, %v5744
    %v5790 = vmul.f32 %v5726, %v5744
    %v5791 = vmul.f32 %v5727, %v5744
    %v5792 = vmul.f32 %v5728, %v5744
    %v5793 = vmul.f32 %v5729, %v5744
    %v5794 = vmul.f32 %v5730, %v5744
    %v5795 = vmul.f32 %v5731, %v5744
    %v5796 = vmul.f32 %v5732, %v5744
    %v5797 = vmul.f32 %v5733, %v5744
    %v5798 = vmul.f32 %v5734, %v5744
    %v5799 = vmul.f32 %v5735, %v5744
    %v5800 = vmul.f32 %v5736, %v5744
    %v5801 = vmul.f32 %v5737, %v5744
    %v5802 = vmul.f32 %v5738, %v5744
    %v5803 = vld [vmem:[%s4] sm:$0x1]
    %v5805 = vlaneseq
    %v5806 = vshrl.u32 %v5805, 7
    %v5807 = vsub.s32 0, %v5806
    %v5808 = vrot.slane %v5803, %v5807
    %v5810 = vadd.f32 %v5746, %v5808
    %v5811 = vadd.f32 %v5747, %v5808
    %v5812 = vadd.f32 %v5748, %v5808
    %v5813 = vadd.f32 %v5749, %v5808
    %v5814 = vadd.f32 %v5750, %v5808
    %v5815 = vadd.f32 %v5751, %v5808
    %v5816 = vadd.f32 %v5752, %v5808
    %v5817 = vadd.f32 %v5753, %v5808
    %v5818 = vadd.f32 %v5754, %v5808
    %v5819 = vadd.f32 %v5755, %v5808
    %v5820 = vadd.f32 %v5756, %v5808
    %v5821 = vadd.f32 %v5757, %v5808
    %v5822 = vadd.f32 %v5758, %v5808
    %v5823 = vadd.f32 %v5759, %v5808
    %v5824 = vadd.f32 %v5760, %v5808
    %v5825 = vadd.f32 %v5761, %v5808
    %v5826 = vadd.f32 %v5762, %v5808
    %v5827 = vadd.f32 %v5763, %v5808
    %v5828 = vadd.f32 %v5764, %v5808
    %v5829 = vadd.f32 %v5765, %v5808
    %v5830 = vadd.f32 %v5766, %v5808
    %v5831 = vadd.f32 %v5767, %v5808
    %v5832 = vadd.f32 %v5768, %v5808
    %v5833 = vadd.f32 %v5769, %v5808
    %v5834 = vadd.f32 %v5770, %v5808
    %v5835 = vadd.f32 %v5771, %v5808
    %v5836 = vadd.f32 %v5772, %v5808
    %v5837 = vadd.f32 %v5773, %v5808
    %v5838 = vadd.f32 %v5774, %v5808
    %v5839 = vadd.f32 %v5775, %v5808
    %v5840 = vadd.f32 %v5776, %v5808
    %v5841 = vadd.f32 %v5777, %v5808
    %v5842 = vadd.f32 %v5778, %v5808
    %v5843 = vadd.f32 %v5779, %v5808
    %v5844 = vadd.f32 %v5780, %v5808
    %v5845 = vadd.f32 %v5781, %v5808
    %v5846 = vadd.f32 %v5782, %v5808
    %v5847 = vadd.f32 %v5783, %v5808
    %v5848 = vadd.f32 %v5784, %v5808
    %v5849 = vadd.f32 %v5785, %v5808
    %v5850 = vadd.f32 %v5786, %v5808
    %v5851 = vadd.f32 %v5787, %v5808
    %v5852 = vadd.f32 %v5788, %v5808
    %v5853 = vadd.f32 %v5789, %v5808
    %v5854 = vadd.f32 %v5790, %v5808
    %v5855 = vadd.f32 %v5791, %v5808
    %v5856 = vadd.f32 %v5792, %v5808
    %v5857 = vadd.f32 %v5793, %v5808
    %v5858 = vadd.f32 %v5794, %v5808
    %v5859 = vadd.f32 %v5795, %v5808
    %v5860 = vadd.f32 %v5796, %v5808
    %v5861 = vadd.f32 %v5797, %v5808
    %v5862 = vadd.f32 %v5798, %v5808
    %v5863 = vadd.f32 %v5799, %v5808
    %v5864 = vadd.f32 %v5800, %v5808
    %v5865 = vadd.f32 %v5801, %v5808
    %v5866 = vadd.f32 %v5802, %v5808
    %v5867 = vmax.f32 %v5810, 0.0
    %v5868 = vmax.f32 %v5811, 0.0
    %v5869 = vmax.f32 %v5812, 0.0
    %v5870 = vmax.f32 %v5813, 0.0
    %v5871 = vmax.f32 %v5814, 0.0
    %v5872 = vmax.f32 %v5815, 0.0
    %v5873 = vmax.f32 %v5816, 0.0
    %v5874 = vmax.f32 %v5817, 0.0
    %v5875 = vmax.f32 %v5818, 0.0
    %v5876 = vmax.f32 %v5819, 0.0
    %v5877 = vmax.f32 %v5820, 0.0
    %v5878 = vmax.f32 %v5821, 0.0
    %v5879 = vmax.f32 %v5822, 0.0
    %v5880 = vmax.f32 %v5823, 0.0
    %v5881 = vmax.f32 %v5824, 0.0
    %v5882 = vmax.f32 %v5825, 0.0
    %v5883 = vmax.f32 %v5826, 0.0
    %v5884 = vmax.f32 %v5827, 0.0
    %v5885 = vmax.f32 %v5828, 0.0
    %v5886 = vmax.f32 %v5829, 0.0
    %v5887 = vmax.f32 %v5830, 0.0
    %v5888 = vmax.f32 %v5831, 0.0
    %v5889 = vmax.f32 %v5832, 0.0
    %v5890 = vmax.f32 %v5833, 0.0
    %v5891 = vmax.f32 %v5834, 0.0
    %v5892 = vmax.f32 %v5835, 0.0
    %v5893 = vmax.f32 %v5836, 0.0
    %v5894 = vmax.f32 %v5837, 0.0
    %v5895 = vmax.f32 %v5838, 0.0
    %v5896 = vmax.f32 %v5839, 0.0
    %v5897 = vmax.f32 %v5840, 0.0
    %v5898 = vmax.f32 %v5841, 0.0
    %v5899 = vmax.f32 %v5842, 0.0
    %v5900 = vmax.f32 %v5843, 0.0
    %v5901 = vmax.f32 %v5844, 0.0
    %v5902 = vmax.f32 %v5845, 0.0
    %v5903 = vmax.f32 %v5846, 0.0
    %v5904 = vmax.f32 %v5847, 0.0
    %v5905 = vmax.f32 %v5848, 0.0
    %v5906 = vmax.f32 %v5849, 0.0
    %v5907 = vmax.f32 %v5850, 0.0
    %v5908 = vmax.f32 %v5851, 0.0
    %v5909 = vmax.f32 %v5852, 0.0
    %v5910 = vmax.f32 %v5853, 0.0
    %v5911 = vmax.f32 %v5854, 0.0
    %v5912 = vmax.f32 %v5855, 0.0
    %v5913 = vmax.f32 %v5856, 0.0
    %v5914 = vmax.f32 %v5857, 0.0
    %v5915 = vmax.f32 %v5858, 0.0
    %v5916 = vmax.f32 %v5859, 0.0
    %v5917 = vmax.f32 %v5860, 0.0
    %v5918 = vmax.f32 %v5861, 0.0
    %v5919 = vmax.f32 %v5862, 0.0
    %v5920 = vmax.f32 %v5863, 0.0
    %v5921 = vmax.f32 %v5864, 0.0
    %v5922 = vmax.f32 %v5865, 0.0
    %v5923 = vmax.f32 %v5866, 0.0
    %v5924 = vpack.c.bf16 %v5868, %v5867
    %v5925 = vpack.c.bf16 %v5870, %v5869
    %v5926 = vpack.c.bf16 %v5872, %v5871
    %v5927 = vpack.c.bf16 %v5874, %v5873
    %v5928 = vpack.c.bf16 %v5876, %v5875
    %v5929 = vpack.c.bf16 %v5878, %v5877
    %v5930 = vpack.c.bf16 %v5880, %v5879
    %v5931 = vpack.c.bf16 %v5882, %v5881
    %v5932 = vpack.c.bf16 %v5884, %v5883
    %v5933 = vpack.c.bf16 %v5886, %v5885
    %v5934 = vpack.c.bf16 %v5888, %v5887
    %v5935 = vpack.c.bf16 %v5890, %v5889
    %v5936 = vpack.c.bf16 %v5892, %v5891
    %v5937 = vpack.c.bf16 %v5894, %v5893
    %v5938 = vpack.c.bf16 %v5896, %v5895
    %v5939 = vpack.c.bf16 %v5898, %v5897
    %v5940 = vpack.c.bf16 %v5900, %v5899
    %v5941 = vpack.c.bf16 %v5902, %v5901
    %v5942 = vpack.c.bf16 %v5904, %v5903
    %v5943 = vpack.c.bf16 %v5906, %v5905
    %v5944 = vpack.c.bf16 %v5908, %v5907
    %v5945 = vpack.c.bf16 %v5910, %v5909
    %v5946 = vpack.c.bf16 %v5912, %v5911
    %v5947 = vpack.c.bf16 %v5914, %v5913
    %v5948 = vpack.c.bf16 %v5916, %v5915
    %v5949 = vpack.c.bf16 %v5918, %v5917
    %v5950 = vpack.c.bf16 %v5920, %v5919
    %v5951 = vpack.c.bf16 %v5922, %v5921
    %v5952 = vpack.c.bf16 %v5923, %v5923
    %v5982 = vunpack.c.l.b16 %v5924
    %v5983 = vunpack.c.h.b16 %v5924
    %v5984 = vunpack.c.l.b16 %v5925
    %v5985 = vunpack.c.h.b16 %v5925
    %v5986 = vunpack.c.l.b16 %v5926
    %v5987 = vunpack.c.h.b16 %v5926
    %v5988 = vunpack.c.l.b16 %v5927
    %v5989 = vunpack.c.h.b16 %v5927
    %v5990 = vunpack.c.l.b16 %v5928
    %v5991 = vunpack.c.h.b16 %v5928
    %v5992 = vunpack.c.l.b16 %v5929
    %v5993 = vunpack.c.h.b16 %v5929
    %v5994 = vunpack.c.l.b16 %v5930
    %v5995 = vunpack.c.h.b16 %v5930
    %v5996 = vunpack.c.l.b16 %v5931
    %v5997 = vunpack.c.h.b16 %v5931
    %v5998 = vunpack.c.l.b16 %v5932
    %v5999 = vunpack.c.h.b16 %v5932
    %v6000 = vunpack.c.l.b16 %v5933
    %v6001 = vunpack.c.h.b16 %v5933
    %v6002 = vunpack.c.l.b16 %v5934
    %v6003 = vunpack.c.h.b16 %v5934
    %v6004 = vunpack.c.l.b16 %v5935
    %v6005 = vunpack.c.h.b16 %v5935
    %v6006 = vunpack.c.l.b16 %v5936
    %v6007 = vunpack.c.h.b16 %v5936
    %v6008 = vunpack.c.l.b16 %v5937
    %v6009 = vunpack.c.h.b16 %v5937
    %v6010 = vunpack.c.l.b16 %v5938
    %v6011 = vunpack.c.h.b16 %v5938
    %v6012 = vunpack.c.l.b16 %v5939
    %v6013 = vunpack.c.h.b16 %v5939
    %v6014 = vunpack.c.l.b16 %v5940
    %v6015 = vunpack.c.h.b16 %v5940
    %v6016 = vunpack.c.l.b16 %v5941
    %v6017 = vunpack.c.h.b16 %v5941
    %v6018 = vunpack.c.l.b16 %v5942
    %v6019 = vunpack.c.h.b16 %v5942
    %v6020 = vunpack.c.l.b16 %v5943
    %v6021 = vunpack.c.h.b16 %v5943
    %v6022 = vunpack.c.l.b16 %v5944
    %v6023 = vunpack.c.h.b16 %v5944
    %v6024 = vunpack.c.l.b16 %v5945
    %v6025 = vunpack.c.h.b16 %v5945
    %v6026 = vunpack.c.l.b16 %v5946
    %v6027 = vunpack.c.h.b16 %v5946
    %v6028 = vunpack.c.l.b16 %v5947
    %v6029 = vunpack.c.h.b16 %v5947
    %v6030 = vunpack.c.l.b16 %v5948
    %v6031 = vunpack.c.h.b16 %v5948
    %v6032 = vunpack.c.l.b16 %v5949
    %v6033 = vunpack.c.h.b16 %v5949
    %v6034 = vunpack.c.l.b16 %v5950
    %v6035 = vunpack.c.h.b16 %v5950
    %v6036 = vunpack.c.l.b16 %v5951
    %v6037 = vunpack.c.h.b16 %v5951
    %v6038 = vunpack.c.l.b16 %v5952
    %v6039 = vpack.c.b16 %v5982, %v5982
    %v6040 = vpack.c.b16 %v5983, %v5983
    %v6041 = vpack.c.b16 %v5984, %v5984
    %v6042 = vpack.c.b16 %v5985, %v5985
    %v6043 = vpack.c.b16 %v5986, %v5986
    %v6044 = vpack.c.b16 %v5987, %v5987
    %v6045 = vpack.c.b16 %v5988, %v5988
    %v6046 = vpack.c.b16 %v5989, %v5989
    %v6047 = vpack.c.b16 %v5990, %v5990
    %v6048 = vpack.c.b16 %v5991, %v5991
    %v6049 = vpack.c.b16 %v5992, %v5992
    %v6050 = vpack.c.b16 %v5993, %v5993
    %v6051 = vpack.c.b16 %v5994, %v5994
    %v6052 = vpack.c.b16 %v5995, %v5995
    %v6053 = vpack.c.b16 %v5996, %v5996
    %v6054 = vpack.c.b16 %v5997, %v5997
    %v6055 = vpack.c.b16 %v5998, %v5998
    %v6056 = vpack.c.b16 %v5999, %v5999
    %v6057 = vpack.c.b16 %v6000, %v6000
    %v6058 = vpack.c.b16 %v6001, %v6001
    %v6059 = vpack.c.b16 %v6002, %v6002
    %v6060 = vpack.c.b16 %v6003, %v6003
    %v6061 = vpack.c.b16 %v6004, %v6004
    %v6062 = vpack.c.b16 %v6005, %v6005
    %v6063 = vpack.c.b16 %v6006, %v6006
    %v6064 = vpack.c.b16 %v6007, %v6007
    %v6065 = vpack.c.b16 %v6008, %v6008
    %v6066 = vpack.c.b16 %v6009, %v6009
    %v6067 = vpack.c.b16 %v6010, %v6010
    %v6068 = vpack.c.b16 %v6011, %v6011
    %v6069 = vpack.c.b16 %v6012, %v6012
    %v6070 = vpack.c.b16 %v6013, %v6013
    %v6071 = vpack.c.b16 %v6014, %v6014
    %v6072 = vpack.c.b16 %v6015, %v6015
    %v6073 = vpack.c.b16 %v6016, %v6016
    %v6074 = vpack.c.b16 %v6017, %v6017
    %v6075 = vpack.c.b16 %v6018, %v6018
    %v6076 = vpack.c.b16 %v6019, %v6019
    %v6077 = vpack.c.b16 %v6020, %v6020
    %v6078 = vpack.c.b16 %v6021, %v6021
    %v6079 = vpack.c.b16 %v6022, %v6022
    %v6080 = vpack.c.b16 %v6023, %v6023
    %v6081 = vpack.c.b16 %v6024, %v6024
    %v6082 = vpack.c.b16 %v6025, %v6025
    %v6083 = vpack.c.b16 %v6026, %v6026
    %v6084 = vpack.c.b16 %v6027, %v6027
    %v6085 = vpack.c.b16 %v6028, %v6028
    %v6086 = vpack.c.b16 %v6029, %v6029
    %v6087 = vpack.c.b16 %v6030, %v6030
    %v6088 = vpack.c.b16 %v6031, %v6031
    %v6089 = vpack.c.b16 %v6032, %v6032
    %v6090 = vpack.c.b16 %v6033, %v6033
    %v6091 = vpack.c.b16 %v6034, %v6034
    %v6092 = vpack.c.b16 %v6035, %v6035
    %v6093 = vpack.c.b16 %v6036, %v6036
    %v6094 = vpack.c.b16 %v6037, %v6037
    %v6095 = vpack.c.b16 %v6038, %v6038
    %vm6153 = vcmask 257024
    %6154 = vst.msk [vmem:[#allocation2] sm:$0xf] %vm6153, %v6039
    %6155 = vst.msk [vmem:[#allocation2 + $0x4] sm:$0xf] %vm6153, %v6040
    %6156 = vst.msk [vmem:[#allocation2 + $0x8] sm:$0xf] %vm6153, %v6041
    %6157 = vst.msk [vmem:[#allocation2 + $0xc] sm:$0xf] %vm6153, %v6042
    %6158 = vst.msk [vmem:[#allocation2 + $0x10] sm:$0xf] %vm6153, %v6043
    %6159 = vst.msk [vmem:[#allocation2 + $0x14] sm:$0xf] %vm6153, %v6044
    %6160 = vst.msk [vmem:[#allocation2 + $0x18] sm:$0xf] %vm6153, %v6045
    %6161 = vst.msk [vmem:[#allocation2 + $0x1c] sm:$0xf] %vm6153, %v6046
    %6162 = vst.msk [vmem:[#allocation2 + $0x20] sm:$0xf] %vm6153, %v6047
    %6163 = vst.msk [vmem:[#allocation2 + $0x24] sm:$0xf] %vm6153, %v6048
    %6164 = vst.msk [vmem:[#allocation2 + $0x28] sm:$0xf] %vm6153, %v6049
    %6165 = vst.msk [vmem:[#allocation2 + $0x2c] sm:$0xf] %vm6153, %v6050
    %6166 = vst.msk [vmem:[#allocation2 + $0x30] sm:$0xf] %vm6153, %v6051
    %6167 = vst.msk [vmem:[#allocation2 + $0x34] sm:$0xf] %vm6153, %v6052
    %6168 = vst.msk [vmem:[#allocation2 + $0x38] sm:$0xf] %vm6153, %v6053
    %6169 = vst.msk [vmem:[#allocation2 + $0x3c] sm:$0xf] %vm6153, %v6054
    %6170 = vst.msk [vmem:[#allocation2 + $0x40] sm:$0xf] %vm6153, %v6055
    %6171 = vst.msk [vmem:[#allocation2 + $0x44] sm:$0xf] %vm6153, %v6056
    %6172 = vst.msk [vmem:[#allocation2 + $0x48] sm:$0xf] %vm6153, %v6057
    %6173 = vst.msk [vmem:[#allocation2 + $0x4c] sm:$0xf] %vm6153, %v6058
    %6174 = vst.msk [vmem:[#allocation2 + $0x50] sm:$0xf] %vm6153, %v6059
    %6175 = vst.msk [vmem:[#allocation2 + $0x54] sm:$0xf] %vm6153, %v6060
    %6176 = vst.msk [vmem:[#allocation2 + $0x58] sm:$0xf] %vm6153, %v6061
    %6177 = vst.msk [vmem:[#allocation2 + $0x5c] sm:$0xf] %vm6153, %v6062
    %6178 = vst.msk [vmem:[#allocation2 + $0x60] sm:$0xf] %vm6153, %v6063
    %6179 = vst.msk [vmem:[#allocation2 + $0x64] sm:$0xf] %vm6153, %v6064
    %6180 = vst.msk [vmem:[#allocation2 + $0x68] sm:$0xf] %vm6153, %v6065
    %6181 = vst.msk [vmem:[#allocation2 + $0x6c] sm:$0xf] %vm6153, %v6066
    %6182 = vst.msk [vmem:[#allocation2 + $0x70] sm:$0xf] %vm6153, %v6067
    %6183 = vst.msk [vmem:[#allocation2 + $0x74] sm:$0xf] %vm6153, %v6068
    %6184 = vst.msk [vmem:[#allocation2 + $0x78] sm:$0xf] %vm6153, %v6069
    %6185 = vst.msk [vmem:[#allocation2 + $0x7c] sm:$0xf] %vm6153, %v6070
    %6186 = vst.msk [vmem:[#allocation2 + $0x80] sm:$0xf] %vm6153, %v6071
    %6187 = vst.msk [vmem:[#allocation2 + $0x84] sm:$0xf] %vm6153, %v6072
    %6188 = vst.msk [vmem:[#allocation2 + $0x88] sm:$0xf] %vm6153, %v6073
    %6189 = vst.msk [vmem:[#allocation2 + $0x8c] sm:$0xf] %vm6153, %v6074
    %6190 = vst.msk [vmem:[#allocation2 + $0x90] sm:$0xf] %vm6153, %v6075
    %6191 = vst.msk [vmem:[#allocation2 + $0x94] sm:$0xf] %vm6153, %v6076
    %6192 = vst.msk [vmem:[#allocation2 + $0x98] sm:$0xf] %vm6153, %v6077
    %6193 = vst.msk [vmem:[#allocation2 + $0x9c] sm:$0xf] %vm6153, %v6078
    %6194 = vst.msk [vmem:[#allocation2 + $0xa0] sm:$0xf] %vm6153, %v6079
    %6195 = vst.msk [vmem:[#allocation2 + $0xa4] sm:$0xf] %vm6153, %v6080
    %6196 = vst.msk [vmem:[#allocation2 + $0xa8] sm:$0xf] %vm6153, %v6081
    %6197 = vst.msk [vmem:[#allocation2 + $0xac] sm:$0xf] %vm6153, %v6082
    %6198 = vst.msk [vmem:[#allocation2 + $0xb0] sm:$0xf] %vm6153, %v6083
    %6199 = vst.msk [vmem:[#allocation2 + $0xb4] sm:$0xf] %vm6153, %v6084
    %6200 = vst.msk [vmem:[#allocation2 + $0xb8] sm:$0xf] %vm6153, %v6085
    %6201 = vst.msk [vmem:[#allocation2 + $0xbc] sm:$0xf] %vm6153, %v6086
    %6202 = vst.msk [vmem:[#allocation2 + $0xc0] sm:$0xf] %vm6153, %v6087
    %6203 = vst.msk [vmem:[#allocation2 + $0xc4] sm:$0xf] %vm6153, %v6088
    %6204 = vst.msk [vmem:[#allocation2 + $0xc8] sm:$0xf] %vm6153, %v6089
    %6205 = vst.msk [vmem:[#allocation2 + $0xcc] sm:$0xf] %vm6153, %v6090
    %6206 = vst.msk [vmem:[#allocation2 + $0xd0] sm:$0xf] %vm6153, %v6091
    %6207 = vst.msk [vmem:[#allocation2 + $0xd4] sm:$0xf] %vm6153, %v6092
    %6208 = vst.msk [vmem:[#allocation2 + $0xd8] sm:$0xf] %vm6153, %v6093
    %6209 = vst.msk [vmem:[#allocation2 + $0xdc] sm:$0xf] %vm6153, %v6094
    %vm6210 = vcmask 253952
    %6211 = vst.msk [vmem:[#allocation2 + $0xe0] sm:$0x1] %vm6210, %v6095
    %v6212 = vld [vmem:[#allocation2] sm:$0xf]
    %v6213 = vld [vmem:[#allocation2 + $0x4] sm:$0xf]
    %v6214 = vld [vmem:[#allocation2 + $0x8] sm:$0xf]
    %v6215 = vld [vmem:[#allocation2 + $0xc] sm:$0xf]
    %v6216 = vld [vmem:[#allocation2 + $0x10] sm:$0xf]
    %v6217 = vld [vmem:[#allocation2 + $0x14] sm:$0xf]
    %v6218 = vld [vmem:[#allocation2 + $0x18] sm:$0xf]
    %v6219 = vld [vmem:[#allocation2 + $0x1c] sm:$0xf]
    %v6220 = vld [vmem:[#allocation2 + $0x20] sm:$0xf]
    %v6221 = vld [vmem:[#allocation2 + $0x24] sm:$0xf]
    %v6222 = vld [vmem:[#allocation2 + $0x28] sm:$0xf]
    %v6223 = vld [vmem:[#allocation2 + $0x2c] sm:$0xf]
    %v6224 = vld [vmem:[#allocation2 + $0x30] sm:$0xf]
    %v6225 = vld [vmem:[#allocation2 + $0x34] sm:$0xf]
    %v6226 = vld [vmem:[#allocation2 + $0x38] sm:$0xf]
    %v6227 = vld [vmem:[#allocation2 + $0x3c] sm:$0xf]
    %v6228 = vld [vmem:[#allocation2 + $0x40] sm:$0xf]
    %v6229 = vld [vmem:[#allocation2 + $0x44] sm:$0xf]
    %v6230 = vld [vmem:[#allocation2 + $0x48] sm:$0xf]
    %v6231 = vld [vmem:[#allocation2 + $0x4c] sm:$0xf]
    %v6232 = vld [vmem:[#allocation2 + $0x50] sm:$0xf]
    %v6233 = vld [vmem:[#allocation2 + $0x54] sm:$0xf]
    %v6234 = vld [vmem:[#allocation2 + $0x58] sm:$0xf]
    %v6235 = vld [vmem:[#allocation2 + $0x5c] sm:$0xf]
    %v6236 = vld [vmem:[#allocation2 + $0x60] sm:$0xf]
    %v6237 = vld [vmem:[#allocation2 + $0x64] sm:$0xf]
    %v6238 = vld [vmem:[#allocation2 + $0x68] sm:$0xf]
    %v6239 = vld [vmem:[#allocation2 + $0x6c] sm:$0xf]
    %v6240 = vld [vmem:[#allocation2 + $0x70] sm:$0xf]
    %v6241 = vld [vmem:[#allocation2 + $0x74] sm:$0xf]
    %v6242 = vld [vmem:[#allocation2 + $0x78] sm:$0xf]
    %v6243 = vld [vmem:[#allocation2 + $0x7c] sm:$0xf]
    %v6244 = vld [vmem:[#allocation2 + $0x80] sm:$0xf]
    %v6245 = vld [vmem:[#allocation2 + $0x84] sm:$0xf]
    %v6246 = vld [vmem:[#allocation2 + $0x88] sm:$0xf]
    %v6247 = vld [vmem:[#allocation2 + $0x8c] sm:$0xf]
    %v6248 = vld [vmem:[#allocation2 + $0x90] sm:$0xf]
    %v6249 = vld [vmem:[#allocation2 + $0x94] sm:$0xf]
    %v6250 = vld [vmem:[#allocation2 + $0x98] sm:$0xf]
    %v6251 = vld [vmem:[#allocation2 + $0x9c] sm:$0xf]
    %v6252 = vld [vmem:[#allocation2 + $0xa0] sm:$0xf]
    %v6253 = vld [vmem:[#allocation2 + $0xa4] sm:$0xf]
    %v6254 = vld [vmem:[#allocation2 + $0xa8] sm:$0xf]
    %v6255 = vld [vmem:[#allocation2 + $0xac] sm:$0xf]
    %v6256 = vld [vmem:[#allocation2 + $0xb0] sm:$0xf]
    %v6257 = vld [vmem:[#allocation2 + $0xb4] sm:$0xf]
    %v6258 = vld [vmem:[#allocation2 + $0xb8] sm:$0xf]
    %v6259 = vld [vmem:[#allocation2 + $0xbc] sm:$0xf]
    %v6260 = vld [vmem:[#allocation2 + $0xc0] sm:$0xf]
    %v6261 = vld [vmem:[#allocation2 + $0xc4] sm:$0xf]
    %v6262 = vld [vmem:[#allocation2 + $0xc8] sm:$0x1]
    %v6263 = vld [vmem:[%s5] sm:$0xf]
    %v6264 = vld [vmem:[%s5 + $0x4] sm:$0xf]
    %v6265 = vld [vmem:[%s5 + $0x8] sm:$0xf]
    %v6266 = vld [vmem:[%s5 + $0xc] sm:$0xf]
    %v6267 = vld [vmem:[#allocation2 + $0xc8] sm:$0x3]
    %s6268 = scalar_lea.vmem %s5, 16
    %v6269 = vld [vmem:[%s6268] sm:$0xf]
    %v6270 = vld [vmem:[%s6268 + $0x4] sm:$0xf]
    %v6271 = vld [vmem:[%s6268 + $0x8] sm:$0xf]
    %v6272 = vld [vmem:[%s6268 + $0xc] sm:$0xf]
    %v6324 = vunpack.c.l.b16 %v6212
    %v6325 = vunpack.c.l.b16 %v6213
    %v6326 = vunpack.c.l.b16 %v6214
    %v6327 = vunpack.c.l.b16 %v6215
    %v6328 = vunpack.c.l.b16 %v6216
    %v6329 = vunpack.c.l.b16 %v6217
    %v6330 = vunpack.c.l.b16 %v6218
    %v6331 = vunpack.c.l.b16 %v6219
    %v6332 = vunpack.c.l.b16 %v6220
    %v6333 = vunpack.c.l.b16 %v6221
    %v6334 = vunpack.c.l.b16 %v6222
    %v6335 = vunpack.c.l.b16 %v6223
    %v6336 = vunpack.c.l.b16 %v6224
    %v6337 = vunpack.c.l.b16 %v6225
    %v6338 = vunpack.c.l.b16 %v6226
    %v6339 = vunpack.c.l.b16 %v6227
    %v6340 = vunpack.c.l.b16 %v6228
    %v6341 = vunpack.c.l.b16 %v6229
    %v6342 = vunpack.c.l.b16 %v6230
    %v6343 = vunpack.c.l.b16 %v6231
    %v6344 = vunpack.c.l.b16 %v6232
    %v6345 = vunpack.c.l.b16 %v6233
    %v6346 = vunpack.c.l.b16 %v6234
    %v6347 = vunpack.c.l.b16 %v6235
    %v6348 = vunpack.c.l.b16 %v6236
    %v6349 = vunpack.c.l.b16 %v6237
    %v6350 = vunpack.c.l.b16 %v6238
    %v6351 = vunpack.c.l.b16 %v6239
    %v6352 = vunpack.c.l.b16 %v6240
    %v6353 = vunpack.c.l.b16 %v6241
    %v6354 = vunpack.c.l.b16 %v6242
    %v6355 = vunpack.c.l.b16 %v6243
    %v6356 = vunpack.c.l.b16 %v6244
    %v6357 = vunpack.c.l.b16 %v6245
    %v6358 = vunpack.c.l.b16 %v6246
    %v6359 = vunpack.c.l.b16 %v6247
    %v6360 = vunpack.c.l.b16 %v6248
    %v6361 = vunpack.c.l.b16 %v6249
    %v6362 = vunpack.c.l.b16 %v6250
    %v6363 = vunpack.c.l.b16 %v6251
    %v6364 = vunpack.c.l.b16 %v6252
    %v6365 = vunpack.c.l.b16 %v6253
    %v6366 = vunpack.c.l.b16 %v6254
    %v6367 = vunpack.c.l.b16 %v6255
    %v6368 = vunpack.c.l.b16 %v6256
    %v6369 = vunpack.c.l.b16 %v6257
    %v6370 = vunpack.c.l.b16 %v6258
    %v6371 = vunpack.c.l.b16 %v6259
    %v6372 = vunpack.c.l.b16 %v6260
    %v6373 = vunpack.c.l.b16 %v6261
    %v6374 = vunpack.c.l.b16 %v6267
    %v6375 = vpack.c.b16 %v6325, %v6324
    %v6376 = vpack.c.b16 %v6327, %v6326
    %v6377 = vpack.c.b16 %v6329, %v6328
    %v6378 = vpack.c.b16 %v6331, %v6330
    %v6379 = vpack.c.b16 %v6333, %v6332
    %v6380 = vpack.c.b16 %v6335, %v6334
    %v6381 = vpack.c.b16 %v6337, %v6336
    %v6382 = vpack.c.b16 %v6339, %v6338
    %v6383 = vpack.c.b16 %v6341, %v6340
    %v6384 = vpack.c.b16 %v6343, %v6342
    %v6385 = vpack.c.b16 %v6345, %v6344
    %v6386 = vpack.c.b16 %v6347, %v6346
    %v6387 = vpack.c.b16 %v6349, %v6348
    %v6388 = vpack.c.b16 %v6351, %v6350
    %v6389 = vpack.c.b16 %v6353, %v6352
    %v6390 = vpack.c.b16 %v6355, %v6354
    %v6391 = vpack.c.b16 %v6357, %v6356
    %v6392 = vpack.c.b16 %v6359, %v6358
    %v6393 = vpack.c.b16 %v6361, %v6360
    %v6394 = vpack.c.b16 %v6363, %v6362
    %v6395 = vpack.c.b16 %v6365, %v6364
    %v6396 = vpack.c.b16 %v6367, %v6366
    %v6397 = vpack.c.b16 %v6369, %v6368
    %v6398 = vpack.c.b16 %v6371, %v6370
    %v6399 = vpack.c.b16 %v6373, %v6372
    %v6400 = vpack.c.b16 %v6374, %v6374
    %vm6401 = vsmask.f32 7424
    %v6403 = vshrl.u32 %v6375, 16
    %v6405 = vshll.u32 %v6375, 16
    %v6407 = vrot.slane %v6405, 1
    %v6408 = vor.u32 %v6403, %v6407
    %v6410 = vshll.u32 %v6376, 16
    %v6412 = vrot.slane %v6410, 1
    %v6413 = vsel %vm6401, %v6408, %v6412
    %v6414 = vshrl.u32 %v6376, 16
    %v6416 = vor.u32 %v6414, %v6412
    %v6418 = vshll.u32 %v6377, 16
    %v6420 = vrot.slane %v6418, 1
    %v6421 = vsel %vm6401, %v6416, %v6420
    %v6422 = vshrl.u32 %v6377, 16
    %v6424 = vor.u32 %v6422, %v6420
    %v6426 = vshll.u32 %v6378, 16
    %v6428 = vrot.slane %v6426, 1
    %v6429 = vsel %vm6401, %v6424, %v6428
    %v6430 = vshrl.u32 %v6378, 16
    %v6432 = vor.u32 %v6430, %v6428
    %v6434 = vshll.u32 %v6379, 16
    %v6436 = vrot.slane %v6434, 1
    %v6437 = vsel %vm6401, %v6432, %v6436
    %v6438 = vshrl.u32 %v6379, 16
    %v6440 = vor.u32 %v6438, %v6436
    %v6442 = vshll.u32 %v6380, 16
    %v6444 = vrot.slane %v6442, 1
    %v6445 = vsel %vm6401, %v6440, %v6444
    %v6446 = vshrl.u32 %v6380, 16
    %v6448 = vor.u32 %v6446, %v6444
    %v6450 = vshll.u32 %v6381, 16
    %v6452 = vrot.slane %v6450, 1
    %v6453 = vsel %vm6401, %v6448, %v6452
    %v6454 = vshrl.u32 %v6381, 16
    %v6456 = vor.u32 %v6454, %v6452
    %v6458 = vshll.u32 %v6382, 16
    %v6460 = vrot.slane %v6458, 1
    %v6461 = vsel %vm6401, %v6456, %v6460
    %v6462 = vshrl.u32 %v6382, 16
    %v6464 = vor.u32 %v6462, %v6460
    %v6466 = vshll.u32 %v6383, 16
    %v6468 = vrot.slane %v6466, 1
    %v6469 = vsel %vm6401, %v6464, %v6468
    %v6470 = vshrl.u32 %v6383, 16
    %v6472 = vor.u32 %v6470, %v6468
    %v6474 = vshll.u32 %v6384, 16
    %v6476 = vrot.slane %v6474, 1
    %v6477 = vsel %vm6401, %v6472, %v6476
    %v6478 = vshrl.u32 %v6384, 16
    %v6480 = vor.u32 %v6478, %v6476
    %v6482 = vshll.u32 %v6385, 16
    %v6484 = vrot.slane %v6482, 1
    %v6485 = vsel %vm6401, %v6480, %v6484
    %v6486 = vshrl.u32 %v6385, 16
    %v6488 = vor.u32 %v6486, %v6484
    %v6490 = vshll.u32 %v6386, 16
    %v6492 = vrot.slane %v6490, 1
    %v6493 = vsel %vm6401, %v6488, %v6492
    %v6494 = vshrl.u32 %v6386, 16
    %v6496 = vor.u32 %v6494, %v6492
    %v6498 = vshll.u32 %v6387, 16
    %v6500 = vrot.slane %v6498, 1
    %v6501 = vsel %vm6401, %v6496, %v6500
    %v6502 = vshrl.u32 %v6387, 16
    %v6504 = vor.u32 %v6502, %v6500
    %v6506 = vshll.u32 %v6388, 16
    %v6508 = vrot.slane %v6506, 1
    %v6509 = vsel %vm6401, %v6504, %v6508
    %v6510 = vshrl.u32 %v6388, 16
    %v6512 = vor.u32 %v6510, %v6508
    %v6514 = vshll.u32 %v6389, 16
    %v6516 = vrot.slane %v6514, 1
    %v6517 = vsel %vm6401, %v6512, %v6516
    %v6518 = vshrl.u32 %v6389, 16
    %v6520 = vor.u32 %v6518, %v6516
    %v6522 = vshll.u32 %v6390, 16
    %v6524 = vrot.slane %v6522, 1
    %v6525 = vsel %vm6401, %v6520, %v6524
    %v6526 = vshrl.u32 %v6390, 16
    %v6528 = vor.u32 %v6526, %v6524
    %v6530 = vshll.u32 %v6391, 16
    %v6532 = vrot.slane %v6530, 1
    %v6533 = vsel %vm6401, %v6528, %v6532
    %v6534 = vshrl.u32 %v6391, 16
    %v6536 = vor.u32 %v6534, %v6532
    %v6538 = vshll.u32 %v6392, 16
    %v6540 = vrot.slane %v6538, 1
    %v6541 = vsel %vm6401, %v6536, %v6540
    %v6542 = vshrl.u32 %v6392, 16
    %v6544 = vor.u32 %v6542, %v6540
    %v6546 = vshll.u32 %v6393, 16
    %v6548 = vrot.slane %v6546, 1
    %v6549 = vsel %vm6401, %v6544, %v6548
    %v6550 = vshrl.u32 %v6393, 16
    %v6552 = vor.u32 %v6550, %v6548
    %v6554 = vshll.u32 %v6394, 16
    %v6556 = vrot.slane %v6554, 1
    %v6557 = vsel %vm6401, %v6552, %v6556
    %v6558 = vshrl.u32 %v6394, 16
    %v6560 = vor.u32 %v6558, %v6556
    %v6562 = vshll.u32 %v6395, 16
    %v6564 = vrot.slane %v6562, 1
    %v6565 = vsel %vm6401, %v6560, %v6564
    %v6566 = vshrl.u32 %v6395, 16
    %v6568 = vor.u32 %v6566, %v6564
    %v6570 = vshll.u32 %v6396, 16
    %v6572 = vrot.slane %v6570, 1
    %v6573 = vsel %vm6401, %v6568, %v6572
    %v6574 = vshrl.u32 %v6396, 16
    %v6576 = vor.u32 %v6574, %v6572
    %v6578 = vshll.u32 %v6397, 16
    %v6580 = vrot.slane %v6578, 1
    %v6581 = vsel %vm6401, %v6576, %v6580
    %v6582 = vshrl.u32 %v6397, 16
    %v6584 = vor.u32 %v6582, %v6580
    %v6586 = vshll.u32 %v6398, 16
    %v6588 = vrot.slane %v6586, 1
    %v6589 = vsel %vm6401, %v6584, %v6588
    %v6590 = vshrl.u32 %v6398, 16
    %v6592 = vor.u32 %v6590, %v6588
    %v6594 = vshll.u32 %v6399, 16
    %v6596 = vrot.slane %v6594, 1
    %v6597 = vsel %vm6401, %v6592, %v6596
    %v6598 = vshrl.u32 %v6399, 16
    %v6600 = vor.u32 %v6598, %v6596
    %v6602 = vshll.u32 %v6400, 16
    %v6604 = vrot.slane %v6602, 1
    %v6605 = vsel %vm6401, %v6600, %v6604
    %v6606 = vshrl.u32 %v6400, 16
    %v6608 = vor.u32 %v6606, %v6604
    %v6613 = vunpack.c.l.b16 %v6269
    %v6614 = vunpack.c.l.b16 %v6270
    %v6615 = vunpack.c.l.b16 %v6271
    %v6616 = vunpack.c.l.b16 %v6272
    %v6617 = vpack.c.b16 %v6614, %v6613
    %v6618 = vpack.c.b16 %v6616, %v6615
    %v6622 = vsel %vm5323, %v6413, 0
    %v6625 = vsel %vm5323, %v6421, 0
    %v6628 = vsel %vm5323, %v6429, 0
    %v6631 = vsel %vm5323, %v6437, 0
    %v6634 = vsel %vm5323, %v6445, 0
    %v6637 = vsel %vm5323, %v6453, 0
    %v6640 = vsel %vm5323, %v6461, 0
    %v6643 = vsel %vm5323, %v6469, 0
    %v6646 = vsel %vm5323, %v6477, 0
    %v6649 = vsel %vm5323, %v6485, 0
    %v6652 = vsel %vm5323, %v6493, 0
    %v6655 = vsel %vm5323, %v6501, 0
    %v6658 = vsel %vm5323, %v6509, 0
    %v6661 = vsel %vm5323, %v6517, 0
    %v6664 = vsel %vm5323, %v6525, 0
    %v6667 = vsel %vm5323, %v6533, 0
    %v6670 = vsel %vm5323, %v6541, 0
    %v6673 = vsel %vm5323, %v6549, 0
    %v6676 = vsel %vm5323, %v6557, 0
    %v6679 = vsel %vm5323, %v6565, 0
    %v6682 = vsel %vm5323, %v6573, 0
    %v6685 = vsel %vm5323, %v6581, 0
    %v6688 = vsel %vm5323, %v6589, 0
    %v6691 = vsel %vm5323, %v6597, 0
    %v6694 = vsel %vm5323, %v6605, 0
    %v6697 = vsel %vm5323, %v6608, 0
    %6699 = vmatprep.subr.bf16.mxu0 0
    %6700 = vmatpush1.bf16.msra.mxu0 %v6617
    %6701 = vmatprep.subr.bf16.mxu0 0
    %6702 = vmatpush1.bf16.msra.mxu0 %v6618
    %6703 = vmatprep.subr.bf16.mxu0 0
    %6704 = vmatpush1.bf16.msra.mxu0 0
    %6705 = vmatprep.subr.bf16.mxu0 0
    %6706 = vmatpush1.bf16.msra.mxu0 0
    %6707 = vmatprep.subr.bf16.mxu0 0
    %6708 = vmatpush1.bf16.msra.mxu0 0
    %6709 = vmatprep.subr.bf16.mxu0 0
    %6710 = vmatpush1.bf16.msra.mxu0 0
    %6711 = vmatprep.subr.bf16.mxu0 0
    %6712 = vmatpush1.bf16.msra.mxu0 0
    %6713 = vmatprep.subr.bf16.mxu0 0
    %6714 = vmatpush1.bf16.msra.mxu0 0
    %6715 = vmatprep.subr.bf16.mxu0 0
    %6716 = vmatpush1.bf16.msra.mxu0 0
    %6717 = vmatprep.subr.bf16.mxu0 0
    %6718 = vmatpush1.bf16.msra.mxu0 0
    %6719 = vmatprep.subr.bf16.mxu0 0
    %6720 = vmatpush1.bf16.msra.mxu0 0
    %6721 = vmatprep.subr.bf16.mxu0 0
    %6722 = vmatpush1.bf16.msra.mxu0 0
    %6723 = vmatprep.subr.bf16.mxu0 0
    %6724 = vmatpush1.bf16.msra.mxu0 0
    %6725 = vmatprep.subr.bf16.mxu0 0
    %6726 = vmatpush1.bf16.msra.mxu0 0
    %6727 = vmatprep.subr.bf16.mxu0 0
    %6728 = vmatpush1.bf16.msra.mxu0 0
    %6729 = vmatprep.subr.bf16.mxu0 0
    %6730 = vmatpush1.bf16.msra.mxu0 0
    %6731 = vmatprep.mubr.bf16.mxu0 0
    %6732 = vmatmul.mubr.bf16.gmra.mrb[0].mxu0 %v6622
    %v6733 = vpop.f32.mrb[0].mxu0
    %v6734 = vadd.f32 0.0, %v6733
    %v6735 = vpop.f32.mrb[0].mxu0
    %v6736 = vpop.f32.mrb[0].mxu0
    %v6737 = vadd.f32 0.0, %v6736
    %v6738 = vpop.f32.mrb[0].mxu0
    %6739 = vmatprep.mubr.bf16.mxu0 0
    %6740 = vmatmul.mubr.bf16.gmra.mrb[0].mxu0 %v6625
    %v6741 = vpop.f32.mrb[0].mxu0
    %v6742 = vadd.f32 0.0, %v6741
    %v6743 = vpop.f32.mrb[0].mxu0
    %v6744 = vpop.f32.mrb[0].mxu0
    %v6745 = vadd.f32 0.0, %v6744
    %v6746 = vpop.f32.mrb[0].mxu0
    %6747 = vmatprep.mubr.bf16.mxu0 0
    %6748 = vmatmul.mubr.bf16.gmra.mrb[0].mxu0 %v6628
    %v6749 = vpop.f32.mrb[0].mxu0
    %v6750 = vadd.f32 0.0, %v6749
    %v6751 = vpop.f32.mrb[0].mxu0
    %v6752 = vpop.f32.mrb[0].mxu0
    %v6753 = vadd.f32 0.0, %v6752
    %v6754 = vpop.f32.mrb[0].mxu0
    %6755 = vmatprep.mubr.bf16.mxu0 0
    %6756 = vmatmul.mubr.bf16.gmra.mrb[0].mxu0 %v6631
    %v6757 = vpop.f32.mrb[0].mxu0
    %v6758 = vadd.f32 0.0, %v6757
    %v6759 = vpop.f32.mrb[0].mxu0
    %v6760 = vpop.f32.mrb[0].mxu0
    %v6761 = vadd.f32 0.0, %v6760
    %v6762 = vpop.f32.mrb[0].mxu0
    %6763 = vmatprep.mubr.bf16.mxu0 0
    %6764 = vmatmul.mubr.bf16.gmra.mrb[0].mxu0 %v6634
    %v6765 = vpop.f32.mrb[0].mxu0
    %v6766 = vadd.f32 0.0, %v6765
    %v6767 = vpop.f32.mrb[0].mxu0
    %v6768 = vpop.f32.mrb[0].mxu0
    %v6769 = vadd.f32 0.0, %v6768
    %v6770 = vpop.f32.mrb[0].mxu0
    %6771 = vmatprep.mubr.bf16.mxu0 0
    %6772 = vmatmul.mubr.bf16.gmra.mrb[0].mxu0 %v6637
    %v6773 = vpop.f32.mrb[0].mxu0
    %v6774 = vadd.f32 0.0, %v6773
    %v6775 = vpop.f32.mrb[0].mxu0
    %v6776 = vpop.f32.mrb[0].mxu0
    %v6777 = vadd.f32 0.0, %v6776
    %v6778 = vpop.f32.mrb[0].mxu0
    %6779 = vmatprep.mubr.bf16.mxu0 0
    %6780 = vmatmul.mubr.bf16.gmra.mrb[0].mxu0 %v6640
    %v6781 = vpop.f32.mrb[0].mxu0
    %v6782 = vadd.f32 0.0, %v6781
    %v6783 = vpop.f32.mrb[0].mxu0
    %v6784 = vpop.f32.mrb[0].mxu0
    %v6785 = vadd.f32 0.0, %v6784
    %v6786 = vpop.f32.mrb[0].mxu0
    %6787 = vmatprep.mubr.bf16.mxu0 0
    %6788 = vmatmul.mubr.bf16.gmra.mrb[0].mxu0 %v6643
    %v6789 = vpop.f32.mrb[0].mxu0
    %v6790 = vadd.f32 0.0, %v6789
    %v6791 = vpop.f32.mrb[0].mxu0
    %v6792 = vpop.f32.mrb[0].mxu0
    %v6793 = vadd.f32 0.0, %v6792
    %v6794 = vpop.f32.mrb[0].mxu0
    %6795 = vmatprep.mubr.bf16.mxu0 0
    %6796 = vmatmul.mubr.bf16.gmra.mrb[0].mxu0 %v6646
    %v6797 = vpop.f32.mrb[0].mxu0
    %v6798 = vadd.f32 0.0, %v6797
    %v6799 = vpop.f32.mrb[0].mxu0
    %v6800 = vpop.f32.mrb[0].mxu0
    %v6801 = vadd.f32 0.0, %v6800
    %v6802 = vpop.f32.mrb[0].mxu0
    %6803 = vmatprep.mubr.bf16.mxu0 0
    %6804 = vmatmul.mubr.bf16.gmra.mrb[0].mxu0 %v6649
    %v6805 = vpop.f32.mrb[0].mxu0
    %v6806 = vadd.f32 0.0, %v6805
    %v6807 = vpop.f32.mrb[0].mxu0
    %v6808 = vpop.f32.mrb[0].mxu0
    %v6809 = vadd.f32 0.0, %v6808
    %v6810 = vpop.f32.mrb[0].mxu0
    %6811 = vmatprep.mubr.bf16.mxu0 0
    %6812 = vmatmul.mubr.bf16.gmra.mrb[0].mxu0 %v6652
    %v6813 = vpop.f32.mrb[0].mxu0
    %v6814 = vadd.f32 0.0, %v6813
    %v6815 = vpop.f32.mrb[0].mxu0
    %v6816 = vpop.f32.mrb[0].mxu0
    %v6817 = vadd.f32 0.0, %v6816
    %v6818 = vpop.f32.mrb[0].mxu0
    %6819 = vmatprep.mubr.bf16.mxu0 0
    %6820 = vmatmul.mubr.bf16.gmra.mrb[0].mxu0 %v6655
    %v6821 = vpop.f32.mrb[0].mxu0
    %v6822 = vadd.f32 0.0, %v6821
    %v6823 = vpop.f32.mrb[0].mxu0
    %v6824 = vpop.f32.mrb[0].mxu0
    %v6825 = vadd.f32 0.0, %v6824
    %v6826 = vpop.f32.mrb[0].mxu0
    %6827 = vmatprep.mubr.bf16.mxu0 0
    %6828 = vmatmul.mubr.bf16.gmra.mrb[0].mxu0 %v6658
    %v6829 = vpop.f32.mrb[0].mxu0
    %v6830 = vadd.f32 0.0, %v6829
    %v6831 = vpop.f32.mrb[0].mxu0
    %v6832 = vpop.f32.mrb[0].mxu0
    %v6833 = vadd.f32 0.0, %v6832
    %v6834 = vpop.f32.mrb[0].mxu0
    %6835 = vmatprep.mubr.bf16.mxu0 0
    %6836 = vmatmul.mubr.bf16.gmra.mrb[0].mxu0 %v6661
    %v6837 = vpop.f32.mrb[0].mxu0
    %v6838 = vadd.f32 0.0, %v6837
    %v6839 = vpop.f32.mrb[0].mxu0
    %v6840 = vpop.f32.mrb[0].mxu0
    %v6841 = vadd.f32 0.0, %v6840
    %v6842 = vpop.f32.mrb[0].mxu0
    %6843 = vmatprep.mubr.bf16.mxu0 0
    %6844 = vmatmul.mubr.bf16.gmra.mrb[0].mxu0 %v6664
    %v6845 = vpop.f32.mrb[0].mxu0
    %v6846 = vadd.f32 0.0, %v6845
    %v6847 = vpop.f32.mrb[0].mxu0
    %v6848 = vpop.f32.mrb[0].mxu0
    %v6849 = vadd.f32 0.0, %v6848
    %v6850 = vpop.f32.mrb[0].mxu0
    %6851 = vmatprep.mubr.bf16.mxu0 0
    %6852 = vmatmul.mubr.bf16.gmra.mrb[0].mxu0 %v6667
    %v6853 = vpop.f32.mrb[0].mxu0
    %v6854 = vadd.f32 0.0, %v6853
    %v6855 = vpop.f32.mrb[0].mxu0
    %v6856 = vpop.f32.mrb[0].mxu0
    %v6857 = vadd.f32 0.0, %v6856
    %v6858 = vpop.f32.mrb[0].mxu0
    %6859 = vmatprep.mubr.bf16.mxu0 0
    %6860 = vmatmul.mubr.bf16.gmra.mrb[0].mxu0 %v6670
    %v6861 = vpop.f32.mrb[0].mxu0
    %v6862 = vadd.f32 0.0, %v6861
    %v6863 = vpop.f32.mrb[0].mxu0
    %v6864 = vpop.f32.mrb[0].mxu0
    %v6865 = vadd.f32 0.0, %v6864
    %v6866 = vpop.f32.mrb[0].mxu0
    %6867 = vmatprep.mubr.bf16.mxu0 0
    %6868 = vmatmul.mubr.bf16.gmra.mrb[0].mxu0 %v6673
    %v6869 = vpop.f32.mrb[0].mxu0
    %v6870 = vadd.f32 0.0, %v6869
    %v6871 = vpop.f32.mrb[0].mxu0
    %v6872 = vpop.f32.mrb[0].mxu0
    %v6873 = vadd.f32 0.0, %v6872
    %v6874 = vpop.f32.mrb[0].mxu0
    %6875 = vmatprep.mubr.bf16.mxu0 0
    %6876 = vmatmul.mubr.bf16.gmra.mrb[0].mxu0 %v6676
    %v6877 = vpop.f32.mrb[0].mxu0
    %v6878 = vadd.f32 0.0, %v6877
    %v6879 = vpop.f32.mrb[0].mxu0
    %v6880 = vpop.f32.mrb[0].mxu0
    %v6881 = vadd.f32 0.0, %v6880
    %v6882 = vpop.f32.mrb[0].mxu0
    %6883 = vmatprep.mubr.bf16.mxu0 0
    %6884 = vmatmul.mubr.bf16.gmra.mrb[0].mxu0 %v6679
    %v6885 = vpop.f32.mrb[0].mxu0
    %v6886 = vadd.f32 0.0, %v6885
    %v6887 = vpop.f32.mrb[0].mxu0
    %v6888 = vpop.f32.mrb[0].mxu0
    %v6889 = vadd.f32 0.0, %v6888
    %v6890 = vpop.f32.mrb[0].mxu0
    %6891 = vmatprep.mubr.bf16.mxu0 0
    %6892 = vmatmul.mubr.bf16.gmra.mrb[0].mxu0 %v6682
    %v6893 = vpop.f32.mrb[0].mxu0
    %v6894 = vadd.f32 0.0, %v6893
    %v6895 = vpop.f32.mrb[0].mxu0
    %v6896 = vpop.f32.mrb[0].mxu0
    %v6897 = vadd.f32 0.0, %v6896
    %v6898 = vpop.f32.mrb[0].mxu0
    %6899 = vmatprep.mubr.bf16.mxu0 0
    %6900 = vmatmul.mubr.bf16.gmra.mrb[0].mxu0 %v6685
    %v6901 = vpop.f32.mrb[0].mxu0
    %v6902 = vadd.f32 0.0, %v6901
    %v6903 = vpop.f32.mrb[0].mxu0
    %v6904 = vpop.f32.mrb[0].mxu0
    %v6905 = vadd.f32 0.0, %v6904
    %v6906 = vpop.f32.mrb[0].mxu0
    %6907 = vmatprep.mubr.bf16.mxu0 0
    %6908 = vmatmul.mubr.bf16.gmra.mrb[0].mxu0 %v6688
    %v6909 = vpop.f32.mrb[0].mxu0
    %v6910 = vadd.f32 0.0, %v6909
    %v6911 = vpop.f32.mrb[0].mxu0
    %v6912 = vpop.f32.mrb[0].mxu0
    %v6913 = vadd.f32 0.0, %v6912
    %v6914 = vpop.f32.mrb[0].mxu0
    %6915 = vmatprep.mubr.bf16.mxu0 0
    %6916 = vmatmul.mubr.bf16.gmra.mrb[0].mxu0 %v6691
    %v6917 = vpop.f32.mrb[0].mxu0
    %v6918 = vadd.f32 0.0, %v6917
    %v6919 = vpop.f32.mrb[0].mxu0
    %v6920 = vpop.f32.mrb[0].mxu0
    %v6921 = vadd.f32 0.0, %v6920
    %v6922 = vpop.f32.mrb[0].mxu0
    %6923 = vmatprep.mubr.bf16.mxu0 0
    %6924 = vmatmul.mubr.bf16.gmra.mrb[0].mxu0 %v6694
    %v6925 = vpop.f32.mrb[0].mxu0
    %v6926 = vadd.f32 0.0, %v6925
    %v6927 = vpop.f32.mrb[0].mxu0
    %v6928 = vpop.f32.mrb[0].mxu0
    %v6929 = vadd.f32 0.0, %v6928
    %v6930 = vpop.f32.mrb[0].mxu0
    %6931 = vmatprep.mubr.bf16.mxu0 0
    %6932 = vmatmul.mubr.bf16.gmra.mrb[0].mxu0 %v6697
    %v6933 = vpop.f32.mrb[0].mxu0
    %v6934 = vadd.f32 0.0, %v6933
    %v6935 = vpop.f32.mrb[0].mxu0
    %v6936 = vpop.f32.mrb[0].mxu0
    %v6937 = vpop.f32.mrb[0].mxu0
    %6938 = vdwg.mxu0
    %v6940 = vunpack.c.l.b16 %v6262
    %v6941 = vpack.c.b16 %v6940, %v6940
    %v6946 = vunpack.c.l.b16 %v6263
    %v6947 = vunpack.c.l.b16 %v6264
    %v6948 = vunpack.c.l.b16 %v6265
    %v6949 = vunpack.c.l.b16 %v6266
    %v6950 = vpack.c.b16 %v6947, %v6946
    %v6951 = vpack.c.b16 %v6949, %v6948
    %v6954 = vsel %vm5323, %v6375, 0
    %v6956 = vsel %vm5323, %v6376, 0
    %v6958 = vsel %vm5323, %v6377, 0
    %v6960 = vsel %vm5323, %v6378, 0
    %v6962 = vsel %vm5323, %v6379, 0
    %v6964 = vsel %vm5323, %v6380, 0
    %v6966 = vsel %vm5323, %v6381, 0
    %v6968 = vsel %vm5323, %v6382, 0
    %v6970 = vsel %vm5323, %v6383, 0
    %v6972 = vsel %vm5323, %v6384, 0
    %v6974 = vsel %vm5323, %v6385, 0
    %v6976 = vsel %vm5323, %v6386, 0
    %v6978 = vsel %vm5323, %v6387, 0
    %v6980 = vsel %vm5323, %v6388, 0
    %v6982 = vsel %vm5323, %v6389, 0
    %v6984 = vsel %vm5323, %v6390, 0
    %v6986 = vsel %vm5323, %v6391, 0
    %v6988 = vsel %vm5323, %v6392, 0
    %v6990 = vsel %vm5323, %v6393, 0
    %v6992 = vsel %vm5323, %v6394, 0
    %v6994 = vsel %vm5323, %v6395, 0
    %v6996 = vsel %vm5323, %v6396, 0
    %v6998 = vsel %vm5323, %v6397, 0
    %v7000 = vsel %vm5323, %v6398, 0
    %v7002 = vsel %vm5323, %v6399, 0
    %v7005 = vsel %vm5323, %v6941, 0
    %7007 = vmatprep.subr.bf16.mxu0 0
    %7008 = vmatpush1.bf16.msra.mxu0 %v6950
    %7009 = vmatprep.subr.bf16.mxu0 0
    %7010 = vmatpush1.bf16.msra.mxu0 %v6951
    %7011 = vmatprep.subr.bf16.mxu0 0
    %7012 = vmatpush1.bf16.msra.mxu0 0
    %7013 = vmatprep.subr.bf16.mxu0 0
    %7014 = vmatpush1.bf16.msra.mxu0 0
    %7015 = vmatprep.subr.bf16.mxu0 0
    %7016 = vmatpush1.bf16.msra.mxu0 0
    %7017 = vmatprep.subr.bf16.mxu0 0
    %7018 = vmatpush1.bf16.msra.mxu0 0
    %7019 = vmatprep.subr.bf16.mxu0 0
    %7020 = vmatpush1.bf16.msra.mxu0 0
    %7021 = vmatprep.subr.bf16.mxu0 0
    %7022 = vmatpush1.bf16.msra.mxu0 0
    %7023 = vmatprep.subr.bf16.mxu0 0
    %7024 = vmatpush1.bf16.msra.mxu0 0
    %7025 = vmatprep.subr.bf16.mxu0 0
    %7026 = vmatpush1.bf16.msra.mxu0 0
    %7027 = vmatprep.subr.bf16.mxu0 0
    %7028 = vmatpush1.bf16.msra.mxu0 0
    %7029 = vmatprep.subr.bf16.mxu0 0
    %7030 = vmatpush1.bf16.msra.mxu0 0
    %7031 = vmatprep.subr.bf16.mxu0 0
    %7032 = vmatpush1.bf16.msra.mxu0 0
    %7033 = vmatprep.subr.bf16.mxu0 0
    %7034 = vmatpush1.bf16.msra.mxu0 0
    %7035 = vmatprep.subr.bf16.mxu0 0
    %7036 = vmatpush1.bf16.msra.mxu0 0
    %7037 = vmatprep.subr.bf16.mxu0 0
    %7038 = vmatpush1.bf16.msra.mxu0 0
    %7039 = vmatprep.mubr.bf16.mxu0 0
    %7040 = vmatmul.mubr.bf16.gmra.mrb[0].mxu0 %v6954
    %v7041 = vpop.f32.mrb[0].mxu0
    %v7042 = vadd.f32 %v6734, %v7041
    %v7043 = vpop.f32.mrb[0].mxu0
    %v7044 = vpop.f32.mrb[0].mxu0
    %v7045 = vadd.f32 %v6737, %v7044
    %v7046 = vpop.f32.mrb[0].mxu0
    %7047 = vmatprep.mubr.bf16.mxu0 0
    %7048 = vmatmul.mubr.bf16.gmra.mrb[0].mxu0 %v6956
    %v7049 = vpop.f32.mrb[0].mxu0
    %v7050 = vadd.f32 %v6742, %v7049
    %v7051 = vpop.f32.mrb[0].mxu0
    %v7052 = vpop.f32.mrb[0].mxu0
    %v7053 = vadd.f32 %v6745, %v7052
    %v7054 = vpop.f32.mrb[0].mxu0
    %7055 = vmatprep.mubr.bf16.mxu0 0
    %7056 = vmatmul.mubr.bf16.gmra.mrb[0].mxu0 %v6958
    %v7057 = vpop.f32.mrb[0].mxu0
    %v7058 = vadd.f32 %v6750, %v7057
    %v7059 = vpop.f32.mrb[0].mxu0
    %v7060 = vpop.f32.mrb[0].mxu0
    %v7061 = vadd.f32 %v6753, %v7060
    %v7062 = vpop.f32.mrb[0].mxu0
    %7063 = vmatprep.mubr.bf16.mxu0 0
    %7064 = vmatmul.mubr.bf16.gmra.mrb[0].mxu0 %v6960
    %v7065 = vpop.f32.mrb[0].mxu0
    %v7066 = vadd.f32 %v6758, %v7065
    %v7067 = vpop.f32.mrb[0].mxu0
    %v7068 = vpop.f32.mrb[0].mxu0
    %v7069 = vadd.f32 %v6761, %v7068
    %v7070 = vpop.f32.mrb[0].mxu0
    %7071 = vmatprep.mubr.bf16.mxu0 0
    %7072 = vmatmul.mubr.bf16.gmra.mrb[0].mxu0 %v6962
    %v7073 = vpop.f32.mrb[0].mxu0
    %v7074 = vadd.f32 %v6766, %v7073
    %v7075 = vpop.f32.mrb[0].mxu0
    %v7076 = vpop.f32.mrb[0].mxu0
    %v7077 = vadd.f32 %v6769, %v7076
    %v7078 = vpop.f32.mrb[0].mxu0
    %7079 = vmatprep.mubr.bf16.mxu0 0
    %7080 = vmatmul.mubr.bf16.gmra.mrb[0].mxu0 %v6964
    %v7081 = vpop.f32.mrb[0].mxu0
    %v7082 = vadd.f32 %v6774, %v7081
    %v7083 = vpop.f32.mrb[0].mxu0
    %v7084 = vpop.f32.mrb[0].mxu0
    %v7085 = vadd.f32 %v6777, %v7084
    %v7086 = vpop.f32.mrb[0].mxu0
    %7087 = vmatprep.mubr.bf16.mxu0 0
    %7088 = vmatmul.mubr.bf16.gmra.mrb[0].mxu0 %v6966
    %v7089 = vpop.f32.mrb[0].mxu0
    %v7090 = vadd.f32 %v6782, %v7089
    %v7091 = vpop.f32.mrb[0].mxu0
    %v7092 = vpop.f32.mrb[0].mxu0
    %v7093 = vadd.f32 %v6785, %v7092
    %v7094 = vpop.f32.mrb[0].mxu0
    %7095 = vmatprep.mubr.bf16.mxu0 0
    %7096 = vmatmul.mubr.bf16.gmra.mrb[0].mxu0 %v6968
    %v7097 = vpop.f32.mrb[0].mxu0
    %v7098 = vadd.f32 %v6790, %v7097
    %v7099 = vpop.f32.mrb[0].mxu0
    %v7100 = vpop.f32.mrb[0].mxu0
    %v7101 = vadd.f32 %v6793, %v7100
    %v7102 = vpop.f32.mrb[0].mxu0
    %7103 = vmatprep.mubr.bf16.mxu0 0
    %7104 = vmatmul.mubr.bf16.gmra.mrb[0].mxu0 %v6970
    %v7105 = vpop.f32.mrb[0].mxu0
    %v7106 = vadd.f32 %v6798, %v7105
    %v7107 = vpop.f32.mrb[0].mxu0
    %v7108 = vpop.f32.mrb[0].mxu0
    %v7109 = vadd.f32 %v6801, %v7108
    %v7110 = vpop.f32.mrb[0].mxu0
    %7111 = vmatprep.mubr.bf16.mxu0 0
    %7112 = vmatmul.mubr.bf16.gmra.mrb[0].mxu0 %v6972
    %v7113 = vpop.f32.mrb[0].mxu0
    %v7114 = vadd.f32 %v6806, %v7113
    %v7115 = vpop.f32.mrb[0].mxu0
    %v7116 = vpop.f32.mrb[0].mxu0
    %v7117 = vadd.f32 %v6809, %v7116
    %v7118 = vpop.f32.mrb[0].mxu0
    %7119 = vmatprep.mubr.bf16.mxu0 0
    %7120 = vmatmul.mubr.bf16.gmra.mrb[0].mxu0 %v6974
    %v7121 = vpop.f32.mrb[0].mxu0
    %v7122 = vadd.f32 %v6814, %v7121
    %v7123 = vpop.f32.mrb[0].mxu0
    %v7124 = vpop.f32.mrb[0].mxu0
    %v7125 = vadd.f32 %v6817, %v7124
    %v7126 = vpop.f32.mrb[0].mxu0
    %7127 = vmatprep.mubr.bf16.mxu0 0
    %7128 = vmatmul.mubr.bf16.gmra.mrb[0].mxu0 %v6976
    %v7129 = vpop.f32.mrb[0].mxu0
    %v7130 = vadd.f32 %v6822, %v7129
    %v7131 = vpop.f32.mrb[0].mxu0
    %v7132 = vpop.f32.mrb[0].mxu0
    %v7133 = vadd.f32 %v6825, %v7132
    %v7134 = vpop.f32.mrb[0].mxu0
    %7135 = vmatprep.mubr.bf16.mxu0 0
    %7136 = vmatmul.mubr.bf16.gmra.mrb[0].mxu0 %v6978
    %v7137 = vpop.f32.mrb[0].mxu0
    %v7138 = vadd.f32 %v6830, %v7137
    %v7139 = vpop.f32.mrb[0].mxu0
    %v7140 = vpop.f32.mrb[0].mxu0
    %v7141 = vadd.f32 %v6833, %v7140
    %v7142 = vpop.f32.mrb[0].mxu0
    %7143 = vmatprep.mubr.bf16.mxu0 0
    %7144 = vmatmul.mubr.bf16.gmra.mrb[0].mxu0 %v6980
    %v7145 = vpop.f32.mrb[0].mxu0
    %v7146 = vadd.f32 %v6838, %v7145
    %v7147 = vpop.f32.mrb[0].mxu0
    %v7148 = vpop.f32.mrb[0].mxu0
    %v7149 = vadd.f32 %v6841, %v7148
    %v7150 = vpop.f32.mrb[0].mxu0
    %7151 = vmatprep.mubr.bf16.mxu0 0
    %7152 = vmatmul.mubr.bf16.gmra.mrb[0].mxu0 %v6982
    %v7153 = vpop.f32.mrb[0].mxu0
    %v7154 = vadd.f32 %v6846, %v7153
    %v7155 = vpop.f32.mrb[0].mxu0
    %v7156 = vpop.f32.mrb[0].mxu0
    %v7157 = vadd.f32 %v6849, %v7156
    %v7158 = vpop.f32.mrb[0].mxu0
    %7159 = vmatprep.mubr.bf16.mxu0 0
    %7160 = vmatmul.mubr.bf16.gmra.mrb[0].mxu0 %v6984
    %v7161 = vpop.f32.mrb[0].mxu0
    %v7162 = vadd.f32 %v6854, %v7161
    %v7163 = vpop.f32.mrb[0].mxu0
    %v7164 = vpop.f32.mrb[0].mxu0
    %v7165 = vadd.f32 %v6857, %v7164
    %v7166 = vpop.f32.mrb[0].mxu0
    %7167 = vmatprep.mubr.bf16.mxu0 0
    %7168 = vmatmul.mubr.bf16.gmra.mrb[0].mxu0 %v6986
    %v7169 = vpop.f32.mrb[0].mxu0
    %v7170 = vadd.f32 %v6862, %v7169
    %v7171 = vpop.f32.mrb[0].mxu0
    %v7172 = vpop.f32.mrb[0].mxu0
    %v7173 = vadd.f32 %v6865, %v7172
    %v7174 = vpop.f32.mrb[0].mxu0
    %7175 = vmatprep.mubr.bf16.mxu0 0
    %7176 = vmatmul.mubr.bf16.gmra.mrb[0].mxu0 %v6988
    %v7177 = vpop.f32.mrb[0].mxu0
    %v7178 = vadd.f32 %v6870, %v7177
    %v7179 = vpop.f32.mrb[0].mxu0
    %v7180 = vpop.f32.mrb[0].mxu0
    %v7181 = vadd.f32 %v6873, %v7180
    %v7182 = vpop.f32.mrb[0].mxu0
    %7183 = vmatprep.mubr.bf16.mxu0 0
    %7184 = vmatmul.mubr.bf16.gmra.mrb[0].mxu0 %v6990
    %v7185 = vpop.f32.mrb[0].mxu0
    %v7186 = vadd.f32 %v6878, %v7185
    %v7187 = vpop.f32.mrb[0].mxu0
    %v7188 = vpop.f32.mrb[0].mxu0
    %v7189 = vadd.f32 %v6881, %v7188
    %v7190 = vpop.f32.mrb[0].mxu0
    %7191 = vmatprep.mubr.bf16.mxu0 0
    %7192 = vmatmul.mubr.bf16.gmra.mrb[0].mxu0 %v6992
    %v7193 = vpop.f32.mrb[0].mxu0
    %v7194 = vadd.f32 %v6886, %v7193
    %v7195 = vpop.f32.mrb[0].mxu0
    %v7196 = vpop.f32.mrb[0].mxu0
    %v7197 = vadd.f32 %v6889, %v7196
    %v7198 = vpop.f32.mrb[0].mxu0
    %7199 = vmatprep.mubr.bf16.mxu0 0
    %7200 = vmatmul.mubr.bf16.gmra.mrb[0].mxu0 %v6994
    %v7201 = vpop.f32.mrb[0].mxu0
    %v7202 = vadd.f32 %v6894, %v7201
    %v7203 = vpop.f32.mrb[0].mxu0
    %v7204 = vpop.f32.mrb[0].mxu0
    %v7205 = vadd.f32 %v6897, %v7204
    %v7206 = vpop.f32.mrb[0].mxu0
    %7207 = vmatprep.mubr.bf16.mxu0 0
    %7208 = vmatmul.mubr.bf16.gmra.mrb[0].mxu0 %v6996
    %v7209 = vpop.f32.mrb[0].mxu0
    %v7210 = vadd.f32 %v6902, %v7209
    %v7211 = vpop.f32.mrb[0].mxu0
    %v7212 = vpop.f32.mrb[0].mxu0
    %v7213 = vadd.f32 %v6905, %v7212
    %v7214 = vpop.f32.mrb[0].mxu0
    %7215 = vmatprep.mubr.bf16.mxu0 0
    %7216 = vmatmul.mubr.bf16.gmra.mrb[0].mxu0 %v6998
    %v7217 = vpop.f32.mrb[0].mxu0
    %v7218 = vadd.f32 %v6910, %v7217
    %v7219 = vpop.f32.mrb[0].mxu0
    %v7220 = vpop.f32.mrb[0].mxu0
    %v7221 = vadd.f32 %v6913, %v7220
    %v7222 = vpop.f32.mrb[0].mxu0
    %7223 = vmatprep.mubr.bf16.mxu0 0
    %7224 = vmatmul.mubr.bf16.gmra.mrb[0].mxu0 %v7000
    %v7225 = vpop.f32.mrb[0].mxu0
    %v7226 = vadd.f32 %v6918, %v7225
    %v7227 = vpop.f32.mrb[0].mxu0
    %v7228 = vpop.f32.mrb[0].mxu0
    %v7229 = vadd.f32 %v6921, %v7228
    %v7230 = vpop.f32.mrb[0].mxu0
    %7231 = vmatprep.mubr.bf16.mxu0 0
    %7232 = vmatmul.mubr.bf16.gmra.mrb[0].mxu0 %v7002
    %v7233 = vpop.f32.mrb[0].mxu0
    %v7234 = vadd.f32 %v6926, %v7233
    %v7235 = vpop.f32.mrb[0].mxu0
    %v7236 = vpop.f32.mrb[0].mxu0
    %v7237 = vadd.f32 %v6929, %v7236
    %v7238 = vpop.f32.mrb[0].mxu0
    %7239 = vmatprep.mubr.bf16.mxu0 0
    %7240 = vmatmul.mubr.bf16.gmra.mrb[0].mxu0 %v7005
    %v7241 = vpop.f32.mrb[0].mxu0
    %v7242 = vadd.f32 %v6934, %v7241
    %v7243 = vpop.f32.mrb[0].mxu0
    %v7244 = vpop.f32.mrb[0].mxu0
    %v7245 = vpop.f32.mrb[0].mxu0
    %7246 = vdwg.mxu0
    %v7247 = vld [vmem:[#allocation2] sm:$0xe]
    %s7248 = scalar_lea.vmem %s5, 32
    %v7249 = vld [vmem:[%s7248] sm:$0xf]
    %v7250 = vld [vmem:[%s7248 + $0x4] sm:$0xf]
    %v7251 = vld [vmem:[%s7248 + $0x8] sm:$0xf]
    %v7252 = vld [vmem:[%s7248 + $0xc] sm:$0xf]
    %v7254 = vunpack.c.l.b16 %v7247
    %v7255 = vpack.c.b16 %v6325, %v7254
    %vm7256 = vcmask 1046528
    %v7257 = vrot.slane %v7255, 1
    %v7258 = vrot.slane %v6376, 1
    %v7259 = vsel %vm7256, %v7257, %v7258
    %v7260 = vrot.slane %v6377, 1
    %v7261 = vsel %vm7256, %v7258, %v7260
    %v7262 = vrot.slane %v6378, 1
    %v7263 = vsel %vm7256, %v7260, %v7262
    %v7264 = vrot.slane %v6379, 1
    %v7265 = vsel %vm7256, %v7262, %v7264
    %v7266 = vrot.slane %v6380, 1
    %v7267 = vsel %vm7256, %v7264, %v7266
    %v7268 = vrot.slane %v6381, 1
    %v7269 = vsel %vm7256, %v7266, %v7268
    %v7270 = vrot.slane %v6382, 1
    %v7271 = vsel %vm7256, %v7268, %v7270
    %v7272 = vrot.slane %v6383, 1
    %v7273 = vsel %vm7256, %v7270, %v7272
    %v7274 = vrot.slane %v6384, 1
    %v7275 = vsel %vm7256, %v7272, %v7274
    %v7276 = vrot.slane %v6385, 1
    %v7277 = vsel %vm7256, %v7274, %v7276
    %v7278 = vrot.slane %v6386, 1
    %v7279 = vsel %vm7256, %v7276, %v7278
    %v7280 = vrot.slane %v6387, 1
    %v7281 = vsel %vm7256, %v7278, %v7280
    %v7282 = vrot.slane %v6388, 1
    %v7283 = vsel %vm7256, %v7280, %v7282
    %v7284 = vrot.slane %v6389, 1
    %v7285 = vsel %vm7256, %v7282, %v7284
    %v7286 = vrot.slane %v6390, 1
    %v7287 = vsel %vm7256, %v7284, %v7286
    %v7288 = vrot.slane %v6391, 1
    %v7289 = vsel %vm7256, %v7286, %v7288
    %v7290 = vrot.slane %v6392, 1
    %v7291 = vsel %vm7256, %v7288, %v7290
    %v7292 = vrot.slane %v6393, 1
    %v7293 = vsel %vm7256, %v7290, %v7292
    %v7294 = vrot.slane %v6394, 1
    %v7295 = vsel %vm7256, %v7292, %v7294
    %v7296 = vrot.slane %v6395, 1
    %v7297 = vsel %vm7256, %v7294, %v7296
    %v7298 = vrot.slane %v6396, 1
    %v7299 = vsel %vm7256, %v7296, %v7298
    %v7300 = vrot.slane %v6397, 1
    %v7301 = vsel %vm7256, %v7298, %v7300
    %v7302 = vrot.slane %v6398, 1
    %v7303 = vsel %vm7256, %v7300, %v7302
    %v7304 = vrot.slane %v6399, 1
    %v7305 = vsel %vm7256, %v7302, %v7304
    %v7306 = vrot.slane %v6400, 1
    %v7307 = vsel %vm7256, %v7304, %v7306
    %v7312 = vunpack.c.l.b16 %v7249
    %v7313 = vunpack.c.l.b16 %v7250
    %v7314 = vunpack.c.l.b16 %v7251
    %v7315 = vunpack.c.l.b16 %v7252
    %v7316 = vpack.c.b16 %v7313, %v7312
    %v7317 = vpack.c.b16 %v7315, %v7314
    %v7321 = vsel %vm5323, %v7259, 0
    %v7324 = vsel %vm5323, %v7261, 0
    %v7327 = vsel %vm5323, %v7263, 0
    %v7330 = vsel %vm5323, %v7265, 0
    %v7333 = vsel %vm5323, %v7267, 0
    %v7336 = vsel %vm5323, %v7269, 0
    %v7339 = vsel %vm5323, %v7271, 0
    %v7342 = vsel %vm5323, %v7273, 0
    %v7345 = vsel %vm5323, %v7275, 0
    %v7348 = vsel %vm5323, %v7277, 0
    %v7351 = vsel %vm5323, %v7279, 0
    %v7354 = vsel %vm5323, %v7281, 0
    %v7357 = vsel %vm5323, %v7283, 0
    %v7360 = vsel %vm5323, %v7285, 0
    %v7363 = vsel %vm5323, %v7287, 0
    %v7366 = vsel %vm5323, %v7289, 0
    %v7369 = vsel %vm5323, %v7291, 0
    %v7372 = vsel %vm5323, %v7293, 0
    %v7375 = vsel %vm5323, %v7295, 0
    %v7378 = vsel %vm5323, %v7297, 0
    %v7381 = vsel %vm5323, %v7299, 0
    %v7384 = vsel %vm5323, %v7301, 0
    %v7387 = vsel %vm5323, %v7303, 0
    %v7390 = vsel %vm5323, %v7305, 0
    %v7393 = vsel %vm5323, %v7307, 0
    %v7396 = vsel %vm5323, %v7306, 0
    %7398 = vmatprep.subr.bf16.mxu0 0
    %7399 = vmatpush1.bf16.msra.mxu0 %v7316
    %7400 = vmatprep.subr.bf16.mxu0 0
    %7401 = vmatpush1.bf16.msra.mxu0 %v7317
    %7402 = vmatprep.subr.bf16.mxu0 0
    %7403 = vmatpush1.bf16.msra.mxu0 0
    %7404 = vmatprep.subr.bf16.mxu0 0
    %7405 = vmatpush1.bf16.msra.mxu0 0
    %7406 = vmatprep.subr.bf16.mxu0 0
    %7407 = vmatpush1.bf16.msra.mxu0 0
    %7408 = vmatprep.subr.bf16.mxu0 0
    %7409 = vmatpush1.bf16.msra.mxu0 0
    %7410 = vmatprep.subr.bf16.mxu0 0
    %7411 = vmatpush1.bf16.msra.mxu0 0
    %7412 = vmatprep.subr.bf16.mxu0 0
    %7413 = vmatpush1.bf16.msra.mxu0 0
    %7414 = vmatprep.subr.bf16.mxu0 0
    %7415 = vmatpush1.bf16.msra.mxu0 0
    %7416 = vmatprep.subr.bf16.mxu0 0
    %7417 = vmatpush1.bf16.msra.mxu0 0
    %7418 = vmatprep.subr.bf16.mxu0 0
    %7419 = vmatpush1.bf16.msra.mxu0 0
    %7420 = vmatprep.subr.bf16.mxu0 0
    %7421 = vmatpush1.bf16.msra.mxu0 0
    %7422 = vmatprep.subr.bf16.mxu0 0
    %7423 = vmatpush1.bf16.msra.mxu0 0
    %7424 = vmatprep.subr.bf16.mxu0 0
    %7425 = vmatpush1.bf16.msra.mxu0 0
    %7426 = vmatprep.subr.bf16.mxu0 0
    %7427 = vmatpush1.bf16.msra.mxu0 0
    %7428 = vmatprep.subr.bf16.mxu0 0
    %7429 = vmatpush1.bf16.msra.mxu0 0
    %7430 = vmatprep.mubr.bf16.mxu0 0
    %7431 = vmatmul.mubr.bf16.gmra.mrb[0].mxu0 %v7321
    %v7432 = vpop.f32.mrb[0].mxu0
    %v7433 = vadd.f32 0.0, %v7432
    %v7434 = vpop.f32.mrb[0].mxu0
    %v7435 = vpop.f32.mrb[0].mxu0
    %v7436 = vadd.f32 0.0, %v7435
    %v7437 = vpop.f32.mrb[0].mxu0
    %7438 = vmatprep.mubr.bf16.mxu0 0
    %7439 = vmatmul.mubr.bf16.gmra.mrb[0].mxu0 %v7324
    %v7440 = vpop.f32.mrb[0].mxu0
    %v7441 = vadd.f32 0.0, %v7440
    %v7442 = vpop.f32.mrb[0].mxu0
    %v7443 = vpop.f32.mrb[0].mxu0
    %v7444 = vadd.f32 0.0, %v7443
    %v7445 = vpop.f32.mrb[0].mxu0
    %7446 = vmatprep.mubr.bf16.mxu0 0
    %7447 = vmatmul.mubr.bf16.gmra.mrb[0].mxu0 %v7327
    %v7448 = vpop.f32.mrb[0].mxu0
    %v7449 = vadd.f32 0.0, %v7448
    %v7450 = vpop.f32.mrb[0].mxu0
    %v7451 = vpop.f32.mrb[0].mxu0
    %v7452 = vadd.f32 0.0, %v7451
    %v7453 = vpop.f32.mrb[0].mxu0
    %7454 = vmatprep.mubr.bf16.mxu0 0
    %7455 = vmatmul.mubr.bf16.gmra.mrb[0].mxu0 %v7330
    %v7456 = vpop.f32.mrb[0].mxu0
    %v7457 = vadd.f32 0.0, %v7456
    %v7458 = vpop.f32.mrb[0].mxu0
    %v7459 = vpop.f32.mrb[0].mxu0
    %v7460 = vadd.f32 0.0, %v7459
    %v7461 = vpop.f32.mrb[0].mxu0
    %7462 = vmatprep.mubr.bf16.mxu0 0
    %7463 = vmatmul.mubr.bf16.gmra.mrb[0].mxu0 %v7333
    %v7464 = vpop.f32.mrb[0].mxu0
    %v7465 = vadd.f32 0.0, %v7464
    %v7466 = vpop.f32.mrb[0].mxu0
    %v7467 = vpop.f32.mrb[0].mxu0
    %v7468 = vadd.f32 0.0, %v7467
    %v7469 = vpop.f32.mrb[0].mxu0
    %7470 = vmatprep.mubr.bf16.mxu0 0
    %7471 = vmatmul.mubr.bf16.gmra.mrb[0].mxu0 %v7336
    %v7472 = vpop.f32.mrb[0].mxu0
    %v7473 = vadd.f32 0.0, %v7472
    %v7474 = vpop.f32.mrb[0].mxu0
    %v7475 = vpop.f32.mrb[0].mxu0
    %v7476 = vadd.f32 0.0, %v7475
    %v7477 = vpop.f32.mrb[0].mxu0
    %7478 = vmatprep.mubr.bf16.mxu0 0
    %7479 = vmatmul.mubr.bf16.gmra.mrb[0].mxu0 %v7339
    %v7480 = vpop.f32.mrb[0].mxu0
    %v7481 = vadd.f32 0.0, %v7480
    %v7482 = vpop.f32.mrb[0].mxu0
    %v7483 = vpop.f32.mrb[0].mxu0
    %v7484 = vadd.f32 0.0, %v7483
    %v7485 = vpop.f32.mrb[0].mxu0
    %7486 = vmatprep.mubr.bf16.mxu0 0
    %7487 = vmatmul.mubr.bf16.gmra.mrb[0].mxu0 %v7342
    %v7488 = vpop.f32.mrb[0].mxu0
    %v7489 = vadd.f32 0.0, %v7488
    %v7490 = vpop.f32.mrb[0].mxu0
    %v7491 = vpop.f32.mrb[0].mxu0
    %v7492 = vadd.f32 0.0, %v7491
    %v7493 = vpop.f32.mrb[0].mxu0
    %7494 = vmatprep.mubr.bf16.mxu0 0
    %7495 = vmatmul.mubr.bf16.gmra.mrb[0].mxu0 %v7345
    %v7496 = vpop.f32.mrb[0].mxu0
    %v7497 = vadd.f32 0.0, %v7496
    %v7498 = vpop.f32.mrb[0].mxu0
    %v7499 = vpop.f32.mrb[0].mxu0
    %v7500 = vadd.f32 0.0, %v7499
    %v7501 = vpop.f32.mrb[0].mxu0
    %7502 = vmatprep.mubr.bf16.mxu0 0
    %7503 = vmatmul.mubr.bf16.gmra.mrb[0].mxu0 %v7348
    %v7504 = vpop.f32.mrb[0].mxu0
    %v7505 = vadd.f32 0.0, %v7504
    %v7506 = vpop.f32.mrb[0].mxu0
    %v7507 = vpop.f32.mrb[0].mxu0
    %v7508 = vadd.f32 0.0, %v7507
    %v7509 = vpop.f32.mrb[0].mxu0
    %7510 = vmatprep.mubr.bf16.mxu0 0
    %7511 = vmatmul.mubr.bf16.gmra.mrb[0].mxu0 %v7351
    %v7512 = vpop.f32.mrb[0].mxu0
    %v7513 = vadd.f32 0.0, %v7512
    %v7514 = vpop.f32.mrb[0].mxu0
    %v7515 = vpop.f32.mrb[0].mxu0
    %v7516 = vadd.f32 0.0, %v7515
    %v7517 = vpop.f32.mrb[0].mxu0
    %7518 = vmatprep.mubr.bf16.mxu0 0
    %7519 = vmatmul.mubr.bf16.gmra.mrb[0].mxu0 %v7354
    %v7520 = vpop.f32.mrb[0].mxu0
    %v7521 = vadd.f32 0.0, %v7520
    %v7522 = vpop.f32.mrb[0].mxu0
    %v7523 = vpop.f32.mrb[0].mxu0
    %v7524 = vadd.f32 0.0, %v7523
    %v7525 = vpop.f32.mrb[0].mxu0
    %7526 = vmatprep.mubr.bf16.mxu0 0
    %7527 = vmatmul.mubr.bf16.gmra.mrb[0].mxu0 %v7357
    %v7528 = vpop.f32.mrb[0].mxu0
    %v7529 = vadd.f32 0.0, %v7528
    %v7530 = vpop.f32.mrb[0].mxu0
    %v7531 = vpop.f32.mrb[0].mxu0
    %v7532 = vadd.f32 0.0, %v7531
    %v7533 = vpop.f32.mrb[0].mxu0
    %7534 = vmatprep.mubr.bf16.mxu0 0
    %7535 = vmatmul.mubr.bf16.gmra.mrb[0].mxu0 %v7360
    %v7536 = vpop.f32.mrb[0].mxu0
    %v7537 = vadd.f32 0.0, %v7536
    %v7538 = vpop.f32.mrb[0].mxu0
    %v7539 = vpop.f32.mrb[0].mxu0
    %v7540 = vadd.f32 0.0, %v7539
    %v7541 = vpop.f32.mrb[0].mxu0
    %7542 = vmatprep.mubr.bf16.mxu0 0
    %7543 = vmatmul.mubr.bf16.gmra.mrb[0].mxu0 %v7363
    %v7544 = vpop.f32.mrb[0].mxu0
    %v7545 = vadd.f32 0.0, %v7544
    %v7546 = vpop.f32.mrb[0].mxu0
    %v7547 = vpop.f32.mrb[0].mxu0
    %v7548 = vadd.f32 0.0, %v7547
    %v7549 = vpop.f32.mrb[0].mxu0
    %7550 = vmatprep.mubr.bf16.mxu0 0
    %7551 = vmatmul.mubr.bf16.gmra.mrb[0].mxu0 %v7366
    %v7552 = vpop.f32.mrb[0].mxu0
    %v7553 = vadd.f32 0.0, %v7552
    %v7554 = vpop.f32.mrb[0].mxu0
    %v7555 = vpop.f32.mrb[0].mxu0
    %v7556 = vadd.f32 0.0, %v7555
    %v7557 = vpop.f32.mrb[0].mxu0
    %7558 = vmatprep.mubr.bf16.mxu0 0
    %7559 = vmatmul.mubr.bf16.gmra.mrb[0].mxu0 %v7369
    %v7560 = vpop.f32.mrb[0].mxu0
    %v7561 = vadd.f32 0.0, %v7560
    %v7562 = vpop.f32.mrb[0].mxu0
    %v7563 = vpop.f32.mrb[0].mxu0
    %v7564 = vadd.f32 0.0, %v7563
    %v7565 = vpop.f32.mrb[0].mxu0
    %7566 = vmatprep.mubr.bf16.mxu0 0
    %7567 = vmatmul.mubr.bf16.gmra.mrb[0].mxu0 %v7372
    %v7568 = vpop.f32.mrb[0].mxu0
    %v7569 = vadd.f32 0.0, %v7568
    %v7570 = vpop.f32.mrb[0].mxu0
    %v7571 = vpop.f32.mrb[0].mxu0
    %v7572 = vadd.f32 0.0, %v7571
    %v7573 = vpop.f32.mrb[0].mxu0
    %7574 = vmatprep.mubr.bf16.mxu0 0
    %7575 = vmatmul.mubr.bf16.gmra.mrb[0].mxu0 %v7375
    %v7576 = vpop.f32.mrb[0].mxu0
    %v7577 = vadd.f32 0.0, %v7576
    %v7578 = vpop.f32.mrb[0].mxu0
    %v7579 = vpop.f32.mrb[0].mxu0
    %v7580 = vadd.f32 0.0, %v7579
    %v7581 = vpop.f32.mrb[0].mxu0
    %7582 = vmatprep.mubr.bf16.mxu0 0
    %7583 = vmatmul.mubr.bf16.gmra.mrb[0].mxu0 %v7378
    %v7584 = vpop.f32.mrb[0].mxu0
    %v7585 = vadd.f32 0.0, %v7584
    %v7586 = vpop.f32.mrb[0].mxu0
    %v7587 = vpop.f32.mrb[0].mxu0
    %v7588 = vadd.f32 0.0, %v7587
    %v7589 = vpop.f32.mrb[0].mxu0
    %7590 = vmatprep.mubr.bf16.mxu0 0
    %7591 = vmatmul.mubr.bf16.gmra.mrb[0].mxu0 %v7381
    %v7592 = vpop.f32.mrb[0].mxu0
    %v7593 = vadd.f32 0.0, %v7592
    %v7594 = vpop.f32.mrb[0].mxu0
    %v7595 = vpop.f32.mrb[0].mxu0
    %v7596 = vadd.f32 0.0, %v7595
    %v7597 = vpop.f32.mrb[0].mxu0
    %7598 = vmatprep.mubr.bf16.mxu0 0
    %7599 = vmatmul.mubr.bf16.gmra.mrb[0].mxu0 %v7384
    %v7600 = vpop.f32.mrb[0].mxu0
    %v7601 = vadd.f32 0.0, %v7600
    %v7602 = vpop.f32.mrb[0].mxu0
    %v7603 = vpop.f32.mrb[0].mxu0
    %v7604 = vadd.f32 0.0, %v7603
    %v7605 = vpop.f32.mrb[0].mxu0
    %7606 = vmatprep.mubr.bf16.mxu0 0
    %7607 = vmatmul.mubr.bf16.gmra.mrb[0].mxu0 %v7387
    %v7608 = vpop.f32.mrb[0].mxu0
    %v7609 = vadd.f32 0.0, %v7608
    %v7610 = vpop.f32.mrb[0].mxu0
    %v7611 = vpop.f32.mrb[0].mxu0
    %v7612 = vadd.f32 0.0, %v7611
    %v7613 = vpop.f32.mrb[0].mxu0
    %7614 = vmatprep.mubr.bf16.mxu0 0
    %7615 = vmatmul.mubr.bf16.gmra.mrb[0].mxu0 %v7390
    %v7616 = vpop.f32.mrb[0].mxu0
    %v7617 = vadd.f32 0.0, %v7616
    %v7618 = vpop.f32.mrb[0].mxu0
    %v7619 = vpop.f32.mrb[0].mxu0
    %v7620 = vadd.f32 0.0, %v7619
    %v7621 = vpop.f32.mrb[0].mxu0
    %7622 = vmatprep.mubr.bf16.mxu0 0
    %7623 = vmatmul.mubr.bf16.gmra.mrb[0].mxu0 %v7393
    %v7624 = vpop.f32.mrb[0].mxu0
    %v7625 = vadd.f32 0.0, %v7624
    %v7626 = vpop.f32.mrb[0].mxu0
    %v7627 = vpop.f32.mrb[0].mxu0
    %v7628 = vadd.f32 0.0, %v7627
    %v7629 = vpop.f32.mrb[0].mxu0
    %7630 = vmatprep.mubr.bf16.mxu0 0
    %7631 = vmatmul.mubr.bf16.gmra.mrb[0].mxu0 %v7396
    %v7632 = vpop.f32.mrb[0].mxu0
    %v7633 = vadd.f32 0.0, %v7632
    %v7634 = vpop.f32.mrb[0].mxu0
    %v7635 = vpop.f32.mrb[0].mxu0
    %v7636 = vpop.f32.mrb[0].mxu0
    %7637 = vdwg.mxu0
    %v7638 = vadd.f32 %v7042, %v7433
    %v7639 = vadd.f32 %v7045, %v7436
    %v7640 = vadd.f32 %v7050, %v7441
    %v7641 = vadd.f32 %v7053, %v7444
    %v7642 = vadd.f32 %v7058, %v7449
    %v7643 = vadd.f32 %v7061, %v7452
    %v7644 = vadd.f32 %v7066, %v7457
    %v7645 = vadd.f32 %v7069, %v7460
    %v7646 = vadd.f32 %v7074, %v7465
    %v7647 = vadd.f32 %v7077, %v7468
    %v7648 = vadd.f32 %v7082, %v7473
    %v7649 = vadd.f32 %v7085, %v7476
    %v7650 = vadd.f32 %v7090, %v7481
    %v7651 = vadd.f32 %v7093, %v7484
    %v7652 = vadd.f32 %v7098, %v7489
    %v7653 = vadd.f32 %v7101, %v7492
    %v7654 = vadd.f32 %v7106, %v7497
    %v7655 = vadd.f32 %v7109, %v7500
    %v7656 = vadd.f32 %v7114, %v7505
    %v7657 = vadd.f32 %v7117, %v7508
    %v7658 = vadd.f32 %v7122, %v7513
    %v7659 = vadd.f32 %v7125, %v7516
    %v7660 = vadd.f32 %v7130, %v7521
    %v7661 = vadd.f32 %v7133, %v7524
    %v7662 = vadd.f32 %v7138, %v7529
    %v7663 = vadd.f32 %v7141, %v7532
    %v7664 = vadd.f32 %v7146, %v7537
    %v7665 = vadd.f32 %v7149, %v7540
    %v7666 = vadd.f32 %v7154, %v7545
    %v7667 = vadd.f32 %v7157, %v7548
    %v7668 = vadd.f32 %v7162, %v7553
    %v7669 = vadd.f32 %v7165, %v7556
    %v7670 = vadd.f32 %v7170, %v7561
    %v7671 = vadd.f32 %v7173, %v7564
    %v7672 = vadd.f32 %v7178, %v7569
    %v7673 = vadd.f32 %v7181, %v7572
    %v7674 = vadd.f32 %v7186, %v7577
    %v7675 = vadd.f32 %v7189, %v7580
    %v7676 = vadd.f32 %v7194, %v7585
    %v7677 = vadd.f32 %v7197, %v7588
    %v7678 = vadd.f32 %v7202, %v7593
    %v7679 = vadd.f32 %v7205, %v7596
    %v7680 = vadd.f32 %v7210, %v7601
    %v7681 = vadd.f32 %v7213, %v7604
    %v7682 = vadd.f32 %v7218, %v7609
    %v7683 = vadd.f32 %v7221, %v7612
    %v7684 = vadd.f32 %v7226, %v7617
    %v7685 = vadd.f32 %v7229, %v7620
    %v7686 = vadd.f32 %v7234, %v7625
    %v7687 = vadd.f32 %v7237, %v7628
    %v7688 = vadd.f32 %v7242, %v7633
    %v7689 = vld [vmem:[#allocation2 + $0x4] sm:$0x8]
    %v7690 = vld [vmem:[#allocation2 + $0x8] sm:$0xf]
    %v7691 = vld [vmem:[#allocation2 + $0xc] sm:$0xf]
    %v7692 = vld [vmem:[#allocation2 + $0x10] sm:$0xf]
    %v7693 = vld [vmem:[#allocation2 + $0x14] sm:$0xf]
    %v7694 = vld [vmem:[#allocation2 + $0x18] sm:$0xf]
    %v7695 = vld [vmem:[#allocation2 + $0x1c] sm:$0xf]
    %v7696 = vld [vmem:[#allocation2 + $0x20] sm:$0xf]
    %v7697 = vld [vmem:[#allocation2 + $0x24] sm:$0xf]
    %v7698 = vld [vmem:[#allocation2 + $0x28] sm:$0xf]
    %v7699 = vld [vmem:[#allocation2 + $0x2c] sm:$0xf]
    %v7700 = vld [vmem:[#allocation2 + $0x30] sm:$0xf]
    %v7701 = vld [vmem:[#allocation2 + $0x34] sm:$0xf]
    %v7702 = vld [vmem:[#allocation2 + $0x38] sm:$0xf]
    %v7703 = vld [vmem:[#allocation2 + $0x3c] sm:$0xf]
    %v7704 = vld [vmem:[#allocation2 + $0x40] sm:$0xf]
    %v7705 = vld [vmem:[#allocation2 + $0x44] sm:$0xf]
    %v7706 = vld [vmem:[#allocation2 + $0x48] sm:$0xf]
    %v7707 = vld [vmem:[#allocation2 + $0x4c] sm:$0xf]
    %v7708 = vld [vmem:[#allocation2 + $0x50] sm:$0xf]
    %v7709 = vld [vmem:[#allocation2 + $0x54] sm:$0xf]
    %v7710 = vld [vmem:[#allocation2 + $0x58] sm:$0xf]
    %v7711 = vld [vmem:[#allocation2 + $0x5c] sm:$0xf]
    %v7712 = vld [vmem:[#allocation2 + $0x60] sm:$0xf]
    %v7713 = vld [vmem:[#allocation2 + $0x64] sm:$0xf]
    %v7714 = vld [vmem:[#allocation2 + $0x68] sm:$0xf]
    %v7715 = vld [vmem:[#allocation2 + $0x6c] sm:$0xf]
    %v7716 = vld [vmem:[#allocation2 + $0x70] sm:$0xf]
    %v7717 = vld [vmem:[#allocation2 + $0x74] sm:$0xf]
    %v7718 = vld [vmem:[#allocation2 + $0x78] sm:$0xf]
    %v7719 = vld [vmem:[#allocation2 + $0x7c] sm:$0xf]
    %v7720 = vld [vmem:[#allocation2 + $0x80] sm:$0xf]
    %v7721 = vld [vmem:[#allocation2 + $0x84] sm:$0xf]
    %v7722 = vld [vmem:[#allocation2 + $0x88] sm:$0xf]
    %v7723 = vld [vmem:[#allocation2 + $0x8c] sm:$0xf]
    %v7724 = vld [vmem:[#allocation2 + $0x90] sm:$0xf]
    %v7725 = vld [vmem:[#allocation2 + $0x94] sm:$0xf]
    %v7726 = vld [vmem:[#allocation2 + $0x98] sm:$0xf]
    %v7727 = vld [vmem:[#allocation2 + $0x9c] sm:$0xf]
    %v7728 = vld [vmem:[#allocation2 + $0xa0] sm:$0xf]
    %v7729 = vld [vmem:[#allocation2 + $0xa4] sm:$0xf]
    %v7730 = vld [vmem:[#allocation2 + $0xa8] sm:$0xf]
    %v7731 = vld [vmem:[#allocation2 + $0xac] sm:$0xf]
    %v7732 = vld [vmem:[#allocation2 + $0xb0] sm:$0xf]
    %v7733 = vld [vmem:[#allocation2 + $0xb4] sm:$0xf]
    %v7734 = vld [vmem:[#allocation2 + $0xb8] sm:$0xf]
    %v7735 = vld [vmem:[#allocation2 + $0xbc] sm:$0xf]
    %v7736 = vld [vmem:[#allocation2 + $0xc0] sm:$0xf]
    %v7737 = vld [vmem:[#allocation2 + $0xc4] sm:$0xf]
    %v7738 = vld [vmem:[#allocation2 + $0xc8] sm:$0xf]
    %v7739 = vld [vmem:[#allocation2 + $0xcc] sm:$0xf]
    %v7740 = vld [vmem:[#allocation2 + $0xd0] sm:$0x1]
    %s7741 = scalar_lea.vmem %s5, 48
    %v7742 = vld [vmem:[%s7741] sm:$0xf]
    %v7743 = vld [vmem:[%s7741 + $0x4] sm:$0xf]
    %v7744 = vld [vmem:[%s7741 + $0x8] sm:$0xf]
    %v7745 = vld [vmem:[%s7741 + $0xc] sm:$0xf]
    %v7798 = vunpack.c.l.b16 %v7689
    %v7799 = vunpack.c.l.b16 %v7690
    %v7800 = vunpack.c.l.b16 %v7691
    %v7801 = vunpack.c.l.b16 %v7692
    %v7802 = vunpack.c.l.b16 %v7693
    %v7803 = vunpack.c.l.b16 %v7694
    %v7804 = vunpack.c.l.b16 %v7695
    %v7805 = vunpack.c.l.b16 %v7696
    %v7806 = vunpack.c.l.b16 %v7697
    %v7807 = vunpack.c.l.b16 %v7698
    %v7808 = vunpack.c.l.b16 %v7699
    %v7809 = vunpack.c.l.b16 %v7700
    %v7810 = vunpack.c.l.b16 %v7701
    %v7811 = vunpack.c.l.b16 %v7702
    %v7812 = vunpack.c.l.b16 %v7703
    %v7813 = vunpack.c.l.b16 %v7704
    %v7814 = vunpack.c.l.b16 %v7705
    %v7815 = vunpack.c.l.b16 %v7706
    %v7816 = vunpack.c.l.b16 %v7707
    %v7817 = vunpack.c.l.b16 %v7708
    %v7818 = vunpack.c.l.b16 %v7709
    %v7819 = vunpack.c.l.b16 %v7710
    %v7820 = vunpack.c.l.b16 %v7711
    %v7821 = vunpack.c.l.b16 %v7712
    %v7822 = vunpack.c.l.b16 %v7713
    %v7823 = vunpack.c.l.b16 %v7714
    %v7824 = vunpack.c.l.b16 %v7715
    %v7825 = vunpack.c.l.b16 %v7716
    %v7826 = vunpack.c.l.b16 %v7717
    %v7827 = vunpack.c.l.b16 %v7718
    %v7828 = vunpack.c.l.b16 %v7719
    %v7829 = vunpack.c.l.b16 %v7720
    %v7830 = vunpack.c.l.b16 %v7721
    %v7831 = vunpack.c.l.b16 %v7722
    %v7832 = vunpack.c.l.b16 %v7723
    %v7833 = vunpack.c.l.b16 %v7724
    %v7834 = vunpack.c.l.b16 %v7725
    %v7835 = vunpack.c.l.b16 %v7726
    %v7836 = vunpack.c.l.b16 %v7727
    %v7837 = vunpack.c.l.b16 %v7728
    %v7838 = vunpack.c.l.b16 %v7729
    %v7839 = vunpack.c.l.b16 %v7730
    %v7840 = vunpack.c.l.b16 %v7731
    %v7841 = vunpack.c.l.b16 %v7732
    %v7842 = vunpack.c.l.b16 %v7733
    %v7843 = vunpack.c.l.b16 %v7734
    %v7844 = vunpack.c.l.b16 %v7735
    %v7845 = vunpack.c.l.b16 %v7736
    %v7846 = vunpack.c.l.b16 %v7737
    %v7847 = vunpack.c.l.b16 %v7738
    %v7848 = vunpack.c.l.b16 %v7739
    %v7849 = vunpack.c.l.b16 %v7740
    %v7850 = vpack.c.b16 %v7799, %v7798
    %v7851 = vpack.c.b16 %v7801, %v7800
    %v7852 = vpack.c.b16 %v7803, %v7802
    %v7853 = vpack.c.b16 %v7805, %v7804
    %v7854 = vpack.c.b16 %v7807, %v7806
    %v7855 = vpack.c.b16 %v7809, %v7808
    %v7856 = vpack.c.b16 %v7811, %v7810
    %v7857 = vpack.c.b16 %v7813, %v7812
    %v7858 = vpack.c.b16 %v7815, %v7814
    %v7859 = vpack.c.b16 %v7817, %v7816
    %v7860 = vpack.c.b16 %v7819, %v7818
    %v7861 = vpack.c.b16 %v7821, %v7820
    %v7862 = vpack.c.b16 %v7823, %v7822
    %v7863 = vpack.c.b16 %v7825, %v7824
    %v7864 = vpack.c.b16 %v7827, %v7826
    %v7865 = vpack.c.b16 %v7829, %v7828
    %v7866 = vpack.c.b16 %v7831, %v7830
    %v7867 = vpack.c.b16 %v7833, %v7832
    %v7868 = vpack.c.b16 %v7835, %v7834
    %v7869 = vpack.c.b16 %v7837, %v7836
    %v7870 = vpack.c.b16 %v7839, %v7838
    %v7871 = vpack.c.b16 %v7841, %v7840
    %v7872 = vpack.c.b16 %v7843, %v7842
    %v7873 = vpack.c.b16 %v7845, %v7844
    %v7874 = vpack.c.b16 %v7847, %v7846
    %v7875 = vpack.c.b16 %v7849, %v7848
    %vm7876 = vsmask.f32 4352
    %v7878 = vshrl.u32 %v7850, 16
    %v7880 = vrot.slane %v7878, 3
    %v7881 = vshll.u32 %v7850, 16
    %v7883 = vrot.slane %v7881, 4
    %v7884 = vor.u32 %v7880, %v7883
    %v7886 = vshrl.u32 %v7851, 16
    %v7888 = vrot.slane %v7886, 3
    %v7889 = vshll.u32 %v7851, 16
    %v7891 = vrot.slane %v7889, 4
    %v7892 = vor.u32 %v7888, %v7891
    %v7893 = vsel %vm7876, %v7884, %v7892
    %v7895 = vshrl.u32 %v7852, 16
    %v7897 = vrot.slane %v7895, 3
    %v7898 = vshll.u32 %v7852, 16
    %v7900 = vrot.slane %v7898, 4
    %v7901 = vor.u32 %v7897, %v7900
    %v7902 = vsel %vm7876, %v7892, %v7901
    %v7904 = vshrl.u32 %v7853, 16
    %v7906 = vrot.slane %v7904, 3
    %v7907 = vshll.u32 %v7853, 16
    %v7909 = vrot.slane %v7907, 4
    %v7910 = vor.u32 %v7906, %v7909
    %v7911 = vsel %vm7876, %v7901, %v7910
    %v7913 = vshrl.u32 %v7854, 16
    %v7915 = vrot.slane %v7913, 3
    %v7916 = vshll.u32 %v7854, 16
    %v7918 = vrot.slane %v7916, 4
    %v7919 = vor.u32 %v7915, %v7918
    %v7920 = vsel %vm7876, %v7910, %v7919
    %v7922 = vshrl.u32 %v7855, 16
    %v7924 = vrot.slane %v7922, 3
    %v7925 = vshll.u32 %v7855, 16
    %v7927 = vrot.slane %v7925, 4
    %v7928 = vor.u32 %v7924, %v7927
    %v7929 = vsel %vm7876, %v7919, %v7928
    %v7931 = vshrl.u32 %v7856, 16
    %v7933 = vrot.slane %v7931, 3
    %v7934 = vshll.u32 %v7856, 16
    %v7936 = vrot.slane %v7934, 4
    %v7937 = vor.u32 %v7933, %v7936
    %v7938 = vsel %vm7876, %v7928, %v7937
    %v7940 = vshrl.u32 %v7857, 16
    %v7942 = vrot.slane %v7940, 3
    %v7943 = vshll.u32 %v7857, 16
    %v7945 = vrot.slane %v7943, 4
    %v7946 = vor.u32 %v7942, %v7945
    %v7947 = vsel %vm7876, %v7937, %v7946
    %v7949 = vshrl.u32 %v7858, 16
    %v7951 = vrot.slane %v7949, 3
    %v7952 = vshll.u32 %v7858, 16
    %v7954 = vrot.slane %v7952, 4
    %v7955 = vor.u32 %v7951, %v7954
    %v7956 = vsel %vm7876, %v7946, %v7955
    %v7958 = vshrl.u32 %v7859, 16
    %v7960 = vrot.slane %v7958, 3
    %v7961 = vshll.u32 %v7859, 16
    %v7963 = vrot.slane %v7961, 4
    %v7964 = vor.u32 %v7960, %v7963
    %v7965 = vsel %vm7876, %v7955, %v7964
    %v7967 = vshrl.u32 %v7860, 16
    %v7969 = vrot.slane %v7967, 3
    %v7970 = vshll.u32 %v7860, 16
    %v7972 = vrot.slane %v7970, 4
    %v7973 = vor.u32 %v7969, %v7972
    %v7974 = vsel %vm7876, %v7964, %v7973
    %v7976 = vshrl.u32 %v7861, 16
    %v7978 = vrot.slane %v7976, 3
    %v7979 = vshll.u32 %v7861, 16
    %v7981 = vrot.slane %v7979, 4
    %v7982 = vor.u32 %v7978, %v7981
    %v7983 = vsel %vm7876, %v7973, %v7982
    %v7985 = vshrl.u32 %v7862, 16
    %v7987 = vrot.slane %v7985, 3
    %v7988 = vshll.u32 %v7862, 16
    %v7990 = vrot.slane %v7988, 4
    %v7991 = vor.u32 %v7987, %v7990
    %v7992 = vsel %vm7876, %v7982, %v7991
    %v7994 = vshrl.u32 %v7863, 16
    %v7996 = vrot.slane %v7994, 3
    %v7997 = vshll.u32 %v7863, 16
    %v7999 = vrot.slane %v7997, 4
    %v8000 = vor.u32 %v7996, %v7999
    %v8001 = vsel %vm7876, %v7991, %v8000
    %v8003 = vshrl.u32 %v7864, 16
    %v8005 = vrot.slane %v8003, 3
    %v8006 = vshll.u32 %v7864, 16
    %v8008 = vrot.slane %v8006, 4
    %v8009 = vor.u32 %v8005, %v8008
    %v8010 = vsel %vm7876, %v8000, %v8009
    %v8012 = vshrl.u32 %v7865, 16
    %v8014 = vrot.slane %v8012, 3
    %v8015 = vshll.u32 %v7865, 16
    %v8017 = vrot.slane %v8015, 4
    %v8018 = vor.u32 %v8014, %v8017
    %v8019 = vsel %vm7876, %v8009, %v8018
    %v8021 = vshrl.u32 %v7866, 16
    %v8023 = vrot.slane %v8021, 3
    %v8024 = vshll.u32 %v7866, 16
    %v8026 = vrot.slane %v8024, 4
    %v8027 = vor.u32 %v8023, %v8026
    %v8028 = vsel %vm7876, %v8018, %v8027
    %v8030 = vshrl.u32 %v7867, 16
    %v8032 = vrot.slane %v8030, 3
    %v8033 = vshll.u32 %v7867, 16
    %v8035 = vrot.slane %v8033, 4
    %v8036 = vor.u32 %v8032, %v8035
    %v8037 = vsel %vm7876, %v8027, %v8036
    %v8039 = vshrl.u32 %v7868, 16
    %v8041 = vrot.slane %v8039, 3
    %v8042 = vshll.u32 %v7868, 16
    %v8044 = vrot.slane %v8042, 4
    %v8045 = vor.u32 %v8041, %v8044
    %v8046 = vsel %vm7876, %v8036, %v8045
    %v8048 = vshrl.u32 %v7869, 16
    %v8050 = vrot.slane %v8048, 3
    %v8051 = vshll.u32 %v7869, 16
    %v8053 = vrot.slane %v8051, 4
    %v8054 = vor.u32 %v8050, %v8053
    %v8055 = vsel %vm7876, %v8045, %v8054
    %v8057 = vshrl.u32 %v7870, 16
    %v8059 = vrot.slane %v8057, 3
    %v8060 = vshll.u32 %v7870, 16
    %v8062 = vrot.slane %v8060, 4
    %v8063 = vor.u32 %v8059, %v8062
    %v8064 = vsel %vm7876, %v8054, %v8063
    %v8066 = vshrl.u32 %v7871, 16
    %v8068 = vrot.slane %v8066, 3
    %v8069 = vshll.u32 %v7871, 16
    %v8071 = vrot.slane %v8069, 4
    %v8072 = vor.u32 %v8068, %v8071
    %v8073 = vsel %vm7876, %v8063, %v8072
    %v8075 = vshrl.u32 %v7872, 16
    %v8077 = vrot.slane %v8075, 3
    %v8078 = vshll.u32 %v7872, 16
    %v8080 = vrot.slane %v8078, 4
    %v8081 = vor.u32 %v8077, %v8080
    %v8082 = vsel %vm7876, %v8072, %v8081
    %v8084 = vshrl.u32 %v7873, 16
    %v8086 = vrot.slane %v8084, 3
    %v8087 = vshll.u32 %v7873, 16
    %v8089 = vrot.slane %v8087, 4
    %v8090 = vor.u32 %v8086, %v8089
    %v8091 = vsel %vm7876, %v8081, %v8090
    %v8093 = vshrl.u32 %v7874, 16
    %v8095 = vrot.slane %v8093, 3
    %v8096 = vshll.u32 %v7874, 16
    %v8098 = vrot.slane %v8096, 4
    %v8099 = vor.u32 %v8095, %v8098
    %v8100 = vsel %vm7876, %v8090, %v8099
    %v8102 = vshrl.u32 %v7875, 16
    %v8104 = vrot.slane %v8102, 3
    %v8105 = vshll.u32 %v7875, 16
    %v8107 = vrot.slane %v8105, 4
    %v8108 = vor.u32 %v8104, %v8107
    %v8109 = vsel %vm7876, %v8099, %v8108
    %v8114 = vunpack.c.l.b16 %v7742
    %v8115 = vunpack.c.l.b16 %v7743
    %v8116 = vunpack.c.l.b16 %v7744
    %v8117 = vunpack.c.l.b16 %v7745
    %v8118 = vpack.c.b16 %v8115, %v8114
    %v8119 = vpack.c.b16 %v8117, %v8116
    %v8123 = vsel %vm5323, %v7893, 0
    %v8126 = vsel %vm5323, %v7902, 0
    %v8129 = vsel %vm5323, %v7911, 0
    %v8132 = vsel %vm5323, %v7920, 0
    %v8135 = vsel %vm5323, %v7929, 0
    %v8138 = vsel %vm5323, %v7938, 0
    %v8141 = vsel %vm5323, %v7947, 0
    %v8144 = vsel %vm5323, %v7956, 0
    %v8147 = vsel %vm5323, %v7965, 0
    %v8150 = vsel %vm5323, %v7974, 0
    %v8153 = vsel %vm5323, %v7983, 0
    %v8156 = vsel %vm5323, %v7992, 0
    %v8159 = vsel %vm5323, %v8001, 0
    %v8162 = vsel %vm5323, %v8010, 0
    %v8165 = vsel %vm5323, %v8019, 0
    %v8168 = vsel %vm5323, %v8028, 0
    %v8171 = vsel %vm5323, %v8037, 0
    %v8174 = vsel %vm5323, %v8046, 0
    %v8177 = vsel %vm5323, %v8055, 0
    %v8180 = vsel %vm5323, %v8064, 0
    %v8183 = vsel %vm5323, %v8073, 0
    %v8186 = vsel %vm5323, %v8082, 0
    %v8189 = vsel %vm5323, %v8091, 0
    %v8192 = vsel %vm5323, %v8100, 0
    %v8195 = vsel %vm5323, %v8109, 0
    %v8198 = vsel %vm5323, %v8108, 0
    %8200 = vmatprep.subr.bf16.mxu0 0
    %8201 = vmatpush1.bf16.msra.mxu0 %v8118
    %8202 = vmatprep.subr.bf16.mxu0 0
    %8203 = vmatpush1.bf16.msra.mxu0 %v8119
    %8204 = vmatprep.subr.bf16.mxu0 0
    %8205 = vmatpush1.bf16.msra.mxu0 0
    %8206 = vmatprep.subr.bf16.mxu0 0
    %8207 = vmatpush1.bf16.msra.mxu0 0
    %8208 = vmatprep.subr.bf16.mxu0 0
    %8209 = vmatpush1.bf16.msra.mxu0 0
    %8210 = vmatprep.subr.bf16.mxu0 0
    %8211 = vmatpush1.bf16.msra.mxu0 0
    %8212 = vmatprep.subr.bf16.mxu0 0
    %8213 = vmatpush1.bf16.msra.mxu0 0
    %8214 = vmatprep.subr.bf16.mxu0 0
    %8215 = vmatpush1.bf16.msra.mxu0 0
    %8216 = vmatprep.subr.bf16.mxu0 0
    %8217 = vmatpush1.bf16.msra.mxu0 0
    %8218 = vmatprep.subr.bf16.mxu0 0
    %8219 = vmatpush1.bf16.msra.mxu0 0
    %8220 = vmatprep.subr.bf16.mxu0 0
    %8221 = vmatpush1.bf16.msra.mxu0 0
    %8222 = vmatprep.subr.bf16.mxu0 0
    %8223 = vmatpush1.bf16.msra.mxu0 0
    %8224 = vmatprep.subr.bf16.mxu0 0
    %8225 = vmatpush1.bf16.msra.mxu0 0
    %8226 = vmatprep.subr.bf16.mxu0 0
    %8227 = vmatpush1.bf16.msra.mxu0 0
    %8228 = vmatprep.subr.bf16.mxu0 0
    %8229 = vmatpush1.bf16.msra.mxu0 0
    %8230 = vmatprep.subr.bf16.mxu0 0
    %8231 = vmatpush1.bf16.msra.mxu0 0
    %8232 = vmatprep.mubr.bf16.mxu0 0
    %8233 = vmatmul.mubr.bf16.gmra.mrb[0].mxu0 %v8123
    %v8234 = vpop.f32.mrb[0].mxu0
    %v8235 = vadd.f32 0.0, %v8234
    %v8236 = vpop.f32.mrb[0].mxu0
    %v8237 = vpop.f32.mrb[0].mxu0
    %v8238 = vadd.f32 0.0, %v8237
    %v8239 = vpop.f32.mrb[0].mxu0
    %8240 = vmatprep.mubr.bf16.mxu0 0
    %8241 = vmatmul.mubr.bf16.gmra.mrb[0].mxu0 %v8126
    %v8242 = vpop.f32.mrb[0].mxu0
    %v8243 = vadd.f32 0.0, %v8242
    %v8244 = vpop.f32.mrb[0].mxu0
    %v8245 = vpop.f32.mrb[0].mxu0
    %v8246 = vadd.f32 0.0, %v8245
    %v8247 = vpop.f32.mrb[0].mxu0
    %8248 = vmatprep.mubr.bf16.mxu0 0
    %8249 = vmatmul.mubr.bf16.gmra.mrb[0].mxu0 %v8129
    %v8250 = vpop.f32.mrb[0].mxu0
    %v8251 = vadd.f32 0.0, %v8250
    %v8252 = vpop.f32.mrb[0].mxu0
    %v8253 = vpop.f32.mrb[0].mxu0
    %v8254 = vadd.f32 0.0, %v8253
    %v8255 = vpop.f32.mrb[0].mxu0
    %8256 = vmatprep.mubr.bf16.mxu0 0
    %8257 = vmatmul.mubr.bf16.gmra.mrb[0].mxu0 %v8132
    %v8258 = vpop.f32.mrb[0].mxu0
    %v8259 = vadd.f32 0.0, %v8258
    %v8260 = vpop.f32.mrb[0].mxu0
    %v8261 = vpop.f32.mrb[0].mxu0
    %v8262 = vadd.f32 0.0, %v8261
    %v8263 = vpop.f32.mrb[0].mxu0
    %8264 = vmatprep.mubr.bf16.mxu0 0
    %8265 = vmatmul.mubr.bf16.gmra.mrb[0].mxu0 %v8135
    %v8266 = vpop.f32.mrb[0].mxu0
    %v8267 = vadd.f32 0.0, %v8266
    %v8268 = vpop.f32.mrb[0].mxu0
    %v8269 = vpop.f32.mrb[0].mxu0
    %v8270 = vadd.f32 0.0, %v8269
    %v8271 = vpop.f32.mrb[0].mxu0
    %8272 = vmatprep.mubr.bf16.mxu0 0
    %8273 = vmatmul.mubr.bf16.gmra.mrb[0].mxu0 %v8138
    %v8274 = vpop.f32.mrb[0].mxu0
    %v8275 = vadd.f32 0.0, %v8274
    %v8276 = vpop.f32.mrb[0].mxu0
    %v8277 = vpop.f32.mrb[0].mxu0
    %v8278 = vadd.f32 0.0, %v8277
    %v8279 = vpop.f32.mrb[0].mxu0
    %8280 = vmatprep.mubr.bf16.mxu0 0
    %8281 = vmatmul.mubr.bf16.gmra.mrb[0].mxu0 %v8141
    %v8282 = vpop.f32.mrb[0].mxu0
    %v8283 = vadd.f32 0.0, %v8282
    %v8284 = vpop.f32.mrb[0].mxu0
    %v8285 = vpop.f32.mrb[0].mxu0
    %v8286 = vadd.f32 0.0, %v8285
    %v8287 = vpop.f32.mrb[0].mxu0
    %8288 = vmatprep.mubr.bf16.mxu0 0
    %8289 = vmatmul.mubr.bf16.gmra.mrb[0].mxu0 %v8144
    %v8290 = vpop.f32.mrb[0].mxu0
    %v8291 = vadd.f32 0.0, %v8290
    %v8292 = vpop.f32.mrb[0].mxu0
    %v8293 = vpop.f32.mrb[0].mxu0
    %v8294 = vadd.f32 0.0, %v8293
    %v8295 = vpop.f32.mrb[0].mxu0
    %8296 = vmatprep.mubr.bf16.mxu0 0
    %8297 = vmatmul.mubr.bf16.gmra.mrb[0].mxu0 %v8147
    %v8298 = vpop.f32.mrb[0].mxu0
    %v8299 = vadd.f32 0.0, %v8298
    %v8300 = vpop.f32.mrb[0].mxu0
    %v8301 = vpop.f32.mrb[0].mxu0
    %v8302 = vadd.f32 0.0, %v8301
    %v8303 = vpop.f32.mrb[0].mxu0
    %8304 = vmatprep.mubr.bf16.mxu0 0
    %8305 = vmatmul.mubr.bf16.gmra.mrb[0].mxu0 %v8150
    %v8306 = vpop.f32.mrb[0].mxu0
    %v8307 = vadd.f32 0.0, %v8306
    %v8308 = vpop.f32.mrb[0].mxu0
    %v8309 = vpop.f32.mrb[0].mxu0
    %v8310 = vadd.f32 0.0, %v8309
    %v8311 = vpop.f32.mrb[0].mxu0
    %8312 = vmatprep.mubr.bf16.mxu0 0
    %8313 = vmatmul.mubr.bf16.gmra.mrb[0].mxu0 %v8153
    %v8314 = vpop.f32.mrb[0].mxu0
    %v8315 = vadd.f32 0.0, %v8314
    %v8316 = vpop.f32.mrb[0].mxu0
    %v8317 = vpop.f32.mrb[0].mxu0
    %v8318 = vadd.f32 0.0, %v8317
    %v8319 = vpop.f32.mrb[0].mxu0
    %8320 = vmatprep.mubr.bf16.mxu0 0
    %8321 = vmatmul.mubr.bf16.gmra.mrb[0].mxu0 %v8156
    %v8322 = vpop.f32.mrb[0].mxu0
    %v8323 = vadd.f32 0.0, %v8322
    %v8324 = vpop.f32.mrb[0].mxu0
    %v8325 = vpop.f32.mrb[0].mxu0
    %v8326 = vadd.f32 0.0, %v8325
    %v8327 = vpop.f32.mrb[0].mxu0
    %8328 = vmatprep.mubr.bf16.mxu0 0
    %8329 = vmatmul.mubr.bf16.gmra.mrb[0].mxu0 %v8159
    %v8330 = vpop.f32.mrb[0].mxu0
    %v8331 = vadd.f32 0.0, %v8330
    %v8332 = vpop.f32.mrb[0].mxu0
    %v8333 = vpop.f32.mrb[0].mxu0
    %v8334 = vadd.f32 0.0, %v8333
    %v8335 = vpop.f32.mrb[0].mxu0
    %8336 = vmatprep.mubr.bf16.mxu0 0
    %8337 = vmatmul.mubr.bf16.gmra.mrb[0].mxu0 %v8162
    %v8338 = vpop.f32.mrb[0].mxu0
    %v8339 = vadd.f32 0.0, %v8338
    %v8340 = vpop.f32.mrb[0].mxu0
    %v8341 = vpop.f32.mrb[0].mxu0
    %v8342 = vadd.f32 0.0, %v8341
    %v8343 = vpop.f32.mrb[0].mxu0
    %8344 = vmatprep.mubr.bf16.mxu0 0
    %8345 = vmatmul.mubr.bf16.gmra.mrb[0].mxu0 %v8165
    %v8346 = vpop.f32.mrb[0].mxu0
    %v8347 = vadd.f32 0.0, %v8346
    %v8348 = vpop.f32.mrb[0].mxu0
    %v8349 = vpop.f32.mrb[0].mxu0
    %v8350 = vadd.f32 0.0, %v8349
    %v8351 = vpop.f32.mrb[0].mxu0
    %8352 = vmatprep.mubr.bf16.mxu0 0
    %8353 = vmatmul.mubr.bf16.gmra.mrb[0].mxu0 %v8168
    %v8354 = vpop.f32.mrb[0].mxu0
    %v8355 = vadd.f32 0.0, %v8354
    %v8356 = vpop.f32.mrb[0].mxu0
    %v8357 = vpop.f32.mrb[0].mxu0
    %v8358 = vadd.f32 0.0, %v8357
    %v8359 = vpop.f32.mrb[0].mxu0
    %8360 = vmatprep.mubr.bf16.mxu0 0
    %8361 = vmatmul.mubr.bf16.gmra.mrb[0].mxu0 %v8171
    %v8362 = vpop.f32.mrb[0].mxu0
    %v8363 = vadd.f32 0.0, %v8362
    %v8364 = vpop.f32.mrb[0].mxu0
    %v8365 = vpop.f32.mrb[0].mxu0
    %v8366 = vadd.f32 0.0, %v8365
    %v8367 = vpop.f32.mrb[0].mxu0
    %8368 = vmatprep.mubr.bf16.mxu0 0
    %8369 = vmatmul.mubr.bf16.gmra.mrb[0].mxu0 %v8174
    %v8370 = vpop.f32.mrb[0].mxu0
    %v8371 = vadd.f32 0.0, %v8370
    %v8372 = vpop.f32.mrb[0].mxu0
    %v8373 = vpop.f32.mrb[0].mxu0
    %v8374 = vadd.f32 0.0, %v8373
    %v8375 = vpop.f32.mrb[0].mxu0
    %8376 = vmatprep.mubr.bf16.mxu0 0
    %8377 = vmatmul.mubr.bf16.gmra.mrb[0].mxu0 %v8177
    %v8378 = vpop.f32.mrb[0].mxu0
    %v8379 = vadd.f32 0.0, %v8378
    %v8380 = vpop.f32.mrb[0].mxu0
    %v8381 = vpop.f32.mrb[0].mxu0
    %v8382 = vadd.f32 0.0, %v8381
    %v8383 = vpop.f32.mrb[0].mxu0
    %8384 = vmatprep.mubr.bf16.mxu0 0
    %8385 = vmatmul.mubr.bf16.gmra.mrb[0].mxu0 %v8180
    %v8386 = vpop.f32.mrb[0].mxu0
    %v8387 = vadd.f32 0.0, %v8386
    %v8388 = vpop.f32.mrb[0].mxu0
    %v8389 = vpop.f32.mrb[0].mxu0
    %v8390 = vadd.f32 0.0, %v8389
    %v8391 = vpop.f32.mrb[0].mxu0
    %8392 = vmatprep.mubr.bf16.mxu0 0
    %8393 = vmatmul.mubr.bf16.gmra.mrb[0].mxu0 %v8183
    %v8394 = vpop.f32.mrb[0].mxu0
    %v8395 = vadd.f32 0.0, %v8394
    %v8396 = vpop.f32.mrb[0].mxu0
    %v8397 = vpop.f32.mrb[0].mxu0
    %v8398 = vadd.f32 0.0, %v8397
    %v8399 = vpop.f32.mrb[0].mxu0
    %8400 = vmatprep.mubr.bf16.mxu0 0
    %8401 = vmatmul.mubr.bf16.gmra.mrb[0].mxu0 %v8186
    %v8402 = vpop.f32.mrb[0].mxu0
    %v8403 = vadd.f32 0.0, %v8402
    %v8404 = vpop.f32.mrb[0].mxu0
    %v8405 = vpop.f32.mrb[0].mxu0
    %v8406 = vadd.f32 0.0, %v8405
    %v8407 = vpop.f32.mrb[0].mxu0
    %8408 = vmatprep.mubr.bf16.mxu0 0
    %8409 = vmatmul.mubr.bf16.gmra.mrb[0].mxu0 %v8189
    %v8410 = vpop.f32.mrb[0].mxu0
    %v8411 = vadd.f32 0.0, %v8410
    %v8412 = vpop.f32.mrb[0].mxu0
    %v8413 = vpop.f32.mrb[0].mxu0
    %v8414 = vadd.f32 0.0, %v8413
    %v8415 = vpop.f32.mrb[0].mxu0
    %8416 = vmatprep.mubr.bf16.mxu0 0
    %8417 = vmatmul.mubr.bf16.gmra.mrb[0].mxu0 %v8192
    %v8418 = vpop.f32.mrb[0].mxu0
    %v8419 = vadd.f32 0.0, %v8418
    %v8420 = vpop.f32.mrb[0].mxu0
    %v8421 = vpop.f32.mrb[0].mxu0
    %v8422 = vadd.f32 0.0, %v8421
    %v8423 = vpop.f32.mrb[0].mxu0
    %8424 = vmatprep.mubr.bf16.mxu0 0
    %8425 = vmatmul.mubr.bf16.gmra.mrb[0].mxu0 %v8195
    %v8426 = vpop.f32.mrb[0].mxu0
    %v8427 = vadd.f32 0.0, %v8426
    %v8428 = vpop.f32.mrb[0].mxu0
    %v8429 = vpop.f32.mrb[0].mxu0
    %v8430 = vadd.f32 0.0, %v8429
    %v8431 = vpop.f32.mrb[0].mxu0
    %8432 = vmatprep.mubr.bf16.mxu0 0
    %8433 = vmatmul.mubr.bf16.gmra.mrb[0].mxu0 %v8198
    %v8434 = vpop.f32.mrb[0].mxu0
    %v8435 = vadd.f32 0.0, %v8434
    %v8436 = vpop.f32.mrb[0].mxu0
    %v8437 = vpop.f32.mrb[0].mxu0
    %v8438 = vpop.f32.mrb[0].mxu0
    %8439 = vdwg.mxu0
    %v8440 = vadd.f32 %v7638, %v8235
    %v8441 = vadd.f32 %v7639, %v8238
    %v8442 = vadd.f32 %v7640, %v8243
    %v8443 = vadd.f32 %v7641, %v8246
    %v8444 = vadd.f32 %v7642, %v8251
    %v8445 = vadd.f32 %v7643, %v8254
    %v8446 = vadd.f32 %v7644, %v8259
    %v8447 = vadd.f32 %v7645, %v8262
    %v8448 = vadd.f32 %v7646, %v8267
    %v8449 = vadd.f32 %v7647, %v8270
    %v8450 = vadd.f32 %v7648, %v8275
    %v8451 = vadd.f32 %v7649, %v8278
    %v8452 = vadd.f32 %v7650, %v8283
    %v8453 = vadd.f32 %v7651, %v8286
    %v8454 = vadd.f32 %v7652, %v8291
    %v8455 = vadd.f32 %v7653, %v8294
    %v8456 = vadd.f32 %v7654, %v8299
    %v8457 = vadd.f32 %v7655, %v8302
    %v8458 = vadd.f32 %v7656, %v8307
    %v8459 = vadd.f32 %v7657, %v8310
    %v8460 = vadd.f32 %v7658, %v8315
    %v8461 = vadd.f32 %v7659, %v8318
    %v8462 = vadd.f32 %v7660, %v8323
    %v8463 = vadd.f32 %v7661, %v8326
    %v8464 = vadd.f32 %v7662, %v8331
    %v8465 = vadd.f32 %v7663, %v8334
    %v8466 = vadd.f32 %v7664, %v8339
    %v8467 = vadd.f32 %v7665, %v8342
    %v8468 = vadd.f32 %v7666, %v8347
    %v8469 = vadd.f32 %v7667, %v8350
    %v8470 = vadd.f32 %v7668, %v8355
    %v8471 = vadd.f32 %v7669, %v8358
    %v8472 = vadd.f32 %v7670, %v8363
    %v8473 = vadd.f32 %v7671, %v8366
    %v8474 = vadd.f32 %v7672, %v8371
    %v8475 = vadd.f32 %v7673, %v8374
    %v8476 = vadd.f32 %v7674, %v8379
    %v8477 = vadd.f32 %v7675, %v8382
    %v8478 = vadd.f32 %v7676, %v8387
    %v8479 = vadd.f32 %v7677, %v8390
    %v8480 = vadd.f32 %v7678, %v8395
    %v8481 = vadd.f32 %v7679, %v8398
    %v8482 = vadd.f32 %v7680, %v8403
    %v8483 = vadd.f32 %v7681, %v8406
    %v8484 = vadd.f32 %v7682, %v8411
    %v8485 = vadd.f32 %v7683, %v8414
    %v8486 = vadd.f32 %v7684, %v8419
    %v8487 = vadd.f32 %v7685, %v8422
    %v8488 = vadd.f32 %v7686, %v8427
    %v8489 = vadd.f32 %v7687, %v8430
    %v8490 = vadd.f32 %v7688, %v8435
    %s8491 = scalar_lea.vmem %s5, 64
    %v8492 = vld [vmem:[%s8491] sm:$0xf]
    %v8493 = vld [vmem:[%s8491 + $0x4] sm:$0xf]
    %v8494 = vld [vmem:[%s8491 + $0x8] sm:$0xf]
    %v8495 = vld [vmem:[%s8491 + $0xc] sm:$0xf]
    %v8496 = vpack.c.b16 %v7800, %v7799
    %v8497 = vpack.c.b16 %v7802, %v7801
    %v8498 = vpack.c.b16 %v7804, %v7803
    %v8499 = vpack.c.b16 %v7806, %v7805
    %v8500 = vpack.c.b16 %v7808, %v7807
    %v8501 = vpack.c.b16 %v7810, %v7809
    %v8502 = vpack.c.b16 %v7812, %v7811
    %v8503 = vpack.c.b16 %v7814, %v7813
    %v8504 = vpack.c.b16 %v7816, %v7815
    %v8505 = vpack.c.b16 %v7818, %v7817
    %v8506 = vpack.c.b16 %v7820, %v7819
    %v8507 = vpack.c.b16 %v7822, %v7821
    %v8508 = vpack.c.b16 %v7824, %v7823
    %v8509 = vpack.c.b16 %v7826, %v7825
    %v8510 = vpack.c.b16 %v7828, %v7827
    %v8511 = vpack.c.b16 %v7830, %v7829
    %v8512 = vpack.c.b16 %v7832, %v7831
    %v8513 = vpack.c.b16 %v7834, %v7833
    %v8514 = vpack.c.b16 %v7836, %v7835
    %v8515 = vpack.c.b16 %v7838, %v7837
    %v8516 = vpack.c.b16 %v7840, %v7839
    %v8517 = vpack.c.b16 %v7842, %v7841
    %v8518 = vpack.c.b16 %v7844, %v7843
    %v8519 = vpack.c.b16 %v7846, %v7845
    %v8520 = vpack.c.b16 %v7848, %v7847
    %v8521 = vpack.c.b16 %v7849, %v7849
    %v8526 = vunpack.c.l.b16 %v8492
    %v8527 = vunpack.c.l.b16 %v8493
    %v8528 = vunpack.c.l.b16 %v8494
    %v8529 = vunpack.c.l.b16 %v8495
    %v8530 = vpack.c.b16 %v8527, %v8526
    %v8531 = vpack.c.b16 %v8529, %v8528
    %v8535 = vsel %vm5323, %v8496, 0
    %v8538 = vsel %vm5323, %v8497, 0
    %v8541 = vsel %vm5323, %v8498, 0
    %v8544 = vsel %vm5323, %v8499, 0
    %v8547 = vsel %vm5323, %v8500, 0
    %v8550 = vsel %vm5323, %v8501, 0
    %v8553 = vsel %vm5323, %v8502, 0
    %v8556 = vsel %vm5323, %v8503, 0
    %v8559 = vsel %vm5323, %v8504, 0
    %v8562 = vsel %vm5323, %v8505, 0
    %v8565 = vsel %vm5323, %v8506, 0
    %v8568 = vsel %vm5323, %v8507, 0
    %v8571 = vsel %vm5323, %v8508, 0
    %v8574 = vsel %vm5323, %v8509, 0
    %v8577 = vsel %vm5323, %v8510, 0
    %v8580 = vsel %vm5323, %v8511, 0
    %v8583 = vsel %vm5323, %v8512, 0
    %v8586 = vsel %vm5323, %v8513, 0
    %v8589 = vsel %vm5323, %v8514, 0
    %v8592 = vsel %vm5323, %v8515, 0
    %v8595 = vsel %vm5323, %v8516, 0
    %v8598 = vsel %vm5323, %v8517, 0
    %v8601 = vsel %vm5323, %v8518, 0
    %v8604 = vsel %vm5323, %v8519, 0
    %v8607 = vsel %vm5323, %v8520, 0
    %v8610 = vsel %vm5323, %v8521, 0
    %8612 = vmatprep.subr.bf16.mxu0 0
    %8613 = vmatpush1.bf16.msra.mxu0 %v8530
    %8614 = vmatprep.subr.bf16.mxu0 0
    %8615 = vmatpush1.bf16.msra.mxu0 %v8531
    %8616 = vmatprep.subr.bf16.mxu0 0
    %8617 = vmatpush1.bf16.msra.mxu0 0
    %8618 = vmatprep.subr.bf16.mxu0 0
    %8619 = vmatpush1.bf16.msra.mxu0 0
    %8620 = vmatprep.subr.bf16.mxu0 0
    %8621 = vmatpush1.bf16.msra.mxu0 0
    %8622 = vmatprep.subr.bf16.mxu0 0
    %8623 = vmatpush1.bf16.msra.mxu0 0
    %8624 = vmatprep.subr.bf16.mxu0 0
    %8625 = vmatpush1.bf16.msra.mxu0 0
    %8626 = vmatprep.subr.bf16.mxu0 0
    %8627 = vmatpush1.bf16.msra.mxu0 0
    %8628 = vmatprep.subr.bf16.mxu0 0
    %8629 = vmatpush1.bf16.msra.mxu0 0
    %8630 = vmatprep.subr.bf16.mxu0 0
    %8631 = vmatpush1.bf16.msra.mxu0 0
    %8632 = vmatprep.subr.bf16.mxu0 0
    %8633 = vmatpush1.bf16.msra.mxu0 0
    %8634 = vmatprep.subr.bf16.mxu0 0
    %8635 = vmatpush1.bf16.msra.mxu0 0
    %8636 = vmatprep.subr.bf16.mxu0 0
    %8637 = vmatpush1.bf16.msra.mxu0 0
    %8638 = vmatprep.subr.bf16.mxu0 0
    %8639 = vmatpush1.bf16.msra.mxu0 0
    %8640 = vmatprep.subr.bf16.mxu0 0
    %8641 = vmatpush1.bf16.msra.mxu0 0
    %8642 = vmatprep.subr.bf16.mxu0 0
    %8643 = vmatpush1.bf16.msra.mxu0 0
    %8644 = vmatprep.mubr.bf16.mxu0 0
    %8645 = vmatmul.mubr.bf16.gmra.mrb[0].mxu0 %v8535
    %v8646 = vpop.f32.mrb[0].mxu0
    %v8647 = vadd.f32 0.0, %v8646
    %v8648 = vpop.f32.mrb[0].mxu0
    %v8649 = vpop.f32.mrb[0].mxu0
    %v8650 = vadd.f32 0.0, %v8649
    %v8651 = vpop.f32.mrb[0].mxu0
    %8652 = vmatprep.mubr.bf16.mxu0 0
    %8653 = vmatmul.mubr.bf16.gmra.mrb[0].mxu0 %v8538
    %v8654 = vpop.f32.mrb[0].mxu0
    %v8655 = vadd.f32 0.0, %v8654
    %v8656 = vpop.f32.mrb[0].mxu0
    %v8657 = vpop.f32.mrb[0].mxu0
    %v8658 = vadd.f32 0.0, %v8657
    %v8659 = vpop.f32.mrb[0].mxu0
    %8660 = vmatprep.mubr.bf16.mxu0 0
    %8661 = vmatmul.mubr.bf16.gmra.mrb[0].mxu0 %v8541
    %v8662 = vpop.f32.mrb[0].mxu0
    %v8663 = vadd.f32 0.0, %v8662
    %v8664 = vpop.f32.mrb[0].mxu0
    %v8665 = vpop.f32.mrb[0].mxu0
    %v8666 = vadd.f32 0.0, %v8665
    %v8667 = vpop.f32.mrb[0].mxu0
    %8668 = vmatprep.mubr.bf16.mxu0 0
    %8669 = vmatmul.mubr.bf16.gmra.mrb[0].mxu0 %v8544
    %v8670 = vpop.f32.mrb[0].mxu0
    %v8671 = vadd.f32 0.0, %v8670
    %v8672 = vpop.f32.mrb[0].mxu0
    %v8673 = vpop.f32.mrb[0].mxu0
    %v8674 = vadd.f32 0.0, %v8673
    %v8675 = vpop.f32.mrb[0].mxu0
    %8676 = vmatprep.mubr.bf16.mxu0 0
    %8677 = vmatmul.mubr.bf16.gmra.mrb[0].mxu0 %v8547
    %v8678 = vpop.f32.mrb[0].mxu0
    %v8679 = vadd.f32 0.0, %v8678
    %v8680 = vpop.f32.mrb[0].mxu0
    %v8681 = vpop.f32.mrb[0].mxu0
    %v8682 = vadd.f32 0.0, %v8681
    %v8683 = vpop.f32.mrb[0].mxu0
    %8684 = vmatprep.mubr.bf16.mxu0 0
    %8685 = vmatmul.mubr.bf16.gmra.mrb[0].mxu0 %v8550
    %v8686 = vpop.f32.mrb[0].mxu0
    %v8687 = vadd.f32 0.0, %v8686
    %v8688 = vpop.f32.mrb[0].mxu0
    %v8689 = vpop.f32.mrb[0].mxu0
    %v8690 = vadd.f32 0.0, %v8689
    %v8691 = vpop.f32.mrb[0].mxu0
    %8692 = vmatprep.mubr.bf16.mxu0 0
    %8693 = vmatmul.mubr.bf16.gmra.mrb[0].mxu0 %v8553
    %v8694 = vpop.f32.mrb[0].mxu0
    %v8695 = vadd.f32 0.0, %v8694
    %v8696 = vpop.f32.mrb[0].mxu0
    %v8697 = vpop.f32.mrb[0].mxu0
    %v8698 = vadd.f32 0.0, %v8697
    %v8699 = vpop.f32.mrb[0].mxu0
    %8700 = vmatprep.mubr.bf16.mxu0 0
    %8701 = vmatmul.mubr.bf16.gmra.mrb[0].mxu0 %v8556
    %v8702 = vpop.f32.mrb[0].mxu0
    %v8703 = vadd.f32 0.0, %v8702
    %v8704 = vpop.f32.mrb[0].mxu0
    %v8705 = vpop.f32.mrb[0].mxu0
    %v8706 = vadd.f32 0.0, %v8705
    %v8707 = vpop.f32.mrb[0].mxu0
    %8708 = vmatprep.mubr.bf16.mxu0 0
    %8709 = vmatmul.mubr.bf16.gmra.mrb[0].mxu0 %v8559
    %v8710 = vpop.f32.mrb[0].mxu0
    %v8711 = vadd.f32 0.0, %v8710
    %v8712 = vpop.f32.mrb[0].mxu0
    %v8713 = vpop.f32.mrb[0].mxu0
    %v8714 = vadd.f32 0.0, %v8713
    %v8715 = vpop.f32.mrb[0].mxu0
    %8716 = vmatprep.mubr.bf16.mxu0 0
    %8717 = vmatmul.mubr.bf16.gmra.mrb[0].mxu0 %v8562
    %v8718 = vpop.f32.mrb[0].mxu0
    %v8719 = vadd.f32 0.0, %v8718
    %v8720 = vpop.f32.mrb[0].mxu0
    %v8721 = vpop.f32.mrb[0].mxu0
    %v8722 = vadd.f32 0.0, %v8721
    %v8723 = vpop.f32.mrb[0].mxu0
    %8724 = vmatprep.mubr.bf16.mxu0 0
    %8725 = vmatmul.mubr.bf16.gmra.mrb[0].mxu0 %v8565
    %v8726 = vpop.f32.mrb[0].mxu0
    %v8727 = vadd.f32 0.0, %v8726
    %v8728 = vpop.f32.mrb[0].mxu0
    %v8729 = vpop.f32.mrb[0].mxu0
    %v8730 = vadd.f32 0.0, %v8729
    %v8731 = vpop.f32.mrb[0].mxu0
    %8732 = vmatprep.mubr.bf16.mxu0 0
    %8733 = vmatmul.mubr.bf16.gmra.mrb[0].mxu0 %v8568
    %v8734 = vpop.f32.mrb[0].mxu0
    %v8735 = vadd.f32 0.0, %v8734
    %v8736 = vpop.f32.mrb[0].mxu0
    %v8737 = vpop.f32.mrb[0].mxu0
    %v8738 = vadd.f32 0.0, %v8737
    %v8739 = vpop.f32.mrb[0].mxu0
    %8740 = vmatprep.mubr.bf16.mxu0 0
    %8741 = vmatmul.mubr.bf16.gmra.mrb[0].mxu0 %v8571
    %v8742 = vpop.f32.mrb[0].mxu0
    %v8743 = vadd.f32 0.0, %v8742
    %v8744 = vpop.f32.mrb[0].mxu0
    %v8745 = vpop.f32.mrb[0].mxu0
    %v8746 = vadd.f32 0.0, %v8745
    %v8747 = vpop.f32.mrb[0].mxu0
    %8748 = vmatprep.mubr.bf16.mxu0 0
    %8749 = vmatmul.mubr.bf16.gmra.mrb[0].mxu0 %v8574
    %v8750 = vpop.f32.mrb[0].mxu0
    %v8751 = vadd.f32 0.0, %v8750
    %v8752 = vpop.f32.mrb[0].mxu0
    %v8753 = vpop.f32.mrb[0].mxu0
    %v8754 = vadd.f32 0.0, %v8753
    %v8755 = vpop.f32.mrb[0].mxu0
    %8756 = vmatprep.mubr.bf16.mxu0 0
    %8757 = vmatmul.mubr.bf16.gmra.mrb[0].mxu0 %v8577
    %v8758 = vpop.f32.mrb[0].mxu0
    %v8759 = vadd.f32 0.0, %v8758
    %v8760 = vpop.f32.mrb[0].mxu0
    %v8761 = vpop.f32.mrb[0].mxu0
    %v8762 = vadd.f32 0.0, %v8761
    %v8763 = vpop.f32.mrb[0].mxu0
    %8764 = vmatprep.mubr.bf16.mxu0 0
    %8765 = vmatmul.mubr.bf16.gmra.mrb[0].mxu0 %v8580
    %v8766 = vpop.f32.mrb[0].mxu0
    %v8767 = vadd.f32 0.0, %v8766
    %v8768 = vpop.f32.mrb[0].mxu0
    %v8769 = vpop.f32.mrb[0].mxu0
    %v8770 = vadd.f32 0.0, %v8769
    %v8771 = vpop.f32.mrb[0].mxu0
    %8772 = vmatprep.mubr.bf16.mxu0 0
    %8773 = vmatmul.mubr.bf16.gmra.mrb[0].mxu0 %v8583
    %v8774 = vpop.f32.mrb[0].mxu0
    %v8775 = vadd.f32 0.0, %v8774
    %v8776 = vpop.f32.mrb[0].mxu0
    %v8777 = vpop.f32.mrb[0].mxu0
    %v8778 = vadd.f32 0.0, %v8777
    %v8779 = vpop.f32.mrb[0].mxu0
    %8780 = vmatprep.mubr.bf16.mxu0 0
    %8781 = vmatmul.mubr.bf16.gmra.mrb[0].mxu0 %v8586
    %v8782 = vpop.f32.mrb[0].mxu0
    %v8783 = vadd.f32 0.0, %v8782
    %v8784 = vpop.f32.mrb[0].mxu0
    %v8785 = vpop.f32.mrb[0].mxu0
    %v8786 = vadd.f32 0.0, %v8785
    %v8787 = vpop.f32.mrb[0].mxu0
    %8788 = vmatprep.mubr.bf16.mxu0 0
    %8789 = vmatmul.mubr.bf16.gmra.mrb[0].mxu0 %v8589
    %v8790 = vpop.f32.mrb[0].mxu0
    %v8791 = vadd.f32 0.0, %v8790
    %v8792 = vpop.f32.mrb[0].mxu0
    %v8793 = vpop.f32.mrb[0].mxu0
    %v8794 = vadd.f32 0.0, %v8793
    %v8795 = vpop.f32.mrb[0].mxu0
    %8796 = vmatprep.mubr.bf16.mxu0 0
    %8797 = vmatmul.mubr.bf16.gmra.mrb[0].mxu0 %v8592
    %v8798 = vpop.f32.mrb[0].mxu0
    %v8799 = vadd.f32 0.0, %v8798
    %v8800 = vpop.f32.mrb[0].mxu0
    %v8801 = vpop.f32.mrb[0].mxu0
    %v8802 = vadd.f32 0.0, %v8801
    %v8803 = vpop.f32.mrb[0].mxu0
    %8804 = vmatprep.mubr.bf16.mxu0 0
    %8805 = vmatmul.mubr.bf16.gmra.mrb[0].mxu0 %v8595
    %v8806 = vpop.f32.mrb[0].mxu0
    %v8807 = vadd.f32 0.0, %v8806
    %v8808 = vpop.f32.mrb[0].mxu0
    %v8809 = vpop.f32.mrb[0].mxu0
    %v8810 = vadd.f32 0.0, %v8809
    %v8811 = vpop.f32.mrb[0].mxu0
    %8812 = vmatprep.mubr.bf16.mxu0 0
    %8813 = vmatmul.mubr.bf16.gmra.mrb[0].mxu0 %v8598
    %v8814 = vpop.f32.mrb[0].mxu0
    %v8815 = vadd.f32 0.0, %v8814
    %v8816 = vpop.f32.mrb[0].mxu0
    %v8817 = vpop.f32.mrb[0].mxu0
    %v8818 = vadd.f32 0.0, %v8817
    %v8819 = vpop.f32.mrb[0].mxu0
    %8820 = vmatprep.mubr.bf16.mxu0 0
    %8821 = vmatmul.mubr.bf16.gmra.mrb[0].mxu0 %v8601
    %v8822 = vpop.f32.mrb[0].mxu0
    %v8823 = vadd.f32 0.0, %v8822
    %v8824 = vpop.f32.mrb[0].mxu0
    %v8825 = vpop.f32.mrb[0].mxu0
    %v8826 = vadd.f32 0.0, %v8825
    %v8827 = vpop.f32.mrb[0].mxu0
    %8828 = vmatprep.mubr.bf16.mxu0 0
    %8829 = vmatmul.mubr.bf16.gmra.mrb[0].mxu0 %v8604
    %v8830 = vpop.f32.mrb[0].mxu0
    %v8831 = vadd.f32 0.0, %v8830
    %v8832 = vpop.f32.mrb[0].mxu0
    %v8833 = vpop.f32.mrb[0].mxu0
    %v8834 = vadd.f32 0.0, %v8833
    %v8835 = vpop.f32.mrb[0].mxu0
    %8836 = vmatprep.mubr.bf16.mxu0 0
    %8837 = vmatmul.mubr.bf16.gmra.mrb[0].mxu0 %v8607
    %v8838 = vpop.f32.mrb[0].mxu0
    %v8839 = vadd.f32 0.0, %v8838
    %v8840 = vpop.f32.mrb[0].mxu0
    %v8841 = vpop.f32.mrb[0].mxu0
    %v8842 = vadd.f32 0.0, %v8841
    %v8843 = vpop.f32.mrb[0].mxu0
    %8844 = vmatprep.mubr.bf16.mxu0 0
    %8845 = vmatmul.mubr.bf16.gmra.mrb[0].mxu0 %v8610
    %v8846 = vpop.f32.mrb[0].mxu0
    %v8847 = vadd.f32 0.0, %v8846
    %v8848 = vpop.f32.mrb[0].mxu0
    %v8849 = vpop.f32.mrb[0].mxu0
    %v8850 = vpop.f32.mrb[0].mxu0
    %8851 = vdwg.mxu0
    %v8852 = vadd.f32 %v8440, %v8647
    %v8853 = vadd.f32 %v8441, %v8650
    %v8854 = vadd.f32 %v8442, %v8655
    %v8855 = vadd.f32 %v8443, %v8658
    %v8856 = vadd.f32 %v8444, %v8663
    %v8857 = vadd.f32 %v8445, %v8666
    %v8858 = vadd.f32 %v8446, %v8671
    %v8859 = vadd.f32 %v8447, %v8674
    %v8860 = vadd.f32 %v8448, %v8679
    %v8861 = vadd.f32 %v8449, %v8682
    %v8862 = vadd.f32 %v8450, %v8687
    %v8863 = vadd.f32 %v8451, %v8690
    %v8864 = vadd.f32 %v8452, %v8695
    %v8865 = vadd.f32 %v8453, %v8698
    %v8866 = vadd.f32 %v8454, %v8703
    %v8867 = vadd.f32 %v8455, %v8706
    %v8868 = vadd.f32 %v8456, %v8711
    %v8869 = vadd.f32 %v8457, %v8714
    %v8870 = vadd.f32 %v8458, %v8719
    %v8871 = vadd.f32 %v8459, %v8722
    %v8872 = vadd.f32 %v8460, %v8727
    %v8873 = vadd.f32 %v8461, %v8730
    %v8874 = vadd.f32 %v8462, %v8735
    %v8875 = vadd.f32 %v8463, %v8738
    %v8876 = vadd.f32 %v8464, %v8743
    %v8877 = vadd.f32 %v8465, %v8746
    %v8878 = vadd.f32 %v8466, %v8751
    %v8879 = vadd.f32 %v8467, %v8754
    %v8880 = vadd.f32 %v8468, %v8759
    %v8881 = vadd.f32 %v8469, %v8762
    %v8882 = vadd.f32 %v8470, %v8767
    %v8883 = vadd.f32 %v8471, %v8770
    %v8884 = vadd.f32 %v8472, %v8775
    %v8885 = vadd.f32 %v8473, %v8778
    %v8886 = vadd.f32 %v8474, %v8783
    %v8887 = vadd.f32 %v8475, %v8786
    %v8888 = vadd.f32 %v8476, %v8791
    %v8889 = vadd.f32 %v8477, %v8794
    %v8890 = vadd.f32 %v8478, %v8799
    %v8891 = vadd.f32 %v8479, %v8802
    %v8892 = vadd.f32 %v8480, %v8807
    %v8893 = vadd.f32 %v8481, %v8810
    %v8894 = vadd.f32 %v8482, %v8815
    %v8895 = vadd.f32 %v8483, %v8818
    %v8896 = vadd.f32 %v8484, %v8823
    %v8897 = vadd.f32 %v8485, %v8826
    %v8898 = vadd.f32 %v8486, %v8831
    %v8899 = vadd.f32 %v8487, %v8834
    %v8900 = vadd.f32 %v8488, %v8839
    %v8901 = vadd.f32 %v8489, %v8842
    %v8902 = vadd.f32 %v8490, %v8847
    %v8903 = vld [vmem:[#allocation2 + $0xd0] sm:$0x3]
    %s8904 = scalar_lea.vmem %s5, 80
    %v8905 = vld [vmem:[%s8904] sm:$0xf]
    %v8906 = vld [vmem:[%s8904 + $0x4] sm:$0xf]
    %v8907 = vld [vmem:[%s8904 + $0x8] sm:$0xf]
    %v8908 = vld [vmem:[%s8904 + $0xc] sm:$0xf]
    %v8910 = vunpack.c.l.b16 %v8903
    %v8911 = vpack.c.b16 %v8910, %v8910
    %v8912 = vshrl.u32 %v8496, 16
    %v8914 = vshll.u32 %v8496, 16
    %v8916 = vrot.slane %v8914, 1
    %v8917 = vor.u32 %v8912, %v8916
    %v8918 = vshll.u32 %v8497, 16
    %v8920 = vrot.slane %v8918, 1
    %v8921 = vsel %vm6401, %v8917, %v8920
    %v8922 = vshrl.u32 %v8497, 16
    %v8924 = vor.u32 %v8922, %v8920
    %v8925 = vshll.u32 %v8498, 16
    %v8927 = vrot.slane %v8925, 1
    %v8928 = vsel %vm6401, %v8924, %v8927
    %v8929 = vshrl.u32 %v8498, 16
    %v8931 = vor.u32 %v8929, %v8927
    %v8932 = vshll.u32 %v8499, 16
    %v8934 = vrot.slane %v8932, 1
    %v8935 = vsel %vm6401, %v8931, %v8934
    %v8936 = vshrl.u32 %v8499, 16
    %v8938 = vor.u32 %v8936, %v8934
    %v8939 = vshll.u32 %v8500, 16
    %v8941 = vrot.slane %v8939, 1
    %v8942 = vsel %vm6401, %v8938, %v8941
    %v8943 = vshrl.u32 %v8500, 16
    %v8945 = vor.u32 %v8943, %v8941
    %v8946 = vshll.u32 %v8501, 16
    %v8948 = vrot.slane %v8946, 1
    %v8949 = vsel %vm6401, %v8945, %v8948
    %v8950 = vshrl.u32 %v8501, 16
    %v8952 = vor.u32 %v8950, %v8948
    %v8953 = vshll.u32 %v8502, 16
    %v8955 = vrot.slane %v8953, 1
    %v8956 = vsel %vm6401, %v8952, %v8955
    %v8957 = vshrl.u32 %v8502, 16
    %v8959 = vor.u32 %v8957, %v8955
    %v8960 = vshll.u32 %v8503, 16
    %v8962 = vrot.slane %v8960, 1
    %v8963 = vsel %vm6401, %v8959, %v8962
    %v8964 = vshrl.u32 %v8503, 16
    %v8966 = vor.u32 %v8964, %v8962
    %v8967 = vshll.u32 %v8504, 16
    %v8969 = vrot.slane %v8967, 1
    %v8970 = vsel %vm6401, %v8966, %v8969
    %v8971 = vshrl.u32 %v8504, 16
    %v8973 = vor.u32 %v8971, %v8969
    %v8974 = vshll.u32 %v8505, 16
    %v8976 = vrot.slane %v8974, 1
    %v8977 = vsel %vm6401, %v8973, %v8976
    %v8978 = vshrl.u32 %v8505, 16
    %v8980 = vor.u32 %v8978, %v8976
    %v8981 = vshll.u32 %v8506, 16
    %v8983 = vrot.slane %v8981, 1
    %v8984 = vsel %vm6401, %v8980, %v8983
    %v8985 = vshrl.u32 %v8506, 16
    %v8987 = vor.u32 %v8985, %v8983
    %v8988 = vshll.u32 %v8507, 16
    %v8990 = vrot.slane %v8988, 1
    %v8991 = vsel %vm6401, %v8987, %v8990
    %v8992 = vshrl.u32 %v8507, 16
    %v8994 = vor.u32 %v8992, %v8990
    %v8995 = vshll.u32 %v8508, 16
    %v8997 = vrot.slane %v8995, 1
    %v8998 = vsel %vm6401, %v8994, %v8997
    %v8999 = vshrl.u32 %v8508, 16
    %v9001 = vor.u32 %v8999, %v8997
    %v9002 = vshll.u32 %v8509, 16
    %v9004 = vrot.slane %v9002, 1
    %v9005 = vsel %vm6401, %v9001, %v9004
    %v9006 = vshrl.u32 %v8509, 16
    %v9008 = vor.u32 %v9006, %v9004
    %v9009 = vshll.u32 %v8510, 16
    %v9011 = vrot.slane %v9009, 1
    %v9012 = vsel %vm6401, %v9008, %v9011
    %v9013 = vshrl.u32 %v8510, 16
    %v9015 = vor.u32 %v9013, %v9011
    %v9016 = vshll.u32 %v8511, 16
    %v9018 = vrot.slane %v9016, 1
    %v9019 = vsel %vm6401, %v9015, %v9018
    %v9020 = vshrl.u32 %v8511, 16
    %v9022 = vor.u32 %v9020, %v9018
    %v9023 = vshll.u32 %v8512, 16
    %v9025 = vrot.slane %v9023, 1
    %v9026 = vsel %vm6401, %v9022, %v9025
    %v9027 = vshrl.u32 %v8512, 16
    %v9029 = vor.u32 %v9027, %v9025
    %v9030 = vshll.u32 %v8513, 16
    %v9032 = vrot.slane %v9030, 1
    %v9033 = vsel %vm6401, %v9029, %v9032
    %v9034 = vshrl.u32 %v8513, 16
    %v9036 = vor.u32 %v9034, %v9032
    %v9037 = vshll.u32 %v8514, 16
    %v9039 = vrot.slane %v9037, 1
    %v9040 = vsel %vm6401, %v9036, %v9039
    %v9041 = vshrl.u32 %v8514, 16
    %v9043 = vor.u32 %v9041, %v9039
    %v9044 = vshll.u32 %v8515, 16
    %v9046 = vrot.slane %v9044, 1
    %v9047 = vsel %vm6401, %v9043, %v9046
    %v9048 = vshrl.u32 %v8515, 16
    %v9050 = vor.u32 %v9048, %v9046
    %v9051 = vshll.u32 %v8516, 16
    %v9053 = vrot.slane %v9051, 1
    %v9054 = vsel %vm6401, %v9050, %v9053
    %v9055 = vshrl.u32 %v8516, 16
    %v9057 = vor.u32 %v9055, %v9053
    %v9058 = vshll.u32 %v8517, 16
    %v9060 = vrot.slane %v9058, 1
    %v9061 = vsel %vm6401, %v9057, %v9060
    %v9062 = vshrl.u32 %v8517, 16
    %v9064 = vor.u32 %v9062, %v9060
    %v9065 = vshll.u32 %v8518, 16
    %v9067 = vrot.slane %v9065, 1
    %v9068 = vsel %vm6401, %v9064, %v9067
    %v9069 = vshrl.u32 %v8518, 16
    %v9071 = vor.u32 %v9069, %v9067
    %v9072 = vshll.u32 %v8519, 16
    %v9074 = vrot.slane %v9072, 1
    %v9075 = vsel %vm6401, %v9071, %v9074
    %v9076 = vshrl.u32 %v8519, 16
    %v9078 = vor.u32 %v9076, %v9074
    %v9079 = vshll.u32 %v8520, 16
    %v9081 = vrot.slane %v9079, 1
    %v9082 = vsel %vm6401, %v9078, %v9081
    %v9083 = vshrl.u32 %v8520, 16
    %v9085 = vor.u32 %v9083, %v9081
    %v9087 = vshll.u32 %v8911, 16
    %v9089 = vrot.slane %v9087, 1
    %v9090 = vsel %vm6401, %v9085, %v9089
    %v9091 = vshrl.u32 %v8911, 16
    %v9093 = vor.u32 %v9091, %v9089
    %v9098 = vunpack.c.l.b16 %v8905
    %v9099 = vunpack.c.l.b16 %v8906
    %v9100 = vunpack.c.l.b16 %v8907
    %v9101 = vunpack.c.l.b16 %v8908
    %v9102 = vpack.c.b16 %v9099, %v9098
    %v9103 = vpack.c.b16 %v9101, %v9100
    %v9107 = vsel %vm5323, %v8921, 0
    %v9110 = vsel %vm5323, %v8928, 0
    %v9113 = vsel %vm5323, %v8935, 0
    %v9116 = vsel %vm5323, %v8942, 0
    %v9119 = vsel %vm5323, %v8949, 0
    %v9122 = vsel %vm5323, %v8956, 0
    %v9125 = vsel %vm5323, %v8963, 0
    %v9128 = vsel %vm5323, %v8970, 0
    %v9131 = vsel %vm5323, %v8977, 0
    %v9134 = vsel %vm5323, %v8984, 0
    %v9137 = vsel %vm5323, %v8991, 0
    %v9140 = vsel %vm5323, %v8998, 0
    %v9143 = vsel %vm5323, %v9005, 0
    %v9146 = vsel %vm5323, %v9012, 0
    %v9149 = vsel %vm5323, %v9019, 0
    %v9152 = vsel %vm5323, %v9026, 0
    %v9155 = vsel %vm5323, %v9033, 0
    %v9158 = vsel %vm5323, %v9040, 0
    %v9161 = vsel %vm5323, %v9047, 0
    %v9164 = vsel %vm5323, %v9054, 0
    %v9167 = vsel %vm5323, %v9061, 0
    %v9170 = vsel %vm5323, %v9068, 0
    %v9173 = vsel %vm5323, %v9075, 0
    %v9176 = vsel %vm5323, %v9082, 0
    %v9179 = vsel %vm5323, %v9090, 0
    %v9182 = vsel %vm5323, %v9093, 0
    %9184 = vmatprep.subr.bf16.mxu0 0
    %9185 = vmatpush1.bf16.msra.mxu0 %v9102
    %9186 = vmatprep.subr.bf16.mxu0 0
    %9187 = vmatpush1.bf16.msra.mxu0 %v9103
    %9188 = vmatprep.subr.bf16.mxu0 0
    %9189 = vmatpush1.bf16.msra.mxu0 0
    %9190 = vmatprep.subr.bf16.mxu0 0
    %9191 = vmatpush1.bf16.msra.mxu0 0
    %9192 = vmatprep.subr.bf16.mxu0 0
    %9193 = vmatpush1.bf16.msra.mxu0 0
    %9194 = vmatprep.subr.bf16.mxu0 0
    %9195 = vmatpush1.bf16.msra.mxu0 0
    %9196 = vmatprep.subr.bf16.mxu0 0
    %9197 = vmatpush1.bf16.msra.mxu0 0
    %9198 = vmatprep.subr.bf16.mxu0 0
    %9199 = vmatpush1.bf16.msra.mxu0 0
    %9200 = vmatprep.subr.bf16.mxu0 0
    %9201 = vmatpush1.bf16.msra.mxu0 0
    %9202 = vmatprep.subr.bf16.mxu0 0
    %9203 = vmatpush1.bf16.msra.mxu0 0
    %9204 = vmatprep.subr.bf16.mxu0 0
    %9205 = vmatpush1.bf16.msra.mxu0 0
    %9206 = vmatprep.subr.bf16.mxu0 0
    %9207 = vmatpush1.bf16.msra.mxu0 0
    %9208 = vmatprep.subr.bf16.mxu0 0
    %9209 = vmatpush1.bf16.msra.mxu0 0
    %9210 = vmatprep.subr.bf16.mxu0 0
    %9211 = vmatpush1.bf16.msra.mxu0 0
    %9212 = vmatprep.subr.bf16.mxu0 0
    %9213 = vmatpush1.bf16.msra.mxu0 0
    %9214 = vmatprep.subr.bf16.mxu0 0
    %9215 = vmatpush1.bf16.msra.mxu0 0
    %9216 = vmatprep.mubr.bf16.mxu0 0
    %9217 = vmatmul.mubr.bf16.gmra.mrb[0].mxu0 %v9107
    %v9218 = vpop.f32.mrb[0].mxu0
    %v9219 = vadd.f32 0.0, %v9218
    %v9220 = vpop.f32.mrb[0].mxu0
    %v9221 = vpop.f32.mrb[0].mxu0
    %v9222 = vadd.f32 0.0, %v9221
    %v9223 = vpop.f32.mrb[0].mxu0
    %9224 = vmatprep.mubr.bf16.mxu0 0
    %9225 = vmatmul.mubr.bf16.gmra.mrb[0].mxu0 %v9110
    %v9226 = vpop.f32.mrb[0].mxu0
    %v9227 = vadd.f32 0.0, %v9226
    %v9228 = vpop.f32.mrb[0].mxu0
    %v9229 = vpop.f32.mrb[0].mxu0
    %v9230 = vadd.f32 0.0, %v9229
    %v9231 = vpop.f32.mrb[0].mxu0
    %9232 = vmatprep.mubr.bf16.mxu0 0
    %9233 = vmatmul.mubr.bf16.gmra.mrb[0].mxu0 %v9113
    %v9234 = vpop.f32.mrb[0].mxu0
    %v9235 = vadd.f32 0.0, %v9234
    %v9236 = vpop.f32.mrb[0].mxu0
    %v9237 = vpop.f32.mrb[0].mxu0
    %v9238 = vadd.f32 0.0, %v9237
    %v9239 = vpop.f32.mrb[0].mxu0
    %9240 = vmatprep.mubr.bf16.mxu0 0
    %9241 = vmatmul.mubr.bf16.gmra.mrb[0].mxu0 %v9116
    %v9242 = vpop.f32.mrb[0].mxu0
    %v9243 = vadd.f32 0.0, %v9242
    %v9244 = vpop.f32.mrb[0].mxu0
    %v9245 = vpop.f32.mrb[0].mxu0
    %v9246 = vadd.f32 0.0, %v9245
    %v9247 = vpop.f32.mrb[0].mxu0
    %9248 = vmatprep.mubr.bf16.mxu0 0
    %9249 = vmatmul.mubr.bf16.gmra.mrb[0].mxu0 %v9119
    %v9250 = vpop.f32.mrb[0].mxu0
    %v9251 = vadd.f32 0.0, %v9250
    %v9252 = vpop.f32.mrb[0].mxu0
    %v9253 = vpop.f32.mrb[0].mxu0
    %v9254 = vadd.f32 0.0, %v9253
    %v9255 = vpop.f32.mrb[0].mxu0
    %9256 = vmatprep.mubr.bf16.mxu0 0
    %9257 = vmatmul.mubr.bf16.gmra.mrb[0].mxu0 %v9122
    %v9258 = vpop.f32.mrb[0].mxu0
    %v9259 = vadd.f32 0.0, %v9258
    %v9260 = vpop.f32.mrb[0].mxu0
    %v9261 = vpop.f32.mrb[0].mxu0
    %v9262 = vadd.f32 0.0, %v9261
    %v9263 = vpop.f32.mrb[0].mxu0
    %9264 = vmatprep.mubr.bf16.mxu0 0
    %9265 = vmatmul.mubr.bf16.gmra.mrb[0].mxu0 %v9125
    %v9266 = vpop.f32.mrb[0].mxu0
    %v9267 = vadd.f32 0.0, %v9266
    %v9268 = vpop.f32.mrb[0].mxu0
    %v9269 = vpop.f32.mrb[0].mxu0
    %v9270 = vadd.f32 0.0, %v9269
    %v9271 = vpop.f32.mrb[0].mxu0
    %9272 = vmatprep.mubr.bf16.mxu0 0
    %9273 = vmatmul.mubr.bf16.gmra.mrb[0].mxu0 %v9128
    %v9274 = vpop.f32.mrb[0].mxu0
    %v9275 = vadd.f32 0.0, %v9274
    %v9276 = vpop.f32.mrb[0].mxu0
    %v9277 = vpop.f32.mrb[0].mxu0
    %v9278 = vadd.f32 0.0, %v9277
    %v9279 = vpop.f32.mrb[0].mxu0
    %9280 = vmatprep.mubr.bf16.mxu0 0
    %9281 = vmatmul.mubr.bf16.gmra.mrb[0].mxu0 %v9131
    %v9282 = vpop.f32.mrb[0].mxu0
    %v9283 = vadd.f32 0.0, %v9282
    %v9284 = vpop.f32.mrb[0].mxu0
    %v9285 = vpop.f32.mrb[0].mxu0
    %v9286 = vadd.f32 0.0, %v9285
    %v9287 = vpop.f32.mrb[0].mxu0
    %9288 = vmatprep.mubr.bf16.mxu0 0
    %9289 = vmatmul.mubr.bf16.gmra.mrb[0].mxu0 %v9134
    %v9290 = vpop.f32.mrb[0].mxu0
    %v9291 = vadd.f32 0.0, %v9290
    %v9292 = vpop.f32.mrb[0].mxu0
    %v9293 = vpop.f32.mrb[0].mxu0
    %v9294 = vadd.f32 0.0, %v9293
    %v9295 = vpop.f32.mrb[0].mxu0
    %9296 = vmatprep.mubr.bf16.mxu0 0
    %9297 = vmatmul.mubr.bf16.gmra.mrb[0].mxu0 %v9137
    %v9298 = vpop.f32.mrb[0].mxu0
    %v9299 = vadd.f32 0.0, %v9298
    %v9300 = vpop.f32.mrb[0].mxu0
    %v9301 = vpop.f32.mrb[0].mxu0
    %v9302 = vadd.f32 0.0, %v9301
    %v9303 = vpop.f32.mrb[0].mxu0
    %9304 = vmatprep.mubr.bf16.mxu0 0
    %9305 = vmatmul.mubr.bf16.gmra.mrb[0].mxu0 %v9140
    %v9306 = vpop.f32.mrb[0].mxu0
    %v9307 = vadd.f32 0.0, %v9306
    %v9308 = vpop.f32.mrb[0].mxu0
    %v9309 = vpop.f32.mrb[0].mxu0
    %v9310 = vadd.f32 0.0, %v9309
    %v9311 = vpop.f32.mrb[0].mxu0
    %9312 = vmatprep.mubr.bf16.mxu0 0
    %9313 = vmatmul.mubr.bf16.gmra.mrb[0].mxu0 %v9143
    %v9314 = vpop.f32.mrb[0].mxu0
    %v9315 = vadd.f32 0.0, %v9314
    %v9316 = vpop.f32.mrb[0].mxu0
    %v9317 = vpop.f32.mrb[0].mxu0
    %v9318 = vadd.f32 0.0, %v9317
    %v9319 = vpop.f32.mrb[0].mxu0
    %9320 = vmatprep.mubr.bf16.mxu0 0
    %9321 = vmatmul.mubr.bf16.gmra.mrb[0].mxu0 %v9146
    %v9322 = vpop.f32.mrb[0].mxu0
    %v9323 = vadd.f32 0.0, %v9322
    %v9324 = vpop.f32.mrb[0].mxu0
    %v9325 = vpop.f32.mrb[0].mxu0
    %v9326 = vadd.f32 0.0, %v9325
    %v9327 = vpop.f32.mrb[0].mxu0
    %9328 = vmatprep.mubr.bf16.mxu0 0
    %9329 = vmatmul.mubr.bf16.gmra.mrb[0].mxu0 %v9149
    %v9330 = vpop.f32.mrb[0].mxu0
    %v9331 = vadd.f32 0.0, %v9330
    %v9332 = vpop.f32.mrb[0].mxu0
    %v9333 = vpop.f32.mrb[0].mxu0
    %v9334 = vadd.f32 0.0, %v9333
    %v9335 = vpop.f32.mrb[0].mxu0
    %9336 = vmatprep.mubr.bf16.mxu0 0
    %9337 = vmatmul.mubr.bf16.gmra.mrb[0].mxu0 %v9152
    %v9338 = vpop.f32.mrb[0].mxu0
    %v9339 = vadd.f32 0.0, %v9338
    %v9340 = vpop.f32.mrb[0].mxu0
    %v9341 = vpop.f32.mrb[0].mxu0
    %v9342 = vadd.f32 0.0, %v9341
    %v9343 = vpop.f32.mrb[0].mxu0
    %9344 = vmatprep.mubr.bf16.mxu0 0
    %9345 = vmatmul.mubr.bf16.gmra.mrb[0].mxu0 %v9155
    %v9346 = vpop.f32.mrb[0].mxu0
    %v9347 = vadd.f32 0.0, %v9346
    %v9348 = vpop.f32.mrb[0].mxu0
    %v9349 = vpop.f32.mrb[0].mxu0
    %v9350 = vadd.f32 0.0, %v9349
    %v9351 = vpop.f32.mrb[0].mxu0
    %9352 = vmatprep.mubr.bf16.mxu0 0
    %9353 = vmatmul.mubr.bf16.gmra.mrb[0].mxu0 %v9158
    %v9354 = vpop.f32.mrb[0].mxu0
    %v9355 = vadd.f32 0.0, %v9354
    %v9356 = vpop.f32.mrb[0].mxu0
    %v9357 = vpop.f32.mrb[0].mxu0
    %v9358 = vadd.f32 0.0, %v9357
    %v9359 = vpop.f32.mrb[0].mxu0
    %9360 = vmatprep.mubr.bf16.mxu0 0
    %9361 = vmatmul.mubr.bf16.gmra.mrb[0].mxu0 %v9161
    %v9362 = vpop.f32.mrb[0].mxu0
    %v9363 = vadd.f32 0.0, %v9362
    %v9364 = vpop.f32.mrb[0].mxu0
    %v9365 = vpop.f32.mrb[0].mxu0
    %v9366 = vadd.f32 0.0, %v9365
    %v9367 = vpop.f32.mrb[0].mxu0
    %9368 = vmatprep.mubr.bf16.mxu0 0
    %9369 = vmatmul.mubr.bf16.gmra.mrb[0].mxu0 %v9164
    %v9370 = vpop.f32.mrb[0].mxu0
    %v9371 = vadd.f32 0.0, %v9370
    %v9372 = vpop.f32.mrb[0].mxu0
    %v9373 = vpop.f32.mrb[0].mxu0
    %v9374 = vadd.f32 0.0, %v9373
    %v9375 = vpop.f32.mrb[0].mxu0
    %9376 = vmatprep.mubr.bf16.mxu0 0
    %9377 = vmatmul.mubr.bf16.gmra.mrb[0].mxu0 %v9167
    %v9378 = vpop.f32.mrb[0].mxu0
    %v9379 = vadd.f32 0.0, %v9378
    %v9380 = vpop.f32.mrb[0].mxu0
    %v9381 = vpop.f32.mrb[0].mxu0
    %v9382 = vadd.f32 0.0, %v9381
    %v9383 = vpop.f32.mrb[0].mxu0
    %9384 = vmatprep.mubr.bf16.mxu0 0
    %9385 = vmatmul.mubr.bf16.gmra.mrb[0].mxu0 %v9170
    %v9386 = vpop.f32.mrb[0].mxu0
    %v9387 = vadd.f32 0.0, %v9386
    %v9388 = vpop.f32.mrb[0].mxu0
    %v9389 = vpop.f32.mrb[0].mxu0
    %v9390 = vadd.f32 0.0, %v9389
    %v9391 = vpop.f32.mrb[0].mxu0
    %9392 = vmatprep.mubr.bf16.mxu0 0
    %9393 = vmatmul.mubr.bf16.gmra.mrb[0].mxu0 %v9173
    %v9394 = vpop.f32.mrb[0].mxu0
    %v9395 = vadd.f32 0.0, %v9394
    %v9396 = vpop.f32.mrb[0].mxu0
    %v9397 = vpop.f32.mrb[0].mxu0
    %v9398 = vadd.f32 0.0, %v9397
    %v9399 = vpop.f32.mrb[0].mxu0
    %9400 = vmatprep.mubr.bf16.mxu0 0
    %9401 = vmatmul.mubr.bf16.gmra.mrb[0].mxu0 %v9176
    %v9402 = vpop.f32.mrb[0].mxu0
    %v9403 = vadd.f32 0.0, %v9402
    %v9404 = vpop.f32.mrb[0].mxu0
    %v9405 = vpop.f32.mrb[0].mxu0
    %v9406 = vadd.f32 0.0, %v9405
    %v9407 = vpop.f32.mrb[0].mxu0
    %9408 = vmatprep.mubr.bf16.mxu0 0
    %9409 = vmatmul.mubr.bf16.gmra.mrb[0].mxu0 %v9179
    %v9410 = vpop.f32.mrb[0].mxu0
    %v9411 = vadd.f32 0.0, %v9410
    %v9412 = vpop.f32.mrb[0].mxu0
    %v9413 = vpop.f32.mrb[0].mxu0
    %v9414 = vadd.f32 0.0, %v9413
    %v9415 = vpop.f32.mrb[0].mxu0
    %9416 = vmatprep.mubr.bf16.mxu0 0
    %9417 = vmatmul.mubr.bf16.gmra.mrb[0].mxu0 %v9182
    %v9418 = vpop.f32.mrb[0].mxu0
    %v9419 = vadd.f32 0.0, %v9418
    %v9420 = vpop.f32.mrb[0].mxu0
    %v9421 = vpop.f32.mrb[0].mxu0
    %v9422 = vpop.f32.mrb[0].mxu0
    %9423 = vdwg.mxu0
    %v9424 = vadd.f32 %v8852, %v9219
    %v9425 = vadd.f32 %v8853, %v9222
    %v9426 = vadd.f32 %v8854, %v9227
    %v9427 = vadd.f32 %v8855, %v9230
    %v9428 = vadd.f32 %v8856, %v9235
    %v9429 = vadd.f32 %v8857, %v9238
    %v9430 = vadd.f32 %v8858, %v9243
    %v9431 = vadd.f32 %v8859, %v9246
    %v9432 = vadd.f32 %v8860, %v9251
    %v9433 = vadd.f32 %v8861, %v9254
    %v9434 = vadd.f32 %v8862, %v9259
    %v9435 = vadd.f32 %v8863, %v9262
    %v9436 = vadd.f32 %v8864, %v9267
    %v9437 = vadd.f32 %v8865, %v9270
    %v9438 = vadd.f32 %v8866, %v9275
    %v9439 = vadd.f32 %v8867, %v9278
    %v9440 = vadd.f32 %v8868, %v9283
    %v9441 = vadd.f32 %v8869, %v9286
    %v9442 = vadd.f32 %v8870, %v9291
    %v9443 = vadd.f32 %v8871, %v9294
    %v9444 = vadd.f32 %v8872, %v9299
    %v9445 = vadd.f32 %v8873, %v9302
    %v9446 = vadd.f32 %v8874, %v9307
    %v9447 = vadd.f32 %v8875, %v9310
    %v9448 = vadd.f32 %v8876, %v9315
    %v9449 = vadd.f32 %v8877, %v9318
    %v9450 = vadd.f32 %v8878, %v9323
    %v9451 = vadd.f32 %v8879, %v9326
    %v9452 = vadd.f32 %v8880, %v9331
    %v9453 = vadd.f32 %v8881, %v9334
    %v9454 = vadd.f32 %v8882, %v9339
    %v9455 = vadd.f32 %v8883, %v9342
    %v9456 = vadd.f32 %v8884, %v9347
    %v9457 = vadd.f32 %v8885, %v9350
    %v9458 = vadd.f32 %v8886, %v9355
    %v9459 = vadd.f32 %v8887, %v9358
    %v9460 = vadd.f32 %v8888, %v9363
    %v9461 = vadd.f32 %v8889, %v9366
    %v9462 = vadd.f32 %v8890, %v9371
    %v9463 = vadd.f32 %v8891, %v9374
    %v9464 = vadd.f32 %v8892, %v9379
    %v9465 = vadd.f32 %v8893, %v9382
    %v9466 = vadd.f32 %v8894, %v9387
    %v9467 = vadd.f32 %v8895, %v9390
    %v9468 = vadd.f32 %v8896, %v9395
    %v9469 = vadd.f32 %v8897, %v9398
    %v9470 = vadd.f32 %v8898, %v9403
    %v9471 = vadd.f32 %v8899, %v9406
    %v9472 = vadd.f32 %v8900, %v9411
    %v9473 = vadd.f32 %v8901, %v9414
    %v9474 = vadd.f32 %v8902, %v9419
    %v9475 = vld [vmem:[#allocation2 + $0xc] sm:$0x8]
    %v9476 = vld [vmem:[#allocation2 + $0x10] sm:$0xf]
    %v9477 = vld [vmem:[#allocation2 + $0x14] sm:$0xf]
    %v9478 = vld [vmem:[#allocation2 + $0x18] sm:$0xf]
    %v9479 = vld [vmem:[#allocation2 + $0x1c] sm:$0xf]
    %v9480 = vld [vmem:[#allocation2 + $0x20] sm:$0xf]
    %v9481 = vld [vmem:[#allocation2 + $0x24] sm:$0xf]
    %v9482 = vld [vmem:[#allocation2 + $0x28] sm:$0xf]
    %v9483 = vld [vmem:[#allocation2 + $0x2c] sm:$0xf]
    %v9484 = vld [vmem:[#allocation2 + $0x30] sm:$0xf]
    %v9485 = vld [vmem:[#allocation2 + $0x34] sm:$0xf]
    %v9486 = vld [vmem:[#allocation2 + $0x38] sm:$0xf]
    %v9487 = vld [vmem:[#allocation2 + $0x3c] sm:$0xf]
    %v9488 = vld [vmem:[#allocation2 + $0x40] sm:$0xf]
    %v9489 = vld [vmem:[#allocation2 + $0x44] sm:$0xf]
    %v9490 = vld [vmem:[#allocation2 + $0x48] sm:$0xf]
    %v9491 = vld [vmem:[#allocation2 + $0x4c] sm:$0xf]
    %v9492 = vld [vmem:[#allocation2 + $0x50] sm:$0xf]
    %v9493 = vld [vmem:[#allocation2 + $0x54] sm:$0xf]
    %v9494 = vld [vmem:[#allocation2 + $0x58] sm:$0xf]
    %v9495 = vld [vmem:[#allocation2 + $0x5c] sm:$0xf]
    %v9496 = vld [vmem:[#allocation2 + $0x60] sm:$0xf]
    %v9497 = vld [vmem:[#allocation2 + $0x64] sm:$0xf]
    %v9498 = vld [vmem:[#allocation2 + $0x68] sm:$0xf]
    %v9499 = vld [vmem:[#allocation2 + $0x6c] sm:$0xf]
    %v9500 = vld [vmem:[#allocation2 + $0x70] sm:$0xf]
    %v9501 = vld [vmem:[#allocation2 + $0x74] sm:$0xf]
    %v9502 = vld [vmem:[#allocation2 + $0x78] sm:$0xf]
    %v9503 = vld [vmem:[#allocation2 + $0x7c] sm:$0xf]
    %v9504 = vld [vmem:[#allocation2 + $0x80] sm:$0xf]
    %v9505 = vld [vmem:[#allocation2 + $0x84] sm:$0xf]
    %v9506 = vld [vmem:[#allocation2 + $0x88] sm:$0xf]
    %v9507 = vld [vmem:[#allocation2 + $0x8c] sm:$0xf]
    %v9508 = vld [vmem:[#allocation2 + $0x90] sm:$0xf]
    %v9509 = vld [vmem:[#allocation2 + $0x94] sm:$0xf]
    %v9510 = vld [vmem:[#allocation2 + $0x98] sm:$0xf]
    %v9511 = vld [vmem:[#allocation2 + $0x9c] sm:$0xf]
    %v9512 = vld [vmem:[#allocation2 + $0xa0] sm:$0xf]
    %v9513 = vld [vmem:[#allocation2 + $0xa4] sm:$0xf]
    %v9514 = vld [vmem:[#allocation2 + $0xa8] sm:$0xf]
    %v9515 = vld [vmem:[#allocation2 + $0xac] sm:$0xf]
    %v9516 = vld [vmem:[#allocation2 + $0xb0] sm:$0xf]
    %v9517 = vld [vmem:[#allocation2 + $0xb4] sm:$0xf]
    %v9518 = vld [vmem:[#allocation2 + $0xb8] sm:$0xf]
    %v9519 = vld [vmem:[#allocation2 + $0xbc] sm:$0xf]
    %v9520 = vld [vmem:[#allocation2 + $0xc0] sm:$0xf]
    %v9521 = vld [vmem:[#allocation2 + $0xc4] sm:$0xf]
    %v9522 = vld [vmem:[#allocation2 + $0xc8] sm:$0xf]
    %v9523 = vld [vmem:[#allocation2 + $0xcc] sm:$0xf]
    %v9524 = vld [vmem:[#allocation2 + $0xd0] sm:$0xf]
    %v9525 = vld [vmem:[#allocation2 + $0xd4] sm:$0xf]
    %s9526 = scalar_lea.vmem %s5, 96
    %v9527 = vld [vmem:[%s9526] sm:$0xf]
    %v9528 = vld [vmem:[%s9526 + $0x4] sm:$0xf]
    %v9529 = vld [vmem:[%s9526 + $0x8] sm:$0xf]
    %v9530 = vld [vmem:[%s9526 + $0xc] sm:$0xf]
    %v9582 = vunpack.c.l.b16 %v9475
    %v9583 = vunpack.c.l.b16 %v9476
    %v9584 = vunpack.c.l.b16 %v9477
    %v9585 = vunpack.c.l.b16 %v9478
    %v9586 = vunpack.c.l.b16 %v9479
    %v9587 = vunpack.c.l.b16 %v9480
    %v9588 = vunpack.c.l.b16 %v9481
    %v9589 = vunpack.c.l.b16 %v9482
    %v9590 = vunpack.c.l.b16 %v9483
    %v9591 = vunpack.c.l.b16 %v9484
    %v9592 = vunpack.c.l.b16 %v9485
    %v9593 = vunpack.c.l.b16 %v9486
    %v9594 = vunpack.c.l.b16 %v9487
    %v9595 = vunpack.c.l.b16 %v9488
    %v9596 = vunpack.c.l.b16 %v9489
    %v9597 = vunpack.c.l.b16 %v9490
    %v9598 = vunpack.c.l.b16 %v9491
    %v9599 = vunpack.c.l.b16 %v9492
    %v9600 = vunpack.c.l.b16 %v9493
    %v9601 = vunpack.c.l.b16 %v9494
    %v9602 = vunpack.c.l.b16 %v9495
    %v9603 = vunpack.c.l.b16 %v9496
    %v9604 = vunpack.c.l.b16 %v9497
    %v9605 = vunpack.c.l.b16 %v9498
    %v9606 = vunpack.c.l.b16 %v9499
    %v9607 = vunpack.c.l.b16 %v9500
    %v9608 = vunpack.c.l.b16 %v9501
    %v9609 = vunpack.c.l.b16 %v9502
    %v9610 = vunpack.c.l.b16 %v9503
    %v9611 = vunpack.c.l.b16 %v9504
    %v9612 = vunpack.c.l.b16 %v9505
    %v9613 = vunpack.c.l.b16 %v9506
    %v9614 = vunpack.c.l.b16 %v9507
    %v9615 = vunpack.c.l.b16 %v9508
    %v9616 = vunpack.c.l.b16 %v9509
    %v9617 = vunpack.c.l.b16 %v9510
    %v9618 = vunpack.c.l.b16 %v9511
    %v9619 = vunpack.c.l.b16 %v9512
    %v9620 = vunpack.c.l.b16 %v9513
    %v9621 = vunpack.c.l.b16 %v9514
    %v9622 = vunpack.c.l.b16 %v9515
    %v9623 = vunpack.c.l.b16 %v9516
    %v9624 = vunpack.c.l.b16 %v9517
    %v9625 = vunpack.c.l.b16 %v9518
    %v9626 = vunpack.c.l.b16 %v9519
    %v9627 = vunpack.c.l.b16 %v9520
    %v9628 = vunpack.c.l.b16 %v9521
    %v9629 = vunpack.c.l.b16 %v9522
    %v9630 = vunpack.c.l.b16 %v9523
    %v9631 = vunpack.c.l.b16 %v9524
    %v9632 = vunpack.c.l.b16 %v9525
    %v9633 = vpack.c.b16 %v9583, %v9582
    %v9634 = vpack.c.b16 %v9585, %v9584
    %v9635 = vpack.c.b16 %v9587, %v9586
    %v9636 = vpack.c.b16 %v9589, %v9588
    %v9637 = vpack.c.b16 %v9591, %v9590
    %v9638 = vpack.c.b16 %v9593, %v9592
    %v9639 = vpack.c.b16 %v9595, %v9594
    %v9640 = vpack.c.b16 %v9597, %v9596
    %v9641 = vpack.c.b16 %v9599, %v9598
    %v9642 = vpack.c.b16 %v9601, %v9600
    %v9643 = vpack.c.b16 %v9603, %v9602
    %v9644 = vpack.c.b16 %v9605, %v9604
    %v9645 = vpack.c.b16 %v9607, %v9606
    %v9646 = vpack.c.b16 %v9609, %v9608
    %v9647 = vpack.c.b16 %v9611, %v9610
    %v9648 = vpack.c.b16 %v9613, %v9612
    %v9649 = vpack.c.b16 %v9615, %v9614
    %v9650 = vpack.c.b16 %v9617, %v9616
    %v9651 = vpack.c.b16 %v9619, %v9618
    %v9652 = vpack.c.b16 %v9621, %v9620
    %v9653 = vpack.c.b16 %v9623, %v9622
    %v9654 = vpack.c.b16 %v9625, %v9624
    %v9655 = vpack.c.b16 %v9627, %v9626
    %v9656 = vpack.c.b16 %v9629, %v9628
    %v9657 = vpack.c.b16 %v9631, %v9630
    %v9658 = vpack.c.b16 %v9632, %v9632
    %vm9659 = vcmask 1044480
    %v9660 = vrot.slane %v9633, 3
    %v9661 = vrot.slane %v9634, 3
    %v9662 = vsel %vm9659, %v9660, %v9661
    %v9663 = vrot.slane %v9635, 3
    %v9664 = vsel %vm9659, %v9661, %v9663
    %v9665 = vrot.slane %v9636, 3
    %v9666 = vsel %vm9659, %v9663, %v9665
    %v9667 = vrot.slane %v9637, 3
    %v9668 = vsel %vm9659, %v9665, %v9667
    %v9669 = vrot.slane %v9638, 3
    %v9670 = vsel %vm9659, %v9667, %v9669
    %v9671 = vrot.slane %v9639, 3
    %v9672 = vsel %vm9659, %v9669, %v9671
    %v9673 = vrot.slane %v9640, 3
    %v9674 = vsel %vm9659, %v9671, %v9673
    %v9675 = vrot.slane %v9641, 3
    %v9676 = vsel %vm9659, %v9673, %v9675
    %v9677 = vrot.slane %v9642, 3
    %v9678 = vsel %vm9659, %v9675, %v9677
    %v9679 = vrot.slane %v9643, 3
    %v9680 = vsel %vm9659, %v9677, %v9679
    %v9681 = vrot.slane %v9644, 3
    %v9682 = vsel %vm9659, %v9679, %v9681
    %v9683 = vrot.slane %v9645, 3
    %v9684 = vsel %vm9659, %v9681, %v9683
    %v9685 = vrot.slane %v9646, 3
    %v9686 = vsel %vm9659, %v9683, %v9685
    %v9687 = vrot.slane %v9647, 3
    %v9688 = vsel %vm9659, %v9685, %v9687
    %v9689 = vrot.slane %v9648, 3
    %v9690 = vsel %vm9659, %v9687, %v9689
    %v9691 = vrot.slane %v9649, 3
    %v9692 = vsel %vm9659, %v9689, %v9691
    %v9693 = vrot.slane %v9650, 3
    %v9694 = vsel %vm9659, %v9691, %v9693
    %v9695 = vrot.slane %v9651, 3
    %v9696 = vsel %vm9659, %v9693, %v9695
    %v9697 = vrot.slane %v9652, 3
    %v9698 = vsel %vm9659, %v9695, %v9697
    %v9699 = vrot.slane %v9653, 3
    %v9700 = vsel %vm9659, %v9697, %v9699
    %v9701 = vrot.slane %v9654, 3
    %v9702 = vsel %vm9659, %v9699, %v9701
    %v9703 = vrot.slane %v9655, 3
    %v9704 = vsel %vm9659, %v9701, %v9703
    %v9705 = vrot.slane %v9656, 3
    %v9706 = vsel %vm9659, %v9703, %v9705
    %v9707 = vrot.slane %v9657, 3
    %v9708 = vsel %vm9659, %v9705, %v9707
    %v9709 = vrot.slane %v9658, 3
    %v9710 = vsel %vm9659, %v9707, %v9709
    %v9715 = vunpack.c.l.b16 %v9527
    %v9716 = vunpack.c.l.b16 %v9528
    %v9717 = vunpack.c.l.b16 %v9529
    %v9718 = vunpack.c.l.b16 %v9530
    %v9719 = vpack.c.b16 %v9716, %v9715
    %v9720 = vpack.c.b16 %v9718, %v9717
    %v9724 = vsel %vm5323, %v9662, 0
    %v9727 = vsel %vm5323, %v9664, 0
    %v9730 = vsel %vm5323, %v9666, 0
    %v9733 = vsel %vm5323, %v9668, 0
    %v9736 = vsel %vm5323, %v9670, 0
    %v9739 = vsel %vm5323, %v9672, 0
    %v9742 = vsel %vm5323, %v9674, 0
    %v9745 = vsel %vm5323, %v9676, 0
    %v9748 = vsel %vm5323, %v9678, 0
    %v9751 = vsel %vm5323, %v9680, 0
    %v9754 = vsel %vm5323, %v9682, 0
    %v9757 = vsel %vm5323, %v9684, 0
    %v9760 = vsel %vm5323, %v9686, 0
    %v9763 = vsel %vm5323, %v9688, 0
    %v9766 = vsel %vm5323, %v9690, 0
    %v9769 = vsel %vm5323, %v9692, 0
    %v9772 = vsel %vm5323, %v9694, 0
    %v9775 = vsel %vm5323, %v9696, 0
    %v9778 = vsel %vm5323, %v9698, 0
    %v9781 = vsel %vm5323, %v9700, 0
    %v9784 = vsel %vm5323, %v9702, 0
    %v9787 = vsel %vm5323, %v9704, 0
    %v9790 = vsel %vm5323, %v9706, 0
    %v9793 = vsel %vm5323, %v9708, 0
    %v9796 = vsel %vm5323, %v9710, 0
    %v9799 = vsel %vm5323, %v9709, 0
    %9801 = vmatprep.subr.bf16.mxu0 0
    %9802 = vmatpush1.bf16.msra.mxu0 %v9719
    %9803 = vmatprep.subr.bf16.mxu0 0
    %9804 = vmatpush1.bf16.msra.mxu0 %v9720
    %9805 = vmatprep.subr.bf16.mxu0 0
    %9806 = vmatpush1.bf16.msra.mxu0 0
    %9807 = vmatprep.subr.bf16.mxu0 0
    %9808 = vmatpush1.bf16.msra.mxu0 0
    %9809 = vmatprep.subr.bf16.mxu0 0
    %9810 = vmatpush1.bf16.msra.mxu0 0
    %9811 = vmatprep.subr.bf16.mxu0 0
    %9812 = vmatpush1.bf16.msra.mxu0 0
    %9813 = vmatprep.subr.bf16.mxu0 0
    %9814 = vmatpush1.bf16.msra.mxu0 0
    %9815 = vmatprep.subr.bf16.mxu0 0
    %9816 = vmatpush1.bf16.msra.mxu0 0
    %9817 = vmatprep.subr.bf16.mxu0 0
    %9818 = vmatpush1.bf16.msra.mxu0 0
    %9819 = vmatprep.subr.bf16.mxu0 0
    %9820 = vmatpush1.bf16.msra.mxu0 0
    %9821 = vmatprep.subr.bf16.mxu0 0
    %9822 = vmatpush1.bf16.msra.mxu0 0
    %9823 = vmatprep.subr.bf16.mxu0 0
    %9824 = vmatpush1.bf16.msra.mxu0 0
    %9825 = vmatprep.subr.bf16.mxu0 0
    %9826 = vmatpush1.bf16.msra.mxu0 0
    %9827 = vmatprep.subr.bf16.mxu0 0
    %9828 = vmatpush1.bf16.msra.mxu0 0
    %9829 = vmatprep.subr.bf16.mxu0 0
    %9830 = vmatpush1.bf16.msra.mxu0 0
    %9831 = vmatprep.subr.bf16.mxu0 0
    %9832 = vmatpush1.bf16.msra.mxu0 0
    %9833 = vmatprep.mubr.bf16.mxu0 0
    %9834 = vmatmul.mubr.bf16.gmra.mrb[0].mxu0 %v9724
    %v9835 = vpop.f32.mrb[0].mxu0
    %v9836 = vadd.f32 0.0, %v9835
    %v9837 = vpop.f32.mrb[0].mxu0
    %v9838 = vpop.f32.mrb[0].mxu0
    %v9839 = vadd.f32 0.0, %v9838
    %v9840 = vpop.f32.mrb[0].mxu0
    %9841 = vmatprep.mubr.bf16.mxu0 0
    %9842 = vmatmul.mubr.bf16.gmra.mrb[0].mxu0 %v9727
    %v9843 = vpop.f32.mrb[0].mxu0
    %v9844 = vadd.f32 0.0, %v9843
    %v9845 = vpop.f32.mrb[0].mxu0
    %v9846 = vpop.f32.mrb[0].mxu0
    %v9847 = vadd.f32 0.0, %v9846
    %v9848 = vpop.f32.mrb[0].mxu0
    %9849 = vmatprep.mubr.bf16.mxu0 0
    %9850 = vmatmul.mubr.bf16.gmra.mrb[0].mxu0 %v9730
    %v9851 = vpop.f32.mrb[0].mxu0
    %v9852 = vadd.f32 0.0, %v9851
    %v9853 = vpop.f32.mrb[0].mxu0
    %v9854 = vpop.f32.mrb[0].mxu0
    %v9855 = vadd.f32 0.0, %v9854
    %v9856 = vpop.f32.mrb[0].mxu0
    %9857 = vmatprep.mubr.bf16.mxu0 0
    %9858 = vmatmul.mubr.bf16.gmra.mrb[0].mxu0 %v9733
    %v9859 = vpop.f32.mrb[0].mxu0
    %v9860 = vadd.f32 0.0, %v9859
    %v9861 = vpop.f32.mrb[0].mxu0
    %v9862 = vpop.f32.mrb[0].mxu0
    %v9863 = vadd.f32 0.0, %v9862
    %v9864 = vpop.f32.mrb[0].mxu0
    %9865 = vmatprep.mubr.bf16.mxu0 0
    %9866 = vmatmul.mubr.bf16.gmra.mrb[0].mxu0 %v9736
    %v9867 = vpop.f32.mrb[0].mxu0
    %v9868 = vadd.f32 0.0, %v9867
    %v9869 = vpop.f32.mrb[0].mxu0
    %v9870 = vpop.f32.mrb[0].mxu0
    %v9871 = vadd.f32 0.0, %v9870
    %v9872 = vpop.f32.mrb[0].mxu0
    %9873 = vmatprep.mubr.bf16.mxu0 0
    %9874 = vmatmul.mubr.bf16.gmra.mrb[0].mxu0 %v9739
    %v9875 = vpop.f32.mrb[0].mxu0
    %v9876 = vadd.f32 0.0, %v9875
    %v9877 = vpop.f32.mrb[0].mxu0
    %v9878 = vpop.f32.mrb[0].mxu0
    %v9879 = vadd.f32 0.0, %v9878
    %v9880 = vpop.f32.mrb[0].mxu0
    %9881 = vmatprep.mubr.bf16.mxu0 0
    %9882 = vmatmul.mubr.bf16.gmra.mrb[0].mxu0 %v9742
    %v9883 = vpop.f32.mrb[0].mxu0
    %v9884 = vadd.f32 0.0, %v9883
    %v9885 = vpop.f32.mrb[0].mxu0
    %v9886 = vpop.f32.mrb[0].mxu0
    %v9887 = vadd.f32 0.0, %v9886
    %v9888 = vpop.f32.mrb[0].mxu0
    %9889 = vmatprep.mubr.bf16.mxu0 0
    %9890 = vmatmul.mubr.bf16.gmra.mrb[0].mxu0 %v9745
    %v9891 = vpop.f32.mrb[0].mxu0
    %v9892 = vadd.f32 0.0, %v9891
    %v9893 = vpop.f32.mrb[0].mxu0
    %v9894 = vpop.f32.mrb[0].mxu0
    %v9895 = vadd.f32 0.0, %v9894
    %v9896 = vpop.f32.mrb[0].mxu0
    %9897 = vmatprep.mubr.bf16.mxu0 0
    %9898 = vmatmul.mubr.bf16.gmra.mrb[0].mxu0 %v9748
    %v9899 = vpop.f32.mrb[0].mxu0
    %v9900 = vadd.f32 0.0, %v9899
    %v9901 = vpop.f32.mrb[0].mxu0
    %v9902 = vpop.f32.mrb[0].mxu0
    %v9903 = vadd.f32 0.0, %v9902
    %v9904 = vpop.f32.mrb[0].mxu0
    %9905 = vmatprep.mubr.bf16.mxu0 0
    %9906 = vmatmul.mubr.bf16.gmra.mrb[0].mxu0 %v9751
    %v9907 = vpop.f32.mrb[0].mxu0
    %v9908 = vadd.f32 0.0, %v9907
    %v9909 = vpop.f32.mrb[0].mxu0
    %v9910 = vpop.f32.mrb[0].mxu0
    %v9911 = vadd.f32 0.0, %v9910
    %v9912 = vpop.f32.mrb[0].mxu0
    %9913 = vmatprep.mubr.bf16.mxu0 0
    %9914 = vmatmul.mubr.bf16.gmra.mrb[0].mxu0 %v9754
    %v9915 = vpop.f32.mrb[0].mxu0
    %v9916 = vadd.f32 0.0, %v9915
    %v9917 = vpop.f32.mrb[0].mxu0
    %v9918 = vpop.f32.mrb[0].mxu0
    %v9919 = vadd.f32 0.0, %v9918
    %v9920 = vpop.f32.mrb[0].mxu0
    %9921 = vmatprep.mubr.bf16.mxu0 0
    %9922 = vmatmul.mubr.bf16.gmra.mrb[0].mxu0 %v9757
    %v9923 = vpop.f32.mrb[0].mxu0
    %v9924 = vadd.f32 0.0, %v9923
    %v9925 = vpop.f32.mrb[0].mxu0
    %v9926 = vpop.f32.mrb[0].mxu0
    %v9927 = vadd.f32 0.0, %v9926
    %v9928 = vpop.f32.mrb[0].mxu0
    %9929 = vmatprep.mubr.bf16.mxu0 0
    %9930 = vmatmul.mubr.bf16.gmra.mrb[0].mxu0 %v9760
    %v9931 = vpop.f32.mrb[0].mxu0
    %v9932 = vadd.f32 0.0, %v9931
    %v9933 = vpop.f32.mrb[0].mxu0
    %v9934 = vpop.f32.mrb[0].mxu0
    %v9935 = vadd.f32 0.0, %v9934
    %v9936 = vpop.f32.mrb[0].mxu0
    %9937 = vmatprep.mubr.bf16.mxu0 0
    %9938 = vmatmul.mubr.bf16.gmra.mrb[0].mxu0 %v9763
    %v9939 = vpop.f32.mrb[0].mxu0
    %v9940 = vadd.f32 0.0, %v9939
    %v9941 = vpop.f32.mrb[0].mxu0
    %v9942 = vpop.f32.mrb[0].mxu0
    %v9943 = vadd.f32 0.0, %v9942
    %v9944 = vpop.f32.mrb[0].mxu0
    %9945 = vmatprep.mubr.bf16.mxu0 0
    %9946 = vmatmul.mubr.bf16.gmra.mrb[0].mxu0 %v9766
    %v9947 = vpop.f32.mrb[0].mxu0
    %v9948 = vadd.f32 0.0, %v9947
    %v9949 = vpop.f32.mrb[0].mxu0
    %v9950 = vpop.f32.mrb[0].mxu0
    %v9951 = vadd.f32 0.0, %v9950
    %v9952 = vpop.f32.mrb[0].mxu0
    %9953 = vmatprep.mubr.bf16.mxu0 0
    %9954 = vmatmul.mubr.bf16.gmra.mrb[0].mxu0 %v9769
    %v9955 = vpop.f32.mrb[0].mxu0
    %v9956 = vadd.f32 0.0, %v9955
    %v9957 = vpop.f32.mrb[0].mxu0
    %v9958 = vpop.f32.mrb[0].mxu0
    %v9959 = vadd.f32 0.0, %v9958
    %v9960 = vpop.f32.mrb[0].mxu0
    %9961 = vmatprep.mubr.bf16.mxu0 0
    %9962 = vmatmul.mubr.bf16.gmra.mrb[0].mxu0 %v9772
    %v9963 = vpop.f32.mrb[0].mxu0
    %v9964 = vadd.f32 0.0, %v9963
    %v9965 = vpop.f32.mrb[0].mxu0
    %v9966 = vpop.f32.mrb[0].mxu0
    %v9967 = vadd.f32 0.0, %v9966
    %v9968 = vpop.f32.mrb[0].mxu0
    %9969 = vmatprep.mubr.bf16.mxu0 0
    %9970 = vmatmul.mubr.bf16.gmra.mrb[0].mxu0 %v9775
    %v9971 = vpop.f32.mrb[0].mxu0
    %v9972 = vadd.f32 0.0, %v9971
    %v9973 = vpop.f32.mrb[0].mxu0
    %v9974 = vpop.f32.mrb[0].mxu0
    %v9975 = vadd.f32 0.0, %v9974
    %v9976 = vpop.f32.mrb[0].mxu0
    %9977 = vmatprep.mubr.bf16.mxu0 0
    %9978 = vmatmul.mubr.bf16.gmra.mrb[0].mxu0 %v9778
    %v9979 = vpop.f32.mrb[0].mxu0
    %v9980 = vadd.f32 0.0, %v9979
    %v9981 = vpop.f32.mrb[0].mxu0
    %v9982 = vpop.f32.mrb[0].mxu0
    %v9983 = vadd.f32 0.0, %v9982
    %v9984 = vpop.f32.mrb[0].mxu0
    %9985 = vmatprep.mubr.bf16.mxu0 0
    %9986 = vmatmul.mubr.bf16.gmra.mrb[0].mxu0 %v9781
    %v9987 = vpop.f32.mrb[0].mxu0
    %v9988 = vadd.f32 0.0, %v9987
    %v9989 = vpop.f32.mrb[0].mxu0
    %v9990 = vpop.f32.mrb[0].mxu0
    %v9991 = vadd.f32 0.0, %v9990
    %v9992 = vpop.f32.mrb[0].mxu0
    %9993 = vmatprep.mubr.bf16.mxu0 0
    %9994 = vmatmul.mubr.bf16.gmra.mrb[0].mxu0 %v9784
    %v9995 = vpop.f32.mrb[0].mxu0
    %v9996 = vadd.f32 0.0, %v9995
    %v9997 = vpop.f32.mrb[0].mxu0
    %v9998 = vpop.f32.mrb[0].mxu0
    %v9999 = vadd.f32 0.0, %v9998
    %v10000 = vpop.f32.mrb[0].mxu0
    %10001 = vmatprep.mubr.bf16.mxu0 0
    %10002 = vmatmul.mubr.bf16.gmra.mrb[0].mxu0 %v9787
    %v10003 = vpop.f32.mrb[0].mxu0
    %v10004 = vadd.f32 0.0, %v10003
    %v10005 = vpop.f32.mrb[0].mxu0
    %v10006 = vpop.f32.mrb[0].mxu0
    %v10007 = vadd.f32 0.0, %v10006
    %v10008 = vpop.f32.mrb[0].mxu0
    %10009 = vmatprep.mubr.bf16.mxu0 0
    %10010 = vmatmul.mubr.bf16.gmra.mrb[0].mxu0 %v9790
    %v10011 = vpop.f32.mrb[0].mxu0
    %v10012 = vadd.f32 0.0, %v10011
    %v10013 = vpop.f32.mrb[0].mxu0
    %v10014 = vpop.f32.mrb[0].mxu0
    %v10015 = vadd.f32 0.0, %v10014
    %v10016 = vpop.f32.mrb[0].mxu0
    %10017 = vmatprep.mubr.bf16.mxu0 0
    %10018 = vmatmul.mubr.bf16.gmra.mrb[0].mxu0 %v9793
    %v10019 = vpop.f32.mrb[0].mxu0
    %v10020 = vadd.f32 0.0, %v10019
    %v10021 = vpop.f32.mrb[0].mxu0
    %v10022 = vpop.f32.mrb[0].mxu0
    %v10023 = vadd.f32 0.0, %v10022
    %v10024 = vpop.f32.mrb[0].mxu0
    %10025 = vmatprep.mubr.bf16.mxu0 0
    %10026 = vmatmul.mubr.bf16.gmra.mrb[0].mxu0 %v9796
    %v10027 = vpop.f32.mrb[0].mxu0
    %v10028 = vadd.f32 0.0, %v10027
    %v10029 = vpop.f32.mrb[0].mxu0
    %v10030 = vpop.f32.mrb[0].mxu0
    %v10031 = vadd.f32 0.0, %v10030
    %v10032 = vpop.f32.mrb[0].mxu0
    %10033 = vmatprep.mubr.bf16.mxu0 0
    %10034 = vmatmul.mubr.bf16.gmra.mrb[0].mxu0 %v9799
    %v10035 = vpop.f32.mrb[0].mxu0
    %v10036 = vadd.f32 0.0, %v10035
    %v10037 = vpop.f32.mrb[0].mxu0
    %v10038 = vpop.f32.mrb[0].mxu0
    %v10039 = vpop.f32.mrb[0].mxu0
    %10040 = vdwg.mxu0
    %v10041 = vadd.f32 %v9424, %v9836
    %v10042 = vadd.f32 %v9425, %v9839
    %v10043 = vadd.f32 %v9426, %v9844
    %v10044 = vadd.f32 %v9427, %v9847
    %v10045 = vadd.f32 %v9428, %v9852
    %v10046 = vadd.f32 %v9429, %v9855
    %v10047 = vadd.f32 %v9430, %v9860
    %v10048 = vadd.f32 %v9431, %v9863
    %v10049 = vadd.f32 %v9432, %v9868
    %v10050 = vadd.f32 %v9433, %v9871
    %v10051 = vadd.f32 %v9434, %v9876
    %v10052 = vadd.f32 %v9435, %v9879
    %v10053 = vadd.f32 %v9436, %v9884
    %v10054 = vadd.f32 %v9437, %v9887
    %v10055 = vadd.f32 %v9438, %v9892
    %v10056 = vadd.f32 %v9439, %v9895
    %v10057 = vadd.f32 %v9440, %v9900
    %v10058 = vadd.f32 %v9441, %v9903
    %v10059 = vadd.f32 %v9442, %v9908
    %v10060 = vadd.f32 %v9443, %v9911
    %v10061 = vadd.f32 %v9444, %v9916
    %v10062 = vadd.f32 %v9445, %v9919
    %v10063 = vadd.f32 %v9446, %v9924
    %v10064 = vadd.f32 %v9447, %v9927
    %v10065 = vadd.f32 %v9448, %v9932
    %v10066 = vadd.f32 %v9449, %v9935
    %v10067 = vadd.f32 %v9450, %v9940
    %v10068 = vadd.f32 %v9451, %v9943
    %v10069 = vadd.f32 %v9452, %v9948
    %v10070 = vadd.f32 %v9453, %v9951
    %v10071 = vadd.f32 %v9454, %v9956
    %v10072 = vadd.f32 %v9455, %v9959
    %v10073 = vadd.f32 %v9456, %v9964
    %v10074 = vadd.f32 %v9457, %v9967
    %v10075 = vadd.f32 %v9458, %v9972
    %v10076 = vadd.f32 %v9459, %v9975
    %v10077 = vadd.f32 %v9460, %v9980
    %v10078 = vadd.f32 %v9461, %v9983
    %v10079 = vadd.f32 %v9462, %v9988
    %v10080 = vadd.f32 %v9463, %v9991
    %v10081 = vadd.f32 %v9464, %v9996
    %v10082 = vadd.f32 %v9465, %v9999
    %v10083 = vadd.f32 %v9466, %v10004
    %v10084 = vadd.f32 %v9467, %v10007
    %v10085 = vadd.f32 %v9468, %v10012
    %v10086 = vadd.f32 %v9469, %v10015
    %v10087 = vadd.f32 %v9470, %v10020
    %v10088 = vadd.f32 %v9471, %v10023
    %v10089 = vadd.f32 %v9472, %v10028
    %v10090 = vadd.f32 %v9473, %v10031
    %v10091 = vadd.f32 %v9474, %v10036
    %v10092 = vld [vmem:[#allocation2 + $0xc] sm:$0x8]
    %v10093 = vld [vmem:[#allocation2 + $0x10] sm:$0xf]
    %v10094 = vld [vmem:[#allocation2 + $0x14] sm:$0xf]
    %v10095 = vld [vmem:[#allocation2 + $0x18] sm:$0xf]
    %v10096 = vld [vmem:[#allocation2 + $0x1c] sm:$0xf]
    %v10097 = vld [vmem:[#allocation2 + $0x20] sm:$0xf]
    %v10098 = vld [vmem:[#allocation2 + $0x24] sm:$0xf]
    %v10099 = vld [vmem:[#allocation2 + $0x28] sm:$0xf]
    %v10100 = vld [vmem:[#allocation2 + $0x2c] sm:$0xf]
    %v10101 = vld [vmem:[#allocation2 + $0x30] sm:$0xf]
    %v10102 = vld [vmem:[#allocation2 + $0x34] sm:$0xf]
    %v10103 = vld [vmem:[#allocation2 + $0x38] sm:$0xf]
    %v10104 = vld [vmem:[#allocation2 + $0x3c] sm:$0xf]
    %v10105 = vld [vmem:[#allocation2 + $0x40] sm:$0xf]
    %v10106 = vld [vmem:[#allocation2 + $0x44] sm:$0xf]
    %v10107 = vld [vmem:[#allocation2 + $0x48] sm:$0xf]
    %v10108 = vld [vmem:[#allocation2 + $0x4c] sm:$0xf]
    %v10109 = vld [vmem:[#allocation2 + $0x50] sm:$0xf]
    %v10110 = vld [vmem:[#allocation2 + $0x54] sm:$0xf]
    %v10111 = vld [vmem:[#allocation2 + $0x58] sm:$0xf]
    %v10112 = vld [vmem:[#allocation2 + $0x5c] sm:$0xf]
    %v10113 = vld [vmem:[#allocation2 + $0x60] sm:$0xf]
    %v10114 = vld [vmem:[#allocation2 + $0x64] sm:$0xf]
    %v10115 = vld [vmem:[#allocation2 + $0x68] sm:$0xf]
    %v10116 = vld [vmem:[#allocation2 + $0x6c] sm:$0xf]
    %v10117 = vld [vmem:[#allocation2 + $0x70] sm:$0xf]
    %v10118 = vld [vmem:[#allocation2 + $0x74] sm:$0xf]
    %v10119 = vld [vmem:[#allocation2 + $0x78] sm:$0xf]
    %v10120 = vld [vmem:[#allocation2 + $0x7c] sm:$0xf]
    %v10121 = vld [vmem:[#allocation2 + $0x80] sm:$0xf]
    %v10122 = vld [vmem:[#allocation2 + $0x84] sm:$0xf]
    %v10123 = vld [vmem:[#allocation2 + $0x88] sm:$0xf]
    %v10124 = vld [vmem:[#allocation2 + $0x8c] sm:$0xf]
    %v10125 = vld [vmem:[#allocation2 + $0x90] sm:$0xf]
    %v10126 = vld [vmem:[#allocation2 + $0x94] sm:$0xf]
    %v10127 = vld [vmem:[#allocation2 + $0x98] sm:$0xf]
    %v10128 = vld [vmem:[#allocation2 + $0x9c] sm:$0xf]
    %v10129 = vld [vmem:[#allocation2 + $0xa0] sm:$0xf]
    %v10130 = vld [vmem:[#allocation2 + $0xa4] sm:$0xf]
    %v10131 = vld [vmem:[#allocation2 + $0xa8] sm:$0xf]
    %v10132 = vld [vmem:[#allocation2 + $0xac] sm:$0xf]
    %v10133 = vld [vmem:[#allocation2 + $0xb0] sm:$0xf]
    %v10134 = vld [vmem:[#allocation2 + $0xb4] sm:$0xf]
    %v10135 = vld [vmem:[#allocation2 + $0xb8] sm:$0xf]
    %v10136 = vld [vmem:[#allocation2 + $0xbc] sm:$0xf]
    %v10137 = vld [vmem:[#allocation2 + $0xc0] sm:$0xf]
    %v10138 = vld [vmem:[#allocation2 + $0xc4] sm:$0xf]
    %v10139 = vld [vmem:[#allocation2 + $0xc8] sm:$0xf]
    %v10140 = vld [vmem:[#allocation2 + $0xcc] sm:$0xf]
    %v10141 = vld [vmem:[#allocation2 + $0xd0] sm:$0xf]
    %v10142 = vld [vmem:[#allocation2 + $0xd4] sm:$0xf]
    %v10143 = vld [vmem:[#allocation2 + $0xd8] sm:$0x1]
    %s10144 = scalar_lea.vmem %s5, 112
    %v10145 = vld [vmem:[%s10144] sm:$0xf]
    %v10146 = vld [vmem:[%s10144 + $0x4] sm:$0xf]
    %v10147 = vld [vmem:[%s10144 + $0x8] sm:$0xf]
    %v10148 = vld [vmem:[%s10144 + $0xc] sm:$0xf]
    %v10201 = vunpack.c.l.b16 %v10092
    %v10202 = vunpack.c.l.b16 %v10093
    %v10203 = vunpack.c.l.b16 %v10094
    %v10204 = vunpack.c.l.b16 %v10095
    %v10205 = vunpack.c.l.b16 %v10096
    %v10206 = vunpack.c.l.b16 %v10097
    %v10207 = vunpack.c.l.b16 %v10098
    %v10208 = vunpack.c.l.b16 %v10099
    %v10209 = vunpack.c.l.b16 %v10100
    %v10210 = vunpack.c.l.b16 %v10101
    %v10211 = vunpack.c.l.b16 %v10102
    %v10212 = vunpack.c.l.b16 %v10103
    %v10213 = vunpack.c.l.b16 %v10104
    %v10214 = vunpack.c.l.b16 %v10105
    %v10215 = vunpack.c.l.b16 %v10106
    %v10216 = vunpack.c.l.b16 %v10107
    %v10217 = vunpack.c.l.b16 %v10108
    %v10218 = vunpack.c.l.b16 %v10109
    %v10219 = vunpack.c.l.b16 %v10110
    %v10220 = vunpack.c.l.b16 %v10111
    %v10221 = vunpack.c.l.b16 %v10112
    %v10222 = vunpack.c.l.b16 %v10113
    %v10223 = vunpack.c.l.b16 %v10114
    %v10224 = vunpack.c.l.b16 %v10115
    %v10225 = vunpack.c.l.b16 %v10116
    %v10226 = vunpack.c.l.b16 %v10117
    %v10227 = vunpack.c.l.b16 %v10118
    %v10228 = vunpack.c.l.b16 %v10119
    %v10229 = vunpack.c.l.b16 %v10120
    %v10230 = vunpack.c.l.b16 %v10121
    %v10231 = vunpack.c.l.b16 %v10122
    %v10232 = vunpack.c.l.b16 %v10123
    %v10233 = vunpack.c.l.b16 %v10124
    %v10234 = vunpack.c.l.b16 %v10125
    %v10235 = vunpack.c.l.b16 %v10126
    %v10236 = vunpack.c.l.b16 %v10127
    %v10237 = vunpack.c.l.b16 %v10128
    %v10238 = vunpack.c.l.b16 %v10129
    %v10239 = vunpack.c.l.b16 %v10130
    %v10240 = vunpack.c.l.b16 %v10131
    %v10241 = vunpack.c.l.b16 %v10132
    %v10242 = vunpack.c.l.b16 %v10133
    %v10243 = vunpack.c.l.b16 %v10134
    %v10244 = vunpack.c.l.b16 %v10135
    %v10245 = vunpack.c.l.b16 %v10136
    %v10246 = vunpack.c.l.b16 %v10137
    %v10247 = vunpack.c.l.b16 %v10138
    %v10248 = vunpack.c.l.b16 %v10139
    %v10249 = vunpack.c.l.b16 %v10140
    %v10250 = vunpack.c.l.b16 %v10141
    %v10251 = vunpack.c.l.b16 %v10142
    %v10252 = vunpack.c.l.b16 %v10143
    %v10253 = vpack.c.b16 %v10202, %v10201
    %v10254 = vpack.c.b16 %v10204, %v10203
    %v10255 = vpack.c.b16 %v10206, %v10205
    %v10256 = vpack.c.b16 %v10208, %v10207
    %v10257 = vpack.c.b16 %v10210, %v10209
    %v10258 = vpack.c.b16 %v10212, %v10211
    %v10259 = vpack.c.b16 %v10214, %v10213
    %v10260 = vpack.c.b16 %v10216, %v10215
    %v10261 = vpack.c.b16 %v10218, %v10217
    %v10262 = vpack.c.b16 %v10220, %v10219
    %v10263 = vpack.c.b16 %v10222, %v10221
    %v10264 = vpack.c.b16 %v10224, %v10223
    %v10265 = vpack.c.b16 %v10226, %v10225
    %v10266 = vpack.c.b16 %v10228, %v10227
    %v10267 = vpack.c.b16 %v10230, %v10229
    %v10268 = vpack.c.b16 %v10232, %v10231
    %v10269 = vpack.c.b16 %v10234, %v10233
    %v10270 = vpack.c.b16 %v10236, %v10235
    %v10271 = vpack.c.b16 %v10238, %v10237
    %v10272 = vpack.c.b16 %v10240, %v10239
    %v10273 = vpack.c.b16 %v10242, %v10241
    %v10274 = vpack.c.b16 %v10244, %v10243
    %v10275 = vpack.c.b16 %v10246, %v10245
    %v10276 = vpack.c.b16 %v10248, %v10247
    %v10277 = vpack.c.b16 %v10250, %v10249
    %v10278 = vpack.c.b16 %v10252, %v10251
    %v10280 = vshrl.u32 %v10253, 16
    %v10282 = vrot.slane %v10280, 3
    %v10283 = vshll.u32 %v10253, 16
    %v10285 = vrot.slane %v10283, 4
    %v10286 = vor.u32 %v10282, %v10285
    %v10288 = vshrl.u32 %v10254, 16
    %v10290 = vrot.slane %v10288, 3
    %v10291 = vshll.u32 %v10254, 16
    %v10293 = vrot.slane %v10291, 4
    %v10294 = vor.u32 %v10290, %v10293
    %v10295 = vsel %vm7876, %v10286, %v10294
    %v10297 = vshrl.u32 %v10255, 16
    %v10299 = vrot.slane %v10297, 3
    %v10300 = vshll.u32 %v10255, 16
    %v10302 = vrot.slane %v10300, 4
    %v10303 = vor.u32 %v10299, %v10302
    %v10304 = vsel %vm7876, %v10294, %v10303
    %v10306 = vshrl.u32 %v10256, 16
    %v10308 = vrot.slane %v10306, 3
    %v10309 = vshll.u32 %v10256, 16
    %v10311 = vrot.slane %v10309, 4
    %v10312 = vor.u32 %v10308, %v10311
    %v10313 = vsel %vm7876, %v10303, %v10312
    %v10315 = vshrl.u32 %v10257, 16
    %v10317 = vrot.slane %v10315, 3
    %v10318 = vshll.u32 %v10257, 16
    %v10320 = vrot.slane %v10318, 4
    %v10321 = vor.u32 %v10317, %v10320
    %v10322 = vsel %vm7876, %v10312, %v10321
    %v10324 = vshrl.u32 %v10258, 16
    %v10326 = vrot.slane %v10324, 3
    %v10327 = vshll.u32 %v10258, 16
    %v10329 = vrot.slane %v10327, 4
    %v10330 = vor.u32 %v10326, %v10329
    %v10331 = vsel %vm7876, %v10321, %v10330
    %v10333 = vshrl.u32 %v10259, 16
    %v10335 = vrot.slane %v10333, 3
    %v10336 = vshll.u32 %v10259, 16
    %v10338 = vrot.slane %v10336, 4
    %v10339 = vor.u32 %v10335, %v10338
    %v10340 = vsel %vm7876, %v10330, %v10339
    %v10342 = vshrl.u32 %v10260, 16
    %v10344 = vrot.slane %v10342, 3
    %v10345 = vshll.u32 %v10260, 16
    %v10347 = vrot.slane %v10345, 4
    %v10348 = vor.u32 %v10344, %v10347
    %v10349 = vsel %vm7876, %v10339, %v10348
    %v10351 = vshrl.u32 %v10261, 16
    %v10353 = vrot.slane %v10351, 3
    %v10354 = vshll.u32 %v10261, 16
    %v10356 = vrot.slane %v10354, 4
    %v10357 = vor.u32 %v10353, %v10356
    %v10358 = vsel %vm7876, %v10348, %v10357
    %v10360 = vshrl.u32 %v10262, 16
    %v10362 = vrot.slane %v10360, 3
    %v10363 = vshll.u32 %v10262, 16
    %v10365 = vrot.slane %v10363, 4
    %v10366 = vor.u32 %v10362, %v10365
    %v10367 = vsel %vm7876, %v10357, %v10366
    %v10369 = vshrl.u32 %v10263, 16
    %v10371 = vrot.slane %v10369, 3
    %v10372 = vshll.u32 %v10263, 16
    %v10374 = vrot.slane %v10372, 4
    %v10375 = vor.u32 %v10371, %v10374
    %v10376 = vsel %vm7876, %v10366, %v10375
    %v10378 = vshrl.u32 %v10264, 16
    %v10380 = vrot.slane %v10378, 3
    %v10381 = vshll.u32 %v10264, 16
    %v10383 = vrot.slane %v10381, 4
    %v10384 = vor.u32 %v10380, %v10383
    %v10385 = vsel %vm7876, %v10375, %v10384
    %v10387 = vshrl.u32 %v10265, 16
    %v10389 = vrot.slane %v10387, 3
    %v10390 = vshll.u32 %v10265, 16
    %v10392 = vrot.slane %v10390, 4
    %v10393 = vor.u32 %v10389, %v10392
    %v10394 = vsel %vm7876, %v10384, %v10393
    %v10396 = vshrl.u32 %v10266, 16
    %v10398 = vrot.slane %v10396, 3
    %v10399 = vshll.u32 %v10266, 16
    %v10401 = vrot.slane %v10399, 4
    %v10402 = vor.u32 %v10398, %v10401
    %v10403 = vsel %vm7876, %v10393, %v10402
    %v10405 = vshrl.u32 %v10267, 16
    %v10407 = vrot.slane %v10405, 3
    %v10408 = vshll.u32 %v10267, 16
    %v10410 = vrot.slane %v10408, 4
    %v10411 = vor.u32 %v10407, %v10410
    %v10412 = vsel %vm7876, %v10402, %v10411
    %v10414 = vshrl.u32 %v10268, 16
    %v10416 = vrot.slane %v10414, 3
    %v10417 = vshll.u32 %v10268, 16
    %v10419 = vrot.slane %v10417, 4
    %v10420 = vor.u32 %v10416, %v10419
    %v10421 = vsel %vm7876, %v10411, %v10420
    %v10423 = vshrl.u32 %v10269, 16
    %v10425 = vrot.slane %v10423, 3
    %v10426 = vshll.u32 %v10269, 16
    %v10428 = vrot.slane %v10426, 4
    %v10429 = vor.u32 %v10425, %v10428
    %v10430 = vsel %vm7876, %v10420, %v10429
    %v10432 = vshrl.u32 %v10270, 16
    %v10434 = vrot.slane %v10432, 3
    %v10435 = vshll.u32 %v10270, 16
    %v10437 = vrot.slane %v10435, 4
    %v10438 = vor.u32 %v10434, %v10437
    %v10439 = vsel %vm7876, %v10429, %v10438
    %v10441 = vshrl.u32 %v10271, 16
    %v10443 = vrot.slane %v10441, 3
    %v10444 = vshll.u32 %v10271, 16
    %v10446 = vrot.slane %v10444, 4
    %v10447 = vor.u32 %v10443, %v10446
    %v10448 = vsel %vm7876, %v10438, %v10447
    %v10450 = vshrl.u32 %v10272, 16
    %v10452 = vrot.slane %v10450, 3
    %v10453 = vshll.u32 %v10272, 16
    %v10455 = vrot.slane %v10453, 4
    %v10456 = vor.u32 %v10452, %v10455
    %v10457 = vsel %vm7876, %v10447, %v10456
    %v10459 = vshrl.u32 %v10273, 16
    %v10461 = vrot.slane %v10459, 3
    %v10462 = vshll.u32 %v10273, 16
    %v10464 = vrot.slane %v10462, 4
    %v10465 = vor.u32 %v10461, %v10464
    %v10466 = vsel %vm7876, %v10456, %v10465
    %v10468 = vshrl.u32 %v10274, 16
    %v10470 = vrot.slane %v10468, 3
    %v10471 = vshll.u32 %v10274, 16
    %v10473 = vrot.slane %v10471, 4
    %v10474 = vor.u32 %v10470, %v10473
    %v10475 = vsel %vm7876, %v10465, %v10474
    %v10477 = vshrl.u32 %v10275, 16
    %v10479 = vrot.slane %v10477, 3
    %v10480 = vshll.u32 %v10275, 16
    %v10482 = vrot.slane %v10480, 4
    %v10483 = vor.u32 %v10479, %v10482
    %v10484 = vsel %vm7876, %v10474, %v10483
    %v10486 = vshrl.u32 %v10276, 16
    %v10488 = vrot.slane %v10486, 3
    %v10489 = vshll.u32 %v10276, 16
    %v10491 = vrot.slane %v10489, 4
    %v10492 = vor.u32 %v10488, %v10491
    %v10493 = vsel %vm7876, %v10483, %v10492
    %v10495 = vshrl.u32 %v10277, 16
    %v10497 = vrot.slane %v10495, 3
    %v10498 = vshll.u32 %v10277, 16
    %v10500 = vrot.slane %v10498, 4
    %v10501 = vor.u32 %v10497, %v10500
    %v10502 = vsel %vm7876, %v10492, %v10501
    %v10504 = vshrl.u32 %v10278, 16
    %v10506 = vrot.slane %v10504, 3
    %v10507 = vshll.u32 %v10278, 16
    %v10509 = vrot.slane %v10507, 4
    %v10510 = vor.u32 %v10506, %v10509
    %v10511 = vsel %vm7876, %v10501, %v10510
    %v10516 = vunpack.c.l.b16 %v10145
    %v10517 = vunpack.c.l.b16 %v10146
    %v10518 = vunpack.c.l.b16 %v10147
    %v10519 = vunpack.c.l.b16 %v10148
    %v10520 = vpack.c.b16 %v10517, %v10516
    %v10521 = vpack.c.b16 %v10519, %v10518
    %v10525 = vsel %vm5323, %v10295, 0
    %v10528 = vsel %vm5323, %v10304, 0
    %v10531 = vsel %vm5323, %v10313, 0
    %v10534 = vsel %vm5323, %v10322, 0
    %v10537 = vsel %vm5323, %v10331, 0
    %v10540 = vsel %vm5323, %v10340, 0
    %v10543 = vsel %vm5323, %v10349, 0
    %v10546 = vsel %vm5323, %v10358, 0
    %v10549 = vsel %vm5323, %v10367, 0
    %v10552 = vsel %vm5323, %v10376, 0
    %v10555 = vsel %vm5323, %v10385, 0
    %v10558 = vsel %vm5323, %v10394, 0
    %v10561 = vsel %vm5323, %v10403, 0
    %v10564 = vsel %vm5323, %v10412, 0
    %v10567 = vsel %vm5323, %v10421, 0
    %v10570 = vsel %vm5323, %v10430, 0
    %v10573 = vsel %vm5323, %v10439, 0
    %v10576 = vsel %vm5323, %v10448, 0
    %v10579 = vsel %vm5323, %v10457, 0
    %v10582 = vsel %vm5323, %v10466, 0
    %v10585 = vsel %vm5323, %v10475, 0
    %v10588 = vsel %vm5323, %v10484, 0
    %v10591 = vsel %vm5323, %v10493, 0
    %v10594 = vsel %vm5323, %v10502, 0
    %v10597 = vsel %vm5323, %v10511, 0
    %v10600 = vsel %vm5323, %v10510, 0
    %10602 = vmatprep.subr.bf16.mxu0 0
    %10603 = vmatpush1.bf16.msra.mxu0 %v10520
    %10604 = vmatprep.subr.bf16.mxu0 0
    %10605 = vmatpush1.bf16.msra.mxu0 %v10521
    %10606 = vmatprep.subr.bf16.mxu0 0
    %10607 = vmatpush1.bf16.msra.mxu0 0
    %10608 = vmatprep.subr.bf16.mxu0 0
    %10609 = vmatpush1.bf16.msra.mxu0 0
    %10610 = vmatprep.subr.bf16.mxu0 0
    %10611 = vmatpush1.bf16.msra.mxu0 0
    %10612 = vmatprep.subr.bf16.mxu0 0
    %10613 = vmatpush1.bf16.msra.mxu0 0
    %10614 = vmatprep.subr.bf16.mxu0 0
    %10615 = vmatpush1.bf16.msra.mxu0 0
    %10616 = vmatprep.subr.bf16.mxu0 0
    %10617 = vmatpush1.bf16.msra.mxu0 0
    %10618 = vmatprep.subr.bf16.mxu0 0
    %10619 = vmatpush1.bf16.msra.mxu0 0
    %10620 = vmatprep.subr.bf16.mxu0 0
    %10621 = vmatpush1.bf16.msra.mxu0 0
    %10622 = vmatprep.subr.bf16.mxu0 0
    %10623 = vmatpush1.bf16.msra.mxu0 0
    %10624 = vmatprep.subr.bf16.mxu0 0
    %10625 = vmatpush1.bf16.msra.mxu0 0
    %10626 = vmatprep.subr.bf16.mxu0 0
    %10627 = vmatpush1.bf16.msra.mxu0 0
    %10628 = vmatprep.subr.bf16.mxu0 0
    %10629 = vmatpush1.bf16.msra.mxu0 0
    %10630 = vmatprep.subr.bf16.mxu0 0
    %10631 = vmatpush1.bf16.msra.mxu0 0
    %10632 = vmatprep.subr.bf16.mxu0 0
    %10633 = vmatpush1.bf16.msra.mxu0 0
    %10634 = vmatprep.mubr.bf16.mxu0 0
    %10635 = vmatmul.mubr.bf16.gmra.mrb[0].mxu0 %v10525
    %v10636 = vpop.f32.mrb[0].mxu0
    %v10637 = vadd.f32 0.0, %v10636
    %v10638 = vpop.f32.mrb[0].mxu0
    %v10639 = vpop.f32.mrb[0].mxu0
    %v10640 = vadd.f32 0.0, %v10639
    %v10641 = vpop.f32.mrb[0].mxu0
    %10642 = vmatprep.mubr.bf16.mxu0 0
    %10643 = vmatmul.mubr.bf16.gmra.mrb[0].mxu0 %v10528
    %v10644 = vpop.f32.mrb[0].mxu0
    %v10645 = vadd.f32 0.0, %v10644
    %v10646 = vpop.f32.mrb[0].mxu0
    %v10647 = vpop.f32.mrb[0].mxu0
    %v10648 = vadd.f32 0.0, %v10647
    %v10649 = vpop.f32.mrb[0].mxu0
    %10650 = vmatprep.mubr.bf16.mxu0 0
    %10651 = vmatmul.mubr.bf16.gmra.mrb[0].mxu0 %v10531
    %v10652 = vpop.f32.mrb[0].mxu0
    %v10653 = vadd.f32 0.0, %v10652
    %v10654 = vpop.f32.mrb[0].mxu0
    %v10655 = vpop.f32.mrb[0].mxu0
    %v10656 = vadd.f32 0.0, %v10655
    %v10657 = vpop.f32.mrb[0].mxu0
    %10658 = vmatprep.mubr.bf16.mxu0 0
    %10659 = vmatmul.mubr.bf16.gmra.mrb[0].mxu0 %v10534
    %v10660 = vpop.f32.mrb[0].mxu0
    %v10661 = vadd.f32 0.0, %v10660
    %v10662 = vpop.f32.mrb[0].mxu0
    %v10663 = vpop.f32.mrb[0].mxu0
    %v10664 = vadd.f32 0.0, %v10663
    %v10665 = vpop.f32.mrb[0].mxu0
    %10666 = vmatprep.mubr.bf16.mxu0 0
    %10667 = vmatmul.mubr.bf16.gmra.mrb[0].mxu0 %v10537
    %v10668 = vpop.f32.mrb[0].mxu0
    %v10669 = vadd.f32 0.0, %v10668
    %v10670 = vpop.f32.mrb[0].mxu0
    %v10671 = vpop.f32.mrb[0].mxu0
    %v10672 = vadd.f32 0.0, %v10671
    %v10673 = vpop.f32.mrb[0].mxu0
    %10674 = vmatprep.mubr.bf16.mxu0 0
    %10675 = vmatmul.mubr.bf16.gmra.mrb[0].mxu0 %v10540
    %v10676 = vpop.f32.mrb[0].mxu0
    %v10677 = vadd.f32 0.0, %v10676
    %v10678 = vpop.f32.mrb[0].mxu0
    %v10679 = vpop.f32.mrb[0].mxu0
    %v10680 = vadd.f32 0.0, %v10679
    %v10681 = vpop.f32.mrb[0].mxu0
    %10682 = vmatprep.mubr.bf16.mxu0 0
    %10683 = vmatmul.mubr.bf16.gmra.mrb[0].mxu0 %v10543
    %v10684 = vpop.f32.mrb[0].mxu0
    %v10685 = vadd.f32 0.0, %v10684
    %v10686 = vpop.f32.mrb[0].mxu0
    %v10687 = vpop.f32.mrb[0].mxu0
    %v10688 = vadd.f32 0.0, %v10687
    %v10689 = vpop.f32.mrb[0].mxu0
    %10690 = vmatprep.mubr.bf16.mxu0 0
    %10691 = vmatmul.mubr.bf16.gmra.mrb[0].mxu0 %v10546
    %v10692 = vpop.f32.mrb[0].mxu0
    %v10693 = vadd.f32 0.0, %v10692
    %v10694 = vpop.f32.mrb[0].mxu0
    %v10695 = vpop.f32.mrb[0].mxu0
    %v10696 = vadd.f32 0.0, %v10695
    %v10697 = vpop.f32.mrb[0].mxu0
    %10698 = vmatprep.mubr.bf16.mxu0 0
    %10699 = vmatmul.mubr.bf16.gmra.mrb[0].mxu0 %v10549
    %v10700 = vpop.f32.mrb[0].mxu0
    %v10701 = vadd.f32 0.0, %v10700
    %v10702 = vpop.f32.mrb[0].mxu0
    %v10703 = vpop.f32.mrb[0].mxu0
    %v10704 = vadd.f32 0.0, %v10703
    %v10705 = vpop.f32.mrb[0].mxu0
    %10706 = vmatprep.mubr.bf16.mxu0 0
    %10707 = vmatmul.mubr.bf16.gmra.mrb[0].mxu0 %v10552
    %v10708 = vpop.f32.mrb[0].mxu0
    %v10709 = vadd.f32 0.0, %v10708
    %v10710 = vpop.f32.mrb[0].mxu0
    %v10711 = vpop.f32.mrb[0].mxu0
    %v10712 = vadd.f32 0.0, %v10711
    %v10713 = vpop.f32.mrb[0].mxu0
    %10714 = vmatprep.mubr.bf16.mxu0 0
    %10715 = vmatmul.mubr.bf16.gmra.mrb[0].mxu0 %v10555
    %v10716 = vpop.f32.mrb[0].mxu0
    %v10717 = vadd.f32 0.0, %v10716
    %v10718 = vpop.f32.mrb[0].mxu0
    %v10719 = vpop.f32.mrb[0].mxu0
    %v10720 = vadd.f32 0.0, %v10719
    %v10721 = vpop.f32.mrb[0].mxu0
    %10722 = vmatprep.mubr.bf16.mxu0 0
    %10723 = vmatmul.mubr.bf16.gmra.mrb[0].mxu0 %v10558
    %v10724 = vpop.f32.mrb[0].mxu0
    %v10725 = vadd.f32 0.0, %v10724
    %v10726 = vpop.f32.mrb[0].mxu0
    %v10727 = vpop.f32.mrb[0].mxu0
    %v10728 = vadd.f32 0.0, %v10727
    %v10729 = vpop.f32.mrb[0].mxu0
    %10730 = vmatprep.mubr.bf16.mxu0 0
    %10731 = vmatmul.mubr.bf16.gmra.mrb[0].mxu0 %v10561
    %v10732 = vpop.f32.mrb[0].mxu0
    %v10733 = vadd.f32 0.0, %v10732
    %v10734 = vpop.f32.mrb[0].mxu0
    %v10735 = vpop.f32.mrb[0].mxu0
    %v10736 = vadd.f32 0.0, %v10735
    %v10737 = vpop.f32.mrb[0].mxu0
    %10738 = vmatprep.mubr.bf16.mxu0 0
    %10739 = vmatmul.mubr.bf16.gmra.mrb[0].mxu0 %v10564
    %v10740 = vpop.f32.mrb[0].mxu0
    %v10741 = vadd.f32 0.0, %v10740
    %v10742 = vpop.f32.mrb[0].mxu0
    %v10743 = vpop.f32.mrb[0].mxu0
    %v10744 = vadd.f32 0.0, %v10743
    %v10745 = vpop.f32.mrb[0].mxu0
    %10746 = vmatprep.mubr.bf16.mxu0 0
    %10747 = vmatmul.mubr.bf16.gmra.mrb[0].mxu0 %v10567
    %v10748 = vpop.f32.mrb[0].mxu0
    %v10749 = vadd.f32 0.0, %v10748
    %v10750 = vpop.f32.mrb[0].mxu0
    %v10751 = vpop.f32.mrb[0].mxu0
    %v10752 = vadd.f32 0.0, %v10751
    %v10753 = vpop.f32.mrb[0].mxu0
    %10754 = vmatprep.mubr.bf16.mxu0 0
    %10755 = vmatmul.mubr.bf16.gmra.mrb[0].mxu0 %v10570
    %v10756 = vpop.f32.mrb[0].mxu0
    %v10757 = vadd.f32 0.0, %v10756
    %v10758 = vpop.f32.mrb[0].mxu0
    %v10759 = vpop.f32.mrb[0].mxu0
    %v10760 = vadd.f32 0.0, %v10759
    %v10761 = vpop.f32.mrb[0].mxu0
    %10762 = vmatprep.mubr.bf16.mxu0 0
    %10763 = vmatmul.mubr.bf16.gmra.mrb[0].mxu0 %v10573
    %v10764 = vpop.f32.mrb[0].mxu0
    %v10765 = vadd.f32 0.0, %v10764
    %v10766 = vpop.f32.mrb[0].mxu0
    %v10767 = vpop.f32.mrb[0].mxu0
    %v10768 = vadd.f32 0.0, %v10767
    %v10769 = vpop.f32.mrb[0].mxu0
    %10770 = vmatprep.mubr.bf16.mxu0 0
    %10771 = vmatmul.mubr.bf16.gmra.mrb[0].mxu0 %v10576
    %v10772 = vpop.f32.mrb[0].mxu0
    %v10773 = vadd.f32 0.0, %v10772
    %v10774 = vpop.f32.mrb[0].mxu0
    %v10775 = vpop.f32.mrb[0].mxu0
    %v10776 = vadd.f32 0.0, %v10775
    %v10777 = vpop.f32.mrb[0].mxu0
    %10778 = vmatprep.mubr.bf16.mxu0 0
    %10779 = vmatmul.mubr.bf16.gmra.mrb[0].mxu0 %v10579
    %v10780 = vpop.f32.mrb[0].mxu0
    %v10781 = vadd.f32 0.0, %v10780
    %v10782 = vpop.f32.mrb[0].mxu0
    %v10783 = vpop.f32.mrb[0].mxu0
    %v10784 = vadd.f32 0.0, %v10783
    %v10785 = vpop.f32.mrb[0].mxu0
    %10786 = vmatprep.mubr.bf16.mxu0 0
    %10787 = vmatmul.mubr.bf16.gmra.mrb[0].mxu0 %v10582
    %v10788 = vpop.f32.mrb[0].mxu0
    %v10789 = vadd.f32 0.0, %v10788
    %v10790 = vpop.f32.mrb[0].mxu0
    %v10791 = vpop.f32.mrb[0].mxu0
    %v10792 = vadd.f32 0.0, %v10791
    %v10793 = vpop.f32.mrb[0].mxu0
    %10794 = vmatprep.mubr.bf16.mxu0 0
    %10795 = vmatmul.mubr.bf16.gmra.mrb[0].mxu0 %v10585
    %v10796 = vpop.f32.mrb[0].mxu0
    %v10797 = vadd.f32 0.0, %v10796
    %v10798 = vpop.f32.mrb[0].mxu0
    %v10799 = vpop.f32.mrb[0].mxu0
    %v10800 = vadd.f32 0.0, %v10799
    %v10801 = vpop.f32.mrb[0].mxu0
    %10802 = vmatprep.mubr.bf16.mxu0 0
    %10803 = vmatmul.mubr.bf16.gmra.mrb[0].mxu0 %v10588
    %v10804 = vpop.f32.mrb[0].mxu0
    %v10805 = vadd.f32 0.0, %v10804
    %v10806 = vpop.f32.mrb[0].mxu0
    %v10807 = vpop.f32.mrb[0].mxu0
    %v10808 = vadd.f32 0.0, %v10807
    %v10809 = vpop.f32.mrb[0].mxu0
    %10810 = vmatprep.mubr.bf16.mxu0 0
    %10811 = vmatmul.mubr.bf16.gmra.mrb[0].mxu0 %v10591
    %v10812 = vpop.f32.mrb[0].mxu0
    %v10813 = vadd.f32 0.0, %v10812
    %v10814 = vpop.f32.mrb[0].mxu0
    %v10815 = vpop.f32.mrb[0].mxu0
    %v10816 = vadd.f32 0.0, %v10815
    %v10817 = vpop.f32.mrb[0].mxu0
    %10818 = vmatprep.mubr.bf16.mxu0 0
    %10819 = vmatmul.mubr.bf16.gmra.mrb[0].mxu0 %v10594
    %v10820 = vpop.f32.mrb[0].mxu0
    %v10821 = vadd.f32 0.0, %v10820
    %v10822 = vpop.f32.mrb[0].mxu0
    %v10823 = vpop.f32.mrb[0].mxu0
    %v10824 = vadd.f32 0.0, %v10823
    %v10825 = vpop.f32.mrb[0].mxu0
    %10826 = vmatprep.mubr.bf16.mxu0 0
    %10827 = vmatmul.mubr.bf16.gmra.mrb[0].mxu0 %v10597
    %v10828 = vpop.f32.mrb[0].mxu0
    %v10829 = vadd.f32 0.0, %v10828
    %v10830 = vpop.f32.mrb[0].mxu0
    %v10831 = vpop.f32.mrb[0].mxu0
    %v10832 = vadd.f32 0.0, %v10831
    %v10833 = vpop.f32.mrb[0].mxu0
    %10834 = vmatprep.mubr.bf16.mxu0 0
    %10835 = vmatmul.mubr.bf16.gmra.mrb[0].mxu0 %v10600
    %v10836 = vpop.f32.mrb[0].mxu0
    %v10837 = vadd.f32 0.0, %v10836
    %v10838 = vpop.f32.mrb[0].mxu0
    %v10839 = vpop.f32.mrb[0].mxu0
    %v10840 = vpop.f32.mrb[0].mxu0
    %10841 = vdwg.mxu0
    %v10842 = vadd.f32 %v10041, %v10637
    %v10843 = vadd.f32 %v10042, %v10640
    %v10844 = vadd.f32 %v10043, %v10645
    %v10845 = vadd.f32 %v10044, %v10648
    %v10846 = vadd.f32 %v10045, %v10653
    %v10847 = vadd.f32 %v10046, %v10656
    %v10848 = vadd.f32 %v10047, %v10661
    %v10849 = vadd.f32 %v10048, %v10664
    %v10850 = vadd.f32 %v10049, %v10669
    %v10851 = vadd.f32 %v10050, %v10672
    %v10852 = vadd.f32 %v10051, %v10677
    %v10853 = vadd.f32 %v10052, %v10680
    %v10854 = vadd.f32 %v10053, %v10685
    %v10855 = vadd.f32 %v10054, %v10688
    %v10856 = vadd.f32 %v10055, %v10693
    %v10857 = vadd.f32 %v10056, %v10696
    %v10858 = vadd.f32 %v10057, %v10701
    %v10859 = vadd.f32 %v10058, %v10704
    %v10860 = vadd.f32 %v10059, %v10709
    %v10861 = vadd.f32 %v10060, %v10712
    %v10862 = vadd.f32 %v10061, %v10717
    %v10863 = vadd.f32 %v10062, %v10720
    %v10864 = vadd.f32 %v10063, %v10725
    %v10865 = vadd.f32 %v10064, %v10728
    %v10866 = vadd.f32 %v10065, %v10733
    %v10867 = vadd.f32 %v10066, %v10736
    %v10868 = vadd.f32 %v10067, %v10741
    %v10869 = vadd.f32 %v10068, %v10744
    %v10870 = vadd.f32 %v10069, %v10749
    %v10871 = vadd.f32 %v10070, %v10752
    %v10872 = vadd.f32 %v10071, %v10757
    %v10873 = vadd.f32 %v10072, %v10760
    %v10874 = vadd.f32 %v10073, %v10765
    %v10875 = vadd.f32 %v10074, %v10768
    %v10876 = vadd.f32 %v10075, %v10773
    %v10877 = vadd.f32 %v10076, %v10776
    %v10878 = vadd.f32 %v10077, %v10781
    %v10879 = vadd.f32 %v10078, %v10784
    %v10880 = vadd.f32 %v10079, %v10789
    %v10881 = vadd.f32 %v10080, %v10792
    %v10882 = vadd.f32 %v10081, %v10797
    %v10883 = vadd.f32 %v10082, %v10800
    %v10884 = vadd.f32 %v10083, %v10805
    %v10885 = vadd.f32 %v10084, %v10808
    %v10886 = vadd.f32 %v10085, %v10813
    %v10887 = vadd.f32 %v10086, %v10816
    %v10888 = vadd.f32 %v10087, %v10821
    %v10889 = vadd.f32 %v10088, %v10824
    %v10890 = vadd.f32 %v10089, %v10829
    %v10891 = vadd.f32 %v10090, %v10832
    %v10892 = vadd.f32 %v10091, %v10837
    %s10893 = scalar_lea.vmem %s5, 128
    %v10894 = vld [vmem:[%s10893] sm:$0xf]
    %v10895 = vld [vmem:[%s10893 + $0x4] sm:$0xf]
    %v10896 = vld [vmem:[%s10893 + $0x8] sm:$0xf]
    %v10897 = vld [vmem:[%s10893 + $0xc] sm:$0xf]
    %v10898 = vpack.c.b16 %v10203, %v10202
    %v10899 = vpack.c.b16 %v10205, %v10204
    %v10900 = vpack.c.b16 %v10207, %v10206
    %v10901 = vpack.c.b16 %v10209, %v10208
    %v10902 = vpack.c.b16 %v10211, %v10210
    %v10903 = vpack.c.b16 %v10213, %v10212
    %v10904 = vpack.c.b16 %v10215, %v10214
    %v10905 = vpack.c.b16 %v10217, %v10216
    %v10906 = vpack.c.b16 %v10219, %v10218
    %v10907 = vpack.c.b16 %v10221, %v10220
    %v10908 = vpack.c.b16 %v10223, %v10222
    %v10909 = vpack.c.b16 %v10225, %v10224
    %v10910 = vpack.c.b16 %v10227, %v10226
    %v10911 = vpack.c.b16 %v10229, %v10228
    %v10912 = vpack.c.b16 %v10231, %v10230
    %v10913 = vpack.c.b16 %v10233, %v10232
    %v10914 = vpack.c.b16 %v10235, %v10234
    %v10915 = vpack.c.b16 %v10237, %v10236
    %v10916 = vpack.c.b16 %v10239, %v10238
    %v10917 = vpack.c.b16 %v10241, %v10240
    %v10918 = vpack.c.b16 %v10243, %v10242
    %v10919 = vpack.c.b16 %v10245, %v10244
    %v10920 = vpack.c.b16 %v10247, %v10246
    %v10921 = vpack.c.b16 %v10249, %v10248
    %v10922 = vpack.c.b16 %v10251, %v10250
    %v10923 = vpack.c.b16 %v10252, %v10252
    %v10928 = vunpack.c.l.b16 %v10894
    %v10929 = vunpack.c.l.b16 %v10895
    %v10930 = vunpack.c.l.b16 %v10896
    %v10931 = vunpack.c.l.b16 %v10897
    %v10932 = vpack.c.b16 %v10929, %v10928
    %v10933 = vpack.c.b16 %v10931, %v10930
    %v10937 = vsel %vm5323, %v10898, 0
    %v10940 = vsel %vm5323, %v10899, 0
    %v10943 = vsel %vm5323, %v10900, 0
    %v10946 = vsel %vm5323, %v10901, 0
    %v10949 = vsel %vm5323, %v10902, 0
    %v10952 = vsel %vm5323, %v10903, 0
    %v10955 = vsel %vm5323, %v10904, 0
    %v10958 = vsel %vm5323, %v10905, 0
    %v10961 = vsel %vm5323, %v10906, 0
    %v10964 = vsel %vm5323, %v10907, 0
    %v10967 = vsel %vm5323, %v10908, 0
    %v10970 = vsel %vm5323, %v10909, 0
    %v10973 = vsel %vm5323, %v10910, 0
    %v10976 = vsel %vm5323, %v10911, 0
    %v10979 = vsel %vm5323, %v10912, 0
    %v10982 = vsel %vm5323, %v10913, 0
    %v10985 = vsel %vm5323, %v10914, 0
    %v10988 = vsel %vm5323, %v10915, 0
    %v10991 = vsel %vm5323, %v10916, 0
    %v10994 = vsel %vm5323, %v10917, 0
    %v10997 = vsel %vm5323, %v10918, 0
    %v11000 = vsel %vm5323, %v10919, 0
    %v11003 = vsel %vm5323, %v10920, 0
    %v11006 = vsel %vm5323, %v10921, 0
    %v11009 = vsel %vm5323, %v10922, 0
    %v11012 = vsel %vm5323, %v10923, 0
    %11014 = vmatprep.subr.bf16.mxu0 0
    %11015 = vmatpush1.bf16.msra.mxu0 %v10932
    %11016 = vmatprep.subr.bf16.mxu0 0
    %11017 = vmatpush1.bf16.msra.mxu0 %v10933
    %11018 = vmatprep.subr.bf16.mxu0 0
    %11019 = vmatpush1.bf16.msra.mxu0 0
    %11020 = vmatprep.subr.bf16.mxu0 0
    %11021 = vmatpush1.bf16.msra.mxu0 0
    %11022 = vmatprep.subr.bf16.mxu0 0
    %11023 = vmatpush1.bf16.msra.mxu0 0
    %11024 = vmatprep.subr.bf16.mxu0 0
    %11025 = vmatpush1.bf16.msra.mxu0 0
    %11026 = vmatprep.subr.bf16.mxu0 0
    %11027 = vmatpush1.bf16.msra.mxu0 0
    %11028 = vmatprep.subr.bf16.mxu0 0
    %11029 = vmatpush1.bf16.msra.mxu0 0
    %11030 = vmatprep.subr.bf16.mxu0 0
    %11031 = vmatpush1.bf16.msra.mxu0 0
    %11032 = vmatprep.subr.bf16.mxu0 0
    %11033 = vmatpush1.bf16.msra.mxu0 0
    %11034 = vmatprep.subr.bf16.mxu0 0
    %11035 = vmatpush1.bf16.msra.mxu0 0
    %11036 = vmatprep.subr.bf16.mxu0 0
    %11037 = vmatpush1.bf16.msra.mxu0 0
    %11038 = vmatprep.subr.bf16.mxu0 0
    %11039 = vmatpush1.bf16.msra.mxu0 0
    %11040 = vmatprep.subr.bf16.mxu0 0
    %11041 = vmatpush1.bf16.msra.mxu0 0
    %11042 = vmatprep.subr.bf16.mxu0 0
    %11043 = vmatpush1.bf16.msra.mxu0 0
    %11044 = vmatprep.subr.bf16.mxu0 0
    %11045 = vmatpush1.bf16.msra.mxu0 0
    %11046 = vmatprep.mubr.bf16.mxu0 0
    %11047 = vmatmul.mubr.bf16.gmra.mrb[0].mxu0 %v10937
    %v11048 = vpop.f32.mrb[0].mxu0
    %v11049 = vadd.f32 0.0, %v11048
    %v11050 = vpop.f32.mrb[0].mxu0
    %v11051 = vpop.f32.mrb[0].mxu0
    %v11052 = vadd.f32 0.0, %v11051
    %v11053 = vpop.f32.mrb[0].mxu0
    %11054 = vmatprep.mubr.bf16.mxu0 0
    %11055 = vmatmul.mubr.bf16.gmra.mrb[0].mxu0 %v10940
    %v11056 = vpop.f32.mrb[0].mxu0
    %v11057 = vadd.f32 0.0, %v11056
    %v11058 = vpop.f32.mrb[0].mxu0
    %v11059 = vpop.f32.mrb[0].mxu0
    %v11060 = vadd.f32 0.0, %v11059
    %v11061 = vpop.f32.mrb[0].mxu0
    %11062 = vmatprep.mubr.bf16.mxu0 0
    %11063 = vmatmul.mubr.bf16.gmra.mrb[0].mxu0 %v10943
    %v11064 = vpop.f32.mrb[0].mxu0
    %v11065 = vadd.f32 0.0, %v11064
    %v11066 = vpop.f32.mrb[0].mxu0
    %v11067 = vpop.f32.mrb[0].mxu0
    %v11068 = vadd.f32 0.0, %v11067
    %v11069 = vpop.f32.mrb[0].mxu0
    %11070 = vmatprep.mubr.bf16.mxu0 0
    %11071 = vmatmul.mubr.bf16.gmra.mrb[0].mxu0 %v10946
    %v11072 = vpop.f32.mrb[0].mxu0
    %v11073 = vadd.f32 0.0, %v11072
    %v11074 = vpop.f32.mrb[0].mxu0
    %v11075 = vpop.f32.mrb[0].mxu0
    %v11076 = vadd.f32 0.0, %v11075
    %v11077 = vpop.f32.mrb[0].mxu0
    %11078 = vmatprep.mubr.bf16.mxu0 0
    %11079 = vmatmul.mubr.bf16.gmra.mrb[0].mxu0 %v10949
    %v11080 = vpop.f32.mrb[0].mxu0
    %v11081 = vadd.f32 0.0, %v11080
    %v11082 = vpop.f32.mrb[0].mxu0
    %v11083 = vpop.f32.mrb[0].mxu0
    %v11084 = vadd.f32 0.0, %v11083
    %v11085 = vpop.f32.mrb[0].mxu0
    %11086 = vmatprep.mubr.bf16.mxu0 0
    %11087 = vmatmul.mubr.bf16.gmra.mrb[0].mxu0 %v10952
    %v11088 = vpop.f32.mrb[0].mxu0
    %v11089 = vadd.f32 0.0, %v11088
    %v11090 = vpop.f32.mrb[0].mxu0
    %v11091 = vpop.f32.mrb[0].mxu0
    %v11092 = vadd.f32 0.0, %v11091
    %v11093 = vpop.f32.mrb[0].mxu0
    %11094 = vmatprep.mubr.bf16.mxu0 0
    %11095 = vmatmul.mubr.bf16.gmra.mrb[0].mxu0 %v10955
    %v11096 = vpop.f32.mrb[0].mxu0
    %v11097 = vadd.f32 0.0, %v11096
    %v11098 = vpop.f32.mrb[0].mxu0
    %v11099 = vpop.f32.mrb[0].mxu0
    %v11100 = vadd.f32 0.0, %v11099
    %v11101 = vpop.f32.mrb[0].mxu0
    %11102 = vmatprep.mubr.bf16.mxu0 0
    %11103 = vmatmul.mubr.bf16.gmra.mrb[0].mxu0 %v10958
    %v11104 = vpop.f32.mrb[0].mxu0
    %v11105 = vadd.f32 0.0, %v11104
    %v11106 = vpop.f32.mrb[0].mxu0
    %v11107 = vpop.f32.mrb[0].mxu0
    %v11108 = vadd.f32 0.0, %v11107
    %v11109 = vpop.f32.mrb[0].mxu0
    %11110 = vmatprep.mubr.bf16.mxu0 0
    %11111 = vmatmul.mubr.bf16.gmra.mrb[0].mxu0 %v10961
    %v11112 = vpop.f32.mrb[0].mxu0
    %v11113 = vadd.f32 0.0, %v11112
    %v11114 = vpop.f32.mrb[0].mxu0
    %v11115 = vpop.f32.mrb[0].mxu0
    %v11116 = vadd.f32 0.0, %v11115
    %v11117 = vpop.f32.mrb[0].mxu0
    %11118 = vmatprep.mubr.bf16.mxu0 0
    %11119 = vmatmul.mubr.bf16.gmra.mrb[0].mxu0 %v10964
    %v11120 = vpop.f32.mrb[0].mxu0
    %v11121 = vadd.f32 0.0, %v11120
    %v11122 = vpop.f32.mrb[0].mxu0
    %v11123 = vpop.f32.mrb[0].mxu0
    %v11124 = vadd.f32 0.0, %v11123
    %v11125 = vpop.f32.mrb[0].mxu0
    %11126 = vmatprep.mubr.bf16.mxu0 0
    %11127 = vmatmul.mubr.bf16.gmra.mrb[0].mxu0 %v10967
    %v11128 = vpop.f32.mrb[0].mxu0
    %v11129 = vadd.f32 0.0, %v11128
    %v11130 = vpop.f32.mrb[0].mxu0
    %v11131 = vpop.f32.mrb[0].mxu0
    %v11132 = vadd.f32 0.0, %v11131
    %v11133 = vpop.f32.mrb[0].mxu0
    %11134 = vmatprep.mubr.bf16.mxu0 0
    %11135 = vmatmul.mubr.bf16.gmra.mrb[0].mxu0 %v10970
    %v11136 = vpop.f32.mrb[0].mxu0
    %v11137 = vadd.f32 0.0, %v11136
    %v11138 = vpop.f32.mrb[0].mxu0
    %v11139 = vpop.f32.mrb[0].mxu0
    %v11140 = vadd.f32 0.0, %v11139
    %v11141 = vpop.f32.mrb[0].mxu0
    %11142 = vmatprep.mubr.bf16.mxu0 0
    %11143 = vmatmul.mubr.bf16.gmra.mrb[0].mxu0 %v10973
    %v11144 = vpop.f32.mrb[0].mxu0
    %v11145 = vadd.f32 0.0, %v11144
    %v11146 = vpop.f32.mrb[0].mxu0
    %v11147 = vpop.f32.mrb[0].mxu0
    %v11148 = vadd.f32 0.0, %v11147
    %v11149 = vpop.f32.mrb[0].mxu0
    %11150 = vmatprep.mubr.bf16.mxu0 0
    %11151 = vmatmul.mubr.bf16.gmra.mrb[0].mxu0 %v10976
    %v11152 = vpop.f32.mrb[0].mxu0
    %v11153 = vadd.f32 0.0, %v11152
    %v11154 = vpop.f32.mrb[0].mxu0
    %v11155 = vpop.f32.mrb[0].mxu0
    %v11156 = vadd.f32 0.0, %v11155
    %v11157 = vpop.f32.mrb[0].mxu0
    %11158 = vmatprep.mubr.bf16.mxu0 0
    %11159 = vmatmul.mubr.bf16.gmra.mrb[0].mxu0 %v10979
    %v11160 = vpop.f32.mrb[0].mxu0
    %v11161 = vadd.f32 0.0, %v11160
    %v11162 = vpop.f32.mrb[0].mxu0
    %v11163 = vpop.f32.mrb[0].mxu0
    %v11164 = vadd.f32 0.0, %v11163
    %v11165 = vpop.f32.mrb[0].mxu0
    %11166 = vmatprep.mubr.bf16.mxu0 0
    %11167 = vmatmul.mubr.bf16.gmra.mrb[0].mxu0 %v10982
    %v11168 = vpop.f32.mrb[0].mxu0
    %v11169 = vadd.f32 0.0, %v11168
    %v11170 = vpop.f32.mrb[0].mxu0
    %v11171 = vpop.f32.mrb[0].mxu0
    %v11172 = vadd.f32 0.0, %v11171
    %v11173 = vpop.f32.mrb[0].mxu0
    %11174 = vmatprep.mubr.bf16.mxu0 0
    %11175 = vmatmul.mubr.bf16.gmra.mrb[0].mxu0 %v10985
    %v11176 = vpop.f32.mrb[0].mxu0
    %v11177 = vadd.f32 0.0, %v11176
    %v11178 = vpop.f32.mrb[0].mxu0
    %v11179 = vpop.f32.mrb[0].mxu0
    %v11180 = vadd.f32 0.0, %v11179
    %v11181 = vpop.f32.mrb[0].mxu0
    %11182 = vmatprep.mubr.bf16.mxu0 0
    %11183 = vmatmul.mubr.bf16.gmra.mrb[0].mxu0 %v10988
    %v11184 = vpop.f32.mrb[0].mxu0
    %v11185 = vadd.f32 0.0, %v11184
    %v11186 = vpop.f32.mrb[0].mxu0
    %v11187 = vpop.f32.mrb[0].mxu0
    %v11188 = vadd.f32 0.0, %v11187
    %v11189 = vpop.f32.mrb[0].mxu0
    %11190 = vmatprep.mubr.bf16.mxu0 0
    %11191 = vmatmul.mubr.bf16.gmra.mrb[0].mxu0 %v10991
    %v11192 = vpop.f32.mrb[0].mxu0
    %v11193 = vadd.f32 0.0, %v11192
    %v11194 = vpop.f32.mrb[0].mxu0
    %v11195 = vpop.f32.mrb[0].mxu0
    %v11196 = vadd.f32 0.0, %v11195
    %v11197 = vpop.f32.mrb[0].mxu0
    %11198 = vmatprep.mubr.bf16.mxu0 0
    %11199 = vmatmul.mubr.bf16.gmra.mrb[0].mxu0 %v10994
    %v11200 = vpop.f32.mrb[0].mxu0
    %v11201 = vadd.f32 0.0, %v11200
    %v11202 = vpop.f32.mrb[0].mxu0
    %v11203 = vpop.f32.mrb[0].mxu0
    %v11204 = vadd.f32 0.0, %v11203
    %v11205 = vpop.f32.mrb[0].mxu0
    %11206 = vmatprep.mubr.bf16.mxu0 0
    %11207 = vmatmul.mubr.bf16.gmra.mrb[0].mxu0 %v10997
    %v11208 = vpop.f32.mrb[0].mxu0
    %v11209 = vadd.f32 0.0, %v11208
    %v11210 = vpop.f32.mrb[0].mxu0
    %v11211 = vpop.f32.mrb[0].mxu0
    %v11212 = vadd.f32 0.0, %v11211
    %v11213 = vpop.f32.mrb[0].mxu0
    %11214 = vmatprep.mubr.bf16.mxu0 0
    %11215 = vmatmul.mubr.bf16.gmra.mrb[0].mxu0 %v11000
    %v11216 = vpop.f32.mrb[0].mxu0
    %v11217 = vadd.f32 0.0, %v11216
    %v11218 = vpop.f32.mrb[0].mxu0
    %v11219 = vpop.f32.mrb[0].mxu0
    %v11220 = vadd.f32 0.0, %v11219
    %v11221 = vpop.f32.mrb[0].mxu0
    %11222 = vmatprep.mubr.bf16.mxu0 0
    %11223 = vmatmul.mubr.bf16.gmra.mrb[0].mxu0 %v11003
    %v11224 = vpop.f32.mrb[0].mxu0
    %v11225 = vadd.f32 0.0, %v11224
    %v11226 = vpop.f32.mrb[0].mxu0
    %v11227 = vpop.f32.mrb[0].mxu0
    %v11228 = vadd.f32 0.0, %v11227
    %v11229 = vpop.f32.mrb[0].mxu0
    %11230 = vmatprep.mubr.bf16.mxu0 0
    %11231 = vmatmul.mubr.bf16.gmra.mrb[0].mxu0 %v11006
    %v11232 = vpop.f32.mrb[0].mxu0
    %v11233 = vadd.f32 0.0, %v11232
    %v11234 = vpop.f32.mrb[0].mxu0
    %v11235 = vpop.f32.mrb[0].mxu0
    %v11236 = vadd.f32 0.0, %v11235
    %v11237 = vpop.f32.mrb[0].mxu0
    %11238 = vmatprep.mubr.bf16.mxu0 0
    %11239 = vmatmul.mubr.bf16.gmra.mrb[0].mxu0 %v11009
    %v11240 = vpop.f32.mrb[0].mxu0
    %v11241 = vadd.f32 0.0, %v11240
    %v11242 = vpop.f32.mrb[0].mxu0
    %v11243 = vpop.f32.mrb[0].mxu0
    %v11244 = vadd.f32 0.0, %v11243
    %v11245 = vpop.f32.mrb[0].mxu0
    %11246 = vmatprep.mubr.bf16.mxu0 0
    %11247 = vmatmul.mubr.bf16.gmra.mrb[0].mxu0 %v11012
    %v11248 = vpop.f32.mrb[0].mxu0
    %v11249 = vadd.f32 0.0, %v11248
    %v11250 = vpop.f32.mrb[0].mxu0
    %v11251 = vpop.f32.mrb[0].mxu0
    %v11252 = vpop.f32.mrb[0].mxu0
    %11253 = vdwg.mxu0
    %v11254 = vadd.f32 %v10842, %v11049
    %v11255 = vadd.f32 %v10843, %v11052
    %v11256 = vadd.f32 %v10844, %v11057
    %v11257 = vadd.f32 %v10845, %v11060
    %v11258 = vadd.f32 %v10846, %v11065
    %v11259 = vadd.f32 %v10847, %v11068
    %v11260 = vadd.f32 %v10848, %v11073
    %v11261 = vadd.f32 %v10849, %v11076
    %v11262 = vadd.f32 %v10850, %v11081
    %v11263 = vadd.f32 %v10851, %v11084
    %v11264 = vadd.f32 %v10852, %v11089
    %v11265 = vadd.f32 %v10853, %v11092
    %v11266 = vadd.f32 %v10854, %v11097
    %v11267 = vadd.f32 %v10855, %v11100
    %v11268 = vadd.f32 %v10856, %v11105
    %v11269 = vadd.f32 %v10857, %v11108
    %v11270 = vadd.f32 %v10858, %v11113
    %v11271 = vadd.f32 %v10859, %v11116
    %v11272 = vadd.f32 %v10860, %v11121
    %v11273 = vadd.f32 %v10861, %v11124
    %v11274 = vadd.f32 %v10862, %v11129
    %v11275 = vadd.f32 %v10863, %v11132
    %v11276 = vadd.f32 %v10864, %v11137
    %v11277 = vadd.f32 %v10865, %v11140
    %v11278 = vadd.f32 %v10866, %v11145
    %v11279 = vadd.f32 %v10867, %v11148
    %v11280 = vadd.f32 %v10868, %v11153
    %v11281 = vadd.f32 %v10869, %v11156
    %v11282 = vadd.f32 %v10870, %v11161
    %v11283 = vadd.f32 %v10871, %v11164
    %v11284 = vadd.f32 %v10872, %v11169
    %v11285 = vadd.f32 %v10873, %v11172
    %v11286 = vadd.f32 %v10874, %v11177
    %v11287 = vadd.f32 %v10875, %v11180
    %v11288 = vadd.f32 %v10876, %v11185
    %v11289 = vadd.f32 %v10877, %v11188
    %v11290 = vadd.f32 %v10878, %v11193
    %v11291 = vadd.f32 %v10879, %v11196
    %v11292 = vadd.f32 %v10880, %v11201
    %v11293 = vadd.f32 %v10881, %v11204
    %v11294 = vadd.f32 %v10882, %v11209
    %v11295 = vadd.f32 %v10883, %v11212
    %v11296 = vadd.f32 %v10884, %v11217
    %v11297 = vadd.f32 %v10885, %v11220
    %v11298 = vadd.f32 %v10886, %v11225
    %v11299 = vadd.f32 %v10887, %v11228
    %v11300 = vadd.f32 %v10888, %v11233
    %v11301 = vadd.f32 %v10889, %v11236
    %v11302 = vadd.f32 %v10890, %v11241
    %v11303 = vadd.f32 %v10891, %v11244
    %v11304 = vadd.f32 %v10892, %v11249
    %vm11305 = vcmask 523264
    %11306 = vst.msk [vmem:[#allocation3] sm:$0xff] %vm11305, %v11254
    %11307 = vst.msk [vmem:[#allocation3 + $0x8] sm:$0xff] %vm11305, %v11255
    %11308 = vst.msk [vmem:[#allocation3 + $0x10] sm:$0xff] %vm11305, %v11256
    %11309 = vst.msk [vmem:[#allocation3 + $0x18] sm:$0xff] %vm11305, %v11257
    %11310 = vst.msk [vmem:[#allocation3 + $0x20] sm:$0xff] %vm11305, %v11258
    %11311 = vst.msk [vmem:[#allocation3 + $0x28] sm:$0xff] %vm11305, %v11259
    %11312 = vst.msk [vmem:[#allocation3 + $0x30] sm:$0xff] %vm11305, %v11260
    %11313 = vst.msk [vmem:[#allocation3 + $0x38] sm:$0xff] %vm11305, %v11261
    %11314 = vst.msk [vmem:[#allocation3 + $0x40] sm:$0xff] %vm11305, %v11262
    %11315 = vst.msk [vmem:[#allocation3 + $0x48] sm:$0xff] %vm11305, %v11263
    %11316 = vst.msk [vmem:[#allocation3 + $0x50] sm:$0xff] %vm11305, %v11264
    %11317 = vst.msk [vmem:[#allocation3 + $0x58] sm:$0xff] %vm11305, %v11265
    %11318 = vst.msk [vmem:[#allocation3 + $0x60] sm:$0xff] %vm11305, %v11266
    %11319 = vst.msk [vmem:[#allocation3 + $0x68] sm:$0xff] %vm11305, %v11267
    %11320 = vst.msk [vmem:[#allocation3 + $0x70] sm:$0xff] %vm11305, %v11268
    %11321 = vst.msk [vmem:[#allocation3 + $0x78] sm:$0xff] %vm11305, %v11269
    %11322 = vst.msk [vmem:[#allocation3 + $0x80] sm:$0xff] %vm11305, %v11270
    %11323 = vst.msk [vmem:[#allocation3 + $0x88] sm:$0xff] %vm11305, %v11271
    %11324 = vst.msk [vmem:[#allocation3 + $0x90] sm:$0xff] %vm11305, %v11272
    %11325 = vst.msk [vmem:[#allocation3 + $0x98] sm:$0xff] %vm11305, %v11273
    %11326 = vst.msk [vmem:[#allocation3 + $0xa0] sm:$0xff] %vm11305, %v11274
    %11327 = vst.msk [vmem:[#allocation3 + $0xa8] sm:$0xff] %vm11305, %v11275
    %11328 = vst.msk [vmem:[#allocation3 + $0xb0] sm:$0xff] %vm11305, %v11276
    %11329 = vst.msk [vmem:[#allocation3 + $0xb8] sm:$0xff] %vm11305, %v11277
    %11330 = vst.msk [vmem:[#allocation3 + $0xc0] sm:$0xff] %vm11305, %v11278
    %11331 = vst.msk [vmem:[#allocation3 + $0xc8] sm:$0xff] %vm11305, %v11279
    %11332 = vst.msk [vmem:[#allocation3 + $0xd0] sm:$0xff] %vm11305, %v11280
    %11333 = vst.msk [vmem:[#allocation3 + $0xd8] sm:$0xff] %vm11305, %v11281
    %11334 = vst.msk [vmem:[#allocation3 + $0xe0] sm:$0xff] %vm11305, %v11282
    %11335 = vst.msk [vmem:[#allocation3 + $0xe8] sm:$0xff] %vm11305, %v11283
    %11336 = vst.msk [vmem:[#allocation3 + $0xf0] sm:$0xff] %vm11305, %v11284
    %11337 = vst.msk [vmem:[#allocation3 + $0xf8] sm:$0xff] %vm11305, %v11285
    %11338 = vst.msk [vmem:[#allocation3 + $0x100] sm:$0xff] %vm11305, %v11286
    %11339 = vst.msk [vmem:[#allocation3 + $0x108] sm:$0xff] %vm11305, %v11287
    %11340 = vst.msk [vmem:[#allocation3 + $0x110] sm:$0xff] %vm11305, %v11288
    %11341 = vst.msk [vmem:[#allocation3 + $0x118] sm:$0xff] %vm11305, %v11289
    %11342 = vst.msk [vmem:[#allocation3 + $0x120] sm:$0xff] %vm11305, %v11290
    %11343 = vst.msk [vmem:[#allocation3 + $0x128] sm:$0xff] %vm11305, %v11291
    %11344 = vst.msk [vmem:[#allocation3 + $0x130] sm:$0xff] %vm11305, %v11292
    %11345 = vst.msk [vmem:[#allocation3 + $0x138] sm:$0xff] %vm11305, %v11293
    %11346 = vst.msk [vmem:[#allocation3 + $0x140] sm:$0xff] %vm11305, %v11294
    %11347 = vst.msk [vmem:[#allocation3 + $0x148] sm:$0xff] %vm11305, %v11295
    %11348 = vst.msk [vmem:[#allocation3 + $0x150] sm:$0xff] %vm11305, %v11296
    %11349 = vst.msk [vmem:[#allocation3 + $0x158] sm:$0xff] %vm11305, %v11297
    %11350 = vst.msk [vmem:[#allocation3 + $0x160] sm:$0xff] %vm11305, %v11298
    %11351 = vst.msk [vmem:[#allocation3 + $0x168] sm:$0xff] %vm11305, %v11299
    %11352 = vst.msk [vmem:[#allocation3 + $0x170] sm:$0xff] %vm11305, %v11300
    %11353 = vst.msk [vmem:[#allocation3 + $0x178] sm:$0xff] %vm11305, %v11301
    %11354 = vst.msk [vmem:[#allocation3 + $0x180] sm:$0xff] %vm11305, %v11302
    %11355 = vst.msk [vmem:[#allocation3 + $0x188] sm:$0xff] %vm11305, %v11303
    %vm11356 = vcmask 517120
    %11357 = vst.msk [vmem:[#allocation3 + $0x190] sm:$0x3] %vm11356, %v11304
    %v11358 = vld [vmem:[#allocation3] sm:$0xff]
    %v11359 = vld [vmem:[#allocation3 + $0x8] sm:$0xff]
    %v11360 = vld [vmem:[#allocation3 + $0x10] sm:$0xff]
    %v11361 = vld [vmem:[#allocation3 + $0x18] sm:$0xff]
    %v11362 = vld [vmem:[#allocation3 + $0x20] sm:$0xff]
    %v11363 = vld [vmem:[#allocation3 + $0x28] sm:$0xff]
    %v11364 = vld [vmem:[#allocation3 + $0x30] sm:$0xff]
    %v11365 = vld [vmem:[#allocation3 + $0x38] sm:$0xff]
    %v11366 = vld [vmem:[#allocation3 + $0x40] sm:$0xff]
    %v11367 = vld [vmem:[#allocation3 + $0x48] sm:$0xff]
    %v11368 = vld [vmem:[#allocation3 + $0x50] sm:$0xff]
    %v11369 = vld [vmem:[#allocation3 + $0x58] sm:$0xff]
    %v11370 = vld [vmem:[#allocation3 + $0x60] sm:$0xff]
    %v11371 = vld [vmem:[#allocation3 + $0x68] sm:$0xff]
    %v11372 = vld [vmem:[#allocation3 + $0x70] sm:$0xff]
    %v11373 = vld [vmem:[#allocation3 + $0x78] sm:$0xff]
    %v11374 = vld [vmem:[#allocation3 + $0x80] sm:$0xff]
    %v11375 = vld [vmem:[#allocation3 + $0x88] sm:$0xff]
    %v11376 = vld [vmem:[#allocation3 + $0x90] sm:$0xff]
    %v11377 = vld [vmem:[#allocation3 + $0x98] sm:$0xff]
    %v11378 = vld [vmem:[#allocation3 + $0xa0] sm:$0xff]
    %v11379 = vld [vmem:[#allocation3 + $0xa8] sm:$0xff]
    %v11380 = vld [vmem:[#allocation3 + $0xb0] sm:$0xff]
    %v11381 = vld [vmem:[#allocation3 + $0xb8] sm:$0xff]
    %v11382 = vld [vmem:[#allocation3 + $0xc0] sm:$0xff]
    %v11383 = vld [vmem:[#allocation3 + $0xc8] sm:$0xff]
    %v11384 = vld [vmem:[#allocation3 + $0xd0] sm:$0xff]
    %v11385 = vld [vmem:[#allocation3 + $0xd8] sm:$0xff]
    %v11386 = vld [vmem:[#allocation3 + $0xe0] sm:$0xff]
    %v11387 = vld [vmem:[#allocation3 + $0xe8] sm:$0xff]
    %v11388 = vld [vmem:[#allocation3 + $0xf0] sm:$0xff]
    %v11389 = vld [vmem:[#allocation3 + $0xf8] sm:$0xff]
    %v11390 = vld [vmem:[#allocation3 + $0x100] sm:$0xff]
    %v11391 = vld [vmem:[#allocation3 + $0x108] sm:$0xff]
    %v11392 = vld [vmem:[#allocation3 + $0x110] sm:$0xff]
    %v11393 = vld [vmem:[#allocation3 + $0x118] sm:$0xff]
    %v11394 = vld [vmem:[#allocation3 + $0x120] sm:$0xff]
    %v11395 = vld [vmem:[#allocation3 + $0x128] sm:$0xff]
    %v11396 = vld [vmem:[#allocation3 + $0x130] sm:$0xff]
    %v11397 = vld [vmem:[#allocation3 + $0x138] sm:$0xff]
    %v11398 = vld [vmem:[#allocation3 + $0x140] sm:$0xff]
    %v11399 = vld [vmem:[#allocation3 + $0x148] sm:$0xff]
    %v11400 = vld [vmem:[#allocation3 + $0x150] sm:$0xff]
    %v11401 = vld [vmem:[#allocation3 + $0x158] sm:$0xff]
    %v11402 = vld [vmem:[#allocation3 + $0x160] sm:$0xff]
    %v11403 = vld [vmem:[#allocation3 + $0x168] sm:$0xff]
    %v11404 = vld [vmem:[#allocation3 + $0x170] sm:$0xff]
    %v11405 = vld [vmem:[#allocation3 + $0x178] sm:$0xff]
    %v11406 = vld [vmem:[#allocation3 + $0x180] sm:$0x3]
    %v11407 = vld [vmem:[#allocation3 + $0x1] sm:$0xff]
    %v11408 = vld [vmem:[#allocation3 + $0x9] sm:$0xff]
    %v11409 = vld [vmem:[#allocation3 + $0x11] sm:$0xff]
    %v11410 = vld [vmem:[#allocation3 + $0x19] sm:$0xff]
    %v11411 = vld [vmem:[#allocation3 + $0x21] sm:$0xff]
    %v11412 = vld [vmem:[#allocation3 + $0x29] sm:$0xff]
    %v11413 = vld [vmem:[#allocation3 + $0x31] sm:$0xff]
    %v11414 = vld [vmem:[#allocation3 + $0x39] sm:$0xff]
    %v11415 = vld [vmem:[#allocation3 + $0x41] sm:$0xff]
    %v11416 = vld [vmem:[#allocation3 + $0x49] sm:$0xff]
    %v11417 = vld [vmem:[#allocation3 + $0x51] sm:$0xff]
    %v11418 = vld [vmem:[#allocation3 + $0x59] sm:$0xff]
    %v11419 = vld [vmem:[#allocation3 + $0x61] sm:$0xff]
    %v11420 = vld [vmem:[#allocation3 + $0x69] sm:$0xff]
    %v11421 = vld [vmem:[#allocation3 + $0x71] sm:$0xff]
    %v11422 = vld [vmem:[#allocation3 + $0x79] sm:$0xff]
    %v11423 = vld [vmem:[#allocation3 + $0x81] sm:$0xff]
    %v11424 = vld [vmem:[#allocation3 + $0x89] sm:$0xff]
    %v11425 = vld [vmem:[#allocation3 + $0x91] sm:$0xff]
    %v11426 = vld [vmem:[#allocation3 + $0x99] sm:$0xff]
    %v11427 = vld [vmem:[#allocation3 + $0xa1] sm:$0xff]
    %v11428 = vld [vmem:[#allocation3 + $0xa9] sm:$0xff]
    %v11429 = vld [vmem:[#allocation3 + $0xb1] sm:$0xff]
    %v11430 = vld [vmem:[#allocation3 + $0xb9] sm:$0xff]
    %v11431 = vld [vmem:[#allocation3 + $0xc1] sm:$0xff]
    %v11432 = vld [vmem:[#allocation3 + $0xc9] sm:$0xff]
    %v11433 = vld [vmem:[#allocation3 + $0xd1] sm:$0xff]
    %v11434 = vld [vmem:[#allocation3 + $0xd9] sm:$0xff]
    %v11435 = vld [vmem:[#allocation3 + $0xe1] sm:$0xff]
    %v11436 = vld [vmem:[#allocation3 + $0xe9] sm:$0xff]
    %v11437 = vld [vmem:[#allocation3 + $0xf1] sm:$0xff]
    %v11438 = vld [vmem:[#allocation3 + $0xf9] sm:$0xff]
    %v11439 = vld [vmem:[#allocation3 + $0x101] sm:$0xff]
    %v11440 = vld [vmem:[#allocation3 + $0x109] sm:$0xff]
    %v11441 = vld [vmem:[#allocation3 + $0x111] sm:$0xff]
    %v11442 = vld [vmem:[#allocation3 + $0x119] sm:$0xff]
    %v11443 = vld [vmem:[#allocation3 + $0x121] sm:$0xff]
    %v11444 = vld [vmem:[#allocation3 + $0x129] sm:$0xff]
    %v11445 = vld [vmem:[#allocation3 + $0x131] sm:$0xff]
    %v11446 = vld [vmem:[#allocation3 + $0x139] sm:$0xff]
    %v11447 = vld [vmem:[#allocation3 + $0x141] sm:$0xff]
    %v11448 = vld [vmem:[#allocation3 + $0x149] sm:$0xff]
    %v11449 = vld [vmem:[#allocation3 + $0x151] sm:$0xff]
    %v11450 = vld [vmem:[#allocation3 + $0x159] sm:$0xff]
    %v11451 = vld [vmem:[#allocation3 + $0x161] sm:$0xff]
    %v11452 = vld [vmem:[#allocation3 + $0x169] sm:$0xff]
    %v11453 = vld [vmem:[#allocation3 + $0x171] sm:$0xff]
    %v11454 = vld [vmem:[#allocation3 + $0x179] sm:$0xff]
    %v11455 = vld [vmem:[#allocation3 + $0x181] sm:$0x3]
    %v11456 = vmax.f32 %v11358, %v11407
    %v11457 = vmax.f32 %v11359, %v11408
    %v11458 = vmax.f32 %v11360, %v11409
    %v11459 = vmax.f32 %v11361, %v11410
    %v11460 = vmax.f32 %v11362, %v11411
    %v11461 = vmax.f32 %v11363, %v11412
    %v11462 = vmax.f32 %v11364, %v11413
    %v11463 = vmax.f32 %v11365, %v11414
    %v11464 = vmax.f32 %v11366, %v11415
    %v11465 = vmax.f32 %v11367, %v11416
    %v11466 = vmax.f32 %v11368, %v11417
    %v11467 = vmax.f32 %v11369, %v11418
    %v11468 = vmax.f32 %v11370, %v11419
    %v11469 = vmax.f32 %v11371, %v11420
    %v11470 = vmax.f32 %v11372, %v11421
    %v11471 = vmax.f32 %v11373, %v11422
    %v11472 = vmax.f32 %v11374, %v11423
    %v11473 = vmax.f32 %v11375, %v11424
    %v11474 = vmax.f32 %v11376, %v11425
    %v11475 = vmax.f32 %v11377, %v11426
    %v11476 = vmax.f32 %v11378, %v11427
    %v11477 = vmax.f32 %v11379, %v11428
    %v11478 = vmax.f32 %v11380, %v11429
    %v11479 = vmax.f32 %v11381, %v11430
    %v11480 = vmax.f32 %v11382, %v11431
    %v11481 = vmax.f32 %v11383, %v11432
    %v11482 = vmax.f32 %v11384, %v11433
    %v11483 = vmax.f32 %v11385, %v11434
    %v11484 = vmax.f32 %v11386, %v11435
    %v11485 = vmax.f32 %v11387, %v11436
    %v11486 = vmax.f32 %v11388, %v11437
    %v11487 = vmax.f32 %v11389, %v11438
    %v11488 = vmax.f32 %v11390, %v11439
    %v11489 = vmax.f32 %v11391, %v11440
    %v11490 = vmax.f32 %v11392, %v11441
    %v11491 = vmax.f32 %v11393, %v11442
    %v11492 = vmax.f32 %v11394, %v11443
    %v11493 = vmax.f32 %v11395, %v11444
    %v11494 = vmax.f32 %v11396, %v11445
    %v11495 = vmax.f32 %v11397, %v11446
    %v11496 = vmax.f32 %v11398, %v11447
    %v11497 = vmax.f32 %v11399, %v11448
    %v11498 = vmax.f32 %v11400, %v11449
    %v11499 = vmax.f32 %v11401, %v11450
    %v11500 = vmax.f32 %v11402, %v11451
    %v11501 = vmax.f32 %v11403, %v11452
    %v11502 = vmax.f32 %v11404, %v11453
    %v11503 = vmax.f32 %v11405, %v11454
    %v11504 = vmax.f32 %v11406, %v11455
    %v11505 = vld [vmem:[#allocation3 + $0xf] sm:$0xff]
    %v11506 = vld [vmem:[#allocation3 + $0x17] sm:$0xff]
    %v11507 = vld [vmem:[#allocation3 + $0x1f] sm:$0xff]
    %v11508 = vld [vmem:[#allocation3 + $0x27] sm:$0xff]
    %v11509 = vld [vmem:[#allocation3 + $0x2f] sm:$0xff]
    %v11510 = vld [vmem:[#allocation3 + $0x37] sm:$0xff]
    %v11511 = vld [vmem:[#allocation3 + $0x3f] sm:$0xff]
    %v11512 = vld [vmem:[#allocation3 + $0x47] sm:$0xff]
    %v11513 = vld [vmem:[#allocation3 + $0x4f] sm:$0xff]
    %v11514 = vld [vmem:[#allocation3 + $0x57] sm:$0xff]
    %v11515 = vld [vmem:[#allocation3 + $0x5f] sm:$0xff]
    %v11516 = vld [vmem:[#allocation3 + $0x67] sm:$0xff]
    %v11517 = vld [vmem:[#allocation3 + $0x6f] sm:$0xff]
    %v11518 = vld [vmem:[#allocation3 + $0x77] sm:$0xff]
    %v11519 = vld [vmem:[#allocation3 + $0x7f] sm:$0xff]
    %v11520 = vld [vmem:[#allocation3 + $0x87] sm:$0xff]
    %v11521 = vld [vmem:[#allocation3 + $0x8f] sm:$0xff]
    %v11522 = vld [vmem:[#allocation3 + $0x97] sm:$0xff]
    %v11523 = vld [vmem:[#allocation3 + $0x9f] sm:$0xff]
    %v11524 = vld [vmem:[#allocation3 + $0xa7] sm:$0xff]
    %v11525 = vld [vmem:[#allocation3 + $0xaf] sm:$0xff]
    %v11526 = vld [vmem:[#allocation3 + $0xb7] sm:$0xff]
    %v11527 = vld [vmem:[#allocation3 + $0xbf] sm:$0xff]
    %v11528 = vld [vmem:[#allocation3 + $0xc7] sm:$0xff]
    %v11529 = vld [vmem:[#allocation3 + $0xcf] sm:$0xff]
    %v11530 = vld [vmem:[#allocation3 + $0xd7] sm:$0xff]
    %v11531 = vld [vmem:[#allocation3 + $0xdf] sm:$0xff]
    %v11532 = vld [vmem:[#allocation3 + $0xe7] sm:$0xff]
    %v11533 = vld [vmem:[#allocation3 + $0xef] sm:$0xff]
    %v11534 = vld [vmem:[#allocation3 + $0xf7] sm:$0xff]
    %v11535 = vld [vmem:[#allocation3 + $0xff] sm:$0xff]
    %v11536 = vld [vmem:[#allocation3 + $0x107] sm:$0xff]
    %v11537 = vld [vmem:[#allocation3 + $0x10f] sm:$0xff]
    %v11538 = vld [vmem:[#allocation3 + $0x117] sm:$0xff]
    %v11539 = vld [vmem:[#allocation3 + $0x11f] sm:$0xff]
    %v11540 = vld [vmem:[#allocation3 + $0x127] sm:$0xff]
    %v11541 = vld [vmem:[#allocation3 + $0x12f] sm:$0xff]
    %v11542 = vld [vmem:[#allocation3 + $0x137] sm:$0xff]
    %v11543 = vld [vmem:[#allocation3 + $0x13f] sm:$0xff]
    %v11544 = vld [vmem:[#allocation3 + $0x147] sm:$0xff]
    %v11545 = vld [vmem:[#allocation3 + $0x14f] sm:$0xff]
    %v11546 = vld [vmem:[#allocation3 + $0x157] sm:$0xff]
    %v11547 = vld [vmem:[#allocation3 + $0x15f] sm:$0xff]
    %v11548 = vld [vmem:[#allocation3 + $0x167] sm:$0xff]
    %v11549 = vld [vmem:[#allocation3 + $0x16f] sm:$0xff]
    %v11550 = vld [vmem:[#allocation3 + $0x177] sm:$0xff]
    %v11551 = vld [vmem:[#allocation3 + $0x17f] sm:$0xff]
    %v11552 = vld [vmem:[#allocation3 + $0x187] sm:$0xff]
    %v11553 = vld [vmem:[#allocation3 + $0x18f] sm:$0x3]
    %v11554 = vmax.f32 %v11456, %v11505
    %v11555 = vmax.f32 %v11457, %v11506
    %v11556 = vmax.f32 %v11458, %v11507
    %v11557 = vmax.f32 %v11459, %v11508
    %v11558 = vmax.f32 %v11460, %v11509
    %v11559 = vmax.f32 %v11461, %v11510
    %v11560 = vmax.f32 %v11462, %v11511
    %v11561 = vmax.f32 %v11463, %v11512
    %v11562 = vmax.f32 %v11464, %v11513
    %v11563 = vmax.f32 %v11465, %v11514
    %v11564 = vmax.f32 %v11466, %v11515
    %v11565 = vmax.f32 %v11467, %v11516
    %v11566 = vmax.f32 %v11468, %v11517
    %v11567 = vmax.f32 %v11469, %v11518
    %v11568 = vmax.f32 %v11470, %v11519
    %v11569 = vmax.f32 %v11471, %v11520
    %v11570 = vmax.f32 %v11472, %v11521
    %v11571 = vmax.f32 %v11473, %v11522
    %v11572 = vmax.f32 %v11474, %v11523
    %v11573 = vmax.f32 %v11475, %v11524
    %v11574 = vmax.f32 %v11476, %v11525
    %v11575 = vmax.f32 %v11477, %v11526
    %v11576 = vmax.f32 %v11478, %v11527
    %v11577 = vmax.f32 %v11479, %v11528
    %v11578 = vmax.f32 %v11480, %v11529
    %v11579 = vmax.f32 %v11481, %v11530
    %v11580 = vmax.f32 %v11482, %v11531
    %v11581 = vmax.f32 %v11483, %v11532
    %v11582 = vmax.f32 %v11484, %v11533
    %v11583 = vmax.f32 %v11485, %v11534
    %v11584 = vmax.f32 %v11486, %v11535
    %v11585 = vmax.f32 %v11487, %v11536
    %v11586 = vmax.f32 %v11488, %v11537
    %v11587 = vmax.f32 %v11489, %v11538
    %v11588 = vmax.f32 %v11490, %v11539
    %v11589 = vmax.f32 %v11491, %v11540
    %v11590 = vmax.f32 %v11492, %v11541
    %v11591 = vmax.f32 %v11493, %v11542
    %v11592 = vmax.f32 %v11494, %v11543
    %v11593 = vmax.f32 %v11495, %v11544
    %v11594 = vmax.f32 %v11496, %v11545
    %v11595 = vmax.f32 %v11497, %v11546
    %v11596 = vmax.f32 %v11498, %v11547
    %v11597 = vmax.f32 %v11499, %v11548
    %v11598 = vmax.f32 %v11500, %v11549
    %v11599 = vmax.f32 %v11501, %v11550
    %v11600 = vmax.f32 %v11502, %v11551
    %v11601 = vmax.f32 %v11503, %v11552
    %v11602 = vmax.f32 %v11504, %v11553
    %v11603 = vld [vmem:[#allocation3 + $0x180] sm:$0xff]
    %v11604 = vld [vmem:[#allocation3 + $0x188] sm:$0xff]
    %v11605 = vld [vmem:[#allocation3 + $0x190] sm:$0x3]
    %v11606 = vmax.f32 %v11554, %v11360
    %v11607 = vmax.f32 %v11555, %v11361
    %v11608 = vmax.f32 %v11556, %v11362
    %v11609 = vmax.f32 %v11557, %v11363
    %v11610 = vmax.f32 %v11558, %v11364
    %v11611 = vmax.f32 %v11559, %v11365
    %v11612 = vmax.f32 %v11560, %v11366
    %v11613 = vmax.f32 %v11561, %v11367
    %v11614 = vmax.f32 %v11562, %v11368
    %v11615 = vmax.f32 %v11563, %v11369
    %v11616 = vmax.f32 %v11564, %v11370
    %v11617 = vmax.f32 %v11565, %v11371
    %v11618 = vmax.f32 %v11566, %v11372
    %v11619 = vmax.f32 %v11567, %v11373
    %v11620 = vmax.f32 %v11568, %v11374
    %v11621 = vmax.f32 %v11569, %v11375
    %v11622 = vmax.f32 %v11570, %v11376
    %v11623 = vmax.f32 %v11571, %v11377
    %v11624 = vmax.f32 %v11572, %v11378
    %v11625 = vmax.f32 %v11573, %v11379
    %v11626 = vmax.f32 %v11574, %v11380
    %v11627 = vmax.f32 %v11575, %v11381
    %v11628 = vmax.f32 %v11576, %v11382
    %v11629 = vmax.f32 %v11577, %v11383
    %v11630 = vmax.f32 %v11578, %v11384
    %v11631 = vmax.f32 %v11579, %v11385
    %v11632 = vmax.f32 %v11580, %v11386
    %v11633 = vmax.f32 %v11581, %v11387
    %v11634 = vmax.f32 %v11582, %v11388
    %v11635 = vmax.f32 %v11583, %v11389
    %v11636 = vmax.f32 %v11584, %v11390
    %v11637 = vmax.f32 %v11585, %v11391
    %v11638 = vmax.f32 %v11586, %v11392
    %v11639 = vmax.f32 %v11587, %v11393
    %v11640 = vmax.f32 %v11588, %v11394
    %v11641 = vmax.f32 %v11589, %v11395
    %v11642 = vmax.f32 %v11590, %v11396
    %v11643 = vmax.f32 %v11591, %v11397
    %v11644 = vmax.f32 %v11592, %v11398
    %v11645 = vmax.f32 %v11593, %v11399
    %v11646 = vmax.f32 %v11594, %v11400
    %v11647 = vmax.f32 %v11595, %v11401
    %v11648 = vmax.f32 %v11596, %v11402
    %v11649 = vmax.f32 %v11597, %v11403
    %v11650 = vmax.f32 %v11598, %v11404
    %v11651 = vmax.f32 %v11599, %v11405
    %v11652 = vmax.f32 %v11600, %v11603
    %v11653 = vmax.f32 %v11601, %v11604
    %v11654 = vmax.f32 %v11602, %v11605
    %11655 = vst.msk [vmem:[#allocation4] sm:$0xff] %vm11305, %v11606
    %11656 = vst.msk [vmem:[#allocation4 + $0x8] sm:$0xff] %vm11305, %v11607
    %11657 = vst.msk [vmem:[#allocation4 + $0x10] sm:$0xff] %vm11305, %v11608
    %11658 = vst.msk [vmem:[#allocation4 + $0x18] sm:$0xff] %vm11305, %v11609
    %11659 = vst.msk [vmem:[#allocation4 + $0x20] sm:$0xff] %vm11305, %v11610
    %11660 = vst.msk [vmem:[#allocation4 + $0x28] sm:$0xff] %vm11305, %v11611
    %11661 = vst.msk [vmem:[#allocation4 + $0x30] sm:$0xff] %vm11305, %v11612
    %11662 = vst.msk [vmem:[#allocation4 + $0x38] sm:$0xff] %vm11305, %v11613
    %11663 = vst.msk [vmem:[#allocation4 + $0x40] sm:$0xff] %vm11305, %v11614
    %11664 = vst.msk [vmem:[#allocation4 + $0x48] sm:$0xff] %vm11305, %v11615
    %11665 = vst.msk [vmem:[#allocation4 + $0x50] sm:$0xff] %vm11305, %v11616
    %11666 = vst.msk [vmem:[#allocation4 + $0x58] sm:$0xff] %vm11305, %v11617
    %11667 = vst.msk [vmem:[#allocation4 + $0x60] sm:$0xff] %vm11305, %v11618
    %11668 = vst.msk [vmem:[#allocation4 + $0x68] sm:$0xff] %vm11305, %v11619
    %11669 = vst.msk [vmem:[#allocation4 + $0x70] sm:$0xff] %vm11305, %v11620
    %11670 = vst.msk [vmem:[#allocation4 + $0x78] sm:$0xff] %vm11305, %v11621
    %11671 = vst.msk [vmem:[#allocation4 + $0x80] sm:$0xff] %vm11305, %v11622
    %11672 = vst.msk [vmem:[#allocation4 + $0x88] sm:$0xff] %vm11305, %v11623
    %11673 = vst.msk [vmem:[#allocation4 + $0x90] sm:$0xff] %vm11305, %v11624
    %11674 = vst.msk [vmem:[#allocation4 + $0x98] sm:$0xff] %vm11305, %v11625
    %11675 = vst.msk [vmem:[#allocation4 + $0xa0] sm:$0xff] %vm11305, %v11626
    %11676 = vst.msk [vmem:[#allocation4 + $0xa8] sm:$0xff] %vm11305, %v11627
    %11677 = vst.msk [vmem:[#allocation4 + $0xb0] sm:$0xff] %vm11305, %v11628
    %11678 = vst.msk [vmem:[#allocation4 + $0xb8] sm:$0xff] %vm11305, %v11629
    %11679 = vst.msk [vmem:[#allocation4 + $0xc0] sm:$0xff] %vm11305, %v11630
    %11680 = vst.msk [vmem:[#allocation4 + $0xc8] sm:$0xff] %vm11305, %v11631
    %11681 = vst.msk [vmem:[#allocation4 + $0xd0] sm:$0xff] %vm11305, %v11632
    %11682 = vst.msk [vmem:[#allocation4 + $0xd8] sm:$0xff] %vm11305, %v11633
    %11683 = vst.msk [vmem:[#allocation4 + $0xe0] sm:$0xff] %vm11305, %v11634
    %11684 = vst.msk [vmem:[#allocation4 + $0xe8] sm:$0xff] %vm11305, %v11635
    %11685 = vst.msk [vmem:[#allocation4 + $0xf0] sm:$0xff] %vm11305, %v11636
    %11686 = vst.msk [vmem:[#allocation4 + $0xf8] sm:$0xff] %vm11305, %v11637
    %11687 = vst.msk [vmem:[#allocation4 + $0x100] sm:$0xff] %vm11305, %v11638
    %11688 = vst.msk [vmem:[#allocation4 + $0x108] sm:$0xff] %vm11305, %v11639
    %11689 = vst.msk [vmem:[#allocation4 + $0x110] sm:$0xff] %vm11305, %v11640
    %11690 = vst.msk [vmem:[#allocation4 + $0x118] sm:$0xff] %vm11305, %v11641
    %11691 = vst.msk [vmem:[#allocation4 + $0x120] sm:$0xff] %vm11305, %v11642
    %11692 = vst.msk [vmem:[#allocation4 + $0x128] sm:$0xff] %vm11305, %v11643
    %11693 = vst.msk [vmem:[#allocation4 + $0x130] sm:$0xff] %vm11305, %v11644
    %11694 = vst.msk [vmem:[#allocation4 + $0x138] sm:$0xff] %vm11305, %v11645
    %11695 = vst.msk [vmem:[#allocation4 + $0x140] sm:$0xff] %vm11305, %v11646
    %11696 = vst.msk [vmem:[#allocation4 + $0x148] sm:$0xff] %vm11305, %v11647
    %11697 = vst.msk [vmem:[#allocation4 + $0x150] sm:$0xff] %vm11305, %v11648
    %11698 = vst.msk [vmem:[#allocation4 + $0x158] sm:$0xff] %vm11305, %v11649
    %11699 = vst.msk [vmem:[#allocation4 + $0x160] sm:$0xff] %vm11305, %v11650
    %11700 = vst.msk [vmem:[#allocation4 + $0x168] sm:$0xff] %vm11305, %v11651
    %11701 = vst.msk [vmem:[#allocation4 + $0x170] sm:$0xff] %vm11305, %v11652
    %11702 = vst.msk [vmem:[#allocation4 + $0x178] sm:$0xff] %vm11305, %v11653
    %11703 = vst.msk [vmem:[#allocation4 + $0x180] sm:$0x3] %vm11356, %v11654
    %v11704 = vld [vmem:[#allocation4] ss:$2 sm:$0x3f]
    %vm11705 = vcmask 521216
    %11706 = vst.msk [vmem:[#allocation5] sm:$0x3f] %vm11705, %v11704
    %s11707 = scalar_lea.vmem [#allocation4], 30
    %v11708 = vld [vmem:[%s11707] ss:$2 sm:$0x3f]
    %11709 = vst.msk [vmem:[#allocation5 + $0x6] sm:$0x3f] %vm11705, %v11708
    %s11710 = scalar_lea.vmem [#allocation4], 60
    %v11711 = vld [vmem:[%s11710] ss:$2 sm:$0x3f]
    %11712 = vst.msk [vmem:[#allocation5 + $0xc] sm:$0x3f] %vm11705, %v11711
    %s11713 = scalar_lea.vmem [#allocation4], 90
    %v11714 = vld [vmem:[%s11713] ss:$2 sm:$0x3f]
    %11715 = vst.msk [vmem:[#allocation5 + $0x12] sm:$0x3f] %vm11705, %v11714
    %s11716 = scalar_lea.vmem [#allocation4], 120
    %v11717 = vld [vmem:[%s11716] ss:$2 sm:$0x3f]
    %11718 = vst.msk [vmem:[#allocation5 + $0x18] sm:$0x3f] %vm11705, %v11717
    %s11719 = scalar_lea.vmem [#allocation4], 150
    %v11720 = vld [vmem:[%s11719] ss:$2 sm:$0x3f]
    %11721 = vst.msk [vmem:[#allocation5 + $0x1e] sm:$0x3f] %vm11705, %v11720
    %s11722 = scalar_lea.vmem [#allocation4], 225
    %v11723 = vld [vmem:[%s11722] ss:$2 sm:$0x3f]
    %11724 = vst.msk [vmem:[#allocation5 + $0x24] sm:$0x3f] %vm11705, %v11723
    %s11725 = scalar_lea.vmem [#allocation4], 255
    %v11726 = vld [vmem:[%s11725] ss:$2 sm:$0x3f]
    %11727 = vst.msk [vmem:[#allocation5 + $0x2a] sm:$0x3f] %vm11705, %v11726
    %s11728 = scalar_lea.vmem [#allocation4], 285
    %v11729 = vld [vmem:[%s11728] ss:$2 sm:$0x3f]
    %11730 = vst.msk [vmem:[#allocation5 + $0x30] sm:$0x3f] %vm11705, %v11729
    %s11731 = scalar_lea.vmem [#allocation4], 315
    %v11732 = vld [vmem:[%s11731] ss:$2 sm:$0x3f]
    %11733 = vst.msk [vmem:[#allocation5 + $0x36] sm:$0x3f] %vm11705, %v11732
    %s11734 = scalar_lea.vmem [#allocation4], 345
    %v11735 = vld [vmem:[%s11734] ss:$2 sm:$0x3f]
    %11736 = vst.msk [vmem:[#allocation5 + $0x3c] sm:$0x3f] %vm11705, %v11735
    %s11737 = scalar_lea.vmem [#allocation4], 375
    %v11738 = vld [vmem:[%s11737] ss:$2 sm:$0x3f]
    %11739 = vst.msk [vmem:[#allocation5 + $0x42] sm:$0x3f] %vm11705, %v11738
    %v11740 = vld [vmem:[#allocation5] sm:$0xff]
    %v11741 = vld [vmem:[#allocation5 + $0x8] sm:$0xff]
    %v11742 = vld [vmem:[#allocation5 + $0x10] sm:$0xff]
    %v11743 = vld [vmem:[#allocation5 + $0x18] sm:$0xff]
    %v11744 = vld [vmem:[#allocation5 + $0x20] sm:$0xff]
    %v11745 = vld [vmem:[#allocation5 + $0x28] sm:$0xff]
    %v11746 = vld [vmem:[#allocation5 + $0x30] sm:$0xff]
    %v11747 = vld [vmem:[#allocation5 + $0x38] sm:$0xff]
    %v11748 = vld [vmem:[#allocation5 + $0x40] sm:$0xff]
    %v11749 = vld [vmem:[%s6] sm:$0x1]
    %v11751 = vlaneseq
    %v11752 = vshrl.u32 %v11751, 7
    %v11753 = vsub.s32 0, %v11752
    %v11754 = vrot.slane %v11749, %v11753
    %v11756 = vadd.f32 %v11740, %v11754
    %v11757 = vadd.f32 %v11741, %v11754
    %v11758 = vadd.f32 %v11742, %v11754
    %v11759 = vadd.f32 %v11743, %v11754
    %v11760 = vadd.f32 %v11744, %v11754
    %v11761 = vadd.f32 %v11745, %v11754
    %v11762 = vadd.f32 %v11746, %v11754
    %v11763 = vadd.f32 %v11747, %v11754
    %v11764 = vadd.f32 %v11748, %v11754
    %v11765 = vsel %vm11305, %v11756, 0.0
    %v11766 = vsel %vm11305, %v11757, 0.0
    %v11767 = vadd.f32 %v11765, %v11766
    %v11768 = vsel %vm11305, %v11758, 0.0
    %v11769 = vadd.f32 %v11767, %v11768
    %v11770 = vsel %vm11305, %v11759, 0.0
    %v11771 = vadd.f32 %v11769, %v11770
    %v11772 = vsel %vm11305, %v11760, 0.0
    %v11773 = vadd.f32 %v11771, %v11772
    %v11774 = vsel %vm11305, %v11761, 0.0
    %v11775 = vadd.f32 %v11773, %v11774
    %v11776 = vsel %vm11305, %v11762, 0.0
    %v11777 = vadd.f32 %v11775, %v11776
    %v11778 = vsel %vm11305, %v11763, 0.0
    %v11779 = vadd.f32 %v11777, %v11778
    %v11780 = vsel %vm11305, %v11764, 0.0
    %v11781 = vadd.f32 %v11779, %v11780
    %v11782 = vrot.slane %v11781, 4
    %v11783 = vadd.f32 %v11781, %v11782
    %v11784 = vrot.slane %v11783, 2
    %v11785 = vadd.f32 %v11783, %v11784
    %v11786 = vrot.slane %v11785, 1
    %v11787 = vadd.f32 %v11785, %v11786
    %v11788 = vrcp.pop 72.0
    %v11789 = vmul.f32 %v11787, %v11788
    %v11790 = vsub.f32 %v11756, %v11789
    %v11791 = vsub.f32 %v11757, %v11789
    %v11792 = vsub.f32 %v11758, %v11789
    %v11793 = vsub.f32 %v11759, %v11789
    %v11794 = vsub.f32 %v11760, %v11789
    %v11795 = vsub.f32 %v11761, %v11789
    %v11796 = vsub.f32 %v11762, %v11789
    %v11797 = vsub.f32 %v11763, %v11789
    %v11798 = vsub.f32 %v11764, %v11789
    %v11799 = vmul.f32 %v11790, %v11790
    %v11800 = vmul.f32 %v11791, %v11791
    %v11801 = vmul.f32 %v11792, %v11792
    %v11802 = vmul.f32 %v11793, %v11793
    %v11803 = vmul.f32 %v11794, %v11794
    %v11804 = vmul.f32 %v11795, %v11795
    %v11805 = vmul.f32 %v11796, %v11796
    %v11806 = vmul.f32 %v11797, %v11797
    %v11807 = vmul.f32 %v11798, %v11798
    %v11808 = vsel %vm11305, %v11799, 0.0
    %v11809 = vsel %vm11305, %v11800, 0.0
    %v11810 = vadd.f32 %v11808, %v11809
    %v11811 = vsel %vm11305, %v11801, 0.0
    %v11812 = vadd.f32 %v11810, %v11811
    %v11813 = vsel %vm11305, %v11802, 0.0
    %v11814 = vadd.f32 %v11812, %v11813
    %v11815 = vsel %vm11305, %v11803, 0.0
    %v11816 = vadd.f32 %v11814, %v11815
    %v11817 = vsel %vm11305, %v11804, 0.0
    %v11818 = vadd.f32 %v11816, %v11817
    %v11819 = vsel %vm11305, %v11805, 0.0
    %v11820 = vadd.f32 %v11818, %v11819
    %v11821 = vsel %vm11305, %v11806, 0.0
    %v11822 = vadd.f32 %v11820, %v11821
    %v11823 = vsel %vm11305, %v11807, 0.0
    %v11824 = vadd.f32 %v11822, %v11823
    %v11825 = vrot.slane %v11824, 4
    %v11826 = vadd.f32 %v11824, %v11825
    %v11827 = vrot.slane %v11826, 2
    %v11828 = vadd.f32 %v11826, %v11827
    %v11829 = vrot.slane %v11828, 1
    %v11830 = vadd.f32 %v11828, %v11829
    %v11831 = vmul.f32 %v11830, %v11788
    %v11832 = vadd.f32 %v11831, 1e-05
    %v11833 = vrsqrt.pop %v11832
    %v11834 = vmul.f32 %v11790, %v11833
    %v11835 = vmul.f32 %v11791, %v11833
    %v11836 = vmul.f32 %v11792, %v11833
    %v11837 = vmul.f32 %v11793, %v11833
    %v11838 = vmul.f32 %v11794, %v11833
    %v11839 = vmul.f32 %v11795, %v11833
    %v11840 = vmul.f32 %v11796, %v11833
    %v11841 = vmul.f32 %v11797, %v11833
    %v11842 = vmul.f32 %v11798, %v11833
    %v11843 = vld [vmem:[%s7] sm:$0x1]
    %v11845 = vlaneseq
    %v11846 = vshrl.u32 %v11845, 7
    %v11847 = vsub.s32 0, %v11846
    %v11848 = vrot.slane %v11843, %v11847
    %v11850 = vmul.f32 %v11834, %v11848
    %v11851 = vmul.f32 %v11835, %v11848
    %v11852 = vmul.f32 %v11836, %v11848
    %v11853 = vmul.f32 %v11837, %v11848
    %v11854 = vmul.f32 %v11838, %v11848
    %v11855 = vmul.f32 %v11839, %v11848
    %v11856 = vmul.f32 %v11840, %v11848
    %v11857 = vmul.f32 %v11841, %v11848
    %v11858 = vmul.f32 %v11842, %v11848
    %v11859 = vld [vmem:[%s8] sm:$0x1]
    %v11861 = vlaneseq
    %v11862 = vshrl.u32 %v11861, 7
    %v11863 = vsub.s32 0, %v11862
    %v11864 = vrot.slane %v11859, %v11863
    %v11866 = vadd.f32 %v11850, %v11864
    %v11867 = vadd.f32 %v11851, %v11864
    %v11868 = vadd.f32 %v11852, %v11864
    %v11869 = vadd.f32 %v11853, %v11864
    %v11870 = vadd.f32 %v11854, %v11864
    %v11871 = vadd.f32 %v11855, %v11864
    %v11872 = vadd.f32 %v11856, %v11864
    %v11873 = vadd.f32 %v11857, %v11864
    %v11874 = vadd.f32 %v11858, %v11864
    %v11875 = vmax.f32 %v11866, 0.0
    %v11876 = vmax.f32 %v11867, 0.0
    %v11877 = vmax.f32 %v11868, 0.0
    %v11878 = vmax.f32 %v11869, 0.0
    %v11879 = vmax.f32 %v11870, 0.0
    %v11880 = vmax.f32 %v11871, 0.0
    %v11881 = vmax.f32 %v11872, 0.0
    %v11882 = vmax.f32 %v11873, 0.0
    %v11883 = vmax.f32 %v11874, 0.0
    %v11884 = vpack.c.bf16 %v11876, %v11875
    %v11885 = vpack.c.bf16 %v11878, %v11877
    %v11886 = vpack.c.bf16 %v11880, %v11879
    %v11887 = vpack.c.bf16 %v11882, %v11881
    %v11888 = vpack.c.bf16 %v11883, %v11883
    %v11894 = vunpack.c.l.b16 %v11884
    %v11895 = vunpack.c.h.b16 %v11884
    %v11896 = vunpack.c.l.b16 %v11885
    %v11897 = vunpack.c.h.b16 %v11885
    %v11898 = vunpack.c.l.b16 %v11886
    %v11899 = vunpack.c.h.b16 %v11886
    %v11900 = vunpack.c.l.b16 %v11887
    %v11901 = vunpack.c.h.b16 %v11887
    %v11902 = vunpack.c.l.b16 %v11888
    %v11903 = vpack.c.b16 %v11894, %v11894
    %v11904 = vpack.c.b16 %v11895, %v11895
    %v11905 = vpack.c.b16 %v11896, %v11896
    %v11906 = vpack.c.b16 %v11897, %v11897
    %v11907 = vpack.c.b16 %v11898, %v11898
    %v11908 = vpack.c.b16 %v11899, %v11899
    %v11909 = vpack.c.b16 %v11900, %v11900
    %v11910 = vpack.c.b16 %v11901, %v11901
    %v11911 = vpack.c.b16 %v11902, %v11902
    %vm11921 = vcmask 519168
    %11922 = vst.msk [vmem:[#allocation6] sm:$0xf] %vm11921, %v11903
    %11923 = vst.msk [vmem:[#allocation6 + $0x4] sm:$0xf] %vm11921, %v11904
    %11924 = vst.msk [vmem:[#allocation6 + $0x8] sm:$0xf] %vm11921, %v11905
    %11925 = vst.msk [vmem:[#allocation6 + $0xc] sm:$0xf] %vm11921, %v11906
    %11926 = vst.msk [vmem:[#allocation6 + $0x10] sm:$0xf] %vm11921, %v11907
    %11927 = vst.msk [vmem:[#allocation6 + $0x14] sm:$0xf] %vm11921, %v11908
    %11928 = vst.msk [vmem:[#allocation6 + $0x18] sm:$0xf] %vm11921, %v11909
    %11929 = vst.msk [vmem:[#allocation6 + $0x1c] sm:$0xf] %vm11921, %v11910
    %11930 = vst.msk [vmem:[#allocation6 + $0x20] sm:$0xf] %vm11921, %v11911
    %v11931 = vld [vmem:[#allocation6] sm:$0xf]
    %v11932 = vld [vmem:[#allocation6 + $0x4] sm:$0xf]
    %v11933 = vld [vmem:[#allocation6 + $0x8] sm:$0xf]
    %v11934 = vld [vmem:[#allocation6 + $0xc] sm:$0xf]
    %v11935 = vld [vmem:[#allocation6 + $0x10] sm:$0xf]
    %v11936 = vld [vmem:[#allocation6 + $0x14] sm:$0xf]
    %v11937 = vld [vmem:[#allocation6 + $0x18] sm:$0x3]
    %v11938 = vld [vmem:[%s9] sm:$0xf]
    %v11939 = vld [vmem:[%s9 + $0x4] sm:$0xf]
    %v11940 = vld [vmem:[%s9 + $0x8] sm:$0xf]
    %v11941 = vld [vmem:[%s9 + $0xc] sm:$0xf]
    %v11942 = vld [vmem:[%s9 + $0x10] sm:$0xf]
    %v11943 = vld [vmem:[%s9 + $0x14] sm:$0xf]
    %v11944 = vld [vmem:[%s9 + $0x18] sm:$0xf]
    %v11945 = vld [vmem:[%s9 + $0x1c] sm:$0xf]
    %s11946 = scalar_lea.vmem %s9, 32
    %v11947 = vld [vmem:[%s11946] sm:$0xf]
    %v11948 = vld [vmem:[%s11946 + $0x4] sm:$0xf]
    %v11949 = vld [vmem:[%s11946 + $0x8] sm:$0xf]
    %v11950 = vld [vmem:[%s11946 + $0xc] sm:$0xf]
    %v11951 = vld [vmem:[%s11946 + $0x10] sm:$0xf]
    %v11952 = vld [vmem:[%s11946 + $0x14] sm:$0xf]
    %v11953 = vld [vmem:[%s11946 + $0x18] sm:$0xf]
    %v11954 = vld [vmem:[%s11946 + $0x1c] sm:$0xf]
    %v11962 = vunpack.c.l.b16 %v11931
    %v11963 = vunpack.c.l.b16 %v11932
    %v11964 = vunpack.c.l.b16 %v11933
    %v11965 = vunpack.c.l.b16 %v11934
    %v11966 = vunpack.c.l.b16 %v11935
    %v11967 = vunpack.c.l.b16 %v11936
    %v11968 = vunpack.c.l.b16 %v11937
    %v11969 = vpack.c.b16 %v11963, %v11962
    %v11970 = vpack.c.b16 %v11965, %v11964
    %v11971 = vpack.c.b16 %v11967, %v11966
    %v11972 = vpack.c.b16 %v11968, %v11968
    %v11974 = vshrl.u32 %v11969, 16
    %v11976 = vshll.u32 %v11969, 16
    %v11978 = vrot.slane %v11976, 1
    %v11979 = vor.u32 %v11974, %v11978
    %v11981 = vshll.u32 %v11970, 16
    %v11983 = vrot.slane %v11981, 1
    %v11984 = vsel %vm6401, %v11979, %v11983
    %v11985 = vshrl.u32 %v11970, 16
    %v11987 = vor.u32 %v11985, %v11983
    %v11989 = vshll.u32 %v11971, 16
    %v11991 = vrot.slane %v11989, 1
    %v11992 = vsel %vm6401, %v11987, %v11991
    %v11993 = vshrl.u32 %v11971, 16
    %v11995 = vor.u32 %v11993, %v11991
    %v11997 = vshll.u32 %v11972, 16
    %v11999 = vrot.slane %v11997, 1
    %v12000 = vsel %vm6401, %v11995, %v11999
    %v12001 = vshrl.u32 %v11972, 16
    %v12003 = vor.u32 %v12001, %v11999
    %v12012 = vunpack.c.l.b16 %v11947
    %v12013 = vunpack.c.l.b16 %v11948
    %v12014 = vunpack.c.l.b16 %v11949
    %v12015 = vunpack.c.l.b16 %v11950
    %v12016 = vunpack.c.l.b16 %v11951
    %v12017 = vunpack.c.l.b16 %v11952
    %v12018 = vunpack.c.l.b16 %v11953
    %v12019 = vunpack.c.l.b16 %v11954
    %v12020 = vpack.c.b16 %v12013, %v12012
    %v12021 = vpack.c.b16 %v12015, %v12014
    %v12022 = vpack.c.b16 %v12017, %v12016
    %v12023 = vpack.c.b16 %v12019, %v12018
    %v12029 = vsel %vm11305, %v11984, 0
    %v12032 = vsel %vm11305, %v11992, 0
    %v12035 = vsel %vm11305, %v12000, 0
    %v12038 = vsel %vm11305, %v12003, 0
    %12040 = vmatprep.subr.bf16.mxu0 0
    %12041 = vmatpush1.bf16.msra.mxu0 %v12020
    %12042 = vmatprep.subr.bf16.mxu0 0
    %12043 = vmatpush1.bf16.msra.mxu0 %v12021
    %12044 = vmatprep.subr.bf16.mxu0 0
    %12045 = vmatpush1.bf16.msra.mxu0 %v12022
    %12046 = vmatprep.subr.bf16.mxu0 0
    %12047 = vmatpush1.bf16.msra.mxu0 %v12023
    %12048 = vmatprep.subr.bf16.mxu0 0
    %12049 = vmatpush1.bf16.msra.mxu0 0
    %12050 = vmatprep.subr.bf16.mxu0 0
    %12051 = vmatpush1.bf16.msra.mxu0 0
    %12052 = vmatprep.subr.bf16.mxu0 0
    %12053 = vmatpush1.bf16.msra.mxu0 0
    %12054 = vmatprep.subr.bf16.mxu0 0
    %12055 = vmatpush1.bf16.msra.mxu0 0
    %12056 = vmatprep.subr.bf16.mxu0 0
    %12057 = vmatpush1.bf16.msra.mxu0 0
    %12058 = vmatprep.subr.bf16.mxu0 0
    %12059 = vmatpush1.bf16.msra.mxu0 0
    %12060 = vmatprep.subr.bf16.mxu0 0
    %12061 = vmatpush1.bf16.msra.mxu0 0
    %12062 = vmatprep.subr.bf16.mxu0 0
    %12063 = vmatpush1.bf16.msra.mxu0 0
    %12064 = vmatprep.subr.bf16.mxu0 0
    %12065 = vmatpush1.bf16.msra.mxu0 0
    %12066 = vmatprep.subr.bf16.mxu0 0
    %12067 = vmatpush1.bf16.msra.mxu0 0
    %12068 = vmatprep.subr.bf16.mxu0 0
    %12069 = vmatpush1.bf16.msra.mxu0 0
    %12070 = vmatprep.subr.bf16.mxu0 0
    %12071 = vmatpush1.bf16.msra.mxu0 0
    %12072 = vmatprep.mubr.bf16.mxu0 0
    %12073 = vmatmul.mubr.bf16.gmra.mrb[0].mxu0 %v12029
    %v12074 = vpop.f32.mrb[0].mxu0
    %v12075 = vadd.f32 0.0, %v12074
    %v12076 = vpop.f32.mrb[0].mxu0
    %v12077 = vpop.f32.mrb[0].mxu0
    %v12078 = vadd.f32 0.0, %v12077
    %v12079 = vpop.f32.mrb[0].mxu0
    %12080 = vmatprep.mubr.bf16.mxu0 0
    %12081 = vmatmul.mubr.bf16.gmra.mrb[0].mxu0 %v12032
    %v12082 = vpop.f32.mrb[0].mxu0
    %v12083 = vadd.f32 0.0, %v12082
    %v12084 = vpop.f32.mrb[0].mxu0
    %v12085 = vpop.f32.mrb[0].mxu0
    %v12086 = vadd.f32 0.0, %v12085
    %v12087 = vpop.f32.mrb[0].mxu0
    %12088 = vmatprep.mubr.bf16.mxu0 0
    %12089 = vmatmul.mubr.bf16.gmra.mrb[0].mxu0 %v12035
    %v12090 = vpop.f32.mrb[0].mxu0
    %v12091 = vadd.f32 0.0, %v12090
    %v12092 = vpop.f32.mrb[0].mxu0
    %v12093 = vpop.f32.mrb[0].mxu0
    %v12094 = vadd.f32 0.0, %v12093
    %v12095 = vpop.f32.mrb[0].mxu0
    %12096 = vmatprep.mubr.bf16.mxu0 0
    %12097 = vmatmul.mubr.bf16.gmra.mrb[0].mxu0 %v12038
    %v12098 = vpop.f32.mrb[0].mxu0
    %v12099 = vadd.f32 0.0, %v12098
    %v12100 = vpop.f32.mrb[0].mxu0
    %v12101 = vpop.f32.mrb[0].mxu0
    %v12102 = vpop.f32.mrb[0].mxu0
    %12103 = vdwg.mxu0
    %v12112 = vunpack.c.l.b16 %v11938
    %v12113 = vunpack.c.l.b16 %v11939
    %v12114 = vunpack.c.l.b16 %v11940
    %v12115 = vunpack.c.l.b16 %v11941
    %v12116 = vunpack.c.l.b16 %v11942
    %v12117 = vunpack.c.l.b16 %v11943
    %v12118 = vunpack.c.l.b16 %v11944
    %v12119 = vunpack.c.l.b16 %v11945
    %v12120 = vpack.c.b16 %v12113, %v12112
    %v12121 = vpack.c.b16 %v12115, %v12114
    %v12122 = vpack.c.b16 %v12117, %v12116
    %v12123 = vpack.c.b16 %v12119, %v12118
    %v12128 = vsel %vm11305, %v11969, 0
    %v12130 = vsel %vm11305, %v11970, 0
    %v12132 = vsel %vm11305, %v11971, 0
    %v12134 = vsel %vm11305, %v11972, 0
    %12136 = vmatprep.subr.bf16.mxu0 0
    %12137 = vmatpush1.bf16.msra.mxu0 %v12120
    %12138 = vmatprep.subr.bf16.mxu0 0
    %12139 = vmatpush1.bf16.msra.mxu0 %v12121
    %12140 = vmatprep.subr.bf16.mxu0 0
    %12141 = vmatpush1.bf16.msra.mxu0 %v12122
    %12142 = vmatprep.subr.bf16.mxu0 0
    %12143 = vmatpush1.bf16.msra.mxu0 %v12123
    %12144 = vmatprep.subr.bf16.mxu0 0
    %12145 = vmatpush1.bf16.msra.mxu0 0
    %12146 = vmatprep.subr.bf16.mxu0 0
    %12147 = vmatpush1.bf16.msra.mxu0 0
    %12148 = vmatprep.subr.bf16.mxu0 0
    %12149 = vmatpush1.bf16.msra.mxu0 0
    %12150 = vmatprep.subr.bf16.mxu0 0
    %12151 = vmatpush1.bf16.msra.mxu0 0
    %12152 = vmatprep.subr.bf16.mxu0 0
    %12153 = vmatpush1.bf16.msra.mxu0 0
    %12154 = vmatprep.subr.bf16.mxu0 0
    %12155 = vmatpush1.bf16.msra.mxu0 0
    %12156 = vmatprep.subr.bf16.mxu0 0
    %12157 = vmatpush1.bf16.msra.mxu0 0
    %12158 = vmatprep.subr.bf16.mxu0 0
    %12159 = vmatpush1.bf16.msra.mxu0 0
    %12160 = vmatprep.subr.bf16.mxu0 0
    %12161 = vmatpush1.bf16.msra.mxu0 0
    %12162 = vmatprep.subr.bf16.mxu0 0
    %12163 = vmatpush1.bf16.msra.mxu0 0
    %12164 = vmatprep.subr.bf16.mxu0 0
    %12165 = vmatpush1.bf16.msra.mxu0 0
    %12166 = vmatprep.subr.bf16.mxu0 0
    %12167 = vmatpush1.bf16.msra.mxu0 0
    %12168 = vmatprep.mubr.bf16.mxu0 0
    %12169 = vmatmul.mubr.bf16.gmra.mrb[0].mxu0 %v12128
    %v12170 = vpop.f32.mrb[0].mxu0
    %v12171 = vadd.f32 %v12075, %v12170
    %v12172 = vpop.f32.mrb[0].mxu0
    %v12173 = vpop.f32.mrb[0].mxu0
    %v12174 = vadd.f32 %v12078, %v12173
    %v12175 = vpop.f32.mrb[0].mxu0
    %12176 = vmatprep.mubr.bf16.mxu0 0
    %12177 = vmatmul.mubr.bf16.gmra.mrb[0].mxu0 %v12130
    %v12178 = vpop.f32.mrb[0].mxu0
    %v12179 = vadd.f32 %v12083, %v12178
    %v12180 = vpop.f32.mrb[0].mxu0
    %v12181 = vpop.f32.mrb[0].mxu0
    %v12182 = vadd.f32 %v12086, %v12181
    %v12183 = vpop.f32.mrb[0].mxu0
    %12184 = vmatprep.mubr.bf16.mxu0 0
    %12185 = vmatmul.mubr.bf16.gmra.mrb[0].mxu0 %v12132
    %v12186 = vpop.f32.mrb[0].mxu0
    %v12187 = vadd.f32 %v12091, %v12186
    %v12188 = vpop.f32.mrb[0].mxu0
    %v12189 = vpop.f32.mrb[0].mxu0
    %v12190 = vadd.f32 %v12094, %v12189
    %v12191 = vpop.f32.mrb[0].mxu0
    %12192 = vmatprep.mubr.bf16.mxu0 0
    %12193 = vmatmul.mubr.bf16.gmra.mrb[0].mxu0 %v12134
    %v12194 = vpop.f32.mrb[0].mxu0
    %v12195 = vadd.f32 %v12099, %v12194
    %v12196 = vpop.f32.mrb[0].mxu0
    %v12197 = vpop.f32.mrb[0].mxu0
    %v12198 = vpop.f32.mrb[0].mxu0
    %12199 = vdwg.mxu0
    %v12200 = vld [vmem:[#allocation6] sm:$0x8]
    %v12201 = vld [vmem:[#allocation6 + $0x4] sm:$0xf]
    %v12202 = vld [vmem:[#allocation6 + $0x8] sm:$0xf]
    %v12203 = vld [vmem:[#allocation6 + $0xc] sm:$0xf]
    %v12204 = vld [vmem:[#allocation6 + $0x10] sm:$0xf]
    %v12205 = vld [vmem:[#allocation6 + $0x14] sm:$0xf]
    %v12206 = vld [vmem:[#allocation6 + $0x18] sm:$0xf]
    %v12207 = vld [vmem:[#allocation6 + $0x1c] sm:$0x1]
    %s12208 = scalar_lea.vmem %s9, 64
    %v12209 = vld [vmem:[%s12208] sm:$0xf]
    %v12210 = vld [vmem:[%s12208 + $0x4] sm:$0xf]
    %v12211 = vld [vmem:[%s12208 + $0x8] sm:$0xf]
    %v12212 = vld [vmem:[%s12208 + $0xc] sm:$0xf]
    %v12213 = vld [vmem:[%s12208 + $0x10] sm:$0xf]
    %v12214 = vld [vmem:[%s12208 + $0x14] sm:$0xf]
    %v12215 = vld [vmem:[%s12208 + $0x18] sm:$0xf]
    %v12216 = vld [vmem:[%s12208 + $0x1c] sm:$0xf]
    %v12225 = vunpack.c.l.b16 %v12200
    %v12226 = vunpack.c.l.b16 %v12201
    %v12227 = vunpack.c.l.b16 %v12202
    %v12228 = vunpack.c.l.b16 %v12203
    %v12229 = vunpack.c.l.b16 %v12204
    %v12230 = vunpack.c.l.b16 %v12205
    %v12231 = vunpack.c.l.b16 %v12206
    %v12232 = vunpack.c.l.b16 %v12207
    %v12233 = vpack.c.b16 %v12226, %v12225
    %v12234 = vpack.c.b16 %v12228, %v12227
    %v12235 = vpack.c.b16 %v12230, %v12229
    %v12236 = vpack.c.b16 %v12232, %v12231
    %v12237 = vrot.slane %v12233, 3
    %v12238 = vrot.slane %v12234, 3
    %v12239 = vsel %vm9659, %v12237, %v12238
    %v12240 = vrot.slane %v12235, 3
    %v12241 = vsel %vm9659, %v12238, %v12240
    %v12242 = vrot.slane %v12236, 3
    %v12243 = vsel %vm9659, %v12240, %v12242
    %v12252 = vunpack.c.l.b16 %v12209
    %v12253 = vunpack.c.l.b16 %v12210
    %v12254 = vunpack.c.l.b16 %v12211
    %v12255 = vunpack.c.l.b16 %v12212
    %v12256 = vunpack.c.l.b16 %v12213
    %v12257 = vunpack.c.l.b16 %v12214
    %v12258 = vunpack.c.l.b16 %v12215
    %v12259 = vunpack.c.l.b16 %v12216
    %v12260 = vpack.c.b16 %v12253, %v12252
    %v12261 = vpack.c.b16 %v12255, %v12254
    %v12262 = vpack.c.b16 %v12257, %v12256
    %v12263 = vpack.c.b16 %v12259, %v12258
    %v12269 = vsel %vm11305, %v12239, 0
    %v12272 = vsel %vm11305, %v12241, 0
    %v12275 = vsel %vm11305, %v12243, 0
    %v12278 = vsel %vm11305, %v12242, 0
    %12280 = vmatprep.subr.bf16.mxu0 0
    %12281 = vmatpush1.bf16.msra.mxu0 %v12260
    %12282 = vmatprep.subr.bf16.mxu0 0
    %12283 = vmatpush1.bf16.msra.mxu0 %v12261
    %12284 = vmatprep.subr.bf16.mxu0 0
    %12285 = vmatpush1.bf16.msra.mxu0 %v12262
    %12286 = vmatprep.subr.bf16.mxu0 0
    %12287 = vmatpush1.bf16.msra.mxu0 %v12263
    %12288 = vmatprep.subr.bf16.mxu0 0
    %12289 = vmatpush1.bf16.msra.mxu0 0
    %12290 = vmatprep.subr.bf16.mxu0 0
    %12291 = vmatpush1.bf16.msra.mxu0 0
    %12292 = vmatprep.subr.bf16.mxu0 0
    %12293 = vmatpush1.bf16.msra.mxu0 0
    %12294 = vmatprep.subr.bf16.mxu0 0
    %12295 = vmatpush1.bf16.msra.mxu0 0
    %12296 = vmatprep.subr.bf16.mxu0 0
    %12297 = vmatpush1.bf16.msra.mxu0 0
    %12298 = vmatprep.subr.bf16.mxu0 0
    %12299 = vmatpush1.bf16.msra.mxu0 0
    %12300 = vmatprep.subr.bf16.mxu0 0
    %12301 = vmatpush1.bf16.msra.mxu0 0
    %12302 = vmatprep.subr.bf16.mxu0 0
    %12303 = vmatpush1.bf16.msra.mxu0 0
    %12304 = vmatprep.subr.bf16.mxu0 0
    %12305 = vmatpush1.bf16.msra.mxu0 0
    %12306 = vmatprep.subr.bf16.mxu0 0
    %12307 = vmatpush1.bf16.msra.mxu0 0
    %12308 = vmatprep.subr.bf16.mxu0 0
    %12309 = vmatpush1.bf16.msra.mxu0 0
    %12310 = vmatprep.subr.bf16.mxu0 0
    %12311 = vmatpush1.bf16.msra.mxu0 0
    %12312 = vmatprep.mubr.bf16.mxu0 0
    %12313 = vmatmul.mubr.bf16.gmra.mrb[0].mxu0 %v12269
    %v12314 = vpop.f32.mrb[0].mxu0
    %v12315 = vadd.f32 0.0, %v12314
    %v12316 = vpop.f32.mrb[0].mxu0
    %v12317 = vpop.f32.mrb[0].mxu0
    %v12318 = vadd.f32 0.0, %v12317
    %v12319 = vpop.f32.mrb[0].mxu0
    %12320 = vmatprep.mubr.bf16.mxu0 0
    %12321 = vmatmul.mubr.bf16.gmra.mrb[0].mxu0 %v12272
    %v12322 = vpop.f32.mrb[0].mxu0
    %v12323 = vadd.f32 0.0, %v12322
    %v12324 = vpop.f32.mrb[0].mxu0
    %v12325 = vpop.f32.mrb[0].mxu0
    %v12326 = vadd.f32 0.0, %v12325
    %v12327 = vpop.f32.mrb[0].mxu0
    %12328 = vmatprep.mubr.bf16.mxu0 0
    %12329 = vmatmul.mubr.bf16.gmra.mrb[0].mxu0 %v12275
    %v12330 = vpop.f32.mrb[0].mxu0
    %v12331 = vadd.f32 0.0, %v12330
    %v12332 = vpop.f32.mrb[0].mxu0
    %v12333 = vpop.f32.mrb[0].mxu0
    %v12334 = vadd.f32 0.0, %v12333
    %v12335 = vpop.f32.mrb[0].mxu0
    %12336 = vmatprep.mubr.bf16.mxu0 0
    %12337 = vmatmul.mubr.bf16.gmra.mrb[0].mxu0 %v12278
    %v12338 = vpop.f32.mrb[0].mxu0
    %v12339 = vadd.f32 0.0, %v12338
    %v12340 = vpop.f32.mrb[0].mxu0
    %v12341 = vpop.f32.mrb[0].mxu0
    %v12342 = vpop.f32.mrb[0].mxu0
    %12343 = vdwg.mxu0
    %v12344 = vadd.f32 %v12171, %v12315
    %v12345 = vadd.f32 %v12174, %v12318
    %v12346 = vadd.f32 %v12179, %v12323
    %v12347 = vadd.f32 %v12182, %v12326
    %v12348 = vadd.f32 %v12187, %v12331
    %v12349 = vadd.f32 %v12190, %v12334
    %v12350 = vadd.f32 %v12195, %v12339
    %s12351 = scalar_lea.vmem %s9, 96
    %v12352 = vld [vmem:[%s12351] sm:$0xf]
    %v12353 = vld [vmem:[%s12351 + $0x4] sm:$0xf]
    %v12354 = vld [vmem:[%s12351 + $0x8] sm:$0xf]
    %v12355 = vld [vmem:[%s12351 + $0xc] sm:$0xf]
    %v12356 = vld [vmem:[%s12351 + $0x10] sm:$0xf]
    %v12357 = vld [vmem:[%s12351 + $0x14] sm:$0xf]
    %v12358 = vld [vmem:[%s12351 + $0x18] sm:$0xf]
    %v12359 = vld [vmem:[%s12351 + $0x1c] sm:$0xf]
    %v12361 = vshrl.u32 %v12233, 16
    %v12363 = vrot.slane %v12361, 3
    %v12364 = vshll.u32 %v12233, 16
    %v12366 = vrot.slane %v12364, 4
    %v12367 = vor.u32 %v12363, %v12366
    %v12369 = vshrl.u32 %v12234, 16
    %v12371 = vrot.slane %v12369, 3
    %v12372 = vshll.u32 %v12234, 16
    %v12374 = vrot.slane %v12372, 4
    %v12375 = vor.u32 %v12371, %v12374
    %v12376 = vsel %vm7876, %v12367, %v12375
    %v12378 = vshrl.u32 %v12235, 16
    %v12380 = vrot.slane %v12378, 3
    %v12381 = vshll.u32 %v12235, 16
    %v12383 = vrot.slane %v12381, 4
    %v12384 = vor.u32 %v12380, %v12383
    %v12385 = vsel %vm7876, %v12375, %v12384
    %v12387 = vshrl.u32 %v12236, 16
    %v12389 = vrot.slane %v12387, 3
    %v12390 = vshll.u32 %v12236, 16
    %v12392 = vrot.slane %v12390, 4
    %v12393 = vor.u32 %v12389, %v12392
    %v12394 = vsel %vm7876, %v12384, %v12393
    %v12403 = vunpack.c.l.b16 %v12352
    %v12404 = vunpack.c.l.b16 %v12353
    %v12405 = vunpack.c.l.b16 %v12354
    %v12406 = vunpack.c.l.b16 %v12355
    %v12407 = vunpack.c.l.b16 %v12356
    %v12408 = vunpack.c.l.b16 %v12357
    %v12409 = vunpack.c.l.b16 %v12358
    %v12410 = vunpack.c.l.b16 %v12359
    %v12411 = vpack.c.b16 %v12404, %v12403
    %v12412 = vpack.c.b16 %v12406, %v12405
    %v12413 = vpack.c.b16 %v12408, %v12407
    %v12414 = vpack.c.b16 %v12410, %v12409
    %v12420 = vsel %vm11305, %v12376, 0
    %v12423 = vsel %vm11305, %v12385, 0
    %v12426 = vsel %vm11305, %v12394, 0
    %v12429 = vsel %vm11305, %v12393, 0
    %12431 = vmatprep.subr.bf16.mxu0 0
    %12432 = vmatpush1.bf16.msra.mxu0 %v12411
    %12433 = vmatprep.subr.bf16.mxu0 0
    %12434 = vmatpush1.bf16.msra.mxu0 %v12412
    %12435 = vmatprep.subr.bf16.mxu0 0
    %12436 = vmatpush1.bf16.msra.mxu0 %v12413
    %12437 = vmatprep.subr.bf16.mxu0 0
    %12438 = vmatpush1.bf16.msra.mxu0 %v12414
    %12439 = vmatprep.subr.bf16.mxu0 0
    %12440 = vmatpush1.bf16.msra.mxu0 0
    %12441 = vmatprep.subr.bf16.mxu0 0
    %12442 = vmatpush1.bf16.msra.mxu0 0
    %12443 = vmatprep.subr.bf16.mxu0 0
    %12444 = vmatpush1.bf16.msra.mxu0 0
    %12445 = vmatprep.subr.bf16.mxu0 0
    %12446 = vmatpush1.bf16.msra.mxu0 0
    %12447 = vmatprep.subr.bf16.mxu0 0
    %12448 = vmatpush1.bf16.msra.mxu0 0
    %12449 = vmatprep.subr.bf16.mxu0 0
    %12450 = vmatpush1.bf16.msra.mxu0 0
    %12451 = vmatprep.subr.bf16.mxu0 0
    %12452 = vmatpush1.bf16.msra.mxu0 0
    %12453 = vmatprep.subr.bf16.mxu0 0
    %12454 = vmatpush1.bf16.msra.mxu0 0
    %12455 = vmatprep.subr.bf16.mxu0 0
    %12456 = vmatpush1.bf16.msra.mxu0 0
    %12457 = vmatprep.subr.bf16.mxu0 0
    %12458 = vmatpush1.bf16.msra.mxu0 0
    %12459 = vmatprep.subr.bf16.mxu0 0
    %12460 = vmatpush1.bf16.msra.mxu0 0
    %12461 = vmatprep.subr.bf16.mxu0 0
    %12462 = vmatpush1.bf16.msra.mxu0 0
    %12463 = vmatprep.mubr.bf16.mxu0 0
    %12464 = vmatmul.mubr.bf16.gmra.mrb[0].mxu0 %v12420
    %v12465 = vpop.f32.mrb[0].mxu0
    %v12466 = vadd.f32 0.0, %v12465
    %v12467 = vpop.f32.mrb[0].mxu0
    %v12468 = vpop.f32.mrb[0].mxu0
    %v12469 = vadd.f32 0.0, %v12468
    %v12470 = vpop.f32.mrb[0].mxu0
    %12471 = vmatprep.mubr.bf16.mxu0 0
    %12472 = vmatmul.mubr.bf16.gmra.mrb[0].mxu0 %v12423
    %v12473 = vpop.f32.mrb[0].mxu0
    %v12474 = vadd.f32 0.0, %v12473
    %v12475 = vpop.f32.mrb[0].mxu0
    %v12476 = vpop.f32.mrb[0].mxu0
    %v12477 = vadd.f32 0.0, %v12476
    %v12478 = vpop.f32.mrb[0].mxu0
    %12479 = vmatprep.mubr.bf16.mxu0 0
    %12480 = vmatmul.mubr.bf16.gmra.mrb[0].mxu0 %v12426
    %v12481 = vpop.f32.mrb[0].mxu0
    %v12482 = vadd.f32 0.0, %v12481
    %v12483 = vpop.f32.mrb[0].mxu0
    %v12484 = vpop.f32.mrb[0].mxu0
    %v12485 = vadd.f32 0.0, %v12484
    %v12486 = vpop.f32.mrb[0].mxu0
    %12487 = vmatprep.mubr.bf16.mxu0 0
    %12488 = vmatmul.mubr.bf16.gmra.mrb[0].mxu0 %v12429
    %v12489 = vpop.f32.mrb[0].mxu0
    %v12490 = vadd.f32 0.0, %v12489
    %v12491 = vpop.f32.mrb[0].mxu0
    %v12492 = vpop.f32.mrb[0].mxu0
    %v12493 = vpop.f32.mrb[0].mxu0
    %12494 = vdwg.mxu0
    %v12495 = vadd.f32 %v12344, %v12466
    %v12496 = vadd.f32 %v12345, %v12469
    %v12497 = vadd.f32 %v12346, %v12474
    %v12498 = vadd.f32 %v12347, %v12477
    %v12499 = vadd.f32 %v12348, %v12482
    %v12500 = vadd.f32 %v12349, %v12485
    %v12501 = vadd.f32 %v12350, %v12490
    %12502 = vst [vmem:[#allocation7] sm:$0xff] %v12495
    %12503 = vst [vmem:[#allocation7 + $0x8] sm:$0xff] %v12496
    %12504 = vst [vmem:[#allocation7 + $0x10] sm:$0xff] %v12497
    %12505 = vst [vmem:[#allocation7 + $0x18] sm:$0xff] %v12498
    %12506 = vst [vmem:[#allocation7 + $0x20] sm:$0xff] %v12499
    %12507 = vst [vmem:[#allocation7 + $0x28] sm:$0xff] %v12500
    %12508 = vst [vmem:[#allocation7 + $0x30] sm:$0x7] %v12501
    %v12509 = vld [vmem:[#allocation7] sm:$0xff]
    %v12510 = vld [vmem:[#allocation7 + $0x8] sm:$0xff]
    %v12511 = vld [vmem:[#allocation7 + $0x10] sm:$0xff]
    %v12512 = vld [vmem:[#allocation7 + $0x18] sm:$0xff]
    %v12513 = vld [vmem:[#allocation7 + $0x20] sm:$0x1f]
    %v12514 = vld [vmem:[#allocation7 + $0x1] sm:$0xff]
    %v12515 = vld [vmem:[#allocation7 + $0x9] sm:$0xff]
    %v12516 = vld [vmem:[#allocation7 + $0x11] sm:$0xff]
    %v12517 = vld [vmem:[#allocation7 + $0x19] sm:$0xff]
    %v12518 = vld [vmem:[#allocation7 + $0x21] sm:$0x1f]
    %v12519 = vmax.f32 %v12509, %v12514
    %v12520 = vmax.f32 %v12510, %v12515
    %v12521 = vmax.f32 %v12511, %v12516
    %v12522 = vmax.f32 %v12512, %v12517
    %v12523 = vmax.f32 %v12513, %v12518
    %v12524 = vld [vmem:[#allocation7 + $0x2] sm:$0xff]
    %v12525 = vld [vmem:[#allocation7 + $0xa] sm:$0xff]
    %v12526 = vld [vmem:[#allocation7 + $0x12] sm:$0xff]
    %v12527 = vld [vmem:[#allocation7 + $0x1a] sm:$0xff]
    %v12528 = vld [vmem:[#allocation7 + $0x22] sm:$0x1f]
    %v12529 = vmax.f32 %v12519, %v12524
    %v12530 = vmax.f32 %v12520, %v12525
    %v12531 = vmax.f32 %v12521, %v12526
    %v12532 = vmax.f32 %v12522, %v12527
    %v12533 = vmax.f32 %v12523, %v12528
    %v12534 = vld [vmem:[#allocation7 + $0x6] sm:$0xff]
    %v12535 = vld [vmem:[#allocation7 + $0xe] sm:$0xff]
    %v12536 = vld [vmem:[#allocation7 + $0x16] sm:$0xff]
    %v12537 = vld [vmem:[#allocation7 + $0x1e] sm:$0xff]
    %v12538 = vld [vmem:[#allocation7 + $0x26] sm:$0x1f]
    %v12539 = vmax.f32 %v12529, %v12534
    %v12540 = vmax.f32 %v12530, %v12535
    %v12541 = vmax.f32 %v12531, %v12536
    %v12542 = vmax.f32 %v12532, %v12537
    %v12543 = vmax.f32 %v12533, %v12538
    %v12544 = vld [vmem:[#allocation7 + $0x7] sm:$0xff]
    %v12545 = vld [vmem:[#allocation7 + $0xf] sm:$0xff]
    %v12546 = vld [vmem:[#allocation7 + $0x17] sm:$0xff]
    %v12547 = vld [vmem:[#allocation7 + $0x1f] sm:$0xff]
    %v12548 = vld [vmem:[#allocation7 + $0x27] sm:$0x1f]
    %v12549 = vmax.f32 %v12539, %v12544
    %v12550 = vmax.f32 %v12540, %v12545
    %v12551 = vmax.f32 %v12541, %v12546
    %v12552 = vmax.f32 %v12542, %v12547
    %v12553 = vmax.f32 %v12543, %v12548
    %v12554 = vld [vmem:[#allocation7 + $0x20] sm:$0xff]
    %v12555 = vld [vmem:[#allocation7 + $0x28] sm:$0x1f]
    %v12556 = vmax.f32 %v12549, %v12510
    %v12557 = vmax.f32 %v12550, %v12511
    %v12558 = vmax.f32 %v12551, %v12512
    %v12559 = vmax.f32 %v12552, %v12554
    %v12560 = vmax.f32 %v12553, %v12555
    %v12561 = vld [vmem:[#allocation7 + $0xc] sm:$0xff]
    %v12562 = vld [vmem:[#allocation7 + $0x14] sm:$0xff]
    %v12563 = vld [vmem:[#allocation7 + $0x1c] sm:$0xff]
    %v12564 = vld [vmem:[#allocation7 + $0x24] sm:$0xff]
    %v12565 = vld [vmem:[#allocation7 + $0x2c] sm:$0x1f]
    %v12566 = vmax.f32 %v12556, %v12561
    %v12567 = vmax.f32 %v12557, %v12562
    %v12568 = vmax.f32 %v12558, %v12563
    %v12569 = vmax.f32 %v12559, %v12564
    %v12570 = vmax.f32 %v12560, %v12565
    %v12571 = vld [vmem:[#allocation7 + $0xd] sm:$0xff]
    %v12572 = vld [vmem:[#allocation7 + $0x15] sm:$0xff]
    %v12573 = vld [vmem:[#allocation7 + $0x1d] sm:$0xff]
    %v12574 = vld [vmem:[#allocation7 + $0x25] sm:$0xff]
    %v12575 = vld [vmem:[#allocation7 + $0x2d] sm:$0x1f]
    %v12576 = vmax.f32 %v12566, %v12571
    %v12577 = vmax.f32 %v12567, %v12572
    %v12578 = vmax.f32 %v12568, %v12573
    %v12579 = vmax.f32 %v12569, %v12574
    %v12580 = vmax.f32 %v12570, %v12575
    %v12581 = vld [vmem:[#allocation7 + $0xe] sm:$0xff]
    %v12582 = vld [vmem:[#allocation7 + $0x16] sm:$0xff]
    %v12583 = vld [vmem:[#allocation7 + $0x1e] sm:$0xff]
    %v12584 = vld [vmem:[#allocation7 + $0x26] sm:$0xff]
    %v12585 = vld [vmem:[#allocation7 + $0x2e] sm:$0x1f]
    %v12586 = vmax.f32 %v12576, %v12581
    %v12587 = vmax.f32 %v12577, %v12582
    %v12588 = vmax.f32 %v12578, %v12583
    %v12589 = vmax.f32 %v12579, %v12584
    %v12590 = vmax.f32 %v12580, %v12585
    %12591 = vst [vmem:[#allocation8] sm:$0xff] %v12586
    %12592 = vst [vmem:[#allocation8 + $0x8] sm:$0xff] %v12587
    %12593 = vst [vmem:[#allocation8 + $0x10] sm:$0xff] %v12588
    %12594 = vst [vmem:[#allocation8 + $0x18] sm:$0xff] %v12589
    %12595 = vst [vmem:[#allocation8 + $0x20] sm:$0x1f] %v12590
    %v12596 = vld [vmem:[#allocation8] ss:$3 sm:$0x1]
    %12597 = vst [vmem:[#allocation9] sm:$0x1] %v12596
    %s12598 = scalar_lea.vmem [#allocation8], 36
    %v12599 = vld [vmem:[%s12598] ss:$3 sm:$0x1]
    %12600 = vst [vmem:[#allocation9 + $0x1] sm:$0x1] %v12599
    %v12601 = vld [vmem:[#allocation9] sm:$0x3]
    %v12602 = vld [vmem:[%s10] sm:$0x1]
    %v12604 = vlaneseq
    %v12605 = vshrl.u32 %v12604, 7
    %v12606 = vsub.s32 0, %v12605
    %v12607 = vrot.slane %v12602, %v12606
    %v12609 = vadd.f32 %v12601, %v12607
    %vm12610 = vcmask 1041408
    %v12611 = vsel %vm12610, %v12609, 0.0
    %v12612 = vrot.slane %v12611, 4
    %v12613 = vadd.f32 %v12611, %v12612
    %v12614 = vrot.slane %v12613, 2
    %v12615 = vadd.f32 %v12613, %v12614
    %v12616 = vrot.slane %v12615, 1
    %v12617 = vadd.f32 %v12615, %v12616
    %v12618 = vrcp.pop 2.0
    %v12619 = vmul.f32 %v12617, %v12618
    %v12620 = vsub.f32 %v12609, %v12619
    %v12621 = vmul.f32 %v12620, %v12620
    %v12622 = vsel %vm12610, %v12621, 0.0
    %v12623 = vrot.slane %v12622, 4
    %v12624 = vadd.f32 %v12622, %v12623
    %v12625 = vrot.slane %v12624, 2
    %v12626 = vadd.f32 %v12624, %v12625
    %v12627 = vrot.slane %v12626, 1
    %v12628 = vadd.f32 %v12626, %v12627
    %v12629 = vmul.f32 %v12628, %v12618
    %v12630 = vadd.f32 %v12629, 1e-05
    %v12631 = vrsqrt.pop %v12630
    %v12632 = vmul.f32 %v12620, %v12631
    %v12633 = vld [vmem:[%s11] sm:$0x1]
    %v12635 = vlaneseq
    %v12636 = vshrl.u32 %v12635, 7
    %v12637 = vsub.s32 0, %v12636
    %v12638 = vrot.slane %v12633, %v12637
    %v12640 = vmul.f32 %v12632, %v12638
    %v12641 = vld [vmem:[%s12] sm:$0x1]
    %v12643 = vlaneseq
    %v12644 = vshrl.u32 %v12643, 7
    %v12645 = vsub.s32 0, %v12644
    %v12646 = vrot.slane %v12641, %v12645
    %v12648 = vadd.f32 %v12640, %v12646
    %v12649 = vmax.f32 %v12648, 0.0
    %v12650 = vpack.c.bf16 %v12649, %v12649
    %v12651 = vld [vmem:[%s13] sm:$0xff]
    %v12652 = vld [vmem:[%s13 + $0x8] sm:$0xff]
    %v12653 = vld [vmem:[%s13 + $0x10] sm:$0xff]
    %v12654 = vld [vmem:[%s13 + $0x18] sm:$0xff]
    %v12655 = vld [vmem:[%s13 + $0x20] sm:$0xff]
    %v12656 = vld [vmem:[%s13 + $0x28] sm:$0xff]
    %v12657 = vld [vmem:[%s13 + $0x30] sm:$0xff]
    %v12658 = vld [vmem:[%s13 + $0x38] sm:$0xff]
    %v12659 = vld [vmem:[%s13 + $0x40] sm:$0xff]
    %v12660 = vld [vmem:[%s13 + $0x48] sm:$0xff]
    %v12661 = vld [vmem:[%s13 + $0x50] sm:$0xff]
    %v12662 = vld [vmem:[%s13 + $0x58] sm:$0xff]
    %v12663 = vld [vmem:[%s13 + $0x60] sm:$0xff]
    %v12664 = vld [vmem:[%s13 + $0x68] sm:$0xff]
    %v12665 = vld [vmem:[%s13 + $0x70] sm:$0xff]
    %v12666 = vld [vmem:[%s13 + $0x78] sm:$0xff]
    %v12667 = vld [vmem:[%s14] sm:$0x3]
    %v12669 = vlaneseq
    %v12670 = vshrl.u32 %v12669, 7
    %v12671 = vsub.s32 0, %v12670
    %v12672 = vrot.slane %v12667, %v12671
    %v12673 = vlaneseq
    %v12674 = vshrl.u32 %v12673, 7
    %v12675 = vsub.s32 1, %v12674
    %v12676 = vrot.slane %v12667, %v12675
    %v12695 = vunpack.c.l.b16 %v12651
    %v12696 = vunpack.c.h.b16 %v12651
    %v12697 = vunpack.c.l.b16 %v12652
    %v12698 = vunpack.c.h.b16 %v12652
    %v12699 = vunpack.c.l.b16 %v12653
    %v12700 = vunpack.c.h.b16 %v12653
    %v12701 = vunpack.c.l.b16 %v12654
    %v12702 = vunpack.c.h.b16 %v12654
    %v12703 = vunpack.c.l.b16 %v12655
    %v12704 = vunpack.c.h.b16 %v12655
    %v12705 = vunpack.c.l.b16 %v12656
    %v12706 = vunpack.c.h.b16 %v12656
    %v12707 = vunpack.c.l.b16 %v12657
    %v12708 = vunpack.c.h.b16 %v12657
    %v12709 = vunpack.c.l.b16 %v12658
    %v12710 = vunpack.c.h.b16 %v12658
    %v12711 = vunpack.c.l.b16 %v12659
    %v12712 = vunpack.c.h.b16 %v12659
    %v12713 = vunpack.c.l.b16 %v12660
    %v12714 = vunpack.c.h.b16 %v12660
    %v12715 = vunpack.c.l.b16 %v12661
    %v12716 = vunpack.c.h.b16 %v12661
    %v12717 = vunpack.c.l.b16 %v12662
    %v12718 = vunpack.c.h.b16 %v12662
    %v12719 = vunpack.c.l.b16 %v12663
    %v12720 = vunpack.c.h.b16 %v12663
    %v12721 = vunpack.c.l.b16 %v12664
    %v12722 = vunpack.c.h.b16 %v12664
    %v12723 = vunpack.c.l.b16 %v12665
    %v12724 = vunpack.c.h.b16 %v12665
    %v12725 = vunpack.c.l.b16 %v12666
    %v12726 = vunpack.c.h.b16 %v12666
    %v12727 = vpack.c.b16 %v12697, %v12695
    %v12728 = vpack.c.b16 %v12698, %v12696
    %v12729 = vpack.c.b16 %v12701, %v12699
    %v12730 = vpack.c.b16 %v12702, %v12700
    %v12731 = vpack.c.b16 %v12705, %v12703
    %v12732 = vpack.c.b16 %v12706, %v12704
    %v12733 = vpack.c.b16 %v12709, %v12707
    %v12734 = vpack.c.b16 %v12710, %v12708
    %v12735 = vpack.c.b16 %v12713, %v12711
    %v12736 = vpack.c.b16 %v12714, %v12712
    %v12737 = vpack.c.b16 %v12717, %v12715
    %v12738 = vpack.c.b16 %v12718, %v12716
    %v12739 = vpack.c.b16 %v12721, %v12719
    %v12740 = vpack.c.b16 %v12722, %v12720
    %v12741 = vpack.c.b16 %v12725, %v12723
    %v12742 = vpack.c.b16 %v12726, %v12724
    %12759 = vmatprep.subr.bf16.mxu0 %v12728
    %12760 = vmatpush1.bf16.msra.mxu0 %v12727
    %12761 = vmatprep.subr.bf16.mxu0 %v12730
    %12762 = vmatpush1.bf16.msra.mxu0 %v12729
    %12763 = vmatprep.subr.bf16.mxu0 %v12732
    %12764 = vmatpush1.bf16.msra.mxu0 %v12731
    %12765 = vmatprep.subr.bf16.mxu0 %v12734
    %12766 = vmatpush1.bf16.msra.mxu0 %v12733
    %12767 = vmatprep.subr.bf16.mxu0 %v12736
    %12768 = vmatpush1.bf16.msra.mxu0 %v12735
    %12769 = vmatprep.subr.bf16.mxu0 %v12738
    %12770 = vmatpush1.bf16.msra.mxu0 %v12737
    %12771 = vmatprep.subr.bf16.mxu0 %v12740
    %12772 = vmatpush1.bf16.msra.mxu0 %v12739
    %12773 = vmatprep.subr.bf16.mxu0 %v12742
    %12774 = vmatpush1.bf16.msra.mxu0 %v12741
    %12775 = vmatprep.subr.bf16.mxu0 0
    %12776 = vmatpush1.bf16.msra.mxu0 0
    %12777 = vmatprep.subr.bf16.mxu0 0
    %12778 = vmatpush1.bf16.msra.mxu0 0
    %12779 = vmatprep.subr.bf16.mxu0 0
    %12780 = vmatpush1.bf16.msra.mxu0 0
    %12781 = vmatprep.subr.bf16.mxu0 0
    %12782 = vmatpush1.bf16.msra.mxu0 0
    %12783 = vmatprep.subr.bf16.mxu0 0
    %12784 = vmatpush1.bf16.msra.mxu0 0
    %12785 = vmatprep.subr.bf16.mxu0 0
    %12786 = vmatpush1.bf16.msra.mxu0 0
    %12787 = vmatprep.subr.bf16.mxu0 0
    %12788 = vmatpush1.bf16.msra.mxu0 0
    %12789 = vmatprep.subr.bf16.mxu0 0
    %12790 = vmatpush1.bf16.msra.mxu0 0
    %12791 = vmatprep.mubr.bf16.mxu0 0
    %12792 = vmatmul.mubr.bf16.gmra.mrb[0].mxu0 %v12650
    %v12793 = vpop.f32.mrb[0].mxu0
    %v12794 = vadd.f32 %v12672, %v12793
    %v12795 = vpop.f32.mrb[0].mxu0
    %v12796 = vadd.f32 %v12676, %v12795
    %v12797 = vpop.f32.mrb[0].mxu0
    %v12798 = vpop.f32.mrb[0].mxu0
    %12799 = vdwg.mxu0
    %v12800 = vmax.f32 %v12794, 0.0
    %v12801 = vmax.f32 %v12796, 0.0
    %v12802 = vpack.c.bf16 %v12800, %v12800
    %v12803 = vpack.c.bf16 %v12801, %v12801
    %v12804 = vld [vmem:[%s15] sm:$0xff]
    %v12805 = vld [vmem:[%s15 + $0x8] sm:$0xff]
    %v12806 = vld [vmem:[%s15 + $0x10] sm:$0xff]
    %v12807 = vld [vmem:[%s15 + $0x18] sm:$0xff]
    %v12808 = vld [vmem:[%s15 + $0x20] sm:$0xff]
    %v12809 = vld [vmem:[%s15 + $0x28] sm:$0xff]
    %v12810 = vld [vmem:[%s15 + $0x30] sm:$0xff]
    %v12811 = vld [vmem:[%s15 + $0x38] sm:$0xff]
    %v12812 = vld [vmem:[%s15 + $0x40] sm:$0xff]
    %v12813 = vld [vmem:[%s15 + $0x48] sm:$0xff]
    %v12814 = vld [vmem:[%s15 + $0x50] sm:$0xff]
    %v12815 = vld [vmem:[%s15 + $0x58] sm:$0xff]
    %v12816 = vld [vmem:[%s15 + $0x60] sm:$0xff]
    %v12817 = vld [vmem:[%s15 + $0x68] sm:$0xff]
    %v12818 = vld [vmem:[%s15 + $0x70] sm:$0xff]
    %v12819 = vld [vmem:[%s15 + $0x78] sm:$0xff]
    %v12820 = vld [vmem:[%s15 + $0x80] sm:$0xff]
    %v12821 = vld [vmem:[%s15 + $0x88] sm:$0xff]
    %v12822 = vld [vmem:[%s15 + $0x90] sm:$0xff]
    %v12823 = vld [vmem:[%s15 + $0x98] sm:$0xff]
    %v12824 = vld [vmem:[%s15 + $0xa0] sm:$0xff]
    %v12825 = vld [vmem:[%s15 + $0xa8] sm:$0xff]
    %v12826 = vld [vmem:[%s15 + $0xb0] sm:$0xff]
    %v12827 = vld [vmem:[%s15 + $0xb8] sm:$0xff]
    %v12828 = vld [vmem:[%s15 + $0xc0] sm:$0xff]
    %v12829 = vld [vmem:[%s15 + $0xc8] sm:$0xff]
    %v12830 = vld [vmem:[%s15 + $0xd0] sm:$0xff]
    %v12831 = vld [vmem:[%s15 + $0xd8] sm:$0xff]
    %v12832 = vld [vmem:[%s15 + $0xe0] sm:$0xff]
    %v12833 = vld [vmem:[%s15 + $0xe8] sm:$0xff]
    %v12834 = vld [vmem:[%s15 + $0xf0] sm:$0xff]
    %v12835 = vld [vmem:[%s15 + $0xf8] sm:$0xff]
    %v12836 = vld [vmem:[%s16] sm:$0x3]
    %v12838 = vlaneseq
    %v12839 = vshrl.u32 %v12838, 7
    %v12840 = vsub.s32 0, %v12839
    %v12841 = vrot.slane %v12836, %v12840
    %v12842 = vlaneseq
    %v12843 = vshrl.u32 %v12842, 7
    %v12844 = vsub.s32 1, %v12843
    %v12845 = vrot.slane %v12836, %v12844
    %v12880 = vunpack.c.l.b16 %v12804
    %v12881 = vunpack.c.h.b16 %v12804
    %v12882 = vunpack.c.l.b16 %v12805
    %v12883 = vunpack.c.h.b16 %v12805
    %v12884 = vunpack.c.l.b16 %v12806
    %v12885 = vunpack.c.h.b16 %v12806
    %v12886 = vunpack.c.l.b16 %v12807
    %v12887 = vunpack.c.h.b16 %v12807
    %v12888 = vunpack.c.l.b16 %v12808
    %v12889 = vunpack.c.h.b16 %v12808
    %v12890 = vunpack.c.l.b16 %v12809
    %v12891 = vunpack.c.h.b16 %v12809
    %v12892 = vunpack.c.l.b16 %v12810
    %v12893 = vunpack.c.h.b16 %v12810
    %v12894 = vunpack.c.l.b16 %v12811
    %v12895 = vunpack.c.h.b16 %v12811
    %v12896 = vunpack.c.l.b16 %v12812
    %v12897 = vunpack.c.h.b16 %v12812
    %v12898 = vunpack.c.l.b16 %v12813
    %v12899 = vunpack.c.h.b16 %v12813
    %v12900 = vunpack.c.l.b16 %v12814
    %v12901 = vunpack.c.h.b16 %v12814
    %v12902 = vunpack.c.l.b16 %v12815
    %v12903 = vunpack.c.h.b16 %v12815
    %v12904 = vunpack.c.l.b16 %v12816
    %v12905 = vunpack.c.h.b16 %v12816
    %v12906 = vunpack.c.l.b16 %v12817
    %v12907 = vunpack.c.h.b16 %v12817
    %v12908 = vunpack.c.l.b16 %v12818
    %v12909 = vunpack.c.h.b16 %v12818
    %v12910 = vunpack.c.l.b16 %v12819
    %v12911 = vunpack.c.h.b16 %v12819
    %v12912 = vunpack.c.l.b16 %v12820
    %v12913 = vunpack.c.h.b16 %v12820
    %v12914 = vunpack.c.l.b16 %v12821
    %v12915 = vunpack.c.h.b16 %v12821
    %v12916 = vunpack.c.l.b16 %v12822
    %v12917 = vunpack.c.h.b16 %v12822
    %v12918 = vunpack.c.l.b16 %v12823
    %v12919 = vunpack.c.h.b16 %v12823
    %v12920 = vunpack.c.l.b16 %v12824
    %v12921 = vunpack.c.h.b16 %v12824
    %v12922 = vunpack.c.l.b16 %v12825
    %v12923 = vunpack.c.h.b16 %v12825
    %v12924 = vunpack.c.l.b16 %v12826
    %v12925 = vunpack.c.h.b16 %v12826
    %v12926 = vunpack.c.l.b16 %v12827
    %v12927 = vunpack.c.h.b16 %v12827
    %v12928 = vunpack.c.l.b16 %v12828
    %v12929 = vunpack.c.h.b16 %v12828
    %v12930 = vunpack.c.l.b16 %v12829
    %v12931 = vunpack.c.h.b16 %v12829
    %v12932 = vunpack.c.l.b16 %v12830
    %v12933 = vunpack.c.h.b16 %v12830
    %v12934 = vunpack.c.l.b16 %v12831
    %v12935 = vunpack.c.h.b16 %v12831
    %v12936 = vunpack.c.l.b16 %v12832
    %v12937 = vunpack.c.h.b16 %v12832
    %v12938 = vunpack.c.l.b16 %v12833
    %v12939 = vunpack.c.h.b16 %v12833
    %v12940 = vunpack.c.l.b16 %v12834
    %v12941 = vunpack.c.h.b16 %v12834
    %v12942 = vunpack.c.l.b16 %v12835
    %v12943 = vunpack.c.h.b16 %v12835
    %v12944 = vpack.c.b16 %v12882, %v12880
    %v12945 = vpack.c.b16 %v12883, %v12881
    %v12946 = vpack.c.b16 %v12886, %v12884
    %v12947 = vpack.c.b16 %v12887, %v12885
    %v12948 = vpack.c.b16 %v12890, %v12888
    %v12949 = vpack.c.b16 %v12891, %v12889
    %v12950 = vpack.c.b16 %v12894, %v12892
    %v12951 = vpack.c.b16 %v12895, %v12893
    %v12952 = vpack.c.b16 %v12898, %v12896
    %v12953 = vpack.c.b16 %v12899, %v12897
    %v12954 = vpack.c.b16 %v12902, %v12900
    %v12955 = vpack.c.b16 %v12903, %v12901
    %v12956 = vpack.c.b16 %v12906, %v12904
    %v12957 = vpack.c.b16 %v12907, %v12905
    %v12958 = vpack.c.b16 %v12910, %v12908
    %v12959 = vpack.c.b16 %v12911, %v12909
    %v12960 = vpack.c.b16 %v12914, %v12912
    %v12961 = vpack.c.b16 %v12915, %v12913
    %v12962 = vpack.c.b16 %v12918, %v12916
    %v12963 = vpack.c.b16 %v12919, %v12917
    %v12964 = vpack.c.b16 %v12922, %v12920
    %v12965 = vpack.c.b16 %v12923, %v12921
    %v12966 = vpack.c.b16 %v12926, %v12924
    %v12967 = vpack.c.b16 %v12927, %v12925
    %v12968 = vpack.c.b16 %v12930, %v12928
    %v12969 = vpack.c.b16 %v12931, %v12929
    %v12970 = vpack.c.b16 %v12934, %v12932
    %v12971 = vpack.c.b16 %v12935, %v12933
    %v12972 = vpack.c.b16 %v12938, %v12936
    %v12973 = vpack.c.b16 %v12939, %v12937
    %v12974 = vpack.c.b16 %v12942, %v12940
    %v12975 = vpack.c.b16 %v12943, %v12941
    %13008 = vmatprep.subr.bf16.mxu0 %v12945
    %13009 = vmatpush1.bf16.msra.mxu0 %v12944
    %13010 = vmatprep.subr.bf16.mxu0 %v12947
    %13011 = vmatpush1.bf16.msra.mxu0 %v12946
    %13012 = vmatprep.subr.bf16.mxu0 %v12949
    %13013 = vmatpush1.bf16.msra.mxu0 %v12948
    %13014 = vmatprep.subr.bf16.mxu0 %v12951
    %13015 = vmatpush1.bf16.msra.mxu0 %v12950
    %13016 = vmatprep.subr.bf16.mxu0 %v12953
    %13017 = vmatpush1.bf16.msra.mxu0 %v12952
    %13018 = vmatprep.subr.bf16.mxu0 %v12955
    %13019 = vmatpush1.bf16.msra.mxu0 %v12954
    %13020 = vmatprep.subr.bf16.mxu0 %v12957
    %13021 = vmatpush1.bf16.msra.mxu0 %v12956
    %13022 = vmatprep.subr.bf16.mxu0 %v12959
    %13023 = vmatpush1.bf16.msra.mxu0 %v12958
    %13024 = vmatprep.subr.bf16.mxu0 %v12961
    %13025 = vmatpush1.bf16.msra.mxu0 %v12960
    %13026 = vmatprep.subr.bf16.mxu0 %v12963
    %13027 = vmatpush1.bf16.msra.mxu0 %v12962
    %13028 = vmatprep.subr.bf16.mxu0 %v12965
    %13029 = vmatpush1.bf16.msra.mxu0 %v12964
    %13030 = vmatprep.subr.bf16.mxu0 %v12967
    %13031 = vmatpush1.bf16.msra.mxu0 %v12966
    %13032 = vmatprep.subr.bf16.mxu0 %v12969
    %13033 = vmatpush1.bf16.msra.mxu0 %v12968
    %13034 = vmatprep.subr.bf16.mxu0 %v12971
    %13035 = vmatpush1.bf16.msra.mxu0 %v12970
    %13036 = vmatprep.subr.bf16.mxu0 %v12973
    %13037 = vmatpush1.bf16.msra.mxu0 %v12972
    %13038 = vmatprep.subr.bf16.mxu0 %v12975
    %13039 = vmatpush1.bf16.msra.mxu0 %v12974
    %13040 = vmatprep.mubr.bf16.mxu0 %v12803
    %13041 = vmatmul.mubr.bf16.gmra.mrb[0].mxu0 %v12802
    %v13042 = vpop.f32.mrb[0].mxu0
    %v13043 = vadd.f32 %v12841, %v13042
    %v13044 = vpop.f32.mrb[0].mxu0
    %v13045 = vadd.f32 %v12845, %v13044
    %v13046 = vpop.f32.mrb[0].mxu0
    %v13047 = vpop.f32.mrb[0].mxu0
    %13048 = vdwg.mxu0
    %v13051 = vcombine.low %v13043, %v13045
    %v13053 = vunpack.c.l.s4 1983009808
    %v13054 = vunpack.c.0.s8 %v13053
    %v13055 = vlaneseq
    %v13056 = vshrl.u32 %v13055, 7
    %v13057 = vsub.s32 %v13054, %v13056
    %v13058 = vrot.slane %v13051, %v13057
    %vm13060 = vcmask 60418
    %vm13061 = vmor %vm13060, %vm12610
    %13062 = vst.msk [vmem:[#allocation10] sm:$0xf] %vm13061, %v13058
    // Predicated region
    $region70: #{onet_forward.1} parent=1 // pred_check
      _
    $region71: #{onet_forward.1} parent=1 // pred_check_branch
      %13064 = sbr.rel (0) target = $region73
    $region72: #{onet_forward.1} parent=1 // pred_region
      %s13066 = ssub.s32 64, 64
      %13067 = vsyncadd [#allocation11], %s13066
      %s13069 = sshll.u32 [#allocation10], 4
      %s13070 = int_to_ptr.vmem [resolvable:$true] %s13069
      %13072 = dma.vmem_to_hbm [thread:$0]  %s13070, 64, %s17, [#allocation11]
    $region73: #{onet_forward.1} parent=1 // pred_fallthru
      _
    // Predicated region
    $region74: #{onet_forward.1} parent=1 // pred_check
      _
    $region75: #{onet_forward.1} parent=1 // pred_check_branch
      %13074 = sbr.rel (0) target = $region77
    $region76: #{onet_forward.1} parent=1 // pred_region
      %13075 = dma.done [#allocation11], 64
    $region77: #{onet_forward.1} parent=1 // pred_fallthru
      _
    %13076 = vsyncpa [#allocation11], 1

</llo_original>
